<compile_context>
chip_gen: v7x
topology: tpu7x:2x2x1
jax: 0.10.0
libtpu: 0.0.40
codegen_flags: <defaults>
</compile_context>

<pallas_src>
import math

import jax
import jax.numpy as jnp
from jax.experimental import pallas as pl
from jax.experimental.pallas import tpu as pltpu

# ----------------------------- model config ---------------------------------
B = 2
TV, H, W = 2, 4, 4            # visual: time, height, width
F_BINS, TA = 4, 8             # audio: freq bins, time
N_EMBD = 32
N_HEAD = 4
NV_SEL = 4                    # v_selector.num_selectors
NA_SEL = 4                    # a_selector.num_selectors
NUM_OFFSET_CLS = 21
DTYPE = jnp.float32


# -------------- math helpers (pure jnp; shared by kernel & reference) --------
def _ln(x, gamma, beta, eps=1e-5):
    x = x.astype(jnp.float32)
    mu = jnp.mean(x, axis=-1, keepdims=True)
    var = jnp.mean(jnp.square(x - mu), axis=-1, keepdims=True)
    return (x - mu) * jax.lax.rsqrt(var + eps) * gamma + beta


def _lin(x, w, b, act=None):
    y = jnp.dot(x, w, preferred_element_type=jnp.float32) + b
    if act == "relu":
        y = jnp.maximum(y, 0.0)
    return y


def _attn_core(q, k, v, n_head, wo, approx):
    """q: (Lq, D), k/v: (Lk, D).  Heads split via static lane slices."""
    D = q.shape[-1]
    dh = D // n_head
    scale = 1.0 / math.sqrt(dh)
    outs = []
    for h in range(n_head):
        sl = slice(h * dh, (h + 1) * dh)
        s = jax.lax.dot_general(q[:, sl], k[:, sl], (((1,), (1,)), ((), ())),
                                preferred_element_type=jnp.float32) * scale
        s = s - jnp.max(s, axis=-1, keepdims=True)
        e = jnp.exp(s)
        denom = jnp.sum(e, axis=-1, keepdims=True)
        r = pl.reciprocal(denom, approx=True) if approx else 1.0 / denom
        outs.append(jnp.dot(e * r, v[:, sl], preferred_element_type=jnp.float32))
    o = jnp.concatenate(outs, axis=-1)
    return _lin(o, *wo)


def _self_attn(x, p, n_head, approx):
    D = x.shape[-1]
    qkv = _lin(x, *p["wqkv"])                      # fused (L, 3D) projection
    q, k, v = qkv[:, :D], qkv[:, D:2 * D], qkv[:, 2 * D:]
    return _attn_core(q, k, v, n_head, p["wo"], approx)


def _cross_attn(q_in, kv_in, p, n_head, approx):
    D = q_in.shape[-1]
    q = _lin(q_in, *p["wq"])
    kv = _lin(kv_in, *p["wkv"])                    # fused (Lk, 2D) projection
    k, v = kv[:, :D], kv[:, D:]
    return _attn_core(q, k, v, n_head, p["wo"], approx)


def _selector(p, ctx, n_head, approx):
    """Learned-query transformer decoder (self-attn, cross-attn, FFN; post-norm)."""
    s = p["selectors"]
    s = _ln(s + _self_attn(s, p["self_attn"], n_head, approx), *p["norm1"])
    s = _ln(s + _cross_attn(s, ctx, p["cross_attn"], n_head, approx), *p["norm2"])
    h = _lin(s, *p["ffn1"], act="relu")
    s = _ln(s + _lin(h, *p["ffn2"]), *p["norm3"])
    return s


def _encoder_layer(p, x, n_head, approx):
    """PyTorch nn.TransformerEncoderLayer semantics (post-norm, ReLU, dropout=eval)."""
    x = _ln(x + _self_attn(x, p["self_attn"], n_head, approx), *p["norm1"])
    h = _lin(x, *p["lin1"], act="relu")
    x = _ln(x + _lin(h, *p["lin2"]), *p["norm2"])
    return x


# ------------------- weight packing for the fused kernel ---------------------
def _ln2(p):
    g, b = p
    return (g.reshape(1, -1), b.reshape(1, -1))


def _dense2(p):
    w, b = p
    return (w, b.reshape(1, -1))


def _pack_self_mha(p):
    wq, bq = p["wq"]; wk, bk = p["wk"]; wv, bv = p["wv"]
    return {"wqkv": (jnp.concatenate([wq, wk, wv], axis=1),
                     jnp.concatenate([bq, bk, bv]).reshape(1, -1)),
            "wo": _dense2(p["wo"])}


def _pack_cross_mha(p):
    wk, bk = p["wk"]; wv, bv = p["wv"]
    return {"wq": _dense2(p["wq"]),
            "wkv": (jnp.concatenate([wk, wv], axis=1),
                    jnp.concatenate([bk, bv]).reshape(1, -1)),
            "wo": _dense2(p["wo"])}


def _pack_selector(p):
    return {"selectors": p["selectors"],
            "self_attn": _pack_self_mha(p["self_attn"]),
            "cross_attn": _pack_cross_mha(p["cross_attn"]),
            "ffn1": _dense2(p["ffn1"]), "ffn2": _dense2(p["ffn2"]),
            "norm1": _ln2(p["norm1"]), "norm2": _ln2(p["norm2"]),
            "norm3": _ln2(p["norm3"])}


def pack_params(params, d):
    """Reshape / fuse raw params into the kernel-side layout (2-D leaves only)."""
    gv, bv = params["glob_ln_vis"]; ga, ba = params["glob_ln_aud"]
    # Per-row affine for the concatenated (vis || aud) selector slab: one
    # row-wise LayerNorm replaces split + two separate LNs inside the kernel.
    glob_gamma = jnp.concatenate(
        [jnp.broadcast_to(gv.reshape(1, -1), (NV_SEL, d)),
         jnp.broadcast_to(ga.reshape(1, -1), (NA_SEL, d))], axis=0)
    glob_beta = jnp.concatenate(
        [jnp.broadcast_to(bv.reshape(1, -1), (NV_SEL, d)),
         jnp.broadcast_to(ba.reshape(1, -1), (NA_SEL, d))], axis=0)
    return {
        "pre_ln_vis": _ln2(params["pre_ln_vis"]),
        "pre_ln_aud": _ln2(params["pre_ln_aud"]),
        "vis_pos_emb": params["vis_pos_emb"].reshape(-1, d),
        "aud_pos_emb": params["aud_pos_emb"].reshape(-1, d),
        "v_selector": _pack_selector(params["v_selector"]),
        "a_selector": _pack_selector(params["a_selector"]),
        "mixer": {"self_attn": _pack_self_mha(params["mixer"]["self_attn"]),
                  "lin1": _dense2(params["mixer"]["lin1"]),
                  "lin2": _dense2(params["mixer"]["lin2"]),
                  "norm1": _ln2(params["mixer"]["norm1"]),
                  "norm2": _ln2(params["mixer"]["norm2"])},
        "glob_gamma": glob_gamma,
        "glob_beta": glob_beta,
        "off_head": _dense2(params["off_head"]),
    }


# ----------------------------- the fused kernel -------------------------------
def _make_kernel(treedef, n_leaves, n_head, nv_sel, na_sel, d):
    n_sel = nv_sel + na_sel

    def kernel(*refs):
        vis_ref, aud_ref = refs[0], refs[1]
        w_refs = refs[2:2 + n_leaves]
        o_ref = refs[2 + n_leaves]
        sel_buf = refs[3 + n_leaves]              # VMEM scratch (n_sel, d)

        # All weights are tiny -> load the whole tree into VMEM-resident values.
        p = jax.tree_util.tree_unflatten(treedef, [r[...] for r in w_refs])

        # pre-norm + learned additive positional embeddings
        vis_ctx = _ln(vis_ref[0], *p["pre_ln_vis"]) + p["vis_pos_emb"]
        aud_ctx = _ln(aud_ref[0], *p["pre_ln_aud"]) + p["aud_pos_emb"]

        # feature selectors (cascade_selection == 0 path)
        vis_sel = _selector(p["v_selector"], vis_ctx, n_head, approx=True)
        aud_sel = _selector(p["a_selector"], aud_ctx, n_head, approx=True)

        # FeatureSelectorMixingTransformer: concat -> 1-layer TransformerEncoder
        all_sel = jnp.concatenate([vis_sel, aud_sel], axis=0)
        mixed = _encoder_layer(p["mixer"], all_sel, n_head, approx=True)
        # TODO(synk): mixed_selector_cfg's optional per-modality re-selection
        # stage (use_selector branch) is config-instantiated and not provided;
        # ablated here.

        # GlobalMLP LayerNorms fused into one row-wise affine LN (dropout=eval)
        sel_buf[...] = _ln(mixed, p["glob_gamma"], p["glob_beta"])

        # off_head: Linear(n_sel*d -> num_cls) on the flattened selector slab,
        # expressed as a sum of per-row (1,d)@(d,num_cls) dots to avoid an
        # in-kernel sublane->lane reshape.
        w_off, b_off = p["off_head"]
        logits = b_off
        for t in range(n_sel):
            logits = logits + jnp.dot(sel_buf[t:t + 1, :],
                                      w_off[t * d:(t + 1) * d, :],
                                      preferred_element_type=jnp.float32)
        o_ref[0] = logits.astype(o_ref.dtype)

    return kernel


def sparse_sync_forward(params, vis, aud):
    Bv, Tv, Dv, Hh, Ww = vis.shape
    _, Da, Ff, Ta = aud.shape
    assert Da == Dv, f"bridge needed: {Da} vs {Dv}"
    D = Dv
    Lv, La = Tv * Hh * Ww, Ff * Ta

    # permutes as in the reference, flattened to channel-last token slabs
    vis_tok = jnp.transpose(vis, (0, 1, 3, 4, 2)).reshape(Bv, Lv, D)
    aud_tok = jnp.transpose(aud, (0, 2, 3, 1)).reshape(Bv, La, D)

    kp = pack_params(params, D)
    leaves, treedef = jax.tree_util.tree_flatten(kp)
    kernel = _make_kernel(treedef, len(leaves), N_HEAD, NV_SEL, NA_SEL, D)

    # every weight: full-array block, same block for every grid step
    weight_specs = [
        pl.BlockSpec(leaf.shape, (lambda b, n=leaf.ndim: (0,) * n))
        for leaf in leaves
    ]

    out = pl.pallas_call(
        kernel,
        out_shape=jax.ShapeDtypeStruct((Bv, 1, NUM_OFFSET_CLS), vis.dtype),
        grid=(Bv,),
        in_specs=[pl.BlockSpec((1, Lv, D), lambda b: (b, 0, 0)),
                  pl.BlockSpec((1, La, D), lambda b: (b, 0, 0))] + weight_specs,
        out_specs=pl.BlockSpec((1, 1, NUM_OFFSET_CLS), lambda b: (b, 0, 0)),
        scratch_shapes=[pltpu.VMEM((NV_SEL + NA_SEL, D), jnp.float32)],
        compiler_params=pltpu.CompilerParams(
            dimension_semantics=("parallel",)),   # v7x: split batch over 2 TCs
    )(vis_tok, aud_tok, *leaves)
    return out[:, 0, :]


# ----------------------- pure-JAX reference (validation) ----------------------
def sparse_sync_reference(params, vis, aud):
    Bv, Tv, Dv, Hh, Ww = vis.shape
    _, Da, Ff, Ta = aud.shape
    D = Dv
    vis_tok = jnp.transpose(vis, (0, 1, 3, 4, 2)).reshape(Bv, Tv * Hh * Ww, D)
    aud_tok = jnp.transpose(aud, (0, 2, 3, 1)).reshape(Bv, Ff * Ta, D)
    kp = pack_params(params, D)
    outs = []
    for b in range(Bv):
        vctx = _ln(vis_tok[b], *kp["pre_ln_vis"]) + kp["vis_pos_emb"]
        actx = _ln(aud_tok[b], *kp["pre_ln_aud"]) + kp["aud_pos_emb"]
        vs = _selector(kp["v_selector"], vctx, N_HEAD, approx=False)
        au = _selector(kp["a_selector"], actx, N_HEAD, approx=False)
        mixed = _encoder_layer(kp["mixer"], jnp.concatenate([vs, au], axis=0),
                               N_HEAD, approx=False)
        selg = _ln(mixed, kp["glob_gamma"], kp["glob_beta"])
        w_off, b_off = kp["off_head"]
        outs.append((selg.reshape(1, -1) @ w_off + b_off)[0])
    return jnp.stack(outs)


# ----------------------------- parameter init --------------------------------
def _dense(key, din, dout):
    w = (jax.random.normal(key, (din, dout), DTYPE) * 0.02).astype(DTYPE)
    b = jnp.zeros((dout,), DTYPE)
    return (w, b)


def _ln_param(d):
    return (jnp.ones((d,), DTYPE), jnp.zeros((d,), DTYPE))


def _mha_params(key, d):
    kq, kk, kv, ko = jax.random.split(key, 4)
    return {"wq": _dense(kq, d, d), "wk": _dense(kk, d, d),
            "wv": _dense(kv, d, d), "wo": _dense(ko, d, d)}


def _selector_params(key, d, n_sel):
    k1, k2, k3, k4, k5 = jax.random.split(key, 5)
    return {
        "selectors": (jax.random.normal(k1, (n_sel, d), DTYPE) * 0.02).astype(DTYPE),
        "self_attn": _mha_params(k2, d),
        "cross_attn": _mha_params(k3, d),
        "ffn1": _dense(k4, d, 4 * d),
        "ffn2": _dense(k5, 4 * d, d),
        "norm1": _ln_param(d), "norm2": _ln_param(d), "norm3": _ln_param(d),
    }


def init_params(key):
    d = N_EMBD
    keys = jax.random.split(key, 8)
    return {
        "pre_ln_vis": _ln_param(d),
        "pre_ln_aud": _ln_param(d),
        "vis_pos_emb": (jax.random.normal(keys[0], (1, TV * H * W, d), DTYPE) * 0.02).astype(DTYPE),
        "aud_pos_emb": (jax.random.normal(keys[1], (1, F_BINS * TA, d), DTYPE) * 0.02).astype(DTYPE),
        "v_selector": _selector_params(keys[2], d, NV_SEL),
        "a_selector": _selector_params(keys[3], d, NA_SEL),
        "mixer": {
            "self_attn": _mha_params(keys[4], d),
            "lin1": _dense(keys[5], d, 4 * d),
            "lin2": _dense(keys[6], 4 * d, d),
            "norm1": _ln_param(d), "norm2": _ln_param(d),
        },
        "glob_ln_vis": _ln_param(d),
        "glob_ln_aud": _ln_param(d),
        "off_head": _dense(keys[7], (NV_SEL + NA_SEL) * d, NUM_OFFSET_CLS),
    }


# --------------------------------- main ---------------------------------------
if __name__ == "__main__":
    root = jax.random.PRNGKey(0)
    k_vis, k_aud, k_par = jax.random.split(root, 3)

    vis = jax.random.normal(k_vis, (B, TV, N_EMBD, H, W), DTYPE)    # (B, Tv, Dv, H, W)
    aud = jax.random.normal(k_aud, (B, N_EMBD, F_BINS, TA), DTYPE)  # (B, Da, F, Ta)
    params = init_params(k_par)

    fwd = jax.jit(sparse_sync_forward)
    logits = fwd(params, vis, aud)
    jax.block_until_ready(logits)

    assert logits.shape == (B, NUM_OFFSET_CLS), logits.shape
    assert bool(jnp.all(jnp.isfinite(logits)))

    # validate the fused Pallas kernel against a pure-JAX forward of same math
    ref = jax.jit(sparse_sync_reference)(params, vis, aud)
    jax.block_until_ready(ref)
    assert bool(jnp.allclose(logits, ref, atol=5e-3, rtol=5e-2)), (
        float(jnp.max(jnp.abs(logits - ref))))

    print("KERNEL_OK")
</pallas_src>

<mosaic_0001>
module attributes {stable_mosaic.version = 11 : i64} {
  func.func @kernel(%arg0: i32, %arg1: memref<1x32x32xf32, #tpu.memory_space<vmem>>, %arg2: memref<1x32x32xf32, #tpu.memory_space<vmem>>, %arg3: memref<32x64xf32, #tpu.memory_space<vmem>>, %arg4: memref<1x64xf32, #tpu.memory_space<vmem>>, %arg5: memref<32x32xf32, #tpu.memory_space<vmem>>, %arg6: memref<1x32xf32, #tpu.memory_space<vmem>>, %arg7: memref<32x32xf32, #tpu.memory_space<vmem>>, %arg8: memref<1x32xf32, #tpu.memory_space<vmem>>, %arg9: memref<32x128xf32, #tpu.memory_space<vmem>>, %arg10: memref<1x128xf32, #tpu.memory_space<vmem>>, %arg11: memref<128x32xf32, #tpu.memory_space<vmem>>, %arg12: memref<1x32xf32, #tpu.memory_space<vmem>>, %arg13: memref<1x32xf32, #tpu.memory_space<vmem>>, %arg14: memref<1x32xf32, #tpu.memory_space<vmem>>, %arg15: memref<1x32xf32, #tpu.memory_space<vmem>>, %arg16: memref<1x32xf32, #tpu.memory_space<vmem>>, %arg17: memref<1x32xf32, #tpu.memory_space<vmem>>, %arg18: memref<1x32xf32, #tpu.memory_space<vmem>>, %arg19: memref<4x32xf32, #tpu.memory_space<vmem>>, %arg20: memref<32x32xf32, #tpu.memory_space<vmem>>, %arg21: memref<1x32xf32, #tpu.memory_space<vmem>>, %arg22: memref<32x96xf32, #tpu.memory_space<vmem>>, %arg23: memref<1x96xf32, #tpu.memory_space<vmem>>, %arg24: memref<32x32xf32, #tpu.memory_space<vmem>>, %arg25: memref<8x32xf32, #tpu.memory_space<vmem>>, %arg26: memref<8x32xf32, #tpu.memory_space<vmem>>, %arg27: memref<32x128xf32, #tpu.memory_space<vmem>>, %arg28: memref<1x128xf32, #tpu.memory_space<vmem>>, %arg29: memref<128x32xf32, #tpu.memory_space<vmem>>, %arg30: memref<1x32xf32, #tpu.memory_space<vmem>>, %arg31: memref<1x32xf32, #tpu.memory_space<vmem>>, %arg32: memref<1x32xf32, #tpu.memory_space<vmem>>, %arg33: memref<1x32xf32, #tpu.memory_space<vmem>>, %arg34: memref<1x32xf32, #tpu.memory_space<vmem>>, %arg35: memref<32x32xf32, #tpu.memory_space<vmem>>, %arg36: memref<1x32xf32, #tpu.memory_space<vmem>>, %arg37: memref<32x96xf32, #tpu.memory_space<vmem>>, %arg38: memref<1x96xf32, #tpu.memory_space<vmem>>, %arg39: memref<256x21xf32, #tpu.memory_space<vmem>>, %arg40: memref<1x21xf32, #tpu.memory_space<vmem>>, %arg41: memref<1x32xf32, #tpu.memory_space<vmem>>, %arg42: memref<1x32xf32, #tpu.memory_space<vmem>>, %arg43: memref<1x32xf32, #tpu.memory_space<vmem>>, %arg44: memref<1x32xf32, #tpu.memory_space<vmem>>, %arg45: memref<32x64xf32, #tpu.memory_space<vmem>>, %arg46: memref<1x64xf32, #tpu.memory_space<vmem>>, %arg47: memref<32x32xf32, #tpu.memory_space<vmem>>, %arg48: memref<1x32xf32, #tpu.memory_space<vmem>>, %arg49: memref<32x32xf32, #tpu.memory_space<vmem>>, %arg50: memref<1x32xf32, #tpu.memory_space<vmem>>, %arg51: memref<32x128xf32, #tpu.memory_space<vmem>>, %arg52: memref<1x128xf32, #tpu.memory_space<vmem>>, %arg53: memref<128x32xf32, #tpu.memory_space<vmem>>, %arg54: memref<1x32xf32, #tpu.memory_space<vmem>>, %arg55: memref<1x32xf32, #tpu.memory_space<vmem>>, %arg56: memref<1x32xf32, #tpu.memory_space<vmem>>, %arg57: memref<1x32xf32, #tpu.memory_space<vmem>>, %arg58: memref<1x32xf32, #tpu.memory_space<vmem>>, %arg59: memref<1x32xf32, #tpu.memory_space<vmem>>, %arg60: memref<1x32xf32, #tpu.memory_space<vmem>>, %arg61: memref<4x32xf32, #tpu.memory_space<vmem>>, %arg62: memref<32x32xf32, #tpu.memory_space<vmem>>, %arg63: memref<1x32xf32, #tpu.memory_space<vmem>>, %arg64: memref<32x96xf32, #tpu.memory_space<vmem>>, %arg65: memref<1x96xf32, #tpu.memory_space<vmem>>, %arg66: memref<32x32xf32, #tpu.memory_space<vmem>>, %arg67: memref<1x1x21xf32, #tpu.memory_space<vmem>>, %arg68: memref<8x32xf32, #tpu.memory_space<vmem>>) attributes {dimension_semantics = [#tpu.dimension_semantics<parallel>], iteration_bounds = array<i64: 2>, scalar_prefetch = 0 : i64, scratch_operands = 1 : i64, tpu.core_type = #tpu.core_type<tc>, window_params = [{transform_indices = @transform_0, window_bounds = array<i64: 1, 32, 32>}, {transform_indices = @transform_1, window_bounds = array<i64: 1, 32, 32>}, {pipeline_mode = #tpu.pipeline_mode<synchronous>, transform_indices = @transform_2, window_bounds = array<i64: 32, 64>}, {pipeline_mode = #tpu.pipeline_mode<synchronous>, transform_indices = @transform_3, window_bounds = array<i64: 1, 64>}, {pipeline_mode = #tpu.pipeline_mode<synchronous>, transform_indices = @transform_4, window_bounds = array<i64: 32, 32>}, {pipeline_mode = #tpu.pipeline_mode<synchronous>, transform_indices = @transform_5, window_bounds = array<i64: 1, 32>}, {pipeline_mode = #tpu.pipeline_mode<synchronous>, transform_indices = @transform_6, window_bounds = array<i64: 32, 32>}, {pipeline_mode = #tpu.pipeline_mode<synchronous>, transform_indices = @transform_7, window_bounds = array<i64: 1, 32>}, {pipeline_mode = #tpu.pipeline_mode<synchronous>, transform_indices = @transform_8, window_bounds = array<i64: 32, 128>}, {pipeline_mode = #tpu.pipeline_mode<synchronous>, transform_indices = @transform_9, window_bounds = array<i64: 1, 128>}, {pipeline_mode = #tpu.pipeline_mode<synchronous>, transform_indices = @transform_10, window_bounds = array<i64: 128, 32>}, {pipeline_mode = #tpu.pipeline_mode<synchronous>, transform_indices = @transform_11, window_bounds = array<i64: 1, 32>}, {pipeline_mode = #tpu.pipeline_mode<synchronous>, transform_indices = @transform_12, window_bounds = array<i64: 1, 32>}, {pipeline_mode = #tpu.pipeline_mode<synchronous>, transform_indices = @transform_13, window_bounds = array<i64: 1, 32>}, {pipeline_mode = #tpu.pipeline_mode<synchronous>, transform_indices = @transform_14, window_bounds = array<i64: 1, 32>}, {pipeline_mode = #tpu.pipeline_mode<synchronous>, transform_indices = @transform_15, window_bounds = array<i64: 1, 32>}, {pipeline_mode = #tpu.pipeline_mode<synchronous>, transform_indices = @transform_16, window_bounds = array<i64: 1, 32>}, {pipeline_mode = #tpu.pipeline_mode<synchronous>, transform_indices = @transform_17, window_bounds = array<i64: 1, 32>}, {pipeline_mode = #tpu.pipeline_mode<synchronous>, transform_indices = @transform_18, window_bounds = array<i64: 4, 32>}, {pipeline_mode = #tpu.pipeline_mode<synchronous>, transform_indices = @transform_19, window_bounds = array<i64: 32, 32>}, {pipeline_mode = #tpu.pipeline_mode<synchronous>, transform_indices = @transform_20, window_bounds = array<i64: 1, 32>}, {pipeline_mode = #tpu.pipeline_mode<synchronous>, transform_indices = @transform_21, window_bounds = array<i64: 32, 96>}, {pipeline_mode = #tpu.pipeline_mode<synchronous>, transform_indices = @transform_22, window_bounds = array<i64: 1, 96>}, {pipeline_mode = #tpu.pipeline_mode<synchronous>, transform_indices = @transform_23, window_bounds = array<i64: 32, 32>}, {pipeline_mode = #tpu.pipeline_mode<synchronous>, transform_indices = @transform_24, window_bounds = array<i64: 8, 32>}, {pipeline_mode = #tpu.pipeline_mode<synchronous>, transform_indices = @transform_25, window_bounds = array<i64: 8, 32>}, {pipeline_mode = #tpu.pipeline_mode<synchronous>, transform_indices = @transform_26, window_bounds = array<i64: 32, 128>}, {pipeline_mode = #tpu.pipeline_mode<synchronous>, transform_indices = @transform_27, window_bounds = array<i64: 1, 128>}, {pipeline_mode = #tpu.pipeline_mode<synchronous>, transform_indices = @transform_28, window_bounds = array<i64: 128, 32>}, {pipeline_mode = #tpu.pipeline_mode<synchronous>, transform_indices = @transform_29, window_bounds = array<i64: 1, 32>}, {pipeline_mode = #tpu.pipeline_mode<synchronous>, transform_indices = @transform_30, window_bounds = array<i64: 1, 32>}, {pipeline_mode = #tpu.pipeline_mode<synchronous>, transform_indices = @transform_31, window_bounds = array<i64: 1, 32>}, {pipeline_mode = #tpu.pipeline_mode<synchronous>, transform_indices = @transform_32, window_bounds = array<i64: 1, 32>}, {pipeline_mode = #tpu.pipeline_mode<synchronous>, transform_indices = @transform_33, window_bounds = array<i64: 1, 32>}, {pipeline_mode = #tpu.pipeline_mode<synchronous>, transform_indices = @transform_34, window_bounds = array<i64: 32, 32>}, {pipeline_mode = #tpu.pipeline_mode<synchronous>, transform_indices = @transform_35, window_bounds = array<i64: 1, 32>}, {pipeline_mode = #tpu.pipeline_mode<synchronous>, transform_indices = @transform_36, window_bounds = array<i64: 32, 96>}, {pipeline_mode = #tpu.pipeline_mode<synchronous>, transform_indices = @transform_37, window_bounds = array<i64: 1, 96>}, {pipeline_mode = #tpu.pipeline_mode<synchronous>, transform_indices = @transform_38, window_bounds = array<i64: 256, 21>}, {pipeline_mode = #tpu.pipeline_mode<synchronous>, transform_indices = @transform_39, window_bounds = array<i64: 1, 21>}, {pipeline_mode = #tpu.pipeline_mode<synchronous>, transform_indices = @transform_40, window_bounds = array<i64: 1, 32>}, {pipeline_mode = #tpu.pipeline_mode<synchronous>, transform_indices = @transform_41, window_bounds = array<i64: 1, 32>}, {pipeline_mode = #tpu.pipeline_mode<synchronous>, transform_indices = @transform_42, window_bounds = array<i64: 1, 32>}, {pipeline_mode = #tpu.pipeline_mode<synchronous>, transform_indices = @transform_43, window_bounds = array<i64: 1, 32>}, {pipeline_mode = #tpu.pipeline_mode<synchronous>, transform_indices = @transform_44, window_bounds = array<i64: 32, 64>}, {pipeline_mode = #tpu.pipeline_mode<synchronous>, transform_indices = @transform_45, window_bounds = array<i64: 1, 64>}, {pipeline_mode = #tpu.pipeline_mode<synchronous>, transform_indices = @transform_46, window_bounds = array<i64: 32, 32>}, {pipeline_mode = #tpu.pipeline_mode<synchronous>, transform_indices = @transform_47, window_bounds = array<i64: 1, 32>}, {pipeline_mode = #tpu.pipeline_mode<synchronous>, transform_indices = @transform_48, window_bounds = array<i64: 32, 32>}, {pipeline_mode = #tpu.pipeline_mode<synchronous>, transform_indices = @transform_49, window_bounds = array<i64: 1, 32>}, {pipeline_mode = #tpu.pipeline_mode<synchronous>, transform_indices = @transform_50, window_bounds = array<i64: 32, 128>}, {pipeline_mode = #tpu.pipeline_mode<synchronous>, transform_indices = @transform_51, window_bounds = array<i64: 1, 128>}, {pipeline_mode = #tpu.pipeline_mode<synchronous>, transform_indices = @transform_52, window_bounds = array<i64: 128, 32>}, {pipeline_mode = #tpu.pipeline_mode<synchronous>, transform_indices = @transform_53, window_bounds = array<i64: 1, 32>}, {pipeline_mode = #tpu.pipeline_mode<synchronous>, transform_indices = @transform_54, window_bounds = array<i64: 1, 32>}, {pipeline_mode = #tpu.pipeline_mode<synchronous>, transform_indices = @transform_55, window_bounds = array<i64: 1, 32>}, {pipeline_mode = #tpu.pipeline_mode<synchronous>, transform_indices = @transform_56, window_bounds = array<i64: 1, 32>}, {pipeline_mode = #tpu.pipeline_mode<synchronous>, transform_indices = @transform_57, window_bounds = array<i64: 1, 32>}, {pipeline_mode = #tpu.pipeline_mode<synchronous>, transform_indices = @transform_58, window_bounds = array<i64: 1, 32>}, {pipeline_mode = #tpu.pipeline_mode<synchronous>, transform_indices = @transform_59, window_bounds = array<i64: 1, 32>}, {pipeline_mode = #tpu.pipeline_mode<synchronous>, transform_indices = @transform_60, window_bounds = array<i64: 4, 32>}, {pipeline_mode = #tpu.pipeline_mode<synchronous>, transform_indices = @transform_61, window_bounds = array<i64: 32, 32>}, {pipeline_mode = #tpu.pipeline_mode<synchronous>, transform_indices = @transform_62, window_bounds = array<i64: 1, 32>}, {pipeline_mode = #tpu.pipeline_mode<synchronous>, transform_indices = @transform_63, window_bounds = array<i64: 32, 96>}, {pipeline_mode = #tpu.pipeline_mode<synchronous>, transform_indices = @transform_64, window_bounds = array<i64: 1, 96>}, {pipeline_mode = #tpu.pipeline_mode<synchronous>, transform_indices = @transform_65, window_bounds = array<i64: 32, 32>}, {transform_indices = @transform_66, window_bounds = array<i64: 1, 1, 21>}]} {
    %c0 = arith.constant 0 : index
    %c0_0 = arith.constant 0 : index
    %0 = vector.load %arg3[%c0, %c0_0] : memref<32x64xf32, #tpu.memory_space<vmem>>, vector<32x64xf32>
    %c0_1 = arith.constant 0 : index
    %c0_2 = arith.constant 0 : index
    %1 = vector.load %arg4[%c0_1, %c0_2] : memref<1x64xf32, #tpu.memory_space<vmem>>, vector<1x64xf32>
    %c0_3 = arith.constant 0 : index
    %c0_4 = arith.constant 0 : index
    %2 = vector.load %arg5[%c0_3, %c0_4] : memref<32x32xf32, #tpu.memory_space<vmem>>, vector<32x32xf32>
    %c0_5 = arith.constant 0 : index
    %c0_6 = arith.constant 0 : index
    %3 = vector.load %arg6[%c0_5, %c0_6] : memref<1x32xf32, #tpu.memory_space<vmem>>, vector<1x32xf32>
    %c0_7 = arith.constant 0 : index
    %c0_8 = arith.constant 0 : index
    %4 = vector.load %arg7[%c0_7, %c0_8] : memref<32x32xf32, #tpu.memory_space<vmem>>, vector<32x32xf32>
    %c0_9 = arith.constant 0 : index
    %c0_10 = arith.constant 0 : index
    %5 = vector.load %arg8[%c0_9, %c0_10] : memref<1x32xf32, #tpu.memory_space<vmem>>, vector<1x32xf32>
    %c0_11 = arith.constant 0 : index
    %c0_12 = arith.constant 0 : index
    %6 = vector.load %arg9[%c0_11, %c0_12] : memref<32x128xf32, #tpu.memory_space<vmem>>, vector<32x128xf32>
    %c0_13 = arith.constant 0 : index
    %c0_14 = arith.constant 0 : index
    %7 = vector.load %arg10[%c0_13, %c0_14] : memref<1x128xf32, #tpu.memory_space<vmem>>, vector<1x128xf32>
    %c0_15 = arith.constant 0 : index
    %c0_16 = arith.constant 0 : index
    %8 = vector.load %arg11[%c0_15, %c0_16] : memref<128x32xf32, #tpu.memory_space<vmem>>, vector<128x32xf32>
    %c0_17 = arith.constant 0 : index
    %c0_18 = arith.constant 0 : index
    %9 = vector.load %arg12[%c0_17, %c0_18] : memref<1x32xf32, #tpu.memory_space<vmem>>, vector<1x32xf32>
    %c0_19 = arith.constant 0 : index
    %c0_20 = arith.constant 0 : index
    %10 = vector.load %arg13[%c0_19, %c0_20] : memref<1x32xf32, #tpu.memory_space<vmem>>, vector<1x32xf32>
    %c0_21 = arith.constant 0 : index
    %c0_22 = arith.constant 0 : index
    %11 = vector.load %arg14[%c0_21, %c0_22] : memref<1x32xf32, #tpu.memory_space<vmem>>, vector<1x32xf32>
    %c0_23 = arith.constant 0 : index
    %c0_24 = arith.constant 0 : index
    %12 = vector.load %arg15[%c0_23, %c0_24] : memref<1x32xf32, #tpu.memory_space<vmem>>, vector<1x32xf32>
    %c0_25 = arith.constant 0 : index
    %c0_26 = arith.constant 0 : index
    %13 = vector.load %arg16[%c0_25, %c0_26] : memref<1x32xf32, #tpu.memory_space<vmem>>, vector<1x32xf32>
    %c0_27 = arith.constant 0 : index
    %c0_28 = arith.constant 0 : index
    %14 = vector.load %arg17[%c0_27, %c0_28] : memref<1x32xf32, #tpu.memory_space<vmem>>, vector<1x32xf32>
    %c0_29 = arith.constant 0 : index
    %c0_30 = arith.constant 0 : index
    %15 = vector.load %arg18[%c0_29, %c0_30] : memref<1x32xf32, #tpu.memory_space<vmem>>, vector<1x32xf32>
    %c0_31 = arith.constant 0 : index
    %c0_32 = arith.constant 0 : index
    %16 = vector.load %arg19[%c0_31, %c0_32] : memref<4x32xf32, #tpu.memory_space<vmem>>, vector<4x32xf32>
    %c0_33 = arith.constant 0 : index
    %c0_34 = arith.constant 0 : index
    %17 = vector.load %arg20[%c0_33, %c0_34] : memref<32x32xf32, #tpu.memory_space<vmem>>, vector<32x32xf32>
    %c0_35 = arith.constant 0 : index
    %c0_36 = arith.constant 0 : index
    %18 = vector.load %arg21[%c0_35, %c0_36] : memref<1x32xf32, #tpu.memory_space<vmem>>, vector<1x32xf32>
    %c0_37 = arith.constant 0 : index
    %c0_38 = arith.constant 0 : index
    %19 = vector.load %arg22[%c0_37, %c0_38] : memref<32x96xf32, #tpu.memory_space<vmem>>, vector<32x96xf32>
    %c0_39 = arith.constant 0 : index
    %c0_40 = arith.constant 0 : index
    %20 = vector.load %arg23[%c0_39, %c0_40] : memref<1x96xf32, #tpu.memory_space<vmem>>, vector<1x96xf32>
    %c0_41 = arith.constant 0 : index
    %c0_42 = arith.constant 0 : index
    %21 = vector.load %arg24[%c0_41, %c0_42] : memref<32x32xf32, #tpu.memory_space<vmem>>, vector<32x32xf32>
    %c0_43 = arith.constant 0 : index
    %c0_44 = arith.constant 0 : index
    %22 = vector.load %arg25[%c0_43, %c0_44] : memref<8x32xf32, #tpu.memory_space<vmem>>, vector<8x32xf32>
    %c0_45 = arith.constant 0 : index
    %c0_46 = arith.constant 0 : index
    %23 = vector.load %arg26[%c0_45, %c0_46] : memref<8x32xf32, #tpu.memory_space<vmem>>, vector<8x32xf32>
    %c0_47 = arith.constant 0 : index
    %c0_48 = arith.constant 0 : index
    %24 = vector.load %arg27[%c0_47, %c0_48] : memref<32x128xf32, #tpu.memory_space<vmem>>, vector<32x128xf32>
    %c0_49 = arith.constant 0 : index
    %c0_50 = arith.constant 0 : index
    %25 = vector.load %arg28[%c0_49, %c0_50] : memref<1x128xf32, #tpu.memory_space<vmem>>, vector<1x128xf32>
    %c0_51 = arith.constant 0 : index
    %c0_52 = arith.constant 0 : index
    %26 = vector.load %arg29[%c0_51, %c0_52] : memref<128x32xf32, #tpu.memory_space<vmem>>, vector<128x32xf32>
    %c0_53 = arith.constant 0 : index
    %c0_54 = arith.constant 0 : index
    %27 = vector.load %arg30[%c0_53, %c0_54] : memref<1x32xf32, #tpu.memory_space<vmem>>, vector<1x32xf32>
    %c0_55 = arith.constant 0 : index
    %c0_56 = arith.constant 0 : index
    %28 = vector.load %arg31[%c0_55, %c0_56] : memref<1x32xf32, #tpu.memory_space<vmem>>, vector<1x32xf32>
    %c0_57 = arith.constant 0 : index
    %c0_58 = arith.constant 0 : index
    %29 = vector.load %arg32[%c0_57, %c0_58] : memref<1x32xf32, #tpu.memory_space<vmem>>, vector<1x32xf32>
    %c0_59 = arith.constant 0 : index
    %c0_60 = arith.constant 0 : index
    %30 = vector.load %arg33[%c0_59, %c0_60] : memref<1x32xf32, #tpu.memory_space<vmem>>, vector<1x32xf32>
    %c0_61 = arith.constant 0 : index
    %c0_62 = arith.constant 0 : index
    %31 = vector.load %arg34[%c0_61, %c0_62] : memref<1x32xf32, #tpu.memory_space<vmem>>, vector<1x32xf32>
    %c0_63 = arith.constant 0 : index
    %c0_64 = arith.constant 0 : index
    %32 = vector.load %arg35[%c0_63, %c0_64] : memref<32x32xf32, #tpu.memory_space<vmem>>, vector<32x32xf32>
    %c0_65 = arith.constant 0 : index
    %c0_66 = arith.constant 0 : index
    %33 = vector.load %arg36[%c0_65, %c0_66] : memref<1x32xf32, #tpu.memory_space<vmem>>, vector<1x32xf32>
    %c0_67 = arith.constant 0 : index
    %c0_68 = arith.constant 0 : index
    %34 = vector.load %arg37[%c0_67, %c0_68] : memref<32x96xf32, #tpu.memory_space<vmem>>, vector<32x96xf32>
    %c0_69 = arith.constant 0 : index
    %c0_70 = arith.constant 0 : index
    %35 = vector.load %arg38[%c0_69, %c0_70] : memref<1x96xf32, #tpu.memory_space<vmem>>, vector<1x96xf32>
    %c0_71 = arith.constant 0 : index
    %c0_72 = arith.constant 0 : index
    %36 = vector.load %arg39[%c0_71, %c0_72] : memref<256x21xf32, #tpu.memory_space<vmem>>, vector<256x21xf32>
    %c0_73 = arith.constant 0 : index
    %c0_74 = arith.constant 0 : index
    %37 = vector.load %arg40[%c0_73, %c0_74] : memref<1x21xf32, #tpu.memory_space<vmem>>, vector<1x21xf32>
    %c0_75 = arith.constant 0 : index
    %c0_76 = arith.constant 0 : index
    %38 = vector.load %arg41[%c0_75, %c0_76] : memref<1x32xf32, #tpu.memory_space<vmem>>, vector<1x32xf32>
    %c0_77 = arith.constant 0 : index
    %c0_78 = arith.constant 0 : index
    %39 = vector.load %arg42[%c0_77, %c0_78] : memref<1x32xf32, #tpu.memory_space<vmem>>, vector<1x32xf32>
    %c0_79 = arith.constant 0 : index
    %c0_80 = arith.constant 0 : index
    %40 = vector.load %arg43[%c0_79, %c0_80] : memref<1x32xf32, #tpu.memory_space<vmem>>, vector<1x32xf32>
    %c0_81 = arith.constant 0 : index
    %c0_82 = arith.constant 0 : index
    %41 = vector.load %arg44[%c0_81, %c0_82] : memref<1x32xf32, #tpu.memory_space<vmem>>, vector<1x32xf32>
    %c0_83 = arith.constant 0 : index
    %c0_84 = arith.constant 0 : index
    %42 = vector.load %arg45[%c0_83, %c0_84] : memref<32x64xf32, #tpu.memory_space<vmem>>, vector<32x64xf32>
    %c0_85 = arith.constant 0 : index
    %c0_86 = arith.constant 0 : index
    %43 = vector.load %arg46[%c0_85, %c0_86] : memref<1x64xf32, #tpu.memory_space<vmem>>, vector<1x64xf32>
    %c0_87 = arith.constant 0 : index
    %c0_88 = arith.constant 0 : index
    %44 = vector.load %arg47[%c0_87, %c0_88] : memref<32x32xf32, #tpu.memory_space<vmem>>, vector<32x32xf32>
    %c0_89 = arith.constant 0 : index
    %c0_90 = arith.constant 0 : index
    %45 = vector.load %arg48[%c0_89, %c0_90] : memref<1x32xf32, #tpu.memory_space<vmem>>, vector<1x32xf32>
    %c0_91 = arith.constant 0 : index
    %c0_92 = arith.constant 0 : index
    %46 = vector.load %arg49[%c0_91, %c0_92] : memref<32x32xf32, #tpu.memory_space<vmem>>, vector<32x32xf32>
    %c0_93 = arith.constant 0 : index
    %c0_94 = arith.constant 0 : index
    %47 = vector.load %arg50[%c0_93, %c0_94] : memref<1x32xf32, #tpu.memory_space<vmem>>, vector<1x32xf32>
    %c0_95 = arith.constant 0 : index
    %c0_96 = arith.constant 0 : index
    %48 = vector.load %arg51[%c0_95, %c0_96] : memref<32x128xf32, #tpu.memory_space<vmem>>, vector<32x128xf32>
    %c0_97 = arith.constant 0 : index
    %c0_98 = arith.constant 0 : index
    %49 = vector.load %arg52[%c0_97, %c0_98] : memref<1x128xf32, #tpu.memory_space<vmem>>, vector<1x128xf32>
    %c0_99 = arith.constant 0 : index
    %c0_100 = arith.constant 0 : index
    %50 = vector.load %arg53[%c0_99, %c0_100] : memref<128x32xf32, #tpu.memory_space<vmem>>, vector<128x32xf32>
    %c0_101 = arith.constant 0 : index
    %c0_102 = arith.constant 0 : index
    %51 = vector.load %arg54[%c0_101, %c0_102] : memref<1x32xf32, #tpu.memory_space<vmem>>, vector<1x32xf32>
    %c0_103 = arith.constant 0 : index
    %c0_104 = arith.constant 0 : index
    %52 = vector.load %arg55[%c0_103, %c0_104] : memref<1x32xf32, #tpu.memory_space<vmem>>, vector<1x32xf32>
    %c0_105 = arith.constant 0 : index
    %c0_106 = arith.constant 0 : index
    %53 = vector.load %arg56[%c0_105, %c0_106] : memref<1x32xf32, #tpu.memory_space<vmem>>, vector<1x32xf32>
    %c0_107 = arith.constant 0 : index
    %c0_108 = arith.constant 0 : index
    %54 = vector.load %arg57[%c0_107, %c0_108] : memref<1x32xf32, #tpu.memory_space<vmem>>, vector<1x32xf32>
    %c0_109 = arith.constant 0 : index
    %c0_110 = arith.constant 0 : index
    %55 = vector.load %arg58[%c0_109, %c0_110] : memref<1x32xf32, #tpu.memory_space<vmem>>, vector<1x32xf32>
    %c0_111 = arith.constant 0 : index
    %c0_112 = arith.constant 0 : index
    %56 = vector.load %arg59[%c0_111, %c0_112] : memref<1x32xf32, #tpu.memory_space<vmem>>, vector<1x32xf32>
    %c0_113 = arith.constant 0 : index
    %c0_114 = arith.constant 0 : index
    %57 = vector.load %arg60[%c0_113, %c0_114] : memref<1x32xf32, #tpu.memory_space<vmem>>, vector<1x32xf32>
    %c0_115 = arith.constant 0 : index
    %c0_116 = arith.constant 0 : index
    %58 = vector.load %arg61[%c0_115, %c0_116] : memref<4x32xf32, #tpu.memory_space<vmem>>, vector<4x32xf32>
    %c0_117 = arith.constant 0 : index
    %c0_118 = arith.constant 0 : index
    %59 = vector.load %arg62[%c0_117, %c0_118] : memref<32x32xf32, #tpu.memory_space<vmem>>, vector<32x32xf32>
    %c0_119 = arith.constant 0 : index
    %c0_120 = arith.constant 0 : index
    %60 = vector.load %arg63[%c0_119, %c0_120] : memref<1x32xf32, #tpu.memory_space<vmem>>, vector<1x32xf32>
    %c0_121 = arith.constant 0 : index
    %c0_122 = arith.constant 0 : index
    %61 = vector.load %arg64[%c0_121, %c0_122] : memref<32x96xf32, #tpu.memory_space<vmem>>, vector<32x96xf32>
    %c0_123 = arith.constant 0 : index
    %c0_124 = arith.constant 0 : index
    %62 = vector.load %arg65[%c0_123, %c0_124] : memref<1x96xf32, #tpu.memory_space<vmem>>, vector<1x96xf32>
    %c0_125 = arith.constant 0 : index
    %c0_126 = arith.constant 0 : index
    %63 = vector.load %arg66[%c0_125, %c0_126] : memref<32x32xf32, #tpu.memory_space<vmem>>, vector<32x32xf32>
    %c0_127 = arith.constant 0 : index
    %c0_128 = arith.constant 0 : index
    %c0_129 = arith.constant 0 : index
    %64 = vector.load %arg1[%c0_127, %c0_128, %c0_129] : memref<1x32x32xf32, #tpu.memory_space<vmem>>, vector<1x32x32xf32>
    %65 = vector.shape_cast %64 : vector<1x32x32xf32> to vector<32x32xf32>
    %cst = arith.constant dense<0.000000e+00> : vector<32xf32>
    %66 = vector.multi_reduction <add>, %65, %cst [1] : vector<32x32xf32> to vector<32xf32>
    %67 = vector.shape_cast %66 : vector<32xf32> to vector<32x1xf32>
    %cst_130 = arith.constant 3.200000e+01 : f32
    %68 = vector.broadcast %cst_130 : f32 to vector<32x1xf32>
    %69 = arith.divf %67, %68 : vector<32x1xf32>
    %70 = vector.broadcast %69 : vector<32x1xf32> to vector<32x32xf32>
    %71 = arith.subf %65, %70 : vector<32x32xf32>
    %72 = arith.mulf %71, %71 : vector<32x32xf32>
    %cst_131 = arith.constant dense<0.000000e+00> : vector<32xf32>
    %73 = vector.multi_reduction <add>, %72, %cst_131 [1] : vector<32x32xf32> to vector<32xf32>
    %74 = vector.shape_cast %73 : vector<32xf32> to vector<32x1xf32>
    %cst_132 = arith.constant 3.200000e+01 : f32
    %75 = vector.broadcast %cst_132 : f32 to vector<32x1xf32>
    %76 = arith.divf %74, %75 : vector<32x1xf32>
    %77 = vector.broadcast %69 : vector<32x1xf32> to vector<32x32xf32>
    %78 = arith.subf %65, %77 : vector<32x32xf32>
    %cst_133 = arith.constant 9.99999974E-6 : f32
    %79 = vector.broadcast %cst_133 : f32 to vector<32x1xf32>
    %80 = arith.addf %76, %79 : vector<32x1xf32>
    %81 = math.rsqrt %80 : vector<32x1xf32>
    %82 = vector.broadcast %81 : vector<32x1xf32> to vector<32x32xf32>
    %83 = arith.mulf %78, %82 : vector<32x32xf32>
    %84 = vector.broadcast %40 : vector<1x32xf32> to vector<32x32xf32>
    %85 = arith.mulf %83, %84 : vector<32x32xf32>
    %86 = vector.broadcast %41 : vector<1x32xf32> to vector<32x32xf32>
    %87 = arith.addf %85, %86 : vector<32x32xf32>
    %88 = arith.addf %87, %63 : vector<32x32xf32>
    %c0_134 = arith.constant 0 : index
    %c0_135 = arith.constant 0 : index
    %c0_136 = arith.constant 0 : index
    %89 = vector.load %arg2[%c0_134, %c0_135, %c0_136] : memref<1x32x32xf32, #tpu.memory_space<vmem>>, vector<1x32x32xf32>
    %90 = vector.shape_cast %89 : vector<1x32x32xf32> to vector<32x32xf32>
    %cst_137 = arith.constant dense<0.000000e+00> : vector<32xf32>
    %91 = vector.multi_reduction <add>, %90, %cst_137 [1] : vector<32x32xf32> to vector<32xf32>
    %92 = vector.shape_cast %91 : vector<32xf32> to vector<32x1xf32>
    %cst_138 = arith.constant 3.200000e+01 : f32
    %93 = vector.broadcast %cst_138 : f32 to vector<32x1xf32>
    %94 = arith.divf %92, %93 : vector<32x1xf32>
    %95 = vector.broadcast %94 : vector<32x1xf32> to vector<32x32xf32>
    %96 = arith.subf %90, %95 : vector<32x32xf32>
    %97 = arith.mulf %96, %96 : vector<32x32xf32>
    %cst_139 = arith.constant dense<0.000000e+00> : vector<32xf32>
    %98 = vector.multi_reduction <add>, %97, %cst_139 [1] : vector<32x32xf32> to vector<32xf32>
    %99 = vector.shape_cast %98 : vector<32xf32> to vector<32x1xf32>
    %cst_140 = arith.constant 3.200000e+01 : f32
    %100 = vector.broadcast %cst_140 : f32 to vector<32x1xf32>
    %101 = arith.divf %99, %100 : vector<32x1xf32>
    %102 = vector.broadcast %94 : vector<32x1xf32> to vector<32x32xf32>
    %103 = arith.subf %90, %102 : vector<32x32xf32>
    %cst_141 = arith.constant 9.99999974E-6 : f32
    %104 = vector.broadcast %cst_141 : f32 to vector<32x1xf32>
    %105 = arith.addf %101, %104 : vector<32x1xf32>
    %106 = math.rsqrt %105 : vector<32x1xf32>
    %107 = vector.broadcast %106 : vector<32x1xf32> to vector<32x32xf32>
    %108 = arith.mulf %103, %107 : vector<32x32xf32>
    %109 = vector.broadcast %38 : vector<1x32xf32> to vector<32x32xf32>
    %110 = arith.mulf %108, %109 : vector<32x32xf32>
    %111 = vector.broadcast %39 : vector<1x32xf32> to vector<32x32xf32>
    %112 = arith.addf %110, %111 : vector<32x32xf32>
    %113 = arith.addf %112, %21 : vector<32x32xf32>
    %cst_142 = arith.constant dense<0.000000e+00> : vector<4x96xf32>
    %114 = tpu.matmul %58, %61, %cst_142 {dimension_numbers = #tpu.dot_dimension_numbers<[1], [0], [0], [1], [0, 0, 1, 1], [], []>} : vector<4x32xf32>, vector<32x96xf32>, vector<4x96xf32> -> vector<4x96xf32>
    %115 = vector.broadcast %62 : vector<1x96xf32> to vector<4x96xf32>
    %116 = arith.addf %114, %115 : vector<4x96xf32>
    %117 = vector.extract_strided_slice %116 {offsets = [0, 0], sizes = [4, 32], strides = [1, 1]} : vector<4x96xf32> to vector<4x32xf32>
    %118 = vector.extract_strided_slice %116 {offsets = [0, 32], sizes = [4, 32], strides = [1, 1]} : vector<4x96xf32> to vector<4x32xf32>
    %119 = vector.extract_strided_slice %116 {offsets = [0, 64], sizes = [4, 32], strides = [1, 1]} : vector<4x96xf32> to vector<4x32xf32>
    %120 = vector.extract_strided_slice %117 {offsets = [0, 0], sizes = [4, 8], strides = [1, 1]} : vector<4x32xf32> to vector<4x8xf32>
    %121 = vector.extract_strided_slice %118 {offsets = [0, 0], sizes = [4, 8], strides = [1, 1]} : vector<4x32xf32> to vector<4x8xf32>
    %cst_143 = arith.constant dense<0.000000e+00> : vector<4x4xf32>
    %122 = tpu.matmul %120, %121, %cst_143 {dimension_numbers = #tpu.dot_dimension_numbers<[1], [1], [0], [0], [0, 0, 1, 0], [], []>} : vector<4x8xf32>, vector<4x8xf32>, vector<4x4xf32> -> vector<4x4xf32>
    %cst_144 = arith.constant 0.353553385 : f32
    %123 = vector.broadcast %cst_144 : f32 to vector<4x4xf32>
    %124 = arith.mulf %122, %123 : vector<4x4xf32>
    %cst_145 = arith.constant dense<0xFF800000> : vector<4xf32>
    %125 = vector.multi_reduction <maximumf>, %124, %cst_145 [1] : vector<4x4xf32> to vector<4xf32>
    %126 = vector.shape_cast %125 : vector<4xf32> to vector<4x1xf32>
    %127 = vector.broadcast %126 : vector<4x1xf32> to vector<4x4xf32>
    %128 = arith.subf %124, %127 : vector<4x4xf32>
    %129 = math.exp %128 : vector<4x4xf32>
    %cst_146 = arith.constant dense<0.000000e+00> : vector<4xf32>
    %130 = vector.multi_reduction <add>, %129, %cst_146 [1] : vector<4x4xf32> to vector<4xf32>
    %131 = vector.shape_cast %130 : vector<4xf32> to vector<4x1xf32>
    %132 = tpu.reciprocal %131 {approx = true} : vector<4x1xf32> -> vector<4x1xf32>
    %133 = vector.broadcast %132 : vector<4x1xf32> to vector<4x4xf32>
    %134 = arith.mulf %129, %133 : vector<4x4xf32>
    %135 = vector.extract_strided_slice %119 {offsets = [0, 0], sizes = [4, 8], strides = [1, 1]} : vector<4x32xf32> to vector<4x8xf32>
    %cst_147 = arith.constant dense<0.000000e+00> : vector<4x8xf32>
    %136 = tpu.matmul %134, %135, %cst_147 {dimension_numbers = #tpu.dot_dimension_numbers<[1], [0], [0], [1], [0, 0, 1, 1], [], []>} : vector<4x4xf32>, vector<4x8xf32>, vector<4x8xf32> -> vector<4x8xf32>
    %137 = vector.extract_strided_slice %117 {offsets = [0, 8], sizes = [4, 8], strides = [1, 1]} : vector<4x32xf32> to vector<4x8xf32>
    %138 = vector.extract_strided_slice %118 {offsets = [0, 8], sizes = [4, 8], strides = [1, 1]} : vector<4x32xf32> to vector<4x8xf32>
    %cst_148 = arith.constant dense<0.000000e+00> : vector<4x4xf32>
    %139 = tpu.matmul %137, %138, %cst_148 {dimension_numbers = #tpu.dot_dimension_numbers<[1], [1], [0], [0], [0, 0, 1, 0], [], []>} : vector<4x8xf32>, vector<4x8xf32>, vector<4x4xf32> -> vector<4x4xf32>
    %cst_149 = arith.constant 0.353553385 : f32
    %140 = vector.broadcast %cst_149 : f32 to vector<4x4xf32>
    %141 = arith.mulf %139, %140 : vector<4x4xf32>
    %cst_150 = arith.constant dense<0xFF800000> : vector<4xf32>
    %142 = vector.multi_reduction <maximumf>, %141, %cst_150 [1] : vector<4x4xf32> to vector<4xf32>
    %143 = vector.shape_cast %142 : vector<4xf32> to vector<4x1xf32>
    %144 = vector.broadcast %143 : vector<4x1xf32> to vector<4x4xf32>
    %145 = arith.subf %141, %144 : vector<4x4xf32>
    %146 = math.exp %145 : vector<4x4xf32>
    %cst_151 = arith.constant dense<0.000000e+00> : vector<4xf32>
    %147 = vector.multi_reduction <add>, %146, %cst_151 [1] : vector<4x4xf32> to vector<4xf32>
    %148 = vector.shape_cast %147 : vector<4xf32> to vector<4x1xf32>
    %149 = tpu.reciprocal %148 {approx = true} : vector<4x1xf32> -> vector<4x1xf32>
    %150 = vector.broadcast %149 : vector<4x1xf32> to vector<4x4xf32>
    %151 = arith.mulf %146, %150 : vector<4x4xf32>
    %152 = vector.extract_strided_slice %119 {offsets = [0, 8], sizes = [4, 8], strides = [1, 1]} : vector<4x32xf32> to vector<4x8xf32>
    %cst_152 = arith.constant dense<0.000000e+00> : vector<4x8xf32>
    %153 = tpu.matmul %151, %152, %cst_152 {dimension_numbers = #tpu.dot_dimension_numbers<[1], [0], [0], [1], [0, 0, 1, 1], [], []>} : vector<4x4xf32>, vector<4x8xf32>, vector<4x8xf32> -> vector<4x8xf32>
    %154 = vector.extract_strided_slice %117 {offsets = [0, 16], sizes = [4, 8], strides = [1, 1]} : vector<4x32xf32> to vector<4x8xf32>
    %155 = vector.extract_strided_slice %118 {offsets = [0, 16], sizes = [4, 8], strides = [1, 1]} : vector<4x32xf32> to vector<4x8xf32>
    %cst_153 = arith.constant dense<0.000000e+00> : vector<4x4xf32>
    %156 = tpu.matmul %154, %155, %cst_153 {dimension_numbers = #tpu.dot_dimension_numbers<[1], [1], [0], [0], [0, 0, 1, 0], [], []>} : vector<4x8xf32>, vector<4x8xf32>, vector<4x4xf32> -> vector<4x4xf32>
    %cst_154 = arith.constant 0.353553385 : f32
    %157 = vector.broadcast %cst_154 : f32 to vector<4x4xf32>
    %158 = arith.mulf %156, %157 : vector<4x4xf32>
    %cst_155 = arith.constant dense<0xFF800000> : vector<4xf32>
    %159 = vector.multi_reduction <maximumf>, %158, %cst_155 [1] : vector<4x4xf32> to vector<4xf32>
    %160 = vector.shape_cast %159 : vector<4xf32> to vector<4x1xf32>
    %161 = vector.broadcast %160 : vector<4x1xf32> to vector<4x4xf32>
    %162 = arith.subf %158, %161 : vector<4x4xf32>
    %163 = math.exp %162 : vector<4x4xf32>
    %cst_156 = arith.constant dense<0.000000e+00> : vector<4xf32>
    %164 = vector.multi_reduction <add>, %163, %cst_156 [1] : vector<4x4xf32> to vector<4xf32>
    %165 = vector.shape_cast %164 : vector<4xf32> to vector<4x1xf32>
    %166 = tpu.reciprocal %165 {approx = true} : vector<4x1xf32> -> vector<4x1xf32>
    %167 = vector.broadcast %166 : vector<4x1xf32> to vector<4x4xf32>
    %168 = arith.mulf %163, %167 : vector<4x4xf32>
    %169 = vector.extract_strided_slice %119 {offsets = [0, 16], sizes = [4, 8], strides = [1, 1]} : vector<4x32xf32> to vector<4x8xf32>
    %cst_157 = arith.constant dense<0.000000e+00> : vector<4x8xf32>
    %170 = tpu.matmul %168, %169, %cst_157 {dimension_numbers = #tpu.dot_dimension_numbers<[1], [0], [0], [1], [0, 0, 1, 1], [], []>} : vector<4x4xf32>, vector<4x8xf32>, vector<4x8xf32> -> vector<4x8xf32>
    %171 = vector.extract_strided_slice %117 {offsets = [0, 24], sizes = [4, 8], strides = [1, 1]} : vector<4x32xf32> to vector<4x8xf32>
    %172 = vector.extract_strided_slice %118 {offsets = [0, 24], sizes = [4, 8], strides = [1, 1]} : vector<4x32xf32> to vector<4x8xf32>
    %cst_158 = arith.constant dense<0.000000e+00> : vector<4x4xf32>
    %173 = tpu.matmul %171, %172, %cst_158 {dimension_numbers = #tpu.dot_dimension_numbers<[1], [1], [0], [0], [0, 0, 1, 0], [], []>} : vector<4x8xf32>, vector<4x8xf32>, vector<4x4xf32> -> vector<4x4xf32>
    %cst_159 = arith.constant 0.353553385 : f32
    %174 = vector.broadcast %cst_159 : f32 to vector<4x4xf32>
    %175 = arith.mulf %173, %174 : vector<4x4xf32>
    %cst_160 = arith.constant dense<0xFF800000> : vector<4xf32>
    %176 = vector.multi_reduction <maximumf>, %175, %cst_160 [1] : vector<4x4xf32> to vector<4xf32>
    %177 = vector.shape_cast %176 : vector<4xf32> to vector<4x1xf32>
    %178 = vector.broadcast %177 : vector<4x1xf32> to vector<4x4xf32>
    %179 = arith.subf %175, %178 : vector<4x4xf32>
    %180 = math.exp %179 : vector<4x4xf32>
    %cst_161 = arith.constant dense<0.000000e+00> : vector<4xf32>
    %181 = vector.multi_reduction <add>, %180, %cst_161 [1] : vector<4x4xf32> to vector<4xf32>
    %182 = vector.shape_cast %181 : vector<4xf32> to vector<4x1xf32>
    %183 = tpu.reciprocal %182 {approx = true} : vector<4x1xf32> -> vector<4x1xf32>
    %184 = vector.broadcast %183 : vector<4x1xf32> to vector<4x4xf32>
    %185 = arith.mulf %180, %184 : vector<4x4xf32>
    %186 = vector.extract_strided_slice %119 {offsets = [0, 24], sizes = [4, 8], strides = [1, 1]} : vector<4x32xf32> to vector<4x8xf32>
    %cst_162 = arith.constant dense<0.000000e+00> : vector<4x8xf32>
    %187 = tpu.matmul %185, %186, %cst_162 {dimension_numbers = #tpu.dot_dimension_numbers<[1], [0], [0], [1], [0, 0, 1, 1], [], []>} : vector<4x4xf32>, vector<4x8xf32>, vector<4x8xf32> -> vector<4x8xf32>
    %188 = tpu.concatenate %136, %153, %170, %187 in 1 : vector<4x8xf32>, vector<4x8xf32>, vector<4x8xf32>, vector<4x8xf32> -> vector<4x32xf32>
    %cst_163 = arith.constant dense<0.000000e+00> : vector<4x32xf32>
    %189 = tpu.matmul %188, %59, %cst_163 {dimension_numbers = #tpu.dot_dimension_numbers<[1], [0], [0], [1], [0, 0, 1, 1], [], []>} : vector<4x32xf32>, vector<32x32xf32>, vector<4x32xf32> -> vector<4x32xf32>
    %190 = vector.broadcast %60 : vector<1x32xf32> to vector<4x32xf32>
    %191 = arith.addf %189, %190 : vector<4x32xf32>
    %192 = arith.addf %58, %191 : vector<4x32xf32>
    %cst_164 = arith.constant dense<0.000000e+00> : vector<4xf32>
    %193 = vector.multi_reduction <add>, %192, %cst_164 [1] : vector<4x32xf32> to vector<4xf32>
    %194 = vector.shape_cast %193 : vector<4xf32> to vector<4x1xf32>
    %cst_165 = arith.constant 3.200000e+01 : f32
    %195 = vector.broadcast %cst_165 : f32 to vector<4x1xf32>
    %196 = arith.divf %194, %195 : vector<4x1xf32>
    %197 = vector.broadcast %196 : vector<4x1xf32> to vector<4x32xf32>
    %198 = arith.subf %192, %197 : vector<4x32xf32>
    %199 = arith.mulf %198, %198 : vector<4x32xf32>
    %cst_166 = arith.constant dense<0.000000e+00> : vector<4xf32>
    %200 = vector.multi_reduction <add>, %199, %cst_166 [1] : vector<4x32xf32> to vector<4xf32>
    %201 = vector.shape_cast %200 : vector<4xf32> to vector<4x1xf32>
    %cst_167 = arith.constant 3.200000e+01 : f32
    %202 = vector.broadcast %cst_167 : f32 to vector<4x1xf32>
    %203 = arith.divf %201, %202 : vector<4x1xf32>
    %204 = vector.broadcast %196 : vector<4x1xf32> to vector<4x32xf32>
    %205 = arith.subf %192, %204 : vector<4x32xf32>
    %cst_168 = arith.constant 9.99999974E-6 : f32
    %206 = vector.broadcast %cst_168 : f32 to vector<4x1xf32>
    %207 = arith.addf %203, %206 : vector<4x1xf32>
    %208 = math.rsqrt %207 : vector<4x1xf32>
    %209 = vector.broadcast %208 : vector<4x1xf32> to vector<4x32xf32>
    %210 = arith.mulf %205, %209 : vector<4x32xf32>
    %211 = vector.broadcast %52 : vector<1x32xf32> to vector<4x32xf32>
    %212 = arith.mulf %210, %211 : vector<4x32xf32>
    %213 = vector.broadcast %53 : vector<1x32xf32> to vector<4x32xf32>
    %214 = arith.addf %212, %213 : vector<4x32xf32>
    %cst_169 = arith.constant dense<0.000000e+00> : vector<4x32xf32>
    %215 = tpu.matmul %214, %46, %cst_169 {dimension_numbers = #tpu.dot_dimension_numbers<[1], [0], [0], [1], [0, 0, 1, 1], [], []>} : vector<4x32xf32>, vector<32x32xf32>, vector<4x32xf32> -> vector<4x32xf32>
    %216 = vector.broadcast %47 : vector<1x32xf32> to vector<4x32xf32>
    %217 = arith.addf %215, %216 : vector<4x32xf32>
    %cst_170 = arith.constant dense<0.000000e+00> : vector<32x64xf32>
    %218 = tpu.matmul %88, %42, %cst_170 {dimension_numbers = #tpu.dot_dimension_numbers<[1], [0], [0], [1], [0, 0, 1, 1], [], []>} : vector<32x32xf32>, vector<32x64xf32>, vector<32x64xf32> -> vector<32x64xf32>
    %219 = vector.broadcast %43 : vector<1x64xf32> to vector<32x64xf32>
    %220 = arith.addf %218, %219 : vector<32x64xf32>
    %221 = vector.extract_strided_slice %220 {offsets = [0, 0], sizes = [32, 32], strides = [1, 1]} : vector<32x64xf32> to vector<32x32xf32>
    %222 = vector.extract_strided_slice %220 {offsets = [0, 32], sizes = [32, 32], strides = [1, 1]} : vector<32x64xf32> to vector<32x32xf32>
    %223 = vector.extract_strided_slice %217 {offsets = [0, 0], sizes = [4, 8], strides = [1, 1]} : vector<4x32xf32> to vector<4x8xf32>
    %224 = vector.extract_strided_slice %221 {offsets = [0, 0], sizes = [32, 8], strides = [1, 1]} : vector<32x32xf32> to vector<32x8xf32>
    %cst_171 = arith.constant dense<0.000000e+00> : vector<4x32xf32>
    %225 = tpu.matmul %223, %224, %cst_171 {dimension_numbers = #tpu.dot_dimension_numbers<[1], [1], [0], [0], [0, 0, 1, 0], [], []>} : vector<4x8xf32>, vector<32x8xf32>, vector<4x32xf32> -> vector<4x32xf32>
    %cst_172 = arith.constant 0.353553385 : f32
    %226 = vector.broadcast %cst_172 : f32 to vector<4x32xf32>
    %227 = arith.mulf %225, %226 : vector<4x32xf32>
    %cst_173 = arith.constant dense<0xFF800000> : vector<4xf32>
    %228 = vector.multi_reduction <maximumf>, %227, %cst_173 [1] : vector<4x32xf32> to vector<4xf32>
    %229 = vector.shape_cast %228 : vector<4xf32> to vector<4x1xf32>
    %230 = vector.broadcast %229 : vector<4x1xf32> to vector<4x32xf32>
    %231 = arith.subf %227, %230 : vector<4x32xf32>
    %232 = math.exp %231 : vector<4x32xf32>
    %cst_174 = arith.constant dense<0.000000e+00> : vector<4xf32>
    %233 = vector.multi_reduction <add>, %232, %cst_174 [1] : vector<4x32xf32> to vector<4xf32>
    %234 = vector.shape_cast %233 : vector<4xf32> to vector<4x1xf32>
    %235 = tpu.reciprocal %234 {approx = true} : vector<4x1xf32> -> vector<4x1xf32>
    %236 = vector.broadcast %235 : vector<4x1xf32> to vector<4x32xf32>
    %237 = arith.mulf %232, %236 : vector<4x32xf32>
    %238 = vector.extract_strided_slice %222 {offsets = [0, 0], sizes = [32, 8], strides = [1, 1]} : vector<32x32xf32> to vector<32x8xf32>
    %cst_175 = arith.constant dense<0.000000e+00> : vector<4x8xf32>
    %239 = tpu.matmul %237, %238, %cst_175 {dimension_numbers = #tpu.dot_dimension_numbers<[1], [0], [0], [1], [0, 0, 1, 1], [], []>} : vector<4x32xf32>, vector<32x8xf32>, vector<4x8xf32> -> vector<4x8xf32>
    %240 = vector.extract_strided_slice %217 {offsets = [0, 8], sizes = [4, 8], strides = [1, 1]} : vector<4x32xf32> to vector<4x8xf32>
    %241 = vector.extract_strided_slice %221 {offsets = [0, 8], sizes = [32, 8], strides = [1, 1]} : vector<32x32xf32> to vector<32x8xf32>
    %cst_176 = arith.constant dense<0.000000e+00> : vector<4x32xf32>
    %242 = tpu.matmul %240, %241, %cst_176 {dimension_numbers = #tpu.dot_dimension_numbers<[1], [1], [0], [0], [0, 0, 1, 0], [], []>} : vector<4x8xf32>, vector<32x8xf32>, vector<4x32xf32> -> vector<4x32xf32>
    %cst_177 = arith.constant 0.353553385 : f32
    %243 = vector.broadcast %cst_177 : f32 to vector<4x32xf32>
    %244 = arith.mulf %242, %243 : vector<4x32xf32>
    %cst_178 = arith.constant dense<0xFF800000> : vector<4xf32>
    %245 = vector.multi_reduction <maximumf>, %244, %cst_178 [1] : vector<4x32xf32> to vector<4xf32>
    %246 = vector.shape_cast %245 : vector<4xf32> to vector<4x1xf32>
    %247 = vector.broadcast %246 : vector<4x1xf32> to vector<4x32xf32>
    %248 = arith.subf %244, %247 : vector<4x32xf32>
    %249 = math.exp %248 : vector<4x32xf32>
    %cst_179 = arith.constant dense<0.000000e+00> : vector<4xf32>
    %250 = vector.multi_reduction <add>, %249, %cst_179 [1] : vector<4x32xf32> to vector<4xf32>
    %251 = vector.shape_cast %250 : vector<4xf32> to vector<4x1xf32>
    %252 = tpu.reciprocal %251 {approx = true} : vector<4x1xf32> -> vector<4x1xf32>
    %253 = vector.broadcast %252 : vector<4x1xf32> to vector<4x32xf32>
    %254 = arith.mulf %249, %253 : vector<4x32xf32>
    %255 = vector.extract_strided_slice %222 {offsets = [0, 8], sizes = [32, 8], strides = [1, 1]} : vector<32x32xf32> to vector<32x8xf32>
    %cst_180 = arith.constant dense<0.000000e+00> : vector<4x8xf32>
    %256 = tpu.matmul %254, %255, %cst_180 {dimension_numbers = #tpu.dot_dimension_numbers<[1], [0], [0], [1], [0, 0, 1, 1], [], []>} : vector<4x32xf32>, vector<32x8xf32>, vector<4x8xf32> -> vector<4x8xf32>
    %257 = vector.extract_strided_slice %217 {offsets = [0, 16], sizes = [4, 8], strides = [1, 1]} : vector<4x32xf32> to vector<4x8xf32>
    %258 = vector.extract_strided_slice %221 {offsets = [0, 16], sizes = [32, 8], strides = [1, 1]} : vector<32x32xf32> to vector<32x8xf32>
    %cst_181 = arith.constant dense<0.000000e+00> : vector<4x32xf32>
    %259 = tpu.matmul %257, %258, %cst_181 {dimension_numbers = #tpu.dot_dimension_numbers<[1], [1], [0], [0], [0, 0, 1, 0], [], []>} : vector<4x8xf32>, vector<32x8xf32>, vector<4x32xf32> -> vector<4x32xf32>
    %cst_182 = arith.constant 0.353553385 : f32
    %260 = vector.broadcast %cst_182 : f32 to vector<4x32xf32>
    %261 = arith.mulf %259, %260 : vector<4x32xf32>
    %cst_183 = arith.constant dense<0xFF800000> : vector<4xf32>
    %262 = vector.multi_reduction <maximumf>, %261, %cst_183 [1] : vector<4x32xf32> to vector<4xf32>
    %263 = vector.shape_cast %262 : vector<4xf32> to vector<4x1xf32>
    %264 = vector.broadcast %263 : vector<4x1xf32> to vector<4x32xf32>
    %265 = arith.subf %261, %264 : vector<4x32xf32>
    %266 = math.exp %265 : vector<4x32xf32>
    %cst_184 = arith.constant dense<0.000000e+00> : vector<4xf32>
    %267 = vector.multi_reduction <add>, %266, %cst_184 [1] : vector<4x32xf32> to vector<4xf32>
    %268 = vector.shape_cast %267 : vector<4xf32> to vector<4x1xf32>
    %269 = tpu.reciprocal %268 {approx = true} : vector<4x1xf32> -> vector<4x1xf32>
    %270 = vector.broadcast %269 : vector<4x1xf32> to vector<4x32xf32>
    %271 = arith.mulf %266, %270 : vector<4x32xf32>
    %272 = vector.extract_strided_slice %222 {offsets = [0, 16], sizes = [32, 8], strides = [1, 1]} : vector<32x32xf32> to vector<32x8xf32>
    %cst_185 = arith.constant dense<0.000000e+00> : vector<4x8xf32>
    %273 = tpu.matmul %271, %272, %cst_185 {dimension_numbers = #tpu.dot_dimension_numbers<[1], [0], [0], [1], [0, 0, 1, 1], [], []>} : vector<4x32xf32>, vector<32x8xf32>, vector<4x8xf32> -> vector<4x8xf32>
    %274 = vector.extract_strided_slice %217 {offsets = [0, 24], sizes = [4, 8], strides = [1, 1]} : vector<4x32xf32> to vector<4x8xf32>
    %275 = vector.extract_strided_slice %221 {offsets = [0, 24], sizes = [32, 8], strides = [1, 1]} : vector<32x32xf32> to vector<32x8xf32>
    %cst_186 = arith.constant dense<0.000000e+00> : vector<4x32xf32>
    %276 = tpu.matmul %274, %275, %cst_186 {dimension_numbers = #tpu.dot_dimension_numbers<[1], [1], [0], [0], [0, 0, 1, 0], [], []>} : vector<4x8xf32>, vector<32x8xf32>, vector<4x32xf32> -> vector<4x32xf32>
    %cst_187 = arith.constant 0.353553385 : f32
    %277 = vector.broadcast %cst_187 : f32 to vector<4x32xf32>
    %278 = arith.mulf %276, %277 : vector<4x32xf32>
    %cst_188 = arith.constant dense<0xFF800000> : vector<4xf32>
    %279 = vector.multi_reduction <maximumf>, %278, %cst_188 [1] : vector<4x32xf32> to vector<4xf32>
    %280 = vector.shape_cast %279 : vector<4xf32> to vector<4x1xf32>
    %281 = vector.broadcast %280 : vector<4x1xf32> to vector<4x32xf32>
    %282 = arith.subf %278, %281 : vector<4x32xf32>
    %283 = math.exp %282 : vector<4x32xf32>
    %cst_189 = arith.constant dense<0.000000e+00> : vector<4xf32>
    %284 = vector.multi_reduction <add>, %283, %cst_189 [1] : vector<4x32xf32> to vector<4xf32>
    %285 = vector.shape_cast %284 : vector<4xf32> to vector<4x1xf32>
    %286 = tpu.reciprocal %285 {approx = true} : vector<4x1xf32> -> vector<4x1xf32>
    %287 = vector.broadcast %286 : vector<4x1xf32> to vector<4x32xf32>
    %288 = arith.mulf %283, %287 : vector<4x32xf32>
    %289 = vector.extract_strided_slice %222 {offsets = [0, 24], sizes = [32, 8], strides = [1, 1]} : vector<32x32xf32> to vector<32x8xf32>
    %cst_190 = arith.constant dense<0.000000e+00> : vector<4x8xf32>
    %290 = tpu.matmul %288, %289, %cst_190 {dimension_numbers = #tpu.dot_dimension_numbers<[1], [0], [0], [1], [0, 0, 1, 1], [], []>} : vector<4x32xf32>, vector<32x8xf32>, vector<4x8xf32> -> vector<4x8xf32>
    %291 = tpu.concatenate %239, %256, %273, %290 in 1 : vector<4x8xf32>, vector<4x8xf32>, vector<4x8xf32>, vector<4x8xf32> -> vector<4x32xf32>
    %cst_191 = arith.constant dense<0.000000e+00> : vector<4x32xf32>
    %292 = tpu.matmul %291, %44, %cst_191 {dimension_numbers = #tpu.dot_dimension_numbers<[1], [0], [0], [1], [0, 0, 1, 1], [], []>} : vector<4x32xf32>, vector<32x32xf32>, vector<4x32xf32> -> vector<4x32xf32>
    %293 = vector.broadcast %45 : vector<1x32xf32> to vector<4x32xf32>
    %294 = arith.addf %292, %293 : vector<4x32xf32>
    %295 = arith.addf %214, %294 : vector<4x32xf32>
    %cst_192 = arith.constant dense<0.000000e+00> : vector<4xf32>
    %296 = vector.multi_reduction <add>, %295, %cst_192 [1] : vector<4x32xf32> to vector<4xf32>
    %297 = vector.shape_cast %296 : vector<4xf32> to vector<4x1xf32>
    %cst_193 = arith.constant 3.200000e+01 : f32
    %298 = vector.broadcast %cst_193 : f32 to vector<4x1xf32>
    %299 = arith.divf %297, %298 : vector<4x1xf32>
    %300 = vector.broadcast %299 : vector<4x1xf32> to vector<4x32xf32>
    %301 = arith.subf %295, %300 : vector<4x32xf32>
    %302 = arith.mulf %301, %301 : vector<4x32xf32>
    %cst_194 = arith.constant dense<0.000000e+00> : vector<4xf32>
    %303 = vector.multi_reduction <add>, %302, %cst_194 [1] : vector<4x32xf32> to vector<4xf32>
    %304 = vector.shape_cast %303 : vector<4xf32> to vector<4x1xf32>
    %cst_195 = arith.constant 3.200000e+01 : f32
    %305 = vector.broadcast %cst_195 : f32 to vector<4x1xf32>
    %306 = arith.divf %304, %305 : vector<4x1xf32>
    %307 = vector.broadcast %299 : vector<4x1xf32> to vector<4x32xf32>
    %308 = arith.subf %295, %307 : vector<4x32xf32>
    %cst_196 = arith.constant 9.99999974E-6 : f32
    %309 = vector.broadcast %cst_196 : f32 to vector<4x1xf32>
    %310 = arith.addf %306, %309 : vector<4x1xf32>
    %311 = math.rsqrt %310 : vector<4x1xf32>
    %312 = vector.broadcast %311 : vector<4x1xf32> to vector<4x32xf32>
    %313 = arith.mulf %308, %312 : vector<4x32xf32>
    %314 = vector.broadcast %54 : vector<1x32xf32> to vector<4x32xf32>
    %315 = arith.mulf %313, %314 : vector<4x32xf32>
    %316 = vector.broadcast %55 : vector<1x32xf32> to vector<4x32xf32>
    %317 = arith.addf %315, %316 : vector<4x32xf32>
    %cst_197 = arith.constant dense<0.000000e+00> : vector<4x128xf32>
    %318 = tpu.matmul %317, %48, %cst_197 {dimension_numbers = #tpu.dot_dimension_numbers<[1], [0], [0], [1], [0, 0, 1, 1], [], []>} : vector<4x32xf32>, vector<32x128xf32>, vector<4x128xf32> -> vector<4x128xf32>
    %319 = vector.broadcast %49 : vector<1x128xf32> to vector<4x128xf32>
    %320 = arith.addf %318, %319 : vector<4x128xf32>
    %cst_198 = arith.constant 0.000000e+00 : f32
    %321 = vector.broadcast %cst_198 : f32 to vector<4x128xf32>
    %322 = arith.maximumf %320, %321 : vector<4x128xf32>
    %cst_199 = arith.constant dense<0.000000e+00> : vector<4x32xf32>
    %323 = tpu.matmul %322, %50, %cst_199 {dimension_numbers = #tpu.dot_dimension_numbers<[1], [0], [0], [1], [0, 0, 1, 1], [], []>} : vector<4x128xf32>, vector<128x32xf32>, vector<4x32xf32> -> vector<4x32xf32>
    %324 = vector.broadcast %51 : vector<1x32xf32> to vector<4x32xf32>
    %325 = arith.addf %323, %324 : vector<4x32xf32>
    %326 = arith.addf %317, %325 : vector<4x32xf32>
    %cst_200 = arith.constant dense<0.000000e+00> : vector<4xf32>
    %327 = vector.multi_reduction <add>, %326, %cst_200 [1] : vector<4x32xf32> to vector<4xf32>
    %328 = vector.shape_cast %327 : vector<4xf32> to vector<4x1xf32>
    %cst_201 = arith.constant 3.200000e+01 : f32
    %329 = vector.broadcast %cst_201 : f32 to vector<4x1xf32>
    %330 = arith.divf %328, %329 : vector<4x1xf32>
    %331 = vector.broadcast %330 : vector<4x1xf32> to vector<4x32xf32>
    %332 = arith.subf %326, %331 : vector<4x32xf32>
    %333 = arith.mulf %332, %332 : vector<4x32xf32>
    %cst_202 = arith.constant dense<0.000000e+00> : vector<4xf32>
    %334 = vector.multi_reduction <add>, %333, %cst_202 [1] : vector<4x32xf32> to vector<4xf32>
    %335 = vector.shape_cast %334 : vector<4xf32> to vector<4x1xf32>
    %cst_203 = arith.constant 3.200000e+01 : f32
    %336 = vector.broadcast %cst_203 : f32 to vector<4x1xf32>
    %337 = arith.divf %335, %336 : vector<4x1xf32>
    %338 = vector.broadcast %330 : vector<4x1xf32> to vector<4x32xf32>
    %339 = arith.subf %326, %338 : vector<4x32xf32>
    %cst_204 = arith.constant 9.99999974E-6 : f32
    %340 = vector.broadcast %cst_204 : f32 to vector<4x1xf32>
    %341 = arith.addf %337, %340 : vector<4x1xf32>
    %342 = math.rsqrt %341 : vector<4x1xf32>
    %343 = vector.broadcast %342 : vector<4x1xf32> to vector<4x32xf32>
    %344 = arith.mulf %339, %343 : vector<4x32xf32>
    %345 = vector.broadcast %56 : vector<1x32xf32> to vector<4x32xf32>
    %346 = arith.mulf %344, %345 : vector<4x32xf32>
    %347 = vector.broadcast %57 : vector<1x32xf32> to vector<4x32xf32>
    %348 = arith.addf %346, %347 : vector<4x32xf32>
    %cst_205 = arith.constant dense<0.000000e+00> : vector<4x96xf32>
    %349 = tpu.matmul %16, %19, %cst_205 {dimension_numbers = #tpu.dot_dimension_numbers<[1], [0], [0], [1], [0, 0, 1, 1], [], []>} : vector<4x32xf32>, vector<32x96xf32>, vector<4x96xf32> -> vector<4x96xf32>
    %350 = vector.broadcast %20 : vector<1x96xf32> to vector<4x96xf32>
    %351 = arith.addf %349, %350 : vector<4x96xf32>
    %352 = vector.extract_strided_slice %351 {offsets = [0, 0], sizes = [4, 32], strides = [1, 1]} : vector<4x96xf32> to vector<4x32xf32>
    %353 = vector.extract_strided_slice %351 {offsets = [0, 32], sizes = [4, 32], strides = [1, 1]} : vector<4x96xf32> to vector<4x32xf32>
    %354 = vector.extract_strided_slice %351 {offsets = [0, 64], sizes = [4, 32], strides = [1, 1]} : vector<4x96xf32> to vector<4x32xf32>
    %355 = vector.extract_strided_slice %352 {offsets = [0, 0], sizes = [4, 8], strides = [1, 1]} : vector<4x32xf32> to vector<4x8xf32>
    %356 = vector.extract_strided_slice %353 {offsets = [0, 0], sizes = [4, 8], strides = [1, 1]} : vector<4x32xf32> to vector<4x8xf32>
    %cst_206 = arith.constant dense<0.000000e+00> : vector<4x4xf32>
    %357 = tpu.matmul %355, %356, %cst_206 {dimension_numbers = #tpu.dot_dimension_numbers<[1], [1], [0], [0], [0, 0, 1, 0], [], []>} : vector<4x8xf32>, vector<4x8xf32>, vector<4x4xf32> -> vector<4x4xf32>
    %cst_207 = arith.constant 0.353553385 : f32
    %358 = vector.broadcast %cst_207 : f32 to vector<4x4xf32>
    %359 = arith.mulf %357, %358 : vector<4x4xf32>
    %cst_208 = arith.constant dense<0xFF800000> : vector<4xf32>
    %360 = vector.multi_reduction <maximumf>, %359, %cst_208 [1] : vector<4x4xf32> to vector<4xf32>
    %361 = vector.shape_cast %360 : vector<4xf32> to vector<4x1xf32>
    %362 = vector.broadcast %361 : vector<4x1xf32> to vector<4x4xf32>
    %363 = arith.subf %359, %362 : vector<4x4xf32>
    %364 = math.exp %363 : vector<4x4xf32>
    %cst_209 = arith.constant dense<0.000000e+00> : vector<4xf32>
    %365 = vector.multi_reduction <add>, %364, %cst_209 [1] : vector<4x4xf32> to vector<4xf32>
    %366 = vector.shape_cast %365 : vector<4xf32> to vector<4x1xf32>
    %367 = tpu.reciprocal %366 {approx = true} : vector<4x1xf32> -> vector<4x1xf32>
    %368 = vector.broadcast %367 : vector<4x1xf32> to vector<4x4xf32>
    %369 = arith.mulf %364, %368 : vector<4x4xf32>
    %370 = vector.extract_strided_slice %354 {offsets = [0, 0], sizes = [4, 8], strides = [1, 1]} : vector<4x32xf32> to vector<4x8xf32>
    %cst_210 = arith.constant dense<0.000000e+00> : vector<4x8xf32>
    %371 = tpu.matmul %369, %370, %cst_210 {dimension_numbers = #tpu.dot_dimension_numbers<[1], [0], [0], [1], [0, 0, 1, 1], [], []>} : vector<4x4xf32>, vector<4x8xf32>, vector<4x8xf32> -> vector<4x8xf32>
    %372 = vector.extract_strided_slice %352 {offsets = [0, 8], sizes = [4, 8], strides = [1, 1]} : vector<4x32xf32> to vector<4x8xf32>
    %373 = vector.extract_strided_slice %353 {offsets = [0, 8], sizes = [4, 8], strides = [1, 1]} : vector<4x32xf32> to vector<4x8xf32>
    %cst_211 = arith.constant dense<0.000000e+00> : vector<4x4xf32>
    %374 = tpu.matmul %372, %373, %cst_211 {dimension_numbers = #tpu.dot_dimension_numbers<[1], [1], [0], [0], [0, 0, 1, 0], [], []>} : vector<4x8xf32>, vector<4x8xf32>, vector<4x4xf32> -> vector<4x4xf32>
    %cst_212 = arith.constant 0.353553385 : f32
    %375 = vector.broadcast %cst_212 : f32 to vector<4x4xf32>
    %376 = arith.mulf %374, %375 : vector<4x4xf32>
    %cst_213 = arith.constant dense<0xFF800000> : vector<4xf32>
    %377 = vector.multi_reduction <maximumf>, %376, %cst_213 [1] : vector<4x4xf32> to vector<4xf32>
    %378 = vector.shape_cast %377 : vector<4xf32> to vector<4x1xf32>
    %379 = vector.broadcast %378 : vector<4x1xf32> to vector<4x4xf32>
    %380 = arith.subf %376, %379 : vector<4x4xf32>
    %381 = math.exp %380 : vector<4x4xf32>
    %cst_214 = arith.constant dense<0.000000e+00> : vector<4xf32>
    %382 = vector.multi_reduction <add>, %381, %cst_214 [1] : vector<4x4xf32> to vector<4xf32>
    %383 = vector.shape_cast %382 : vector<4xf32> to vector<4x1xf32>
    %384 = tpu.reciprocal %383 {approx = true} : vector<4x1xf32> -> vector<4x1xf32>
    %385 = vector.broadcast %384 : vector<4x1xf32> to vector<4x4xf32>
    %386 = arith.mulf %381, %385 : vector<4x4xf32>
    %387 = vector.extract_strided_slice %354 {offsets = [0, 8], sizes = [4, 8], strides = [1, 1]} : vector<4x32xf32> to vector<4x8xf32>
    %cst_215 = arith.constant dense<0.000000e+00> : vector<4x8xf32>
    %388 = tpu.matmul %386, %387, %cst_215 {dimension_numbers = #tpu.dot_dimension_numbers<[1], [0], [0], [1], [0, 0, 1, 1], [], []>} : vector<4x4xf32>, vector<4x8xf32>, vector<4x8xf32> -> vector<4x8xf32>
    %389 = vector.extract_strided_slice %352 {offsets = [0, 16], sizes = [4, 8], strides = [1, 1]} : vector<4x32xf32> to vector<4x8xf32>
    %390 = vector.extract_strided_slice %353 {offsets = [0, 16], sizes = [4, 8], strides = [1, 1]} : vector<4x32xf32> to vector<4x8xf32>
    %cst_216 = arith.constant dense<0.000000e+00> : vector<4x4xf32>
    %391 = tpu.matmul %389, %390, %cst_216 {dimension_numbers = #tpu.dot_dimension_numbers<[1], [1], [0], [0], [0, 0, 1, 0], [], []>} : vector<4x8xf32>, vector<4x8xf32>, vector<4x4xf32> -> vector<4x4xf32>
    %cst_217 = arith.constant 0.353553385 : f32
    %392 = vector.broadcast %cst_217 : f32 to vector<4x4xf32>
    %393 = arith.mulf %391, %392 : vector<4x4xf32>
    %cst_218 = arith.constant dense<0xFF800000> : vector<4xf32>
    %394 = vector.multi_reduction <maximumf>, %393, %cst_218 [1] : vector<4x4xf32> to vector<4xf32>
    %395 = vector.shape_cast %394 : vector<4xf32> to vector<4x1xf32>
    %396 = vector.broadcast %395 : vector<4x1xf32> to vector<4x4xf32>
    %397 = arith.subf %393, %396 : vector<4x4xf32>
    %398 = math.exp %397 : vector<4x4xf32>
    %cst_219 = arith.constant dense<0.000000e+00> : vector<4xf32>
    %399 = vector.multi_reduction <add>, %398, %cst_219 [1] : vector<4x4xf32> to vector<4xf32>
    %400 = vector.shape_cast %399 : vector<4xf32> to vector<4x1xf32>
    %401 = tpu.reciprocal %400 {approx = true} : vector<4x1xf32> -> vector<4x1xf32>
    %402 = vector.broadcast %401 : vector<4x1xf32> to vector<4x4xf32>
    %403 = arith.mulf %398, %402 : vector<4x4xf32>
    %404 = vector.extract_strided_slice %354 {offsets = [0, 16], sizes = [4, 8], strides = [1, 1]} : vector<4x32xf32> to vector<4x8xf32>
    %cst_220 = arith.constant dense<0.000000e+00> : vector<4x8xf32>
    %405 = tpu.matmul %403, %404, %cst_220 {dimension_numbers = #tpu.dot_dimension_numbers<[1], [0], [0], [1], [0, 0, 1, 1], [], []>} : vector<4x4xf32>, vector<4x8xf32>, vector<4x8xf32> -> vector<4x8xf32>
    %406 = vector.extract_strided_slice %352 {offsets = [0, 24], sizes = [4, 8], strides = [1, 1]} : vector<4x32xf32> to vector<4x8xf32>
    %407 = vector.extract_strided_slice %353 {offsets = [0, 24], sizes = [4, 8], strides = [1, 1]} : vector<4x32xf32> to vector<4x8xf32>
    %cst_221 = arith.constant dense<0.000000e+00> : vector<4x4xf32>
    %408 = tpu.matmul %406, %407, %cst_221 {dimension_numbers = #tpu.dot_dimension_numbers<[1], [1], [0], [0], [0, 0, 1, 0], [], []>} : vector<4x8xf32>, vector<4x8xf32>, vector<4x4xf32> -> vector<4x4xf32>
    %cst_222 = arith.constant 0.353553385 : f32
    %409 = vector.broadcast %cst_222 : f32 to vector<4x4xf32>
    %410 = arith.mulf %408, %409 : vector<4x4xf32>
    %cst_223 = arith.constant dense<0xFF800000> : vector<4xf32>
    %411 = vector.multi_reduction <maximumf>, %410, %cst_223 [1] : vector<4x4xf32> to vector<4xf32>
    %412 = vector.shape_cast %411 : vector<4xf32> to vector<4x1xf32>
    %413 = vector.broadcast %412 : vector<4x1xf32> to vector<4x4xf32>
    %414 = arith.subf %410, %413 : vector<4x4xf32>
    %415 = math.exp %414 : vector<4x4xf32>
    %cst_224 = arith.constant dense<0.000000e+00> : vector<4xf32>
    %416 = vector.multi_reduction <add>, %415, %cst_224 [1] : vector<4x4xf32> to vector<4xf32>
    %417 = vector.shape_cast %416 : vector<4xf32> to vector<4x1xf32>
    %418 = tpu.reciprocal %417 {approx = true} : vector<4x1xf32> -> vector<4x1xf32>
    %419 = vector.broadcast %418 : vector<4x1xf32> to vector<4x4xf32>
    %420 = arith.mulf %415, %419 : vector<4x4xf32>
    %421 = vector.extract_strided_slice %354 {offsets = [0, 24], sizes = [4, 8], strides = [1, 1]} : vector<4x32xf32> to vector<4x8xf32>
    %cst_225 = arith.constant dense<0.000000e+00> : vector<4x8xf32>
    %422 = tpu.matmul %420, %421, %cst_225 {dimension_numbers = #tpu.dot_dimension_numbers<[1], [0], [0], [1], [0, 0, 1, 1], [], []>} : vector<4x4xf32>, vector<4x8xf32>, vector<4x8xf32> -> vector<4x8xf32>
    %423 = tpu.concatenate %371, %388, %405, %422 in 1 : vector<4x8xf32>, vector<4x8xf32>, vector<4x8xf32>, vector<4x8xf32> -> vector<4x32xf32>
    %cst_226 = arith.constant dense<0.000000e+00> : vector<4x32xf32>
    %424 = tpu.matmul %423, %17, %cst_226 {dimension_numbers = #tpu.dot_dimension_numbers<[1], [0], [0], [1], [0, 0, 1, 1], [], []>} : vector<4x32xf32>, vector<32x32xf32>, vector<4x32xf32> -> vector<4x32xf32>
    %425 = vector.broadcast %18 : vector<1x32xf32> to vector<4x32xf32>
    %426 = arith.addf %424, %425 : vector<4x32xf32>
    %427 = arith.addf %16, %426 : vector<4x32xf32>
    %cst_227 = arith.constant dense<0.000000e+00> : vector<4xf32>
    %428 = vector.multi_reduction <add>, %427, %cst_227 [1] : vector<4x32xf32> to vector<4xf32>
    %429 = vector.shape_cast %428 : vector<4xf32> to vector<4x1xf32>
    %cst_228 = arith.constant 3.200000e+01 : f32
    %430 = vector.broadcast %cst_228 : f32 to vector<4x1xf32>
    %431 = arith.divf %429, %430 : vector<4x1xf32>
    %432 = vector.broadcast %431 : vector<4x1xf32> to vector<4x32xf32>
    %433 = arith.subf %427, %432 : vector<4x32xf32>
    %434 = arith.mulf %433, %433 : vector<4x32xf32>
    %cst_229 = arith.constant dense<0.000000e+00> : vector<4xf32>
    %435 = vector.multi_reduction <add>, %434, %cst_229 [1] : vector<4x32xf32> to vector<4xf32>
    %436 = vector.shape_cast %435 : vector<4xf32> to vector<4x1xf32>
    %cst_230 = arith.constant 3.200000e+01 : f32
    %437 = vector.broadcast %cst_230 : f32 to vector<4x1xf32>
    %438 = arith.divf %436, %437 : vector<4x1xf32>
    %439 = vector.broadcast %431 : vector<4x1xf32> to vector<4x32xf32>
    %440 = arith.subf %427, %439 : vector<4x32xf32>
    %cst_231 = arith.constant 9.99999974E-6 : f32
    %441 = vector.broadcast %cst_231 : f32 to vector<4x1xf32>
    %442 = arith.addf %438, %441 : vector<4x1xf32>
    %443 = math.rsqrt %442 : vector<4x1xf32>
    %444 = vector.broadcast %443 : vector<4x1xf32> to vector<4x32xf32>
    %445 = arith.mulf %440, %444 : vector<4x32xf32>
    %446 = vector.broadcast %10 : vector<1x32xf32> to vector<4x32xf32>
    %447 = arith.mulf %445, %446 : vector<4x32xf32>
    %448 = vector.broadcast %11 : vector<1x32xf32> to vector<4x32xf32>
    %449 = arith.addf %447, %448 : vector<4x32xf32>
    %cst_232 = arith.constant dense<0.000000e+00> : vector<4x32xf32>
    %450 = tpu.matmul %449, %4, %cst_232 {dimension_numbers = #tpu.dot_dimension_numbers<[1], [0], [0], [1], [0, 0, 1, 1], [], []>} : vector<4x32xf32>, vector<32x32xf32>, vector<4x32xf32> -> vector<4x32xf32>
    %451 = vector.broadcast %5 : vector<1x32xf32> to vector<4x32xf32>
    %452 = arith.addf %450, %451 : vector<4x32xf32>
    %cst_233 = arith.constant dense<0.000000e+00> : vector<32x64xf32>
    %453 = tpu.matmul %113, %0, %cst_233 {dimension_numbers = #tpu.dot_dimension_numbers<[1], [0], [0], [1], [0, 0, 1, 1], [], []>} : vector<32x32xf32>, vector<32x64xf32>, vector<32x64xf32> -> vector<32x64xf32>
    %454 = vector.broadcast %1 : vector<1x64xf32> to vector<32x64xf32>
    %455 = arith.addf %453, %454 : vector<32x64xf32>
    %456 = vector.extract_strided_slice %455 {offsets = [0, 0], sizes = [32, 32], strides = [1, 1]} : vector<32x64xf32> to vector<32x32xf32>
    %457 = vector.extract_strided_slice %455 {offsets = [0, 32], sizes = [32, 32], strides = [1, 1]} : vector<32x64xf32> to vector<32x32xf32>
    %458 = vector.extract_strided_slice %452 {offsets = [0, 0], sizes = [4, 8], strides = [1, 1]} : vector<4x32xf32> to vector<4x8xf32>
    %459 = vector.extract_strided_slice %456 {offsets = [0, 0], sizes = [32, 8], strides = [1, 1]} : vector<32x32xf32> to vector<32x8xf32>
    %cst_234 = arith.constant dense<0.000000e+00> : vector<4x32xf32>
    %460 = tpu.matmul %458, %459, %cst_234 {dimension_numbers = #tpu.dot_dimension_numbers<[1], [1], [0], [0], [0, 0, 1, 0], [], []>} : vector<4x8xf32>, vector<32x8xf32>, vector<4x32xf32> -> vector<4x32xf32>
    %cst_235 = arith.constant 0.353553385 : f32
    %461 = vector.broadcast %cst_235 : f32 to vector<4x32xf32>
    %462 = arith.mulf %460, %461 : vector<4x32xf32>
    %cst_236 = arith.constant dense<0xFF800000> : vector<4xf32>
    %463 = vector.multi_reduction <maximumf>, %462, %cst_236 [1] : vector<4x32xf32> to vector<4xf32>
    %464 = vector.shape_cast %463 : vector<4xf32> to vector<4x1xf32>
    %465 = vector.broadcast %464 : vector<4x1xf32> to vector<4x32xf32>
    %466 = arith.subf %462, %465 : vector<4x32xf32>
    %467 = math.exp %466 : vector<4x32xf32>
    %cst_237 = arith.constant dense<0.000000e+00> : vector<4xf32>
    %468 = vector.multi_reduction <add>, %467, %cst_237 [1] : vector<4x32xf32> to vector<4xf32>
    %469 = vector.shape_cast %468 : vector<4xf32> to vector<4x1xf32>
    %470 = tpu.reciprocal %469 {approx = true} : vector<4x1xf32> -> vector<4x1xf32>
    %471 = vector.broadcast %470 : vector<4x1xf32> to vector<4x32xf32>
    %472 = arith.mulf %467, %471 : vector<4x32xf32>
    %473 = vector.extract_strided_slice %457 {offsets = [0, 0], sizes = [32, 8], strides = [1, 1]} : vector<32x32xf32> to vector<32x8xf32>
    %cst_238 = arith.constant dense<0.000000e+00> : vector<4x8xf32>
    %474 = tpu.matmul %472, %473, %cst_238 {dimension_numbers = #tpu.dot_dimension_numbers<[1], [0], [0], [1], [0, 0, 1, 1], [], []>} : vector<4x32xf32>, vector<32x8xf32>, vector<4x8xf32> -> vector<4x8xf32>
    %475 = vector.extract_strided_slice %452 {offsets = [0, 8], sizes = [4, 8], strides = [1, 1]} : vector<4x32xf32> to vector<4x8xf32>
    %476 = vector.extract_strided_slice %456 {offsets = [0, 8], sizes = [32, 8], strides = [1, 1]} : vector<32x32xf32> to vector<32x8xf32>
    %cst_239 = arith.constant dense<0.000000e+00> : vector<4x32xf32>
    %477 = tpu.matmul %475, %476, %cst_239 {dimension_numbers = #tpu.dot_dimension_numbers<[1], [1], [0], [0], [0, 0, 1, 0], [], []>} : vector<4x8xf32>, vector<32x8xf32>, vector<4x32xf32> -> vector<4x32xf32>
    %cst_240 = arith.constant 0.353553385 : f32
    %478 = vector.broadcast %cst_240 : f32 to vector<4x32xf32>
    %479 = arith.mulf %477, %478 : vector<4x32xf32>
    %cst_241 = arith.constant dense<0xFF800000> : vector<4xf32>
    %480 = vector.multi_reduction <maximumf>, %479, %cst_241 [1] : vector<4x32xf32> to vector<4xf32>
    %481 = vector.shape_cast %480 : vector<4xf32> to vector<4x1xf32>
    %482 = vector.broadcast %481 : vector<4x1xf32> to vector<4x32xf32>
    %483 = arith.subf %479, %482 : vector<4x32xf32>
    %484 = math.exp %483 : vector<4x32xf32>
    %cst_242 = arith.constant dense<0.000000e+00> : vector<4xf32>
    %485 = vector.multi_reduction <add>, %484, %cst_242 [1] : vector<4x32xf32> to vector<4xf32>
    %486 = vector.shape_cast %485 : vector<4xf32> to vector<4x1xf32>
    %487 = tpu.reciprocal %486 {approx = true} : vector<4x1xf32> -> vector<4x1xf32>
    %488 = vector.broadcast %487 : vector<4x1xf32> to vector<4x32xf32>
    %489 = arith.mulf %484, %488 : vector<4x32xf32>
    %490 = vector.extract_strided_slice %457 {offsets = [0, 8], sizes = [32, 8], strides = [1, 1]} : vector<32x32xf32> to vector<32x8xf32>
    %cst_243 = arith.constant dense<0.000000e+00> : vector<4x8xf32>
    %491 = tpu.matmul %489, %490, %cst_243 {dimension_numbers = #tpu.dot_dimension_numbers<[1], [0], [0], [1], [0, 0, 1, 1], [], []>} : vector<4x32xf32>, vector<32x8xf32>, vector<4x8xf32> -> vector<4x8xf32>
    %492 = vector.extract_strided_slice %452 {offsets = [0, 16], sizes = [4, 8], strides = [1, 1]} : vector<4x32xf32> to vector<4x8xf32>
    %493 = vector.extract_strided_slice %456 {offsets = [0, 16], sizes = [32, 8], strides = [1, 1]} : vector<32x32xf32> to vector<32x8xf32>
    %cst_244 = arith.constant dense<0.000000e+00> : vector<4x32xf32>
    %494 = tpu.matmul %492, %493, %cst_244 {dimension_numbers = #tpu.dot_dimension_numbers<[1], [1], [0], [0], [0, 0, 1, 0], [], []>} : vector<4x8xf32>, vector<32x8xf32>, vector<4x32xf32> -> vector<4x32xf32>
    %cst_245 = arith.constant 0.353553385 : f32
    %495 = vector.broadcast %cst_245 : f32 to vector<4x32xf32>
    %496 = arith.mulf %494, %495 : vector<4x32xf32>
    %cst_246 = arith.constant dense<0xFF800000> : vector<4xf32>
    %497 = vector.multi_reduction <maximumf>, %496, %cst_246 [1] : vector<4x32xf32> to vector<4xf32>
    %498 = vector.shape_cast %497 : vector<4xf32> to vector<4x1xf32>
    %499 = vector.broadcast %498 : vector<4x1xf32> to vector<4x32xf32>
    %500 = arith.subf %496, %499 : vector<4x32xf32>
    %501 = math.exp %500 : vector<4x32xf32>
    %cst_247 = arith.constant dense<0.000000e+00> : vector<4xf32>
    %502 = vector.multi_reduction <add>, %501, %cst_247 [1] : vector<4x32xf32> to vector<4xf32>
    %503 = vector.shape_cast %502 : vector<4xf32> to vector<4x1xf32>
    %504 = tpu.reciprocal %503 {approx = true} : vector<4x1xf32> -> vector<4x1xf32>
    %505 = vector.broadcast %504 : vector<4x1xf32> to vector<4x32xf32>
    %506 = arith.mulf %501, %505 : vector<4x32xf32>
    %507 = vector.extract_strided_slice %457 {offsets = [0, 16], sizes = [32, 8], strides = [1, 1]} : vector<32x32xf32> to vector<32x8xf32>
    %cst_248 = arith.constant dense<0.000000e+00> : vector<4x8xf32>
    %508 = tpu.matmul %506, %507, %cst_248 {dimension_numbers = #tpu.dot_dimension_numbers<[1], [0], [0], [1], [0, 0, 1, 1], [], []>} : vector<4x32xf32>, vector<32x8xf32>, vector<4x8xf32> -> vector<4x8xf32>
    %509 = vector.extract_strided_slice %452 {offsets = [0, 24], sizes = [4, 8], strides = [1, 1]} : vector<4x32xf32> to vector<4x8xf32>
    %510 = vector.extract_strided_slice %456 {offsets = [0, 24], sizes = [32, 8], strides = [1, 1]} : vector<32x32xf32> to vector<32x8xf32>
    %cst_249 = arith.constant dense<0.000000e+00> : vector<4x32xf32>
    %511 = tpu.matmul %509, %510, %cst_249 {dimension_numbers = #tpu.dot_dimension_numbers<[1], [1], [0], [0], [0, 0, 1, 0], [], []>} : vector<4x8xf32>, vector<32x8xf32>, vector<4x32xf32> -> vector<4x32xf32>
    %cst_250 = arith.constant 0.353553385 : f32
    %512 = vector.broadcast %cst_250 : f32 to vector<4x32xf32>
    %513 = arith.mulf %511, %512 : vector<4x32xf32>
    %cst_251 = arith.constant dense<0xFF800000> : vector<4xf32>
    %514 = vector.multi_reduction <maximumf>, %513, %cst_251 [1] : vector<4x32xf32> to vector<4xf32>
    %515 = vector.shape_cast %514 : vector<4xf32> to vector<4x1xf32>
    %516 = vector.broadcast %515 : vector<4x1xf32> to vector<4x32xf32>
    %517 = arith.subf %513, %516 : vector<4x32xf32>
    %518 = math.exp %517 : vector<4x32xf32>
    %cst_252 = arith.constant dense<0.000000e+00> : vector<4xf32>
    %519 = vector.multi_reduction <add>, %518, %cst_252 [1] : vector<4x32xf32> to vector<4xf32>
    %520 = vector.shape_cast %519 : vector<4xf32> to vector<4x1xf32>
    %521 = tpu.reciprocal %520 {approx = true} : vector<4x1xf32> -> vector<4x1xf32>
    %522 = vector.broadcast %521 : vector<4x1xf32> to vector<4x32xf32>
    %523 = arith.mulf %518, %522 : vector<4x32xf32>
    %524 = vector.extract_strided_slice %457 {offsets = [0, 24], sizes = [32, 8], strides = [1, 1]} : vector<32x32xf32> to vector<32x8xf32>
    %cst_253 = arith.constant dense<0.000000e+00> : vector<4x8xf32>
    %525 = tpu.matmul %523, %524, %cst_253 {dimension_numbers = #tpu.dot_dimension_numbers<[1], [0], [0], [1], [0, 0, 1, 1], [], []>} : vector<4x32xf32>, vector<32x8xf32>, vector<4x8xf32> -> vector<4x8xf32>
    %526 = tpu.concatenate %474, %491, %508, %525 in 1 : vector<4x8xf32>, vector<4x8xf32>, vector<4x8xf32>, vector<4x8xf32> -> vector<4x32xf32>
    %cst_254 = arith.constant dense<0.000000e+00> : vector<4x32xf32>
    %527 = tpu.matmul %526, %2, %cst_254 {dimension_numbers = #tpu.dot_dimension_numbers<[1], [0], [0], [1], [0, 0, 1, 1], [], []>} : vector<4x32xf32>, vector<32x32xf32>, vector<4x32xf32> -> vector<4x32xf32>
    %528 = vector.broadcast %3 : vector<1x32xf32> to vector<4x32xf32>
    %529 = arith.addf %527, %528 : vector<4x32xf32>
    %530 = arith.addf %449, %529 : vector<4x32xf32>
    %cst_255 = arith.constant dense<0.000000e+00> : vector<4xf32>
    %531 = vector.multi_reduction <add>, %530, %cst_255 [1] : vector<4x32xf32> to vector<4xf32>
    %532 = vector.shape_cast %531 : vector<4xf32> to vector<4x1xf32>
    %cst_256 = arith.constant 3.200000e+01 : f32
    %533 = vector.broadcast %cst_256 : f32 to vector<4x1xf32>
    %534 = arith.divf %532, %533 : vector<4x1xf32>
    %535 = vector.broadcast %534 : vector<4x1xf32> to vector<4x32xf32>
    %536 = arith.subf %530, %535 : vector<4x32xf32>
    %537 = arith.mulf %536, %536 : vector<4x32xf32>
    %cst_257 = arith.constant dense<0.000000e+00> : vector<4xf32>
    %538 = vector.multi_reduction <add>, %537, %cst_257 [1] : vector<4x32xf32> to vector<4xf32>
    %539 = vector.shape_cast %538 : vector<4xf32> to vector<4x1xf32>
    %cst_258 = arith.constant 3.200000e+01 : f32
    %540 = vector.broadcast %cst_258 : f32 to vector<4x1xf32>
    %541 = arith.divf %539, %540 : vector<4x1xf32>
    %542 = vector.broadcast %534 : vector<4x1xf32> to vector<4x32xf32>
    %543 = arith.subf %530, %542 : vector<4x32xf32>
    %cst_259 = arith.constant 9.99999974E-6 : f32
    %544 = vector.broadcast %cst_259 : f32 to vector<4x1xf32>
    %545 = arith.addf %541, %544 : vector<4x1xf32>
    %546 = math.rsqrt %545 : vector<4x1xf32>
    %547 = vector.broadcast %546 : vector<4x1xf32> to vector<4x32xf32>
    %548 = arith.mulf %543, %547 : vector<4x32xf32>
    %549 = vector.broadcast %12 : vector<1x32xf32> to vector<4x32xf32>
    %550 = arith.mulf %548, %549 : vector<4x32xf32>
    %551 = vector.broadcast %13 : vector<1x32xf32> to vector<4x32xf32>
    %552 = arith.addf %550, %551 : vector<4x32xf32>
    %cst_260 = arith.constant dense<0.000000e+00> : vector<4x128xf32>
    %553 = tpu.matmul %552, %6, %cst_260 {dimension_numbers = #tpu.dot_dimension_numbers<[1], [0], [0], [1], [0, 0, 1, 1], [], []>} : vector<4x32xf32>, vector<32x128xf32>, vector<4x128xf32> -> vector<4x128xf32>
    %554 = vector.broadcast %7 : vector<1x128xf32> to vector<4x128xf32>
    %555 = arith.addf %553, %554 : vector<4x128xf32>
    %cst_261 = arith.constant 0.000000e+00 : f32
    %556 = vector.broadcast %cst_261 : f32 to vector<4x128xf32>
    %557 = arith.maximumf %555, %556 : vector<4x128xf32>
    %cst_262 = arith.constant dense<0.000000e+00> : vector<4x32xf32>
    %558 = tpu.matmul %557, %8, %cst_262 {dimension_numbers = #tpu.dot_dimension_numbers<[1], [0], [0], [1], [0, 0, 1, 1], [], []>} : vector<4x128xf32>, vector<128x32xf32>, vector<4x32xf32> -> vector<4x32xf32>
    %559 = vector.broadcast %9 : vector<1x32xf32> to vector<4x32xf32>
    %560 = arith.addf %558, %559 : vector<4x32xf32>
    %561 = arith.addf %552, %560 : vector<4x32xf32>
    %cst_263 = arith.constant dense<0.000000e+00> : vector<4xf32>
    %562 = vector.multi_reduction <add>, %561, %cst_263 [1] : vector<4x32xf32> to vector<4xf32>
    %563 = vector.shape_cast %562 : vector<4xf32> to vector<4x1xf32>
    %cst_264 = arith.constant 3.200000e+01 : f32
    %564 = vector.broadcast %cst_264 : f32 to vector<4x1xf32>
    %565 = arith.divf %563, %564 : vector<4x1xf32>
    %566 = vector.broadcast %565 : vector<4x1xf32> to vector<4x32xf32>
    %567 = arith.subf %561, %566 : vector<4x32xf32>
    %568 = arith.mulf %567, %567 : vector<4x32xf32>
    %cst_265 = arith.constant dense<0.000000e+00> : vector<4xf32>
    %569 = vector.multi_reduction <add>, %568, %cst_265 [1] : vector<4x32xf32> to vector<4xf32>
    %570 = vector.shape_cast %569 : vector<4xf32> to vector<4x1xf32>
    %cst_266 = arith.constant 3.200000e+01 : f32
    %571 = vector.broadcast %cst_266 : f32 to vector<4x1xf32>
    %572 = arith.divf %570, %571 : vector<4x1xf32>
    %573 = vector.broadcast %565 : vector<4x1xf32> to vector<4x32xf32>
    %574 = arith.subf %561, %573 : vector<4x32xf32>
    %cst_267 = arith.constant 9.99999974E-6 : f32
    %575 = vector.broadcast %cst_267 : f32 to vector<4x1xf32>
    %576 = arith.addf %572, %575 : vector<4x1xf32>
    %577 = math.rsqrt %576 : vector<4x1xf32>
    %578 = vector.broadcast %577 : vector<4x1xf32> to vector<4x32xf32>
    %579 = arith.mulf %574, %578 : vector<4x32xf32>
    %580 = vector.broadcast %14 : vector<1x32xf32> to vector<4x32xf32>
    %581 = arith.mulf %579, %580 : vector<4x32xf32>
    %582 = vector.broadcast %15 : vector<1x32xf32> to vector<4x32xf32>
    %583 = arith.addf %581, %582 : vector<4x32xf32>
    %584 = tpu.concatenate %348, %583 in 0 : vector<4x32xf32>, vector<4x32xf32> -> vector<8x32xf32>
    %cst_268 = arith.constant dense<0.000000e+00> : vector<8x96xf32>
    %585 = tpu.matmul %584, %34, %cst_268 {dimension_numbers = #tpu.dot_dimension_numbers<[1], [0], [0], [1], [0, 0, 1, 1], [], []>} : vector<8x32xf32>, vector<32x96xf32>, vector<8x96xf32> -> vector<8x96xf32>
    %586 = vector.broadcast %35 : vector<1x96xf32> to vector<8x96xf32>
    %587 = arith.addf %585, %586 : vector<8x96xf32>
    %588 = vector.extract_strided_slice %587 {offsets = [0, 0], sizes = [8, 32], strides = [1, 1]} : vector<8x96xf32> to vector<8x32xf32>
    %589 = vector.extract_strided_slice %587 {offsets = [0, 32], sizes = [8, 32], strides = [1, 1]} : vector<8x96xf32> to vector<8x32xf32>
    %590 = vector.extract_strided_slice %587 {offsets = [0, 64], sizes = [8, 32], strides = [1, 1]} : vector<8x96xf32> to vector<8x32xf32>
    %591 = vector.extract_strided_slice %588 {offsets = [0, 0], sizes = [8, 8], strides = [1, 1]} : vector<8x32xf32> to vector<8x8xf32>
    %592 = vector.extract_strided_slice %589 {offsets = [0, 0], sizes = [8, 8], strides = [1, 1]} : vector<8x32xf32> to vector<8x8xf32>
    %cst_269 = arith.constant dense<0.000000e+00> : vector<8x8xf32>
    %593 = tpu.matmul %591, %592, %cst_269 {dimension_numbers = #tpu.dot_dimension_numbers<[1], [1], [0], [0], [0, 0, 1, 0], [], []>} : vector<8x8xf32>, vector<8x8xf32>, vector<8x8xf32> -> vector<8x8xf32>
    %cst_270 = arith.constant 0.353553385 : f32
    %594 = vector.broadcast %cst_270 : f32 to vector<8x8xf32>
    %595 = arith.mulf %593, %594 : vector<8x8xf32>
    %cst_271 = arith.constant dense<0xFF800000> : vector<8xf32>
    %596 = vector.multi_reduction <maximumf>, %595, %cst_271 [1] : vector<8x8xf32> to vector<8xf32>
    %597 = vector.shape_cast %596 : vector<8xf32> to vector<8x1xf32>
    %598 = vector.broadcast %597 : vector<8x1xf32> to vector<8x8xf32>
    %599 = arith.subf %595, %598 : vector<8x8xf32>
    %600 = math.exp %599 : vector<8x8xf32>
    %cst_272 = arith.constant dense<0.000000e+00> : vector<8xf32>
    %601 = vector.multi_reduction <add>, %600, %cst_272 [1] : vector<8x8xf32> to vector<8xf32>
    %602 = vector.shape_cast %601 : vector<8xf32> to vector<8x1xf32>
    %603 = tpu.reciprocal %602 {approx = true} : vector<8x1xf32> -> vector<8x1xf32>
    %604 = vector.broadcast %603 : vector<8x1xf32> to vector<8x8xf32>
    %605 = arith.mulf %600, %604 : vector<8x8xf32>
    %606 = vector.extract_strided_slice %590 {offsets = [0, 0], sizes = [8, 8], strides = [1, 1]} : vector<8x32xf32> to vector<8x8xf32>
    %cst_273 = arith.constant dense<0.000000e+00> : vector<8x8xf32>
    %607 = tpu.matmul %605, %606, %cst_273 {dimension_numbers = #tpu.dot_dimension_numbers<[1], [0], [0], [1], [0, 0, 1, 1], [], []>} : vector<8x8xf32>, vector<8x8xf32>, vector<8x8xf32> -> vector<8x8xf32>
    %608 = vector.extract_strided_slice %588 {offsets = [0, 8], sizes = [8, 8], strides = [1, 1]} : vector<8x32xf32> to vector<8x8xf32>
    %609 = vector.extract_strided_slice %589 {offsets = [0, 8], sizes = [8, 8], strides = [1, 1]} : vector<8x32xf32> to vector<8x8xf32>
    %cst_274 = arith.constant dense<0.000000e+00> : vector<8x8xf32>
    %610 = tpu.matmul %608, %609, %cst_274 {dimension_numbers = #tpu.dot_dimension_numbers<[1], [1], [0], [0], [0, 0, 1, 0], [], []>} : vector<8x8xf32>, vector<8x8xf32>, vector<8x8xf32> -> vector<8x8xf32>
    %cst_275 = arith.constant 0.353553385 : f32
    %611 = vector.broadcast %cst_275 : f32 to vector<8x8xf32>
    %612 = arith.mulf %610, %611 : vector<8x8xf32>
    %cst_276 = arith.constant dense<0xFF800000> : vector<8xf32>
    %613 = vector.multi_reduction <maximumf>, %612, %cst_276 [1] : vector<8x8xf32> to vector<8xf32>
    %614 = vector.shape_cast %613 : vector<8xf32> to vector<8x1xf32>
    %615 = vector.broadcast %614 : vector<8x1xf32> to vector<8x8xf32>
    %616 = arith.subf %612, %615 : vector<8x8xf32>
    %617 = math.exp %616 : vector<8x8xf32>
    %cst_277 = arith.constant dense<0.000000e+00> : vector<8xf32>
    %618 = vector.multi_reduction <add>, %617, %cst_277 [1] : vector<8x8xf32> to vector<8xf32>
    %619 = vector.shape_cast %618 : vector<8xf32> to vector<8x1xf32>
    %620 = tpu.reciprocal %619 {approx = true} : vector<8x1xf32> -> vector<8x1xf32>
    %621 = vector.broadcast %620 : vector<8x1xf32> to vector<8x8xf32>
    %622 = arith.mulf %617, %621 : vector<8x8xf32>
    %623 = vector.extract_strided_slice %590 {offsets = [0, 8], sizes = [8, 8], strides = [1, 1]} : vector<8x32xf32> to vector<8x8xf32>
    %cst_278 = arith.constant dense<0.000000e+00> : vector<8x8xf32>
    %624 = tpu.matmul %622, %623, %cst_278 {dimension_numbers = #tpu.dot_dimension_numbers<[1], [0], [0], [1], [0, 0, 1, 1], [], []>} : vector<8x8xf32>, vector<8x8xf32>, vector<8x8xf32> -> vector<8x8xf32>
    %625 = vector.extract_strided_slice %588 {offsets = [0, 16], sizes = [8, 8], strides = [1, 1]} : vector<8x32xf32> to vector<8x8xf32>
    %626 = vector.extract_strided_slice %589 {offsets = [0, 16], sizes = [8, 8], strides = [1, 1]} : vector<8x32xf32> to vector<8x8xf32>
    %cst_279 = arith.constant dense<0.000000e+00> : vector<8x8xf32>
    %627 = tpu.matmul %625, %626, %cst_279 {dimension_numbers = #tpu.dot_dimension_numbers<[1], [1], [0], [0], [0, 0, 1, 0], [], []>} : vector<8x8xf32>, vector<8x8xf32>, vector<8x8xf32> -> vector<8x8xf32>
    %cst_280 = arith.constant 0.353553385 : f32
    %628 = vector.broadcast %cst_280 : f32 to vector<8x8xf32>
    %629 = arith.mulf %627, %628 : vector<8x8xf32>
    %cst_281 = arith.constant dense<0xFF800000> : vector<8xf32>
    %630 = vector.multi_reduction <maximumf>, %629, %cst_281 [1] : vector<8x8xf32> to vector<8xf32>
    %631 = vector.shape_cast %630 : vector<8xf32> to vector<8x1xf32>
    %632 = vector.broadcast %631 : vector<8x1xf32> to vector<8x8xf32>
    %633 = arith.subf %629, %632 : vector<8x8xf32>
    %634 = math.exp %633 : vector<8x8xf32>
    %cst_282 = arith.constant dense<0.000000e+00> : vector<8xf32>
    %635 = vector.multi_reduction <add>, %634, %cst_282 [1] : vector<8x8xf32> to vector<8xf32>
    %636 = vector.shape_cast %635 : vector<8xf32> to vector<8x1xf32>
    %637 = tpu.reciprocal %636 {approx = true} : vector<8x1xf32> -> vector<8x1xf32>
    %638 = vector.broadcast %637 : vector<8x1xf32> to vector<8x8xf32>
    %639 = arith.mulf %634, %638 : vector<8x8xf32>
    %640 = vector.extract_strided_slice %590 {offsets = [0, 16], sizes = [8, 8], strides = [1, 1]} : vector<8x32xf32> to vector<8x8xf32>
    %cst_283 = arith.constant dense<0.000000e+00> : vector<8x8xf32>
    %641 = tpu.matmul %639, %640, %cst_283 {dimension_numbers = #tpu.dot_dimension_numbers<[1], [0], [0], [1], [0, 0, 1, 1], [], []>} : vector<8x8xf32>, vector<8x8xf32>, vector<8x8xf32> -> vector<8x8xf32>
    %642 = vector.extract_strided_slice %588 {offsets = [0, 24], sizes = [8, 8], strides = [1, 1]} : vector<8x32xf32> to vector<8x8xf32>
    %643 = vector.extract_strided_slice %589 {offsets = [0, 24], sizes = [8, 8], strides = [1, 1]} : vector<8x32xf32> to vector<8x8xf32>
    %cst_284 = arith.constant dense<0.000000e+00> : vector<8x8xf32>
    %644 = tpu.matmul %642, %643, %cst_284 {dimension_numbers = #tpu.dot_dimension_numbers<[1], [1], [0], [0], [0, 0, 1, 0], [], []>} : vector<8x8xf32>, vector<8x8xf32>, vector<8x8xf32> -> vector<8x8xf32>
    %cst_285 = arith.constant 0.353553385 : f32
    %645 = vector.broadcast %cst_285 : f32 to vector<8x8xf32>
    %646 = arith.mulf %644, %645 : vector<8x8xf32>
    %cst_286 = arith.constant dense<0xFF800000> : vector<8xf32>
    %647 = vector.multi_reduction <maximumf>, %646, %cst_286 [1] : vector<8x8xf32> to vector<8xf32>
    %648 = vector.shape_cast %647 : vector<8xf32> to vector<8x1xf32>
    %649 = vector.broadcast %648 : vector<8x1xf32> to vector<8x8xf32>
    %650 = arith.subf %646, %649 : vector<8x8xf32>
    %651 = math.exp %650 : vector<8x8xf32>
    %cst_287 = arith.constant dense<0.000000e+00> : vector<8xf32>
    %652 = vector.multi_reduction <add>, %651, %cst_287 [1] : vector<8x8xf32> to vector<8xf32>
    %653 = vector.shape_cast %652 : vector<8xf32> to vector<8x1xf32>
    %654 = tpu.reciprocal %653 {approx = true} : vector<8x1xf32> -> vector<8x1xf32>
    %655 = vector.broadcast %654 : vector<8x1xf32> to vector<8x8xf32>
    %656 = arith.mulf %651, %655 : vector<8x8xf32>
    %657 = vector.extract_strided_slice %590 {offsets = [0, 24], sizes = [8, 8], strides = [1, 1]} : vector<8x32xf32> to vector<8x8xf32>
    %cst_288 = arith.constant dense<0.000000e+00> : vector<8x8xf32>
    %658 = tpu.matmul %656, %657, %cst_288 {dimension_numbers = #tpu.dot_dimension_numbers<[1], [0], [0], [1], [0, 0, 1, 1], [], []>} : vector<8x8xf32>, vector<8x8xf32>, vector<8x8xf32> -> vector<8x8xf32>
    %659 = tpu.concatenate %607, %624, %641, %658 in 1 : vector<8x8xf32>, vector<8x8xf32>, vector<8x8xf32>, vector<8x8xf32> -> vector<8x32xf32>
    %cst_289 = arith.constant dense<0.000000e+00> : vector<8x32xf32>
    %660 = tpu.matmul %659, %32, %cst_289 {dimension_numbers = #tpu.dot_dimension_numbers<[1], [0], [0], [1], [0, 0, 1, 1], [], []>} : vector<8x32xf32>, vector<32x32xf32>, vector<8x32xf32> -> vector<8x32xf32>
    %661 = vector.broadcast %33 : vector<1x32xf32> to vector<8x32xf32>
    %662 = arith.addf %660, %661 : vector<8x32xf32>
    %663 = arith.addf %584, %662 : vector<8x32xf32>
    %cst_290 = arith.constant dense<0.000000e+00> : vector<8xf32>
    %664 = vector.multi_reduction <add>, %663, %cst_290 [1] : vector<8x32xf32> to vector<8xf32>
    %665 = vector.shape_cast %664 : vector<8xf32> to vector<8x1xf32>
    %cst_291 = arith.constant 3.200000e+01 : f32
    %666 = vector.broadcast %cst_291 : f32 to vector<8x1xf32>
    %667 = arith.divf %665, %666 : vector<8x1xf32>
    %668 = vector.broadcast %667 : vector<8x1xf32> to vector<8x32xf32>
    %669 = arith.subf %663, %668 : vector<8x32xf32>
    %670 = arith.mulf %669, %669 : vector<8x32xf32>
    %cst_292 = arith.constant dense<0.000000e+00> : vector<8xf32>
    %671 = vector.multi_reduction <add>, %670, %cst_292 [1] : vector<8x32xf32> to vector<8xf32>
    %672 = vector.shape_cast %671 : vector<8xf32> to vector<8x1xf32>
    %cst_293 = arith.constant 3.200000e+01 : f32
    %673 = vector.broadcast %cst_293 : f32 to vector<8x1xf32>
    %674 = arith.divf %672, %673 : vector<8x1xf32>
    %675 = vector.broadcast %667 : vector<8x1xf32> to vector<8x32xf32>
    %676 = arith.subf %663, %675 : vector<8x32xf32>
    %cst_294 = arith.constant 9.99999974E-6 : f32
    %677 = vector.broadcast %cst_294 : f32 to vector<8x1xf32>
    %678 = arith.addf %674, %677 : vector<8x1xf32>
    %679 = math.rsqrt %678 : vector<8x1xf32>
    %680 = vector.broadcast %679 : vector<8x1xf32> to vector<8x32xf32>
    %681 = arith.mulf %676, %680 : vector<8x32xf32>
    %682 = vector.broadcast %28 : vector<1x32xf32> to vector<8x32xf32>
    %683 = arith.mulf %681, %682 : vector<8x32xf32>
    %684 = vector.broadcast %29 : vector<1x32xf32> to vector<8x32xf32>
    %685 = arith.addf %683, %684 : vector<8x32xf32>
    %cst_295 = arith.constant dense<0.000000e+00> : vector<8x128xf32>
    %686 = tpu.matmul %685, %24, %cst_295 {dimension_numbers = #tpu.dot_dimension_numbers<[1], [0], [0], [1], [0, 0, 1, 1], [], []>} : vector<8x32xf32>, vector<32x128xf32>, vector<8x128xf32> -> vector<8x128xf32>
    %687 = vector.broadcast %25 : vector<1x128xf32> to vector<8x128xf32>
    %688 = arith.addf %686, %687 : vector<8x128xf32>
    %cst_296 = arith.constant 0.000000e+00 : f32
    %689 = vector.broadcast %cst_296 : f32 to vector<8x128xf32>
    %690 = arith.maximumf %688, %689 : vector<8x128xf32>
    %cst_297 = arith.constant dense<0.000000e+00> : vector<8x32xf32>
    %691 = tpu.matmul %690, %26, %cst_297 {dimension_numbers = #tpu.dot_dimension_numbers<[1], [0], [0], [1], [0, 0, 1, 1], [], []>} : vector<8x128xf32>, vector<128x32xf32>, vector<8x32xf32> -> vector<8x32xf32>
    %692 = vector.broadcast %27 : vector<1x32xf32> to vector<8x32xf32>
    %693 = arith.addf %691, %692 : vector<8x32xf32>
    %694 = arith.addf %685, %693 : vector<8x32xf32>
    %cst_298 = arith.constant dense<0.000000e+00> : vector<8xf32>
    %695 = vector.multi_reduction <add>, %694, %cst_298 [1] : vector<8x32xf32> to vector<8xf32>
    %696 = vector.shape_cast %695 : vector<8xf32> to vector<8x1xf32>
    %cst_299 = arith.constant 3.200000e+01 : f32
    %697 = vector.broadcast %cst_299 : f32 to vector<8x1xf32>
    %698 = arith.divf %696, %697 : vector<8x1xf32>
    %699 = vector.broadcast %698 : vector<8x1xf32> to vector<8x32xf32>
    %700 = arith.subf %694, %699 : vector<8x32xf32>
    %701 = arith.mulf %700, %700 : vector<8x32xf32>
    %cst_300 = arith.constant dense<0.000000e+00> : vector<8xf32>
    %702 = vector.multi_reduction <add>, %701, %cst_300 [1] : vector<8x32xf32> to vector<8xf32>
    %703 = vector.shape_cast %702 : vector<8xf32> to vector<8x1xf32>
    %cst_301 = arith.constant 3.200000e+01 : f32
    %704 = vector.broadcast %cst_301 : f32 to vector<8x1xf32>
    %705 = arith.divf %703, %704 : vector<8x1xf32>
    %706 = vector.broadcast %698 : vector<8x1xf32> to vector<8x32xf32>
    %707 = arith.subf %694, %706 : vector<8x32xf32>
    %cst_302 = arith.constant 9.99999974E-6 : f32
    %708 = vector.broadcast %cst_302 : f32 to vector<8x1xf32>
    %709 = arith.addf %705, %708 : vector<8x1xf32>
    %710 = math.rsqrt %709 : vector<8x1xf32>
    %711 = vector.broadcast %710 : vector<8x1xf32> to vector<8x32xf32>
    %712 = arith.mulf %707, %711 : vector<8x32xf32>
    %713 = vector.broadcast %30 : vector<1x32xf32> to vector<8x32xf32>
    %714 = arith.mulf %712, %713 : vector<8x32xf32>
    %715 = vector.broadcast %31 : vector<1x32xf32> to vector<8x32xf32>
    %716 = arith.addf %714, %715 : vector<8x32xf32>
    %cst_303 = arith.constant dense<0.000000e+00> : vector<8xf32>
    %717 = vector.multi_reduction <add>, %716, %cst_303 [1] : vector<8x32xf32> to vector<8xf32>
    %718 = vector.shape_cast %717 : vector<8xf32> to vector<8x1xf32>
    %cst_304 = arith.constant 3.200000e+01 : f32
    %719 = vector.broadcast %cst_304 : f32 to vector<8x1xf32>
    %720 = arith.divf %718, %719 : vector<8x1xf32>
    %721 = vector.broadcast %720 : vector<8x1xf32> to vector<8x32xf32>
    %722 = arith.subf %716, %721 : vector<8x32xf32>
    %723 = arith.mulf %722, %722 : vector<8x32xf32>
    %cst_305 = arith.constant dense<0.000000e+00> : vector<8xf32>
    %724 = vector.multi_reduction <add>, %723, %cst_305 [1] : vector<8x32xf32> to vector<8xf32>
    %725 = vector.shape_cast %724 : vector<8xf32> to vector<8x1xf32>
    %cst_306 = arith.constant 3.200000e+01 : f32
    %726 = vector.broadcast %cst_306 : f32 to vector<8x1xf32>
    %727 = arith.divf %725, %726 : vector<8x1xf32>
    %728 = vector.broadcast %720 : vector<8x1xf32> to vector<8x32xf32>
    %729 = arith.subf %716, %728 : vector<8x32xf32>
    %cst_307 = arith.constant 9.99999974E-6 : f32
    %730 = vector.broadcast %cst_307 : f32 to vector<8x1xf32>
    %731 = arith.addf %727, %730 : vector<8x1xf32>
    %732 = math.rsqrt %731 : vector<8x1xf32>
    %733 = vector.broadcast %732 : vector<8x1xf32> to vector<8x32xf32>
    %734 = arith.mulf %729, %733 : vector<8x32xf32>
    %735 = arith.mulf %734, %23 : vector<8x32xf32>
    %736 = arith.addf %735, %22 : vector<8x32xf32>
    %c0_308 = arith.constant 0 : index
    %c0_309 = arith.constant 0 : index
    %737 = vector.load %arg68[%c0_308, %c0_309] : memref<8x32xf32, #tpu.memory_space<vmem>>, vector<8x32xf32>
    tpu.vector_store %arg68[%c0_308, %c0_309], %736 {strides = array<i32>} : memref<8x32xf32, #tpu.memory_space<vmem>>, vector<8x32xf32>,
    %c0_310 = arith.constant 0 : index
    %c0_311 = arith.constant 0 : index
    %738 = vector.load %arg68[%c0_310, %c0_311] : memref<8x32xf32, #tpu.memory_space<vmem>>, vector<1x32xf32>
    %739 = vector.extract_strided_slice %36 {offsets = [0, 0], sizes = [32, 21], strides = [1, 1]} : vector<256x21xf32> to vector<32x21xf32>
    %cst_312 = arith.constant dense<0.000000e+00> : vector<1x21xf32>
    %740 = tpu.matmul %738, %739, %cst_312 {dimension_numbers = #tpu.dot_dimension_numbers<[1], [0], [0], [1], [0, 0, 1, 1], [], []>} : vector<1x32xf32>, vector<32x21xf32>, vector<1x21xf32> -> vector<1x21xf32>
    %741 = arith.addf %37, %740 : vector<1x21xf32>
    %c1 = arith.constant 1 : index
    %c0_313 = arith.constant 0 : index
    %742 = vector.load %arg68[%c1, %c0_313] : memref<8x32xf32, #tpu.memory_space<vmem>>, vector<1x32xf32>
    %743 = vector.extract_strided_slice %36 {offsets = [32, 0], sizes = [32, 21], strides = [1, 1]} : vector<256x21xf32> to vector<32x21xf32>
    %cst_314 = arith.constant dense<0.000000e+00> : vector<1x21xf32>
    %744 = tpu.matmul %742, %743, %cst_314 {dimension_numbers = #tpu.dot_dimension_numbers<[1], [0], [0], [1], [0, 0, 1, 1], [], []>} : vector<1x32xf32>, vector<32x21xf32>, vector<1x21xf32> -> vector<1x21xf32>
    %745 = arith.addf %741, %744 : vector<1x21xf32>
    %c2 = arith.constant 2 : index
    %c0_315 = arith.constant 0 : index
    %746 = vector.load %arg68[%c2, %c0_315] : memref<8x32xf32, #tpu.memory_space<vmem>>, vector<1x32xf32>
    %747 = vector.extract_strided_slice %36 {offsets = [64, 0], sizes = [32, 21], strides = [1, 1]} : vector<256x21xf32> to vector<32x21xf32>
    %cst_316 = arith.constant dense<0.000000e+00> : vector<1x21xf32>
    %748 = tpu.matmul %746, %747, %cst_316 {dimension_numbers = #tpu.dot_dimension_numbers<[1], [0], [0], [1], [0, 0, 1, 1], [], []>} : vector<1x32xf32>, vector<32x21xf32>, vector<1x21xf32> -> vector<1x21xf32>
    %749 = arith.addf %745, %748 : vector<1x21xf32>
    %c3 = arith.constant 3 : index
    %c0_317 = arith.constant 0 : index
    %750 = vector.load %arg68[%c3, %c0_317] : memref<8x32xf32, #tpu.memory_space<vmem>>, vector<1x32xf32>
    %751 = vector.extract_strided_slice %36 {offsets = [96, 0], sizes = [32, 21], strides = [1, 1]} : vector<256x21xf32> to vector<32x21xf32>
    %cst_318 = arith.constant dense<0.000000e+00> : vector<1x21xf32>
    %752 = tpu.matmul %750, %751, %cst_318 {dimension_numbers = #tpu.dot_dimension_numbers<[1], [0], [0], [1], [0, 0, 1, 1], [], []>} : vector<1x32xf32>, vector<32x21xf32>, vector<1x21xf32> -> vector<1x21xf32>
    %753 = arith.addf %749, %752 : vector<1x21xf32>
    %c4 = arith.constant 4 : index
    %c0_319 = arith.constant 0 : index
    %754 = vector.load %arg68[%c4, %c0_319] : memref<8x32xf32, #tpu.memory_space<vmem>>, vector<1x32xf32>
    %755 = vector.extract_strided_slice %36 {offsets = [128, 0], sizes = [32, 21], strides = [1, 1]} : vector<256x21xf32> to vector<32x21xf32>
    %cst_320 = arith.constant dense<0.000000e+00> : vector<1x21xf32>
    %756 = tpu.matmul %754, %755, %cst_320 {dimension_numbers = #tpu.dot_dimension_numbers<[1], [0], [0], [1], [0, 0, 1, 1], [], []>} : vector<1x32xf32>, vector<32x21xf32>, vector<1x21xf32> -> vector<1x21xf32>
    %757 = arith.addf %753, %756 : vector<1x21xf32>
    %c5 = arith.constant 5 : index
    %c0_321 = arith.constant 0 : index
    %758 = vector.load %arg68[%c5, %c0_321] : memref<8x32xf32, #tpu.memory_space<vmem>>, vector<1x32xf32>
    %759 = vector.extract_strided_slice %36 {offsets = [160, 0], sizes = [32, 21], strides = [1, 1]} : vector<256x21xf32> to vector<32x21xf32>
    %cst_322 = arith.constant dense<0.000000e+00> : vector<1x21xf32>
    %760 = tpu.matmul %758, %759, %cst_322 {dimension_numbers = #tpu.dot_dimension_numbers<[1], [0], [0], [1], [0, 0, 1, 1], [], []>} : vector<1x32xf32>, vector<32x21xf32>, vector<1x21xf32> -> vector<1x21xf32>
    %761 = arith.addf %757, %760 : vector<1x21xf32>
    %c6 = arith.constant 6 : index
    %c0_323 = arith.constant 0 : index
    %762 = vector.load %arg68[%c6, %c0_323] : memref<8x32xf32, #tpu.memory_space<vmem>>, vector<1x32xf32>
    %763 = vector.extract_strided_slice %36 {offsets = [192, 0], sizes = [32, 21], strides = [1, 1]} : vector<256x21xf32> to vector<32x21xf32>
    %cst_324 = arith.constant dense<0.000000e+00> : vector<1x21xf32>
    %764 = tpu.matmul %762, %763, %cst_324 {dimension_numbers = #tpu.dot_dimension_numbers<[1], [0], [0], [1], [0, 0, 1, 1], [], []>} : vector<1x32xf32>, vector<32x21xf32>, vector<1x21xf32> -> vector<1x21xf32>
    %765 = arith.addf %761, %764 : vector<1x21xf32>
    %c7 = arith.constant 7 : index
    %c0_325 = arith.constant 0 : index
    %766 = vector.load %arg68[%c7, %c0_325] : memref<8x32xf32, #tpu.memory_space<vmem>>, vector<1x32xf32>
    %767 = vector.extract_strided_slice %36 {offsets = [224, 0], sizes = [32, 21], strides = [1, 1]} : vector<256x21xf32> to vector<32x21xf32>
    %cst_326 = arith.constant dense<0.000000e+00> : vector<1x21xf32>
    %768 = tpu.matmul %766, %767, %cst_326 {dimension_numbers = #tpu.dot_dimension_numbers<[1], [0], [0], [1], [0, 0, 1, 1], [], []>} : vector<1x32xf32>, vector<32x21xf32>, vector<1x21xf32> -> vector<1x21xf32>
    %769 = arith.addf %765, %768 : vector<1x21xf32>
    %c0_327 = arith.constant 0 : index
    %c0_328 = arith.constant 0 : index
    %c0_329 = arith.constant 0 : index
    %770 = vector.load %arg67[%c0_327, %c0_328, %c0_329] : memref<1x1x21xf32, #tpu.memory_space<vmem>>, vector<1x1x21xf32>
    %771 = vector.shape_cast %770 : vector<1x1x21xf32> to vector<1x21xf32>
    %772 = vector.shape_cast %769 : vector<1x21xf32> to vector<1x1x21xf32>
    tpu.vector_store %arg67[%c0_327, %c0_328, %c0_329], %772 {strides = array<i32>} : memref<1x1x21xf32, #tpu.memory_space<vmem>>, vector<1x1x21xf32>,
    return
  }
  func.func @transform_0(%arg0: i32) -> (i32, i32, i32) {
    %c0_i32 = arith.constant 0 : i32
    %c0_i32_0 = arith.constant 0 : i32
    %c0_i32_1 = arith.constant 0 : i32
    return %arg0, %c0_i32, %c0_i32_0 : i32, i32, i32
  }
  func.func @transform_1(%arg0: i32) -> (i32, i32, i32) {
    %c0_i32 = arith.constant 0 : i32
    %c0_i32_0 = arith.constant 0 : i32
    %c0_i32_1 = arith.constant 0 : i32
    return %arg0, %c0_i32, %c0_i32_0 : i32, i32, i32
  }
  func.func @transform_2(%arg0: i32) -> (i32, i32) {
    %c0_i32 = arith.constant 0 : i32
    %c0_i32_0 = arith.constant 0 : i32
    %c0_i32_1 = arith.constant 0 : i32
    return %c0_i32, %c0_i32_0 : i32, i32
  }
  func.func @transform_3(%arg0: i32) -> (i32, i32) {
    %c0_i32 = arith.constant 0 : i32
    %c0_i32_0 = arith.constant 0 : i32
    %c0_i32_1 = arith.constant 0 : i32
    return %c0_i32, %c0_i32_0 : i32, i32
  }
  func.func @transform_4(%arg0: i32) -> (i32, i32) {
    %c0_i32 = arith.constant 0 : i32
    %c0_i32_0 = arith.constant 0 : i32
    %c0_i32_1 = arith.constant 0 : i32
    return %c0_i32, %c0_i32_0 : i32, i32
  }
  func.func @transform_5(%arg0: i32) -> (i32, i32) {
    %c0_i32 = arith.constant 0 : i32
    %c0_i32_0 = arith.constant 0 : i32
    %c0_i32_1 = arith.constant 0 : i32
    return %c0_i32, %c0_i32_0 : i32, i32
  }
  func.func @transform_6(%arg0: i32) -> (i32, i32) {
    %c0_i32 = arith.constant 0 : i32
    %c0_i32_0 = arith.constant 0 : i32
    %c0_i32_1 = arith.constant 0 : i32
    return %c0_i32, %c0_i32_0 : i32, i32
  }
  func.func @transform_7(%arg0: i32) -> (i32, i32) {
    %c0_i32 = arith.constant 0 : i32
    %c0_i32_0 = arith.constant 0 : i32
    %c0_i32_1 = arith.constant 0 : i32
    return %c0_i32, %c0_i32_0 : i32, i32
  }
  func.func @transform_8(%arg0: i32) -> (i32, i32) {
    %c0_i32 = arith.constant 0 : i32
    %c0_i32_0 = arith.constant 0 : i32
    %c0_i32_1 = arith.constant 0 : i32
    return %c0_i32, %c0_i32_0 : i32, i32
  }
  func.func @transform_9(%arg0: i32) -> (i32, i32) {
    %c0_i32 = arith.constant 0 : i32
    %c0_i32_0 = arith.constant 0 : i32
    %c0_i32_1 = arith.constant 0 : i32
    return %c0_i32, %c0_i32_0 : i32, i32
  }
  func.func @transform_10(%arg0: i32) -> (i32, i32) {
    %c0_i32 = arith.constant 0 : i32
    %c0_i32_0 = arith.constant 0 : i32
    %c0_i32_1 = arith.constant 0 : i32
    return %c0_i32, %c0_i32_0 : i32, i32
  }
  func.func @transform_11(%arg0: i32) -> (i32, i32) {
    %c0_i32 = arith.constant 0 : i32
    %c0_i32_0 = arith.constant 0 : i32
    %c0_i32_1 = arith.constant 0 : i32
    return %c0_i32, %c0_i32_0 : i32, i32
  }
  func.func @transform_12(%arg0: i32) -> (i32, i32) {
    %c0_i32 = arith.constant 0 : i32
    %c0_i32_0 = arith.constant 0 : i32
    %c0_i32_1 = arith.constant 0 : i32
    return %c0_i32, %c0_i32_0 : i32, i32
  }
  func.func @transform_13(%arg0: i32) -> (i32, i32) {
    %c0_i32 = arith.constant 0 : i32
    %c0_i32_0 = arith.constant 0 : i32
    %c0_i32_1 = arith.constant 0 : i32
    return %c0_i32, %c0_i32_0 : i32, i32
  }
  func.func @transform_14(%arg0: i32) -> (i32, i32) {
    %c0_i32 = arith.constant 0 : i32
    %c0_i32_0 = arith.constant 0 : i32
    %c0_i32_1 = arith.constant 0 : i32
    return %c0_i32, %c0_i32_0 : i32, i32
  }
  func.func @transform_15(%arg0: i32) -> (i32, i32) {
    %c0_i32 = arith.constant 0 : i32
    %c0_i32_0 = arith.constant 0 : i32
    %c0_i32_1 = arith.constant 0 : i32
    return %c0_i32, %c0_i32_0 : i32, i32
  }
  func.func @transform_16(%arg0: i32) -> (i32, i32) {
    %c0_i32 = arith.constant 0 : i32
    %c0_i32_0 = arith.constant 0 : i32
    %c0_i32_1 = arith.constant 0 : i32
    return %c0_i32, %c0_i32_0 : i32, i32
  }
  func.func @transform_17(%arg0: i32) -> (i32, i32) {
    %c0_i32 = arith.constant 0 : i32
    %c0_i32_0 = arith.constant 0 : i32
    %c0_i32_1 = arith.constant 0 : i32
    return %c0_i32, %c0_i32_0 : i32, i32
  }
  func.func @transform_18(%arg0: i32) -> (i32, i32) {
    %c0_i32 = arith.constant 0 : i32
    %c0_i32_0 = arith.constant 0 : i32
    %c0_i32_1 = arith.constant 0 : i32
    return %c0_i32, %c0_i32_0 : i32, i32
  }
  func.func @transform_19(%arg0: i32) -> (i32, i32) {
    %c0_i32 = arith.constant 0 : i32
    %c0_i32_0 = arith.constant 0 : i32
    %c0_i32_1 = arith.constant 0 : i32
    return %c0_i32, %c0_i32_0 : i32, i32
  }
  func.func @transform_20(%arg0: i32) -> (i32, i32) {
    %c0_i32 = arith.constant 0 : i32
    %c0_i32_0 = arith.constant 0 : i32
    %c0_i32_1 = arith.constant 0 : i32
    return %c0_i32, %c0_i32_0 : i32, i32
  }
  func.func @transform_21(%arg0: i32) -> (i32, i32) {
    %c0_i32 = arith.constant 0 : i32
    %c0_i32_0 = arith.constant 0 : i32
    %c0_i32_1 = arith.constant 0 : i32
    return %c0_i32, %c0_i32_0 : i32, i32
  }
  func.func @transform_22(%arg0: i32) -> (i32, i32) {
    %c0_i32 = arith.constant 0 : i32
    %c0_i32_0 = arith.constant 0 : i32
    %c0_i32_1 = arith.constant 0 : i32
    return %c0_i32, %c0_i32_0 : i32, i32
  }
  func.func @transform_23(%arg0: i32) -> (i32, i32) {
    %c0_i32 = arith.constant 0 : i32
    %c0_i32_0 = arith.constant 0 : i32
    %c0_i32_1 = arith.constant 0 : i32
    return %c0_i32, %c0_i32_0 : i32, i32
  }
  func.func @transform_24(%arg0: i32) -> (i32, i32) {
    %c0_i32 = arith.constant 0 : i32
    %c0_i32_0 = arith.constant 0 : i32
    %c0_i32_1 = arith.constant 0 : i32
    return %c0_i32, %c0_i32_0 : i32, i32
  }
  func.func @transform_25(%arg0: i32) -> (i32, i32) {
    %c0_i32 = arith.constant 0 : i32
    %c0_i32_0 = arith.constant 0 : i32
    %c0_i32_1 = arith.constant 0 : i32
    return %c0_i32, %c0_i32_0 : i32, i32
  }
  func.func @transform_26(%arg0: i32) -> (i32, i32) {
    %c0_i32 = arith.constant 0 : i32
    %c0_i32_0 = arith.constant 0 : i32
    %c0_i32_1 = arith.constant 0 : i32
    return %c0_i32, %c0_i32_0 : i32, i32
  }
  func.func @transform_27(%arg0: i32) -> (i32, i32) {
    %c0_i32 = arith.constant 0 : i32
    %c0_i32_0 = arith.constant 0 : i32
    %c0_i32_1 = arith.constant 0 : i32
    return %c0_i32, %c0_i32_0 : i32, i32
  }
  func.func @transform_28(%arg0: i32) -> (i32, i32) {
    %c0_i32 = arith.constant 0 : i32
    %c0_i32_0 = arith.constant 0 : i32
    %c0_i32_1 = arith.constant 0 : i32
    return %c0_i32, %c0_i32_0 : i32, i32
  }
  func.func @transform_29(%arg0: i32) -> (i32, i32) {
    %c0_i32 = arith.constant 0 : i32
    %c0_i32_0 = arith.constant 0 : i32
    %c0_i32_1 = arith.constant 0 : i32
    return %c0_i32, %c0_i32_0 : i32, i32
  }
  func.func @transform_30(%arg0: i32) -> (i32, i32) {
    %c0_i32 = arith.constant 0 : i32
    %c0_i32_0 = arith.constant 0 : i32
    %c0_i32_1 = arith.constant 0 : i32
    return %c0_i32, %c0_i32_0 : i32, i32
  }
  func.func @transform_31(%arg0: i32) -> (i32, i32) {
    %c0_i32 = arith.constant 0 : i32
    %c0_i32_0 = arith.constant 0 : i32
    %c0_i32_1 = arith.constant 0 : i32
    return %c0_i32, %c0_i32_0 : i32, i32
  }
  func.func @transform_32(%arg0: i32) -> (i32, i32) {
    %c0_i32 = arith.constant 0 : i32
    %c0_i32_0 = arith.constant 0 : i32
    %c0_i32_1 = arith.constant 0 : i32
    return %c0_i32, %c0_i32_0 : i32, i32
  }
  func.func @transform_33(%arg0: i32) -> (i32, i32) {
    %c0_i32 = arith.constant 0 : i32
    %c0_i32_0 = arith.constant 0 : i32
    %c0_i32_1 = arith.constant 0 : i32
    return %c0_i32, %c0_i32_0 : i32, i32
  }
  func.func @transform_34(%arg0: i32) -> (i32, i32) {
    %c0_i32 = arith.constant 0 : i32
    %c0_i32_0 = arith.constant 0 : i32
    %c0_i32_1 = arith.constant 0 : i32
    return %c0_i32, %c0_i32_0 : i32, i32
  }
  func.func @transform_35(%arg0: i32) -> (i32, i32) {
    %c0_i32 = arith.constant 0 : i32
    %c0_i32_0 = arith.constant 0 : i32
    %c0_i32_1 = arith.constant 0 : i32
    return %c0_i32, %c0_i32_0 : i32, i32
  }
  func.func @transform_36(%arg0: i32) -> (i32, i32) {
    %c0_i32 = arith.constant 0 : i32
    %c0_i32_0 = arith.constant 0 : i32
    %c0_i32_1 = arith.constant 0 : i32
    return %c0_i32, %c0_i32_0 : i32, i32
  }
  func.func @transform_37(%arg0: i32) -> (i32, i32) {
    %c0_i32 = arith.constant 0 : i32
    %c0_i32_0 = arith.constant 0 : i32
    %c0_i32_1 = arith.constant 0 : i32
    return %c0_i32, %c0_i32_0 : i32, i32
  }
  func.func @transform_38(%arg0: i32) -> (i32, i32) {
    %c0_i32 = arith.constant 0 : i32
    %c0_i32_0 = arith.constant 0 : i32
    %c0_i32_1 = arith.constant 0 : i32
    return %c0_i32, %c0_i32_0 : i32, i32
  }
  func.func @transform_39(%arg0: i32) -> (i32, i32) {
    %c0_i32 = arith.constant 0 : i32
    %c0_i32_0 = arith.constant 0 : i32
    %c0_i32_1 = arith.constant 0 : i32
    return %c0_i32, %c0_i32_0 : i32, i32
  }
  func.func @transform_40(%arg0: i32) -> (i32, i32) {
    %c0_i32 = arith.constant 0 : i32
    %c0_i32_0 = arith.constant 0 : i32
    %c0_i32_1 = arith.constant 0 : i32
    return %c0_i32, %c0_i32_0 : i32, i32
  }
  func.func @transform_41(%arg0: i32) -> (i32, i32) {
    %c0_i32 = arith.constant 0 : i32
    %c0_i32_0 = arith.constant 0 : i32
    %c0_i32_1 = arith.constant 0 : i32
    return %c0_i32, %c0_i32_0 : i32, i32
  }
  func.func @transform_42(%arg0: i32) -> (i32, i32) {
    %c0_i32 = arith.constant 0 : i32
    %c0_i32_0 = arith.constant 0 : i32
    %c0_i32_1 = arith.constant 0 : i32
    return %c0_i32, %c0_i32_0 : i32, i32
  }
  func.func @transform_43(%arg0: i32) -> (i32, i32) {
    %c0_i32 = arith.constant 0 : i32
    %c0_i32_0 = arith.constant 0 : i32
    %c0_i32_1 = arith.constant 0 : i32
    return %c0_i32, %c0_i32_0 : i32, i32
  }
  func.func @transform_44(%arg0: i32) -> (i32, i32) {
    %c0_i32 = arith.constant 0 : i32
    %c0_i32_0 = arith.constant 0 : i32
    %c0_i32_1 = arith.constant 0 : i32
    return %c0_i32, %c0_i32_0 : i32, i32
  }
  func.func @transform_45(%arg0: i32) -> (i32, i32) {
    %c0_i32 = arith.constant 0 : i32
    %c0_i32_0 = arith.constant 0 : i32
    %c0_i32_1 = arith.constant 0 : i32
    return %c0_i32, %c0_i32_0 : i32, i32
  }
  func.func @transform_46(%arg0: i32) -> (i32, i32) {
    %c0_i32 = arith.constant 0 : i32
    %c0_i32_0 = arith.constant 0 : i32
    %c0_i32_1 = arith.constant 0 : i32
    return %c0_i32, %c0_i32_0 : i32, i32
  }
  func.func @transform_47(%arg0: i32) -> (i32, i32) {
    %c0_i32 = arith.constant 0 : i32
    %c0_i32_0 = arith.constant 0 : i32
    %c0_i32_1 = arith.constant 0 : i32
    return %c0_i32, %c0_i32_0 : i32, i32
  }
  func.func @transform_48(%arg0: i32) -> (i32, i32) {
    %c0_i32 = arith.constant 0 : i32
    %c0_i32_0 = arith.constant 0 : i32
    %c0_i32_1 = arith.constant 0 : i32
    return %c0_i32, %c0_i32_0 : i32, i32
  }
  func.func @transform_49(%arg0: i32) -> (i32, i32) {
    %c0_i32 = arith.constant 0 : i32
    %c0_i32_0 = arith.constant 0 : i32
    %c0_i32_1 = arith.constant 0 : i32
    return %c0_i32, %c0_i32_0 : i32, i32
  }
  func.func @transform_50(%arg0: i32) -> (i32, i32) {
    %c0_i32 = arith.constant 0 : i32
    %c0_i32_0 = arith.constant 0 : i32
    %c0_i32_1 = arith.constant 0 : i32
    return %c0_i32, %c0_i32_0 : i32, i32
  }
  func.func @transform_51(%arg0: i32) -> (i32, i32) {
    %c0_i32 = arith.constant 0 : i32
    %c0_i32_0 = arith.constant 0 : i32
    %c0_i32_1 = arith.constant 0 : i32
    return %c0_i32, %c0_i32_0 : i32, i32
  }
  func.func @transform_52(%arg0: i32) -> (i32, i32) {
    %c0_i32 = arith.constant 0 : i32
    %c0_i32_0 = arith.constant 0 : i32
    %c0_i32_1 = arith.constant 0 : i32
    return %c0_i32, %c0_i32_0 : i32, i32
  }
  func.func @transform_53(%arg0: i32) -> (i32, i32) {
    %c0_i32 = arith.constant 0 : i32
    %c0_i32_0 = arith.constant 0 : i32
    %c0_i32_1 = arith.constant 0 : i32
    return %c0_i32, %c0_i32_0 : i32, i32
  }
  func.func @transform_54(%arg0: i32) -> (i32, i32) {
    %c0_i32 = arith.constant 0 : i32
    %c0_i32_0 = arith.constant 0 : i32
    %c0_i32_1 = arith.constant 0 : i32
    return %c0_i32, %c0_i32_0 : i32, i32
  }
  func.func @transform_55(%arg0: i32) -> (i32, i32) {
    %c0_i32 = arith.constant 0 : i32
    %c0_i32_0 = arith.constant 0 : i32
    %c0_i32_1 = arith.constant 0 : i32
    return %c0_i32, %c0_i32_0 : i32, i32
  }
  func.func @transform_56(%arg0: i32) -> (i32, i32) {
    %c0_i32 = arith.constant 0 : i32
    %c0_i32_0 = arith.constant 0 : i32
    %c0_i32_1 = arith.constant 0 : i32
    return %c0_i32, %c0_i32_0 : i32, i32
  }
  func.func @transform_57(%arg0: i32) -> (i32, i32) {
    %c0_i32 = arith.constant 0 : i32
    %c0_i32_0 = arith.constant 0 : i32
    %c0_i32_1 = arith.constant 0 : i32
    return %c0_i32, %c0_i32_0 : i32, i32
  }
  func.func @transform_58(%arg0: i32) -> (i32, i32) {
    %c0_i32 = arith.constant 0 : i32
    %c0_i32_0 = arith.constant 0 : i32
    %c0_i32_1 = arith.constant 0 : i32
    return %c0_i32, %c0_i32_0 : i32, i32
  }
  func.func @transform_59(%arg0: i32) -> (i32, i32) {
    %c0_i32 = arith.constant 0 : i32
    %c0_i32_0 = arith.constant 0 : i32
    %c0_i32_1 = arith.constant 0 : i32
    return %c0_i32, %c0_i32_0 : i32, i32
  }
  func.func @transform_60(%arg0: i32) -> (i32, i32) {
    %c0_i32 = arith.constant 0 : i32
    %c0_i32_0 = arith.constant 0 : i32
    %c0_i32_1 = arith.constant 0 : i32
    return %c0_i32, %c0_i32_0 : i32, i32
  }
  func.func @transform_61(%arg0: i32) -> (i32, i32) {
    %c0_i32 = arith.constant 0 : i32
    %c0_i32_0 = arith.constant 0 : i32
    %c0_i32_1 = arith.constant 0 : i32
    return %c0_i32, %c0_i32_0 : i32, i32
  }
  func.func @transform_62(%arg0: i32) -> (i32, i32) {
    %c0_i32 = arith.constant 0 : i32
    %c0_i32_0 = arith.constant 0 : i32
    %c0_i32_1 = arith.constant 0 : i32
    return %c0_i32, %c0_i32_0 : i32, i32
  }
  func.func @transform_63(%arg0: i32) -> (i32, i32) {
    %c0_i32 = arith.constant 0 : i32
    %c0_i32_0 = arith.constant 0 : i32
    %c0_i32_1 = arith.constant 0 : i32
    return %c0_i32, %c0_i32_0 : i32, i32
  }
  func.func @transform_64(%arg0: i32) -> (i32, i32) {
    %c0_i32 = arith.constant 0 : i32
    %c0_i32_0 = arith.constant 0 : i32
    %c0_i32_1 = arith.constant 0 : i32
    return %c0_i32, %c0_i32_0 : i32, i32
  }
  func.func @transform_65(%arg0: i32) -> (i32, i32) {
    %c0_i32 = arith.constant 0 : i32
    %c0_i32_0 = arith.constant 0 : i32
    %c0_i32_1 = arith.constant 0 : i32
    return %c0_i32, %c0_i32_0 : i32, i32
  }
  func.func @transform_66(%arg0: i32) -> (i32, i32, i32) {
    %c0_i32 = arith.constant 0 : i32
    %c0_i32_0 = arith.constant 0 : i32
    %c0_i32_1 = arith.constant 0 : i32
    return %arg0, %c0_i32, %c0_i32_0 : i32, i32, i32
  }
}

</mosaic_0001>

<llo_original>
// kernel: sparse_sync_forward.1
$region0: #{sparse_sync_forward.1}
  #allocation0 [shape = 'u32[]', space=smem, size = 0x4, offset = 0x4, fixed_abs, tag = 'smem constant byte address 0x4 - core index']
  #allocation1 [shape = 'u32[144,128]{1,0:T(1,128)}', space=vmem, size = 0x12000, scoped, tag = 'internal scratch']
  #allocation2 [shape = 'f32[8,32]{1,0:T(8,128)}', space=vmem, size = 0x1000, scoped, tag = 'scratch operand']
  %s0 = inlined_call_operand.smem [shape: u32[67], index: -1, kind: input, shape index: {}]
  %s1 = sld [smem:[%s0]]
  %s2 = scalar_lea.smem %s0, 1
  %s3 = sld [smem:[%s2]]
  %s4 = scalar_lea.smem %s0, 2
  %s5 = sld [smem:[%s4]]
  %s6 = scalar_lea.smem %s0, 3
  %s7 = sld [smem:[%s6]]
  %s8 = scalar_lea.smem %s0, 4
  %s9 = sld [smem:[%s8]]
  %s10 = scalar_lea.smem %s0, 5
  %s11 = sld [smem:[%s10]]
  %s12 = scalar_lea.smem %s0, 6
  %s13 = sld [smem:[%s12]]
  %s14 = scalar_lea.smem %s0, 7
  %s15 = sld [smem:[%s14]]
  %s16 = scalar_lea.smem %s0, 8
  %s17 = sld [smem:[%s16]]
  %s18 = scalar_lea.smem %s0, 9
  %s19 = sld [smem:[%s18]]
  %s20 = scalar_lea.smem %s0, 10
  %s21 = sld [smem:[%s20]]
  %s22 = scalar_lea.smem %s0, 11
  %s23 = sld [smem:[%s22]]
  %s24 = scalar_lea.smem %s0, 12
  %s25 = sld [smem:[%s24]]
  %s26 = scalar_lea.smem %s0, 13
  %s27 = sld [smem:[%s26]]
  %s28 = scalar_lea.smem %s0, 14
  %s29 = sld [smem:[%s28]]
  %s30 = scalar_lea.smem %s0, 15
  %s31 = sld [smem:[%s30]]
  %s32 = scalar_lea.smem %s0, 16
  %s33 = sld [smem:[%s32]]
  %s34 = scalar_lea.smem %s0, 17
  %s35 = sld [smem:[%s34]]
  %s36 = scalar_lea.smem %s0, 18
  %s37 = sld [smem:[%s36]]
  %s38 = scalar_lea.smem %s0, 19
  %s39 = sld [smem:[%s38]]
  %s40 = scalar_lea.smem %s0, 20
  %s41 = sld [smem:[%s40]]
  %s42 = scalar_lea.smem %s0, 21
  %s43 = sld [smem:[%s42]]
  %s44 = scalar_lea.smem %s0, 22
  %s45 = sld [smem:[%s44]]
  %s46 = scalar_lea.smem %s0, 23
  %s47 = sld [smem:[%s46]]
  %s48 = scalar_lea.smem %s0, 24
  %s49 = sld [smem:[%s48]]
  %s50 = scalar_lea.smem %s0, 25
  %s51 = sld [smem:[%s50]]
  %s52 = scalar_lea.smem %s0, 26
  %s53 = sld [smem:[%s52]]
  %s54 = scalar_lea.smem %s0, 27
  %s55 = sld [smem:[%s54]]
  %s56 = scalar_lea.smem %s0, 28
  %s57 = sld [smem:[%s56]]
  %s58 = scalar_lea.smem %s0, 29
  %s59 = sld [smem:[%s58]]
  %s60 = scalar_lea.smem %s0, 30
  %s61 = sld [smem:[%s60]]
  %s62 = scalar_lea.smem %s0, 31
  %s63 = sld [smem:[%s62]]
  %s64 = scalar_lea.smem %s0, 32
  %s65 = sld [smem:[%s64]]
  %s66 = scalar_lea.smem %s0, 33
  %s67 = sld [smem:[%s66]]
  %s68 = scalar_lea.smem %s0, 34
  %s69 = sld [smem:[%s68]]
  %s70 = scalar_lea.smem %s0, 35
  %s71 = sld [smem:[%s70]]
  %s72 = scalar_lea.smem %s0, 36
  %s73 = sld [smem:[%s72]]
  %s74 = scalar_lea.smem %s0, 37
  %s75 = sld [smem:[%s74]]
  %s76 = scalar_lea.smem %s0, 38
  %s77 = sld [smem:[%s76]]
  %s78 = scalar_lea.smem %s0, 39
  %s79 = sld [smem:[%s78]]
  %s80 = scalar_lea.smem %s0, 40
  %s81 = sld [smem:[%s80]]
  %s82 = scalar_lea.smem %s0, 41
  %s83 = sld [smem:[%s82]]
  %s84 = scalar_lea.smem %s0, 42
  %s85 = sld [smem:[%s84]]
  %s86 = scalar_lea.smem %s0, 43
  %s87 = sld [smem:[%s86]]
  %s88 = scalar_lea.smem %s0, 44
  %s89 = sld [smem:[%s88]]
  %s90 = scalar_lea.smem %s0, 45
  %s91 = sld [smem:[%s90]]
  %s92 = scalar_lea.smem %s0, 46
  %s93 = sld [smem:[%s92]]
  %s94 = scalar_lea.smem %s0, 47
  %s95 = sld [smem:[%s94]]
  %s96 = scalar_lea.smem %s0, 48
  %s97 = sld [smem:[%s96]]
  %s98 = scalar_lea.smem %s0, 49
  %s99 = sld [smem:[%s98]]
  %s100 = scalar_lea.smem %s0, 50
  %s101 = sld [smem:[%s100]]
  %s102 = scalar_lea.smem %s0, 51
  %s103 = sld [smem:[%s102]]
  %s104 = scalar_lea.smem %s0, 52
  %s105 = sld [smem:[%s104]]
  %s106 = scalar_lea.smem %s0, 53
  %s107 = sld [smem:[%s106]]
  %s108 = scalar_lea.smem %s0, 54
  %s109 = sld [smem:[%s108]]
  %s110 = scalar_lea.smem %s0, 55
  %s111 = sld [smem:[%s110]]
  %s112 = scalar_lea.smem %s0, 56
  %s113 = sld [smem:[%s112]]
  %s114 = scalar_lea.smem %s0, 57
  %s115 = sld [smem:[%s114]]
  %s116 = scalar_lea.smem %s0, 58
  %s117 = sld [smem:[%s116]]
  %s118 = scalar_lea.smem %s0, 59
  %s119 = sld [smem:[%s118]]
  %s120 = scalar_lea.smem %s0, 60
  %s121 = sld [smem:[%s120]]
  %s122 = scalar_lea.smem %s0, 61
  %s123 = sld [smem:[%s122]]
  %s124 = scalar_lea.smem %s0, 62
  %s125 = sld [smem:[%s124]]
  %s126 = scalar_lea.smem %s0, 63
  %s127 = sld [smem:[%s126]]
  %s128 = scalar_lea.smem %s0, 64
  %s129 = sld [smem:[%s128]]
  %s130 = scalar_lea.smem %s0, 65
  %s131 = sld [smem:[%s130]]
  %s132 = scalar_lea.smem %s0, 66
  %s133 = sld [smem:[%s132]]
  %s134 = sld [smem:[#allocation0]]
  $region353: #{sparse_sync_forward.1} parent=0
    _
  %s136 = ssub.s32 1, %s134
  %s137 = scalar_select 0, %s136, %s134
  $region1: #{sparse_sync_forward.1} parent=0
    #allocation3 [shape = 'u8[512]{0}', space=vmem, size = 0x400, scoped, tag = 'input window, operand 41, single buffered']
    #allocation4 [shape = 's32[2]{0}', space=sflag, size = 0x8, scoped, tag = 'scoped memory for sparse_sync_forward.1']
    #allocation5 [shape = 's32[2]{0}', space=sflag, size = 0x8, scoped, tag = 'scoped memory for sparse_sync_forward.1']
    #allocation6 [shape = 'u8[512]{0}', space=vmem, size = 0x400, scoped, tag = 'input window, operand 42, single buffered']
    #allocation7 [shape = 's32[1]{0}', space=sflag, size = 0x4, scoped, tag = 'scoped memory for sparse_sync_forward.1']
    #allocation8 [shape = 'u8[512]{0}', space=vmem, size = 0x400, scoped, tag = 'input window, operand 43, single buffered']
    #allocation9 [shape = 'u8[512]{0}', space=vmem, size = 0x400, scoped, tag = 'input window, operand 47, single buffered']
    #allocation10 [shape = 's32[1]{0}', space=sflag, size = 0x4, scoped, tag = 'scoped memory for sparse_sync_forward.1']
    #allocation11 [shape = 'u8[512]{0}', space=vmem, size = 0x400, scoped, tag = 'input window, operand 49, single buffered']
    #allocation12 [shape = 'u8[512]{0}', space=vmem, size = 0x400, scoped, tag = 'input window, operand 51, single buffered']
    #allocation13 [shape = 's32[1]{0}', space=sflag, size = 0x4, scoped, tag = 'scoped memory for sparse_sync_forward.1']
    #allocation14 [shape = 'u8[512]{0}', space=vmem, size = 0x400, scoped, tag = 'input window, operand 53, single buffered']
    #allocation15 [shape = 'u8[512]{0}', space=vmem, size = 0x400, scoped, tag = 'input window, operand 54, single buffered']
    #allocation16 [shape = 's32[1]{0}', space=sflag, size = 0x4, scoped, tag = 'scoped memory for sparse_sync_forward.1']
    #allocation17 [shape = 'u8[512]{0}', space=vmem, size = 0x400, scoped, tag = 'input window, operand 55, single buffered']
    #allocation18 [shape = 'u8[512]{0}', space=vmem, size = 0x400, scoped, tag = 'input window, operand 56, single buffered']
    #allocation19 [shape = 's32[1]{0}', space=sflag, size = 0x4, scoped, tag = 'scoped memory for sparse_sync_forward.1']
    #allocation20 [shape = 'u8[512]{0}', space=vmem, size = 0x400, scoped, tag = 'input window, operand 57, single buffered']
    #allocation21 [shape = 'u8[512]{0}', space=vmem, size = 0x400, scoped, tag = 'input window, operand 58, single buffered']
    #allocation22 [shape = 's32[1]{0}', space=sflag, size = 0x4, scoped, tag = 'scoped memory for sparse_sync_forward.1']
    #allocation23 [shape = 'u8[512]{0}', space=vmem, size = 0x400, scoped, tag = 'input window, operand 59, single buffered']
    #allocation24 [shape = 'u8[512]{0}', space=vmem, size = 0x400, scoped, tag = 'input window, operand 62, single buffered']
    #allocation25 [shape = 's32[1]{0}', space=sflag, size = 0x4, scoped, tag = 'scoped memory for sparse_sync_forward.1']
    #allocation26 [shape = 'u8[1024]{0}', space=vmem, size = 0x400, scoped, tag = 'output window, operand 0']
    %138 = vsyncpa [#allocation4], 0
    %139 = vsyncpa [#allocation7], 0
    %140 = vsyncpa [#allocation10], 0
    %141 = vsyncpa [#allocation13], 0
    %142 = vsyncpa [#allocation16], 0
    %143 = vsyncpa [#allocation19], 0
    %144 = vsyncpa [#allocation22], 0
    %145 = vsyncpa [#allocation25], 0
    %146 = vsyncpa [#allocation5], 0
    %s147 = scalar_lea.sflag [#allocation5], 1
    %148 = vsyncpa %s147, 0
    loop: start=0, step=1, limit=4
    $region2: #{sparse_sync_forward.1} parent=1 // loop_pre_header
      _
    $region3: #{sparse_sync_forward.1} parent=1 // loop_header
      %s150 = sphi 0, %s154
      %p151 = scmp.ge.s32.totalorder %s150, 4
      %s160 = sphi 0, %s162
      %s163 = sphi 0, %s160
      %s164 = sphi 0, %s163
      %s180 = sphi 0, %s164
      %s186 = sphi 0, %s188
      %s189 = sphi 0, %s186
      %s190 = sphi 0, %s189
      %s206 = sphi 0, %s190
      %s210 = sphi 0, %s210
      %s212 = sphi 0, %s210
      %s213 = sphi 0, %s212
      %s227 = sphi 0, %s213
      %s231 = sphi 0, %s231
      %s233 = sphi 0, %s231
      %s234 = sphi 0, %s233
      %s248 = sphi 0, %s234
      %s252 = sphi 0, %s252
      %s254 = sphi 0, %s252
      %s255 = sphi 0, %s254
      %s269 = sphi 0, %s255
      %s273 = sphi 0, %s273
      %s275 = sphi 0, %s273
      %s276 = sphi 0, %s275
      %s290 = sphi 0, %s276
      %s294 = sphi 0, %s294
      %s296 = sphi 0, %s294
      %s297 = sphi 0, %s296
      %s311 = sphi 0, %s297
      %s315 = sphi 0, %s315
      %s317 = sphi 0, %s315
      %s318 = sphi 0, %s317
      %s332 = sphi 0, %s318
      %s336 = sphi 0, %s336
      %s338 = sphi 0, %s336
      %s339 = sphi 0, %s338
      %s353 = sphi 0, %s339
      %s357 = sphi 0, %s357
      %s359 = sphi 0, %s357
      %s360 = sphi 0, %s359
      %s374 = sphi 0, %s360
      %s378 = sphi 0, %s378
      %s380 = sphi 0, %s378
      %s381 = sphi 0, %s380
      %s395 = sphi 0, %s381
      %s399 = sphi 0, %s399
      %s401 = sphi 0, %s399
      %s402 = sphi 0, %s401
      %s416 = sphi 0, %s402
      %s420 = sphi 0, %s420
      %s422 = sphi 0, %s420
      %s423 = sphi 0, %s422
      %s437 = sphi 0, %s423
      %s441 = sphi 0, %s441
      %s443 = sphi 0, %s441
      %s444 = sphi 0, %s443
      %s458 = sphi 0, %s444
      %s462 = sphi 0, %s462
      %s464 = sphi 0, %s462
      %s465 = sphi 0, %s464
      %s479 = sphi 0, %s465
      %s483 = sphi 0, %s483
      %s485 = sphi 0, %s483
      %s486 = sphi 0, %s485
      %s500 = sphi 0, %s486
      %s504 = sphi 0, %s504
      %s506 = sphi 0, %s504
      %s507 = sphi 0, %s506
      %s521 = sphi 0, %s507
      %s525 = sphi 0, %s525
      %s527 = sphi 0, %s525
      %s528 = sphi 0, %s527
      %s542 = sphi 0, %s528
      %s546 = sphi 0, %s546
      %s548 = sphi 0, %s546
      %s549 = sphi 0, %s548
      %s563 = sphi 0, %s549
      %s567 = sphi 0, %s567
      %s569 = sphi 0, %s567
      %s570 = sphi 0, %s569
      %s584 = sphi 0, %s570
      %s588 = sphi 0, %s588
      %s590 = sphi 0, %s588
      %s591 = sphi 0, %s590
      %s605 = sphi 0, %s591
      %s609 = sphi 0, %s609
      %s611 = sphi 0, %s609
      %s612 = sphi 0, %s611
      %s626 = sphi 0, %s612
      %s630 = sphi 0, %s630
      %s632 = sphi 0, %s630
      %s633 = sphi 0, %s632
      %s647 = sphi 0, %s633
      %s651 = sphi 0, %s651
      %s653 = sphi 0, %s651
      %s654 = sphi 0, %s653
      %s668 = sphi 0, %s654
      %s672 = sphi 0, %s672
      %s674 = sphi 0, %s672
      %s675 = sphi 0, %s674
      %s689 = sphi 0, %s675
      %s693 = sphi 0, %s693
      %s695 = sphi 0, %s693
      %s696 = sphi 0, %s695
      %s710 = sphi 0, %s696
      %s714 = sphi 0, %s714
      %s716 = sphi 0, %s714
      %s717 = sphi 0, %s716
      %s731 = sphi 0, %s717
      %s735 = sphi 0, %s735
      %s737 = sphi 0, %s735
      %s738 = sphi 0, %s737
      %s752 = sphi 0, %s738
      %s756 = sphi 0, %s756
      %s758 = sphi 0, %s756
      %s759 = sphi 0, %s758
      %s773 = sphi 0, %s759
      %s777 = sphi 0, %s777
      %s779 = sphi 0, %s777
      %s780 = sphi 0, %s779
      %s794 = sphi 0, %s780
      %s798 = sphi 0, %s798
      %s800 = sphi 0, %s798
      %s801 = sphi 0, %s800
      %s815 = sphi 0, %s801
      %s819 = sphi 0, %s819
      %s821 = sphi 0, %s819
      %s822 = sphi 0, %s821
      %s836 = sphi 0, %s822
      %s840 = sphi 0, %s840
      %s842 = sphi 0, %s840
      %s843 = sphi 0, %s842
      %s857 = sphi 0, %s843
      %s861 = sphi 0, %s861
      %s863 = sphi 0, %s861
      %s864 = sphi 0, %s863
      %s878 = sphi 0, %s864
      %s882 = sphi 0, %s882
      %s884 = sphi 0, %s882
      %s885 = sphi 0, %s884
      %s899 = sphi 0, %s885
      %s903 = sphi 0, %s903
      %s905 = sphi 0, %s903
      %s906 = sphi 0, %s905
      %s920 = sphi 0, %s906
      %s924 = sphi 0, %s924
      %s926 = sphi 0, %s924
      %s927 = sphi 0, %s926
      %s941 = sphi 0, %s927
      %s945 = sphi 0, %s945
      %s947 = sphi 0, %s945
      %s948 = sphi 0, %s947
      %s962 = sphi 0, %s948
      %s966 = sphi 0, %s966
      %s968 = sphi 0, %s966
      %s969 = sphi 0, %s968
      %s983 = sphi 0, %s969
      %s987 = sphi 0, %s987
      %s989 = sphi 0, %s987
      %s990 = sphi 0, %s989
      %s1004 = sphi 0, %s990
      %s1008 = sphi 0, %s1008
      %s1010 = sphi 0, %s1008
      %s1011 = sphi 0, %s1010
      %s1025 = sphi 0, %s1011
      %s1029 = sphi 0, %s1029
      %s1031 = sphi 0, %s1029
      %s1032 = sphi 0, %s1031
      %s1046 = sphi 0, %s1032
      %s1050 = sphi 0, %s1050
      %s1052 = sphi 0, %s1050
      %s1053 = sphi 0, %s1052
      %s1067 = sphi 0, %s1053
      %s1071 = sphi 0, %s1071
      %s1073 = sphi 0, %s1071
      %s1074 = sphi 0, %s1073
      %s1088 = sphi 0, %s1074
      %s1092 = sphi 0, %s1092
      %s1094 = sphi 0, %s1092
      %s1095 = sphi 0, %s1094
      %s1109 = sphi 0, %s1095
      %s1113 = sphi 0, %s1113
      %s1115 = sphi 0, %s1113
      %s1116 = sphi 0, %s1115
      %s1130 = sphi 0, %s1116
      %s1134 = sphi 0, %s1134
      %s1136 = sphi 0, %s1134
      %s1137 = sphi 0, %s1136
      %s1151 = sphi 0, %s1137
      %s1155 = sphi 0, %s1155
      %s1157 = sphi 0, %s1155
      %s1158 = sphi 0, %s1157
      %s1172 = sphi 0, %s1158
      %s1176 = sphi 0, %s1176
      %s1178 = sphi 0, %s1176
      %s1179 = sphi 0, %s1178
      %s1193 = sphi 0, %s1179
      %s1197 = sphi 0, %s1197
      %s1199 = sphi 0, %s1197
      %s1200 = sphi 0, %s1199
      %s1214 = sphi 0, %s1200
      %s1218 = sphi 0, %s1218
      %s1220 = sphi 0, %s1218
      %s1221 = sphi 0, %s1220
      %s1235 = sphi 0, %s1221
      %s1239 = sphi 0, %s1239
      %s1241 = sphi 0, %s1239
      %s1242 = sphi 0, %s1241
      %s1256 = sphi 0, %s1242
      %s1260 = sphi 0, %s1260
      %s1262 = sphi 0, %s1260
      %s1263 = sphi 0, %s1262
      %s1277 = sphi 0, %s1263
      %s1281 = sphi 0, %s1281
      %s1283 = sphi 0, %s1281
      %s1284 = sphi 0, %s1283
      %s1298 = sphi 0, %s1284
      %s1302 = sphi 0, %s1302
      %s1304 = sphi 0, %s1302
      %s1305 = sphi 0, %s1304
      %s1319 = sphi 0, %s1305
      %s1323 = sphi 0, %s1323
      %s1325 = sphi 0, %s1323
      %s1326 = sphi 0, %s1325
      %s1340 = sphi 0, %s1326
      %s1344 = sphi 0, %s1344
      %s1346 = sphi 0, %s1344
      %s1347 = sphi 0, %s1346
      %s1361 = sphi 0, %s1347
      %s1365 = sphi 0, %s1365
      %s1367 = sphi 0, %s1365
      %s1368 = sphi 0, %s1367
      %s1382 = sphi 0, %s1368
      %s1386 = sphi 0, %s1386
      %s1388 = sphi 0, %s1386
      %s1389 = sphi 0, %s1388
      %s1403 = sphi 0, %s1389
      %s1407 = sphi 0, %s1407
      %s1409 = sphi 0, %s1407
      %s1410 = sphi 0, %s1409
      %s1424 = sphi 0, %s1410
      %s1428 = sphi 0, %s1428
      %s1430 = sphi 0, %s1428
      %s1431 = sphi 0, %s1430
      %s1445 = sphi 0, %s1431
      %s1449 = sphi 0, %s1449
      %s1451 = sphi 0, %s1449
      %s1452 = sphi 0, %s1451
      %s1466 = sphi 0, %s1452
      %s1470 = sphi 0, %s1470
      %s1472 = sphi 0, %s1470
      %s1473 = sphi 0, %s1472
      %s1487 = sphi 0, %s1473
      %s1491 = sphi 0, %s1491
      %s1493 = sphi 0, %s1491
      %s1494 = sphi 0, %s1493
      %s1508 = sphi 0, %s1494
      %s1512 = sphi 0, %s1512
      %s1514 = sphi 0, %s1512
      %s1515 = sphi 0, %s1514
      %s1529 = sphi 0, %s1515
      %s1533 = sphi 0, %s1533
      %s1535 = sphi 0, %s1533
      %s1536 = sphi 0, %s1535
      %s1550 = sphi 0, %s1536
      %s1556 = sphi 0, %s1558
      %s1559 = sphi 0, %s1556
      %s1560 = sphi 0, %s1559
      %s1576 = sphi 0, %s1560
    $region4: #{sparse_sync_forward.1} parent=1 // loop_header_branch
      %153 = sbr.rel (%p151) target = $region8
    $region5: #{sparse_sync_forward.1} parent=1 // loop_body
      %s155 = ssub.s32 %s150, 1
      %s156 = ssub.s32 %s150, 2
      %s157 = sadd.s32 %s150, 1
      %s158 = ssub.s32 %s150, %s157
      %p159 = scmp.eq.s32.totalorder %s158, 0
      %s161 = sadd.s32 %s160, 1
      %s162 = scalar_select %p159, %s160, %s161
      %p165 = pneg %p159
      %p166 = scmp.eq.s32.totalorder %s150, 1
      %p167 = por %p165, %p166
      %p168 = scmp.ne.s32.totalorder %s160, %s163
      %p169 = scmp.eq.s32.totalorder %s150, 0
      %p170 = por %p168, %p169
      %p171 = scmp.ne.s32.totalorder %s160, %s163
      %p172 = scmp.eq.s32.totalorder %s155, 1
      %p173 = por %p171, %p172
      %p174 = scmp.ne.s32.totalorder %s163, %s164
      %p175 = scmp.eq.s32.totalorder %s155, 0
      %p176 = por %p174, %p175
      %p177 = scmp.ne.s32.totalorder %s163, %s164
      %p178 = scmp.eq.s32.totalorder %s156, 1
      %p179 = por %p177, %p178
      %p181 = scmp.ne.s32.totalorder %s164, %s180
      %p182 = scmp.eq.s32.totalorder %s156, 0
      %p183 = por %p181, %p182
      %s184 = ssub.s32 %s150, %s157
      %p185 = scmp.eq.s32.totalorder %s184, 0
      %s187 = sadd.s32 %s186, 1
      %s188 = scalar_select %p185, %s186, %s187
      %p191 = pneg %p185
      %p192 = scmp.eq.s32.totalorder %s150, 1
      %p193 = por %p191, %p192
      %p194 = scmp.ne.s32.totalorder %s186, %s189
      %p195 = scmp.eq.s32.totalorder %s150, 0
      %p196 = por %p194, %p195
      %p197 = scmp.ne.s32.totalorder %s186, %s189
      %p198 = scmp.eq.s32.totalorder %s155, 1
      %p199 = por %p197, %p198
      %p200 = scmp.ne.s32.totalorder %s189, %s190
      %p201 = scmp.eq.s32.totalorder %s155, 0
      %p202 = por %p200, %p201
      %p203 = scmp.ne.s32.totalorder %s189, %s190
      %p204 = scmp.eq.s32.totalorder %s156, 1
      %p205 = por %p203, %p204
      %p207 = scmp.ne.s32.totalorder %s190, %s206
      %p208 = scmp.eq.s32.totalorder %s156, 0
      %p209 = por %p207, %p208
      %s211 = sadd.s32 %s210, 1
      %p214 = scmp.eq.s32.totalorder %s150, 1
      %p215 = scmp.ne.s32.totalorder %s210, %s212
      %p216 = scmp.eq.s32.totalorder %s150, 0
      %p217 = por %p215, %p216
      %p218 = scmp.ne.s32.totalorder %s210, %s212
      %p219 = scmp.eq.s32.totalorder %s155, 1
      %p220 = por %p218, %p219
      %p221 = scmp.ne.s32.totalorder %s212, %s213
      %p222 = scmp.eq.s32.totalorder %s155, 0
      %p223 = por %p221, %p222
      %p224 = scmp.ne.s32.totalorder %s212, %s213
      %p225 = scmp.eq.s32.totalorder %s156, 1
      %p226 = por %p224, %p225
      %p228 = scmp.ne.s32.totalorder %s213, %s227
      %p229 = scmp.eq.s32.totalorder %s156, 0
      %p230 = por %p228, %p229
      %s232 = sadd.s32 %s231, 1
      %p235 = scmp.eq.s32.totalorder %s150, 1
      %p236 = scmp.ne.s32.totalorder %s231, %s233
      %p237 = scmp.eq.s32.totalorder %s150, 0
      %p238 = por %p236, %p237
      %p239 = scmp.ne.s32.totalorder %s231, %s233
      %p240 = scmp.eq.s32.totalorder %s155, 1
      %p241 = por %p239, %p240
      %p242 = scmp.ne.s32.totalorder %s233, %s234
      %p243 = scmp.eq.s32.totalorder %s155, 0
      %p244 = por %p242, %p243
      %p245 = scmp.ne.s32.totalorder %s233, %s234
      %p246 = scmp.eq.s32.totalorder %s156, 1
      %p247 = por %p245, %p246
      %p249 = scmp.ne.s32.totalorder %s234, %s248
      %p250 = scmp.eq.s32.totalorder %s156, 0
      %p251 = por %p249, %p250
      %s253 = sadd.s32 %s252, 1
      %p256 = scmp.eq.s32.totalorder %s150, 1
      %p257 = scmp.ne.s32.totalorder %s252, %s254
      %p258 = scmp.eq.s32.totalorder %s150, 0
      %p259 = por %p257, %p258
      %p260 = scmp.ne.s32.totalorder %s252, %s254
      %p261 = scmp.eq.s32.totalorder %s155, 1
      %p262 = por %p260, %p261
      %p263 = scmp.ne.s32.totalorder %s254, %s255
      %p264 = scmp.eq.s32.totalorder %s155, 0
      %p265 = por %p263, %p264
      %p266 = scmp.ne.s32.totalorder %s254, %s255
      %p267 = scmp.eq.s32.totalorder %s156, 1
      %p268 = por %p266, %p267
      %p270 = scmp.ne.s32.totalorder %s255, %s269
      %p271 = scmp.eq.s32.totalorder %s156, 0
      %p272 = por %p270, %p271
      %s274 = sadd.s32 %s273, 1
      %p277 = scmp.eq.s32.totalorder %s150, 1
      %p278 = scmp.ne.s32.totalorder %s273, %s275
      %p279 = scmp.eq.s32.totalorder %s150, 0
      %p280 = por %p278, %p279
      %p281 = scmp.ne.s32.totalorder %s273, %s275
      %p282 = scmp.eq.s32.totalorder %s155, 1
      %p283 = por %p281, %p282
      %p284 = scmp.ne.s32.totalorder %s275, %s276
      %p285 = scmp.eq.s32.totalorder %s155, 0
      %p286 = por %p284, %p285
      %p287 = scmp.ne.s32.totalorder %s275, %s276
      %p288 = scmp.eq.s32.totalorder %s156, 1
      %p289 = por %p287, %p288
      %p291 = scmp.ne.s32.totalorder %s276, %s290
      %p292 = scmp.eq.s32.totalorder %s156, 0
      %p293 = por %p291, %p292
      %s295 = sadd.s32 %s294, 1
      %p298 = scmp.eq.s32.totalorder %s150, 1
      %p299 = scmp.ne.s32.totalorder %s294, %s296
      %p300 = scmp.eq.s32.totalorder %s150, 0
      %p301 = por %p299, %p300
      %p302 = scmp.ne.s32.totalorder %s294, %s296
      %p303 = scmp.eq.s32.totalorder %s155, 1
      %p304 = por %p302, %p303
      %p305 = scmp.ne.s32.totalorder %s296, %s297
      %p306 = scmp.eq.s32.totalorder %s155, 0
      %p307 = por %p305, %p306
      %p308 = scmp.ne.s32.totalorder %s296, %s297
      %p309 = scmp.eq.s32.totalorder %s156, 1
      %p310 = por %p308, %p309
      %p312 = scmp.ne.s32.totalorder %s297, %s311
      %p313 = scmp.eq.s32.totalorder %s156, 0
      %p314 = por %p312, %p313
      %s316 = sadd.s32 %s315, 1
      %p319 = scmp.eq.s32.totalorder %s150, 1
      %p320 = scmp.ne.s32.totalorder %s315, %s317
      %p321 = scmp.eq.s32.totalorder %s150, 0
      %p322 = por %p320, %p321
      %p323 = scmp.ne.s32.totalorder %s315, %s317
      %p324 = scmp.eq.s32.totalorder %s155, 1
      %p325 = por %p323, %p324
      %p326 = scmp.ne.s32.totalorder %s317, %s318
      %p327 = scmp.eq.s32.totalorder %s155, 0
      %p328 = por %p326, %p327
      %p329 = scmp.ne.s32.totalorder %s317, %s318
      %p330 = scmp.eq.s32.totalorder %s156, 1
      %p331 = por %p329, %p330
      %p333 = scmp.ne.s32.totalorder %s318, %s332
      %p334 = scmp.eq.s32.totalorder %s156, 0
      %p335 = por %p333, %p334
      %s337 = sadd.s32 %s336, 1
      %p340 = scmp.eq.s32.totalorder %s150, 1
      %p341 = scmp.ne.s32.totalorder %s336, %s338
      %p342 = scmp.eq.s32.totalorder %s150, 0
      %p343 = por %p341, %p342
      %p344 = scmp.ne.s32.totalorder %s336, %s338
      %p345 = scmp.eq.s32.totalorder %s155, 1
      %p346 = por %p344, %p345
      %p347 = scmp.ne.s32.totalorder %s338, %s339
      %p348 = scmp.eq.s32.totalorder %s155, 0
      %p349 = por %p347, %p348
      %p350 = scmp.ne.s32.totalorder %s338, %s339
      %p351 = scmp.eq.s32.totalorder %s156, 1
      %p352 = por %p350, %p351
      %p354 = scmp.ne.s32.totalorder %s339, %s353
      %p355 = scmp.eq.s32.totalorder %s156, 0
      %p356 = por %p354, %p355
      %s358 = sadd.s32 %s357, 1
      %p361 = scmp.eq.s32.totalorder %s150, 1
      %p362 = scmp.ne.s32.totalorder %s357, %s359
      %p363 = scmp.eq.s32.totalorder %s150, 0
      %p364 = por %p362, %p363
      %p365 = scmp.ne.s32.totalorder %s357, %s359
      %p366 = scmp.eq.s32.totalorder %s155, 1
      %p367 = por %p365, %p366
      %p368 = scmp.ne.s32.totalorder %s359, %s360
      %p369 = scmp.eq.s32.totalorder %s155, 0
      %p370 = por %p368, %p369
      %p371 = scmp.ne.s32.totalorder %s359, %s360
      %p372 = scmp.eq.s32.totalorder %s156, 1
      %p373 = por %p371, %p372
      %p375 = scmp.ne.s32.totalorder %s360, %s374
      %p376 = scmp.eq.s32.totalorder %s156, 0
      %p377 = por %p375, %p376
      %s379 = sadd.s32 %s378, 1
      %p382 = scmp.eq.s32.totalorder %s150, 1
      %p383 = scmp.ne.s32.totalorder %s378, %s380
      %p384 = scmp.eq.s32.totalorder %s150, 0
      %p385 = por %p383, %p384
      %p386 = scmp.ne.s32.totalorder %s378, %s380
      %p387 = scmp.eq.s32.totalorder %s155, 1
      %p388 = por %p386, %p387
      %p389 = scmp.ne.s32.totalorder %s380, %s381
      %p390 = scmp.eq.s32.totalorder %s155, 0
      %p391 = por %p389, %p390
      %p392 = scmp.ne.s32.totalorder %s380, %s381
      %p393 = scmp.eq.s32.totalorder %s156, 1
      %p394 = por %p392, %p393
      %p396 = scmp.ne.s32.totalorder %s381, %s395
      %p397 = scmp.eq.s32.totalorder %s156, 0
      %p398 = por %p396, %p397
      %s400 = sadd.s32 %s399, 1
      %p403 = scmp.eq.s32.totalorder %s150, 1
      %p404 = scmp.ne.s32.totalorder %s399, %s401
      %p405 = scmp.eq.s32.totalorder %s150, 0
      %p406 = por %p404, %p405
      %p407 = scmp.ne.s32.totalorder %s399, %s401
      %p408 = scmp.eq.s32.totalorder %s155, 1
      %p409 = por %p407, %p408
      %p410 = scmp.ne.s32.totalorder %s401, %s402
      %p411 = scmp.eq.s32.totalorder %s155, 0
      %p412 = por %p410, %p411
      %p413 = scmp.ne.s32.totalorder %s401, %s402
      %p414 = scmp.eq.s32.totalorder %s156, 1
      %p415 = por %p413, %p414
      %p417 = scmp.ne.s32.totalorder %s402, %s416
      %p418 = scmp.eq.s32.totalorder %s156, 0
      %p419 = por %p417, %p418
      %s421 = sadd.s32 %s420, 1
      %p424 = scmp.eq.s32.totalorder %s150, 1
      %p425 = scmp.ne.s32.totalorder %s420, %s422
      %p426 = scmp.eq.s32.totalorder %s150, 0
      %p427 = por %p425, %p426
      %p428 = scmp.ne.s32.totalorder %s420, %s422
      %p429 = scmp.eq.s32.totalorder %s155, 1
      %p430 = por %p428, %p429
      %p431 = scmp.ne.s32.totalorder %s422, %s423
      %p432 = scmp.eq.s32.totalorder %s155, 0
      %p433 = por %p431, %p432
      %p434 = scmp.ne.s32.totalorder %s422, %s423
      %p435 = scmp.eq.s32.totalorder %s156, 1
      %p436 = por %p434, %p435
      %p438 = scmp.ne.s32.totalorder %s423, %s437
      %p439 = scmp.eq.s32.totalorder %s156, 0
      %p440 = por %p438, %p439
      %s442 = sadd.s32 %s441, 1
      %p445 = scmp.eq.s32.totalorder %s150, 1
      %p446 = scmp.ne.s32.totalorder %s441, %s443
      %p447 = scmp.eq.s32.totalorder %s150, 0
      %p448 = por %p446, %p447
      %p449 = scmp.ne.s32.totalorder %s441, %s443
      %p450 = scmp.eq.s32.totalorder %s155, 1
      %p451 = por %p449, %p450
      %p452 = scmp.ne.s32.totalorder %s443, %s444
      %p453 = scmp.eq.s32.totalorder %s155, 0
      %p454 = por %p452, %p453
      %p455 = scmp.ne.s32.totalorder %s443, %s444
      %p456 = scmp.eq.s32.totalorder %s156, 1
      %p457 = por %p455, %p456
      %p459 = scmp.ne.s32.totalorder %s444, %s458
      %p460 = scmp.eq.s32.totalorder %s156, 0
      %p461 = por %p459, %p460
      %s463 = sadd.s32 %s462, 1
      %p466 = scmp.eq.s32.totalorder %s150, 1
      %p467 = scmp.ne.s32.totalorder %s462, %s464
      %p468 = scmp.eq.s32.totalorder %s150, 0
      %p469 = por %p467, %p468
      %p470 = scmp.ne.s32.totalorder %s462, %s464
      %p471 = scmp.eq.s32.totalorder %s155, 1
      %p472 = por %p470, %p471
      %p473 = scmp.ne.s32.totalorder %s464, %s465
      %p474 = scmp.eq.s32.totalorder %s155, 0
      %p475 = por %p473, %p474
      %p476 = scmp.ne.s32.totalorder %s464, %s465
      %p477 = scmp.eq.s32.totalorder %s156, 1
      %p478 = por %p476, %p477
      %p480 = scmp.ne.s32.totalorder %s465, %s479
      %p481 = scmp.eq.s32.totalorder %s156, 0
      %p482 = por %p480, %p481
      %s484 = sadd.s32 %s483, 1
      %p487 = scmp.eq.s32.totalorder %s150, 1
      %p488 = scmp.ne.s32.totalorder %s483, %s485
      %p489 = scmp.eq.s32.totalorder %s150, 0
      %p490 = por %p488, %p489
      %p491 = scmp.ne.s32.totalorder %s483, %s485
      %p492 = scmp.eq.s32.totalorder %s155, 1
      %p493 = por %p491, %p492
      %p494 = scmp.ne.s32.totalorder %s485, %s486
      %p495 = scmp.eq.s32.totalorder %s155, 0
      %p496 = por %p494, %p495
      %p497 = scmp.ne.s32.totalorder %s485, %s486
      %p498 = scmp.eq.s32.totalorder %s156, 1
      %p499 = por %p497, %p498
      %p501 = scmp.ne.s32.totalorder %s486, %s500
      %p502 = scmp.eq.s32.totalorder %s156, 0
      %p503 = por %p501, %p502
      %s505 = sadd.s32 %s504, 1
      %p508 = scmp.eq.s32.totalorder %s150, 1
      %p509 = scmp.ne.s32.totalorder %s504, %s506
      %p510 = scmp.eq.s32.totalorder %s150, 0
      %p511 = por %p509, %p510
      %p512 = scmp.ne.s32.totalorder %s504, %s506
      %p513 = scmp.eq.s32.totalorder %s155, 1
      %p514 = por %p512, %p513
      %p515 = scmp.ne.s32.totalorder %s506, %s507
      %p516 = scmp.eq.s32.totalorder %s155, 0
      %p517 = por %p515, %p516
      %p518 = scmp.ne.s32.totalorder %s506, %s507
      %p519 = scmp.eq.s32.totalorder %s156, 1
      %p520 = por %p518, %p519
      %p522 = scmp.ne.s32.totalorder %s507, %s521
      %p523 = scmp.eq.s32.totalorder %s156, 0
      %p524 = por %p522, %p523
      %s526 = sadd.s32 %s525, 1
      %p529 = scmp.eq.s32.totalorder %s150, 1
      %p530 = scmp.ne.s32.totalorder %s525, %s527
      %p531 = scmp.eq.s32.totalorder %s150, 0
      %p532 = por %p530, %p531
      %p533 = scmp.ne.s32.totalorder %s525, %s527
      %p534 = scmp.eq.s32.totalorder %s155, 1
      %p535 = por %p533, %p534
      %p536 = scmp.ne.s32.totalorder %s527, %s528
      %p537 = scmp.eq.s32.totalorder %s155, 0
      %p538 = por %p536, %p537
      %p539 = scmp.ne.s32.totalorder %s527, %s528
      %p540 = scmp.eq.s32.totalorder %s156, 1
      %p541 = por %p539, %p540
      %p543 = scmp.ne.s32.totalorder %s528, %s542
      %p544 = scmp.eq.s32.totalorder %s156, 0
      %p545 = por %p543, %p544
      %s547 = sadd.s32 %s546, 1
      %p550 = scmp.eq.s32.totalorder %s150, 1
      %p551 = scmp.ne.s32.totalorder %s546, %s548
      %p552 = scmp.eq.s32.totalorder %s150, 0
      %p553 = por %p551, %p552
      %p554 = scmp.ne.s32.totalorder %s546, %s548
      %p555 = scmp.eq.s32.totalorder %s155, 1
      %p556 = por %p554, %p555
      %p557 = scmp.ne.s32.totalorder %s548, %s549
      %p558 = scmp.eq.s32.totalorder %s155, 0
      %p559 = por %p557, %p558
      %p560 = scmp.ne.s32.totalorder %s548, %s549
      %p561 = scmp.eq.s32.totalorder %s156, 1
      %p562 = por %p560, %p561
      %p564 = scmp.ne.s32.totalorder %s549, %s563
      %p565 = scmp.eq.s32.totalorder %s156, 0
      %p566 = por %p564, %p565
      %s568 = sadd.s32 %s567, 1
      %p571 = scmp.eq.s32.totalorder %s150, 1
      %p572 = scmp.ne.s32.totalorder %s567, %s569
      %p573 = scmp.eq.s32.totalorder %s150, 0
      %p574 = por %p572, %p573
      %p575 = scmp.ne.s32.totalorder %s567, %s569
      %p576 = scmp.eq.s32.totalorder %s155, 1
      %p577 = por %p575, %p576
      %p578 = scmp.ne.s32.totalorder %s569, %s570
      %p579 = scmp.eq.s32.totalorder %s155, 0
      %p580 = por %p578, %p579
      %p581 = scmp.ne.s32.totalorder %s569, %s570
      %p582 = scmp.eq.s32.totalorder %s156, 1
      %p583 = por %p581, %p582
      %p585 = scmp.ne.s32.totalorder %s570, %s584
      %p586 = scmp.eq.s32.totalorder %s156, 0
      %p587 = por %p585, %p586
      %s589 = sadd.s32 %s588, 1
      %p592 = scmp.eq.s32.totalorder %s150, 1
      %p593 = scmp.ne.s32.totalorder %s588, %s590
      %p594 = scmp.eq.s32.totalorder %s150, 0
      %p595 = por %p593, %p594
      %p596 = scmp.ne.s32.totalorder %s588, %s590
      %p597 = scmp.eq.s32.totalorder %s155, 1
      %p598 = por %p596, %p597
      %p599 = scmp.ne.s32.totalorder %s590, %s591
      %p600 = scmp.eq.s32.totalorder %s155, 0
      %p601 = por %p599, %p600
      %p602 = scmp.ne.s32.totalorder %s590, %s591
      %p603 = scmp.eq.s32.totalorder %s156, 1
      %p604 = por %p602, %p603
      %p606 = scmp.ne.s32.totalorder %s591, %s605
      %p607 = scmp.eq.s32.totalorder %s156, 0
      %p608 = por %p606, %p607
      %s610 = sadd.s32 %s609, 1
      %p613 = scmp.eq.s32.totalorder %s150, 1
      %p614 = scmp.ne.s32.totalorder %s609, %s611
      %p615 = scmp.eq.s32.totalorder %s150, 0
      %p616 = por %p614, %p615
      %p617 = scmp.ne.s32.totalorder %s609, %s611
      %p618 = scmp.eq.s32.totalorder %s155, 1
      %p619 = por %p617, %p618
      %p620 = scmp.ne.s32.totalorder %s611, %s612
      %p621 = scmp.eq.s32.totalorder %s155, 0
      %p622 = por %p620, %p621
      %p623 = scmp.ne.s32.totalorder %s611, %s612
      %p624 = scmp.eq.s32.totalorder %s156, 1
      %p625 = por %p623, %p624
      %p627 = scmp.ne.s32.totalorder %s612, %s626
      %p628 = scmp.eq.s32.totalorder %s156, 0
      %p629 = por %p627, %p628
      %s631 = sadd.s32 %s630, 1
      %p634 = scmp.eq.s32.totalorder %s150, 1
      %p635 = scmp.ne.s32.totalorder %s630, %s632
      %p636 = scmp.eq.s32.totalorder %s150, 0
      %p637 = por %p635, %p636
      %p638 = scmp.ne.s32.totalorder %s630, %s632
      %p639 = scmp.eq.s32.totalorder %s155, 1
      %p640 = por %p638, %p639
      %p641 = scmp.ne.s32.totalorder %s632, %s633
      %p642 = scmp.eq.s32.totalorder %s155, 0
      %p643 = por %p641, %p642
      %p644 = scmp.ne.s32.totalorder %s632, %s633
      %p645 = scmp.eq.s32.totalorder %s156, 1
      %p646 = por %p644, %p645
      %p648 = scmp.ne.s32.totalorder %s633, %s647
      %p649 = scmp.eq.s32.totalorder %s156, 0
      %p650 = por %p648, %p649
      %s652 = sadd.s32 %s651, 1
      %p655 = scmp.eq.s32.totalorder %s150, 1
      %p656 = scmp.ne.s32.totalorder %s651, %s653
      %p657 = scmp.eq.s32.totalorder %s150, 0
      %p658 = por %p656, %p657
      %p659 = scmp.ne.s32.totalorder %s651, %s653
      %p660 = scmp.eq.s32.totalorder %s155, 1
      %p661 = por %p659, %p660
      %p662 = scmp.ne.s32.totalorder %s653, %s654
      %p663 = scmp.eq.s32.totalorder %s155, 0
      %p664 = por %p662, %p663
      %p665 = scmp.ne.s32.totalorder %s653, %s654
      %p666 = scmp.eq.s32.totalorder %s156, 1
      %p667 = por %p665, %p666
      %p669 = scmp.ne.s32.totalorder %s654, %s668
      %p670 = scmp.eq.s32.totalorder %s156, 0
      %p671 = por %p669, %p670
      %s673 = sadd.s32 %s672, 1
      %p676 = scmp.eq.s32.totalorder %s150, 1
      %p677 = scmp.ne.s32.totalorder %s672, %s674
      %p678 = scmp.eq.s32.totalorder %s150, 0
      %p679 = por %p677, %p678
      %p680 = scmp.ne.s32.totalorder %s672, %s674
      %p681 = scmp.eq.s32.totalorder %s155, 1
      %p682 = por %p680, %p681
      %p683 = scmp.ne.s32.totalorder %s674, %s675
      %p684 = scmp.eq.s32.totalorder %s155, 0
      %p685 = por %p683, %p684
      %p686 = scmp.ne.s32.totalorder %s674, %s675
      %p687 = scmp.eq.s32.totalorder %s156, 1
      %p688 = por %p686, %p687
      %p690 = scmp.ne.s32.totalorder %s675, %s689
      %p691 = scmp.eq.s32.totalorder %s156, 0
      %p692 = por %p690, %p691
      %s694 = sadd.s32 %s693, 1
      %p697 = scmp.eq.s32.totalorder %s150, 1
      %p698 = scmp.ne.s32.totalorder %s693, %s695
      %p699 = scmp.eq.s32.totalorder %s150, 0
      %p700 = por %p698, %p699
      %p701 = scmp.ne.s32.totalorder %s693, %s695
      %p702 = scmp.eq.s32.totalorder %s155, 1
      %p703 = por %p701, %p702
      %p704 = scmp.ne.s32.totalorder %s695, %s696
      %p705 = scmp.eq.s32.totalorder %s155, 0
      %p706 = por %p704, %p705
      %p707 = scmp.ne.s32.totalorder %s695, %s696
      %p708 = scmp.eq.s32.totalorder %s156, 1
      %p709 = por %p707, %p708
      %p711 = scmp.ne.s32.totalorder %s696, %s710
      %p712 = scmp.eq.s32.totalorder %s156, 0
      %p713 = por %p711, %p712
      %s715 = sadd.s32 %s714, 1
      %p718 = scmp.eq.s32.totalorder %s150, 1
      %p719 = scmp.ne.s32.totalorder %s714, %s716
      %p720 = scmp.eq.s32.totalorder %s150, 0
      %p721 = por %p719, %p720
      %p722 = scmp.ne.s32.totalorder %s714, %s716
      %p723 = scmp.eq.s32.totalorder %s155, 1
      %p724 = por %p722, %p723
      %p725 = scmp.ne.s32.totalorder %s716, %s717
      %p726 = scmp.eq.s32.totalorder %s155, 0
      %p727 = por %p725, %p726
      %p728 = scmp.ne.s32.totalorder %s716, %s717
      %p729 = scmp.eq.s32.totalorder %s156, 1
      %p730 = por %p728, %p729
      %p732 = scmp.ne.s32.totalorder %s717, %s731
      %p733 = scmp.eq.s32.totalorder %s156, 0
      %p734 = por %p732, %p733
      %s736 = sadd.s32 %s735, 1
      %p739 = scmp.eq.s32.totalorder %s150, 1
      %p740 = scmp.ne.s32.totalorder %s735, %s737
      %p741 = scmp.eq.s32.totalorder %s150, 0
      %p742 = por %p740, %p741
      %p743 = scmp.ne.s32.totalorder %s735, %s737
      %p744 = scmp.eq.s32.totalorder %s155, 1
      %p745 = por %p743, %p744
      %p746 = scmp.ne.s32.totalorder %s737, %s738
      %p747 = scmp.eq.s32.totalorder %s155, 0
      %p748 = por %p746, %p747
      %p749 = scmp.ne.s32.totalorder %s737, %s738
      %p750 = scmp.eq.s32.totalorder %s156, 1
      %p751 = por %p749, %p750
      %p753 = scmp.ne.s32.totalorder %s738, %s752
      %p754 = scmp.eq.s32.totalorder %s156, 0
      %p755 = por %p753, %p754
      %s757 = sadd.s32 %s756, 1
      %p760 = scmp.eq.s32.totalorder %s150, 1
      %p761 = scmp.ne.s32.totalorder %s756, %s758
      %p762 = scmp.eq.s32.totalorder %s150, 0
      %p763 = por %p761, %p762
      %p764 = scmp.ne.s32.totalorder %s756, %s758
      %p765 = scmp.eq.s32.totalorder %s155, 1
      %p766 = por %p764, %p765
      %p767 = scmp.ne.s32.totalorder %s758, %s759
      %p768 = scmp.eq.s32.totalorder %s155, 0
      %p769 = por %p767, %p768
      %p770 = scmp.ne.s32.totalorder %s758, %s759
      %p771 = scmp.eq.s32.totalorder %s156, 1
      %p772 = por %p770, %p771
      %p774 = scmp.ne.s32.totalorder %s759, %s773
      %p775 = scmp.eq.s32.totalorder %s156, 0
      %p776 = por %p774, %p775
      %s778 = sadd.s32 %s777, 1
      %p781 = scmp.eq.s32.totalorder %s150, 1
      %p782 = scmp.ne.s32.totalorder %s777, %s779
      %p783 = scmp.eq.s32.totalorder %s150, 0
      %p784 = por %p782, %p783
      %p785 = scmp.ne.s32.totalorder %s777, %s779
      %p786 = scmp.eq.s32.totalorder %s155, 1
      %p787 = por %p785, %p786
      %p788 = scmp.ne.s32.totalorder %s779, %s780
      %p789 = scmp.eq.s32.totalorder %s155, 0
      %p790 = por %p788, %p789
      %p791 = scmp.ne.s32.totalorder %s779, %s780
      %p792 = scmp.eq.s32.totalorder %s156, 1
      %p793 = por %p791, %p792
      %p795 = scmp.ne.s32.totalorder %s780, %s794
      %p796 = scmp.eq.s32.totalorder %s156, 0
      %p797 = por %p795, %p796
      %s799 = sadd.s32 %s798, 1
      %p802 = scmp.eq.s32.totalorder %s150, 1
      %p803 = scmp.ne.s32.totalorder %s798, %s800
      %p804 = scmp.eq.s32.totalorder %s150, 0
      %p805 = por %p803, %p804
      %p806 = scmp.ne.s32.totalorder %s798, %s800
      %p807 = scmp.eq.s32.totalorder %s155, 1
      %p808 = por %p806, %p807
      %p809 = scmp.ne.s32.totalorder %s800, %s801
      %p810 = scmp.eq.s32.totalorder %s155, 0
      %p811 = por %p809, %p810
      %p812 = scmp.ne.s32.totalorder %s800, %s801
      %p813 = scmp.eq.s32.totalorder %s156, 1
      %p814 = por %p812, %p813
      %p816 = scmp.ne.s32.totalorder %s801, %s815
      %p817 = scmp.eq.s32.totalorder %s156, 0
      %p818 = por %p816, %p817
      %s820 = sadd.s32 %s819, 1
      %p823 = scmp.eq.s32.totalorder %s150, 1
      %p824 = scmp.ne.s32.totalorder %s819, %s821
      %p825 = scmp.eq.s32.totalorder %s150, 0
      %p826 = por %p824, %p825
      %p827 = scmp.ne.s32.totalorder %s819, %s821
      %p828 = scmp.eq.s32.totalorder %s155, 1
      %p829 = por %p827, %p828
      %p830 = scmp.ne.s32.totalorder %s821, %s822
      %p831 = scmp.eq.s32.totalorder %s155, 0
      %p832 = por %p830, %p831
      %p833 = scmp.ne.s32.totalorder %s821, %s822
      %p834 = scmp.eq.s32.totalorder %s156, 1
      %p835 = por %p833, %p834
      %p837 = scmp.ne.s32.totalorder %s822, %s836
      %p838 = scmp.eq.s32.totalorder %s156, 0
      %p839 = por %p837, %p838
      %s841 = sadd.s32 %s840, 1
      %p844 = scmp.eq.s32.totalorder %s150, 1
      %p845 = scmp.ne.s32.totalorder %s840, %s842
      %p846 = scmp.eq.s32.totalorder %s150, 0
      %p847 = por %p845, %p846
      %p848 = scmp.ne.s32.totalorder %s840, %s842
      %p849 = scmp.eq.s32.totalorder %s155, 1
      %p850 = por %p848, %p849
      %p851 = scmp.ne.s32.totalorder %s842, %s843
      %p852 = scmp.eq.s32.totalorder %s155, 0
      %p853 = por %p851, %p852
      %p854 = scmp.ne.s32.totalorder %s842, %s843
      %p855 = scmp.eq.s32.totalorder %s156, 1
      %p856 = por %p854, %p855
      %p858 = scmp.ne.s32.totalorder %s843, %s857
      %p859 = scmp.eq.s32.totalorder %s156, 0
      %p860 = por %p858, %p859
      %s862 = sadd.s32 %s861, 1
      %p865 = scmp.eq.s32.totalorder %s150, 1
      %p866 = scmp.ne.s32.totalorder %s861, %s863
      %p867 = scmp.eq.s32.totalorder %s150, 0
      %p868 = por %p866, %p867
      %p869 = scmp.ne.s32.totalorder %s861, %s863
      %p870 = scmp.eq.s32.totalorder %s155, 1
      %p871 = por %p869, %p870
      %p872 = scmp.ne.s32.totalorder %s863, %s864
      %p873 = scmp.eq.s32.totalorder %s155, 0
      %p874 = por %p872, %p873
      %p875 = scmp.ne.s32.totalorder %s863, %s864
      %p876 = scmp.eq.s32.totalorder %s156, 1
      %p877 = por %p875, %p876
      %p879 = scmp.ne.s32.totalorder %s864, %s878
      %p880 = scmp.eq.s32.totalorder %s156, 0
      %p881 = por %p879, %p880
      %s883 = sadd.s32 %s882, 1
      %p886 = scmp.eq.s32.totalorder %s150, 1
      %p887 = scmp.ne.s32.totalorder %s882, %s884
      %p888 = scmp.eq.s32.totalorder %s150, 0
      %p889 = por %p887, %p888
      %p890 = scmp.ne.s32.totalorder %s882, %s884
      %p891 = scmp.eq.s32.totalorder %s155, 1
      %p892 = por %p890, %p891
      %p893 = scmp.ne.s32.totalorder %s884, %s885
      %p894 = scmp.eq.s32.totalorder %s155, 0
      %p895 = por %p893, %p894
      %p896 = scmp.ne.s32.totalorder %s884, %s885
      %p897 = scmp.eq.s32.totalorder %s156, 1
      %p898 = por %p896, %p897
      %p900 = scmp.ne.s32.totalorder %s885, %s899
      %p901 = scmp.eq.s32.totalorder %s156, 0
      %p902 = por %p900, %p901
      %s904 = sadd.s32 %s903, 1
      %p907 = scmp.eq.s32.totalorder %s150, 1
      %p908 = scmp.ne.s32.totalorder %s903, %s905
      %p909 = scmp.eq.s32.totalorder %s150, 0
      %p910 = por %p908, %p909
      %p911 = scmp.ne.s32.totalorder %s903, %s905
      %p912 = scmp.eq.s32.totalorder %s155, 1
      %p913 = por %p911, %p912
      %p914 = scmp.ne.s32.totalorder %s905, %s906
      %p915 = scmp.eq.s32.totalorder %s155, 0
      %p916 = por %p914, %p915
      %p917 = scmp.ne.s32.totalorder %s905, %s906
      %p918 = scmp.eq.s32.totalorder %s156, 1
      %p919 = por %p917, %p918
      %p921 = scmp.ne.s32.totalorder %s906, %s920
      %p922 = scmp.eq.s32.totalorder %s156, 0
      %p923 = por %p921, %p922
      %s925 = sadd.s32 %s924, 1
      %p928 = scmp.eq.s32.totalorder %s150, 1
      %p929 = scmp.ne.s32.totalorder %s924, %s926
      %p930 = scmp.eq.s32.totalorder %s150, 0
      %p931 = por %p929, %p930
      %p932 = scmp.ne.s32.totalorder %s924, %s926
      %p933 = scmp.eq.s32.totalorder %s155, 1
      %p934 = por %p932, %p933
      %p935 = scmp.ne.s32.totalorder %s926, %s927
      %p936 = scmp.eq.s32.totalorder %s155, 0
      %p937 = por %p935, %p936
      %p938 = scmp.ne.s32.totalorder %s926, %s927
      %p939 = scmp.eq.s32.totalorder %s156, 1
      %p940 = por %p938, %p939
      %p942 = scmp.ne.s32.totalorder %s927, %s941
      %p943 = scmp.eq.s32.totalorder %s156, 0
      %p944 = por %p942, %p943
      %s946 = sadd.s32 %s945, 1
      %p949 = scmp.eq.s32.totalorder %s150, 1
      %p950 = scmp.ne.s32.totalorder %s945, %s947
      %p951 = scmp.eq.s32.totalorder %s150, 0
      %p952 = por %p950, %p951
      %p953 = scmp.ne.s32.totalorder %s945, %s947
      %p954 = scmp.eq.s32.totalorder %s155, 1
      %p955 = por %p953, %p954
      %p956 = scmp.ne.s32.totalorder %s947, %s948
      %p957 = scmp.eq.s32.totalorder %s155, 0
      %p958 = por %p956, %p957
      %p959 = scmp.ne.s32.totalorder %s947, %s948
      %p960 = scmp.eq.s32.totalorder %s156, 1
      %p961 = por %p959, %p960
      %p963 = scmp.ne.s32.totalorder %s948, %s962
      %p964 = scmp.eq.s32.totalorder %s156, 0
      %p965 = por %p963, %p964
      %s967 = sadd.s32 %s966, 1
      %p970 = scmp.eq.s32.totalorder %s150, 1
      %p971 = scmp.ne.s32.totalorder %s966, %s968
      %p972 = scmp.eq.s32.totalorder %s150, 0
      %p973 = por %p971, %p972
      %p974 = scmp.ne.s32.totalorder %s966, %s968
      %p975 = scmp.eq.s32.totalorder %s155, 1
      %p976 = por %p974, %p975
      %p977 = scmp.ne.s32.totalorder %s968, %s969
      %p978 = scmp.eq.s32.totalorder %s155, 0
      %p979 = por %p977, %p978
      %p980 = scmp.ne.s32.totalorder %s968, %s969
      %p981 = scmp.eq.s32.totalorder %s156, 1
      %p982 = por %p980, %p981
      %p984 = scmp.ne.s32.totalorder %s969, %s983
      %p985 = scmp.eq.s32.totalorder %s156, 0
      %p986 = por %p984, %p985
      %s988 = sadd.s32 %s987, 1
      %p991 = scmp.eq.s32.totalorder %s150, 1
      %p992 = scmp.ne.s32.totalorder %s987, %s989
      %p993 = scmp.eq.s32.totalorder %s150, 0
      %p994 = por %p992, %p993
      %p995 = scmp.ne.s32.totalorder %s987, %s989
      %p996 = scmp.eq.s32.totalorder %s155, 1
      %p997 = por %p995, %p996
      %p998 = scmp.ne.s32.totalorder %s989, %s990
      %p999 = scmp.eq.s32.totalorder %s155, 0
      %p1000 = por %p998, %p999
      %p1001 = scmp.ne.s32.totalorder %s989, %s990
      %p1002 = scmp.eq.s32.totalorder %s156, 1
      %p1003 = por %p1001, %p1002
      %p1005 = scmp.ne.s32.totalorder %s990, %s1004
      %p1006 = scmp.eq.s32.totalorder %s156, 0
      %p1007 = por %p1005, %p1006
      %s1009 = sadd.s32 %s1008, 1
      %p1012 = scmp.eq.s32.totalorder %s150, 1
      %p1013 = scmp.ne.s32.totalorder %s1008, %s1010
      %p1014 = scmp.eq.s32.totalorder %s150, 0
      %p1015 = por %p1013, %p1014
      %p1016 = scmp.ne.s32.totalorder %s1008, %s1010
      %p1017 = scmp.eq.s32.totalorder %s155, 1
      %p1018 = por %p1016, %p1017
      %p1019 = scmp.ne.s32.totalorder %s1010, %s1011
      %p1020 = scmp.eq.s32.totalorder %s155, 0
      %p1021 = por %p1019, %p1020
      %p1022 = scmp.ne.s32.totalorder %s1010, %s1011
      %p1023 = scmp.eq.s32.totalorder %s156, 1
      %p1024 = por %p1022, %p1023
      %p1026 = scmp.ne.s32.totalorder %s1011, %s1025
      %p1027 = scmp.eq.s32.totalorder %s156, 0
      %p1028 = por %p1026, %p1027
      %s1030 = sadd.s32 %s1029, 1
      %p1033 = scmp.eq.s32.totalorder %s150, 1
      %p1034 = scmp.ne.s32.totalorder %s1029, %s1031
      %p1035 = scmp.eq.s32.totalorder %s150, 0
      %p1036 = por %p1034, %p1035
      %p1037 = scmp.ne.s32.totalorder %s1029, %s1031
      %p1038 = scmp.eq.s32.totalorder %s155, 1
      %p1039 = por %p1037, %p1038
      %p1040 = scmp.ne.s32.totalorder %s1031, %s1032
      %p1041 = scmp.eq.s32.totalorder %s155, 0
      %p1042 = por %p1040, %p1041
      %p1043 = scmp.ne.s32.totalorder %s1031, %s1032
      %p1044 = scmp.eq.s32.totalorder %s156, 1
      %p1045 = por %p1043, %p1044
      %p1047 = scmp.ne.s32.totalorder %s1032, %s1046
      %p1048 = scmp.eq.s32.totalorder %s156, 0
      %p1049 = por %p1047, %p1048
      %s1051 = sadd.s32 %s1050, 1
      %p1054 = scmp.eq.s32.totalorder %s150, 1
      %p1055 = scmp.ne.s32.totalorder %s1050, %s1052
      %p1056 = scmp.eq.s32.totalorder %s150, 0
      %p1057 = por %p1055, %p1056
      %p1058 = scmp.ne.s32.totalorder %s1050, %s1052
      %p1059 = scmp.eq.s32.totalorder %s155, 1
      %p1060 = por %p1058, %p1059
      %p1061 = scmp.ne.s32.totalorder %s1052, %s1053
      %p1062 = scmp.eq.s32.totalorder %s155, 0
      %p1063 = por %p1061, %p1062
      %p1064 = scmp.ne.s32.totalorder %s1052, %s1053
      %p1065 = scmp.eq.s32.totalorder %s156, 1
      %p1066 = por %p1064, %p1065
      %p1068 = scmp.ne.s32.totalorder %s1053, %s1067
      %p1069 = scmp.eq.s32.totalorder %s156, 0
      %p1070 = por %p1068, %p1069
      %s1072 = sadd.s32 %s1071, 1
      %p1075 = scmp.eq.s32.totalorder %s150, 1
      %p1076 = scmp.ne.s32.totalorder %s1071, %s1073
      %p1077 = scmp.eq.s32.totalorder %s150, 0
      %p1078 = por %p1076, %p1077
      %p1079 = scmp.ne.s32.totalorder %s1071, %s1073
      %p1080 = scmp.eq.s32.totalorder %s155, 1
      %p1081 = por %p1079, %p1080
      %p1082 = scmp.ne.s32.totalorder %s1073, %s1074
      %p1083 = scmp.eq.s32.totalorder %s155, 0
      %p1084 = por %p1082, %p1083
      %p1085 = scmp.ne.s32.totalorder %s1073, %s1074
      %p1086 = scmp.eq.s32.totalorder %s156, 1
      %p1087 = por %p1085, %p1086
      %p1089 = scmp.ne.s32.totalorder %s1074, %s1088
      %p1090 = scmp.eq.s32.totalorder %s156, 0
      %p1091 = por %p1089, %p1090
      %s1093 = sadd.s32 %s1092, 1
      %p1096 = scmp.eq.s32.totalorder %s150, 1
      %p1097 = scmp.ne.s32.totalorder %s1092, %s1094
      %p1098 = scmp.eq.s32.totalorder %s150, 0
      %p1099 = por %p1097, %p1098
      %p1100 = scmp.ne.s32.totalorder %s1092, %s1094
      %p1101 = scmp.eq.s32.totalorder %s155, 1
      %p1102 = por %p1100, %p1101
      %p1103 = scmp.ne.s32.totalorder %s1094, %s1095
      %p1104 = scmp.eq.s32.totalorder %s155, 0
      %p1105 = por %p1103, %p1104
      %p1106 = scmp.ne.s32.totalorder %s1094, %s1095
      %p1107 = scmp.eq.s32.totalorder %s156, 1
      %p1108 = por %p1106, %p1107
      %p1110 = scmp.ne.s32.totalorder %s1095, %s1109
      %p1111 = scmp.eq.s32.totalorder %s156, 0
      %p1112 = por %p1110, %p1111
      %s1114 = sadd.s32 %s1113, 1
      %p1117 = scmp.eq.s32.totalorder %s150, 1
      %p1118 = scmp.ne.s32.totalorder %s1113, %s1115
      %p1119 = scmp.eq.s32.totalorder %s150, 0
      %p1120 = por %p1118, %p1119
      %p1121 = scmp.ne.s32.totalorder %s1113, %s1115
      %p1122 = scmp.eq.s32.totalorder %s155, 1
      %p1123 = por %p1121, %p1122
      %p1124 = scmp.ne.s32.totalorder %s1115, %s1116
      %p1125 = scmp.eq.s32.totalorder %s155, 0
      %p1126 = por %p1124, %p1125
      %p1127 = scmp.ne.s32.totalorder %s1115, %s1116
      %p1128 = scmp.eq.s32.totalorder %s156, 1
      %p1129 = por %p1127, %p1128
      %p1131 = scmp.ne.s32.totalorder %s1116, %s1130
      %p1132 = scmp.eq.s32.totalorder %s156, 0
      %p1133 = por %p1131, %p1132
      %s1135 = sadd.s32 %s1134, 1
      %p1138 = scmp.eq.s32.totalorder %s150, 1
      %p1139 = scmp.ne.s32.totalorder %s1134, %s1136
      %p1140 = scmp.eq.s32.totalorder %s150, 0
      %p1141 = por %p1139, %p1140
      %p1142 = scmp.ne.s32.totalorder %s1134, %s1136
      %p1143 = scmp.eq.s32.totalorder %s155, 1
      %p1144 = por %p1142, %p1143
      %p1145 = scmp.ne.s32.totalorder %s1136, %s1137
      %p1146 = scmp.eq.s32.totalorder %s155, 0
      %p1147 = por %p1145, %p1146
      %p1148 = scmp.ne.s32.totalorder %s1136, %s1137
      %p1149 = scmp.eq.s32.totalorder %s156, 1
      %p1150 = por %p1148, %p1149
      %p1152 = scmp.ne.s32.totalorder %s1137, %s1151
      %p1153 = scmp.eq.s32.totalorder %s156, 0
      %p1154 = por %p1152, %p1153
      %s1156 = sadd.s32 %s1155, 1
      %p1159 = scmp.eq.s32.totalorder %s150, 1
      %p1160 = scmp.ne.s32.totalorder %s1155, %s1157
      %p1161 = scmp.eq.s32.totalorder %s150, 0
      %p1162 = por %p1160, %p1161
      %p1163 = scmp.ne.s32.totalorder %s1155, %s1157
      %p1164 = scmp.eq.s32.totalorder %s155, 1
      %p1165 = por %p1163, %p1164
      %p1166 = scmp.ne.s32.totalorder %s1157, %s1158
      %p1167 = scmp.eq.s32.totalorder %s155, 0
      %p1168 = por %p1166, %p1167
      %p1169 = scmp.ne.s32.totalorder %s1157, %s1158
      %p1170 = scmp.eq.s32.totalorder %s156, 1
      %p1171 = por %p1169, %p1170
      %p1173 = scmp.ne.s32.totalorder %s1158, %s1172
      %p1174 = scmp.eq.s32.totalorder %s156, 0
      %p1175 = por %p1173, %p1174
      %s1177 = sadd.s32 %s1176, 1
      %p1180 = scmp.eq.s32.totalorder %s150, 1
      %p1181 = scmp.ne.s32.totalorder %s1176, %s1178
      %p1182 = scmp.eq.s32.totalorder %s150, 0
      %p1183 = por %p1181, %p1182
      %p1184 = scmp.ne.s32.totalorder %s1176, %s1178
      %p1185 = scmp.eq.s32.totalorder %s155, 1
      %p1186 = por %p1184, %p1185
      %p1187 = scmp.ne.s32.totalorder %s1178, %s1179
      %p1188 = scmp.eq.s32.totalorder %s155, 0
      %p1189 = por %p1187, %p1188
      %p1190 = scmp.ne.s32.totalorder %s1178, %s1179
      %p1191 = scmp.eq.s32.totalorder %s156, 1
      %p1192 = por %p1190, %p1191
      %p1194 = scmp.ne.s32.totalorder %s1179, %s1193
      %p1195 = scmp.eq.s32.totalorder %s156, 0
      %p1196 = por %p1194, %p1195
      %s1198 = sadd.s32 %s1197, 1
      %p1201 = scmp.eq.s32.totalorder %s150, 1
      %p1202 = scmp.ne.s32.totalorder %s1197, %s1199
      %p1203 = scmp.eq.s32.totalorder %s150, 0
      %p1204 = por %p1202, %p1203
      %p1205 = scmp.ne.s32.totalorder %s1197, %s1199
      %p1206 = scmp.eq.s32.totalorder %s155, 1
      %p1207 = por %p1205, %p1206
      %p1208 = scmp.ne.s32.totalorder %s1199, %s1200
      %p1209 = scmp.eq.s32.totalorder %s155, 0
      %p1210 = por %p1208, %p1209
      %p1211 = scmp.ne.s32.totalorder %s1199, %s1200
      %p1212 = scmp.eq.s32.totalorder %s156, 1
      %p1213 = por %p1211, %p1212
      %p1215 = scmp.ne.s32.totalorder %s1200, %s1214
      %p1216 = scmp.eq.s32.totalorder %s156, 0
      %p1217 = por %p1215, %p1216
      %s1219 = sadd.s32 %s1218, 1
      %p1222 = scmp.eq.s32.totalorder %s150, 1
      %p1223 = scmp.ne.s32.totalorder %s1218, %s1220
      %p1224 = scmp.eq.s32.totalorder %s150, 0
      %p1225 = por %p1223, %p1224
      %p1226 = scmp.ne.s32.totalorder %s1218, %s1220
      %p1227 = scmp.eq.s32.totalorder %s155, 1
      %p1228 = por %p1226, %p1227
      %p1229 = scmp.ne.s32.totalorder %s1220, %s1221
      %p1230 = scmp.eq.s32.totalorder %s155, 0
      %p1231 = por %p1229, %p1230
      %p1232 = scmp.ne.s32.totalorder %s1220, %s1221
      %p1233 = scmp.eq.s32.totalorder %s156, 1
      %p1234 = por %p1232, %p1233
      %p1236 = scmp.ne.s32.totalorder %s1221, %s1235
      %p1237 = scmp.eq.s32.totalorder %s156, 0
      %p1238 = por %p1236, %p1237
      %s1240 = sadd.s32 %s1239, 1
      %p1243 = scmp.eq.s32.totalorder %s150, 1
      %p1244 = scmp.ne.s32.totalorder %s1239, %s1241
      %p1245 = scmp.eq.s32.totalorder %s150, 0
      %p1246 = por %p1244, %p1245
      %p1247 = scmp.ne.s32.totalorder %s1239, %s1241
      %p1248 = scmp.eq.s32.totalorder %s155, 1
      %p1249 = por %p1247, %p1248
      %p1250 = scmp.ne.s32.totalorder %s1241, %s1242
      %p1251 = scmp.eq.s32.totalorder %s155, 0
      %p1252 = por %p1250, %p1251
      %p1253 = scmp.ne.s32.totalorder %s1241, %s1242
      %p1254 = scmp.eq.s32.totalorder %s156, 1
      %p1255 = por %p1253, %p1254
      %p1257 = scmp.ne.s32.totalorder %s1242, %s1256
      %p1258 = scmp.eq.s32.totalorder %s156, 0
      %p1259 = por %p1257, %p1258
      %s1261 = sadd.s32 %s1260, 1
      %p1264 = scmp.eq.s32.totalorder %s150, 1
      %p1265 = scmp.ne.s32.totalorder %s1260, %s1262
      %p1266 = scmp.eq.s32.totalorder %s150, 0
      %p1267 = por %p1265, %p1266
      %p1268 = scmp.ne.s32.totalorder %s1260, %s1262
      %p1269 = scmp.eq.s32.totalorder %s155, 1
      %p1270 = por %p1268, %p1269
      %p1271 = scmp.ne.s32.totalorder %s1262, %s1263
      %p1272 = scmp.eq.s32.totalorder %s155, 0
      %p1273 = por %p1271, %p1272
      %p1274 = scmp.ne.s32.totalorder %s1262, %s1263
      %p1275 = scmp.eq.s32.totalorder %s156, 1
      %p1276 = por %p1274, %p1275
      %p1278 = scmp.ne.s32.totalorder %s1263, %s1277
      %p1279 = scmp.eq.s32.totalorder %s156, 0
      %p1280 = por %p1278, %p1279
      %s1282 = sadd.s32 %s1281, 1
      %p1285 = scmp.eq.s32.totalorder %s150, 1
      %p1286 = scmp.ne.s32.totalorder %s1281, %s1283
      %p1287 = scmp.eq.s32.totalorder %s150, 0
      %p1288 = por %p1286, %p1287
      %p1289 = scmp.ne.s32.totalorder %s1281, %s1283
      %p1290 = scmp.eq.s32.totalorder %s155, 1
      %p1291 = por %p1289, %p1290
      %p1292 = scmp.ne.s32.totalorder %s1283, %s1284
      %p1293 = scmp.eq.s32.totalorder %s155, 0
      %p1294 = por %p1292, %p1293
      %p1295 = scmp.ne.s32.totalorder %s1283, %s1284
      %p1296 = scmp.eq.s32.totalorder %s156, 1
      %p1297 = por %p1295, %p1296
      %p1299 = scmp.ne.s32.totalorder %s1284, %s1298
      %p1300 = scmp.eq.s32.totalorder %s156, 0
      %p1301 = por %p1299, %p1300
      %s1303 = sadd.s32 %s1302, 1
      %p1306 = scmp.eq.s32.totalorder %s150, 1
      %p1307 = scmp.ne.s32.totalorder %s1302, %s1304
      %p1308 = scmp.eq.s32.totalorder %s150, 0
      %p1309 = por %p1307, %p1308
      %p1310 = scmp.ne.s32.totalorder %s1302, %s1304
      %p1311 = scmp.eq.s32.totalorder %s155, 1
      %p1312 = por %p1310, %p1311
      %p1313 = scmp.ne.s32.totalorder %s1304, %s1305
      %p1314 = scmp.eq.s32.totalorder %s155, 0
      %p1315 = por %p1313, %p1314
      %p1316 = scmp.ne.s32.totalorder %s1304, %s1305
      %p1317 = scmp.eq.s32.totalorder %s156, 1
      %p1318 = por %p1316, %p1317
      %p1320 = scmp.ne.s32.totalorder %s1305, %s1319
      %p1321 = scmp.eq.s32.totalorder %s156, 0
      %p1322 = por %p1320, %p1321
      %s1324 = sadd.s32 %s1323, 1
      %p1327 = scmp.eq.s32.totalorder %s150, 1
      %p1328 = scmp.ne.s32.totalorder %s1323, %s1325
      %p1329 = scmp.eq.s32.totalorder %s150, 0
      %p1330 = por %p1328, %p1329
      %p1331 = scmp.ne.s32.totalorder %s1323, %s1325
      %p1332 = scmp.eq.s32.totalorder %s155, 1
      %p1333 = por %p1331, %p1332
      %p1334 = scmp.ne.s32.totalorder %s1325, %s1326
      %p1335 = scmp.eq.s32.totalorder %s155, 0
      %p1336 = por %p1334, %p1335
      %p1337 = scmp.ne.s32.totalorder %s1325, %s1326
      %p1338 = scmp.eq.s32.totalorder %s156, 1
      %p1339 = por %p1337, %p1338
      %p1341 = scmp.ne.s32.totalorder %s1326, %s1340
      %p1342 = scmp.eq.s32.totalorder %s156, 0
      %p1343 = por %p1341, %p1342
      %s1345 = sadd.s32 %s1344, 1
      %p1348 = scmp.eq.s32.totalorder %s150, 1
      %p1349 = scmp.ne.s32.totalorder %s1344, %s1346
      %p1350 = scmp.eq.s32.totalorder %s150, 0
      %p1351 = por %p1349, %p1350
      %p1352 = scmp.ne.s32.totalorder %s1344, %s1346
      %p1353 = scmp.eq.s32.totalorder %s155, 1
      %p1354 = por %p1352, %p1353
      %p1355 = scmp.ne.s32.totalorder %s1346, %s1347
      %p1356 = scmp.eq.s32.totalorder %s155, 0
      %p1357 = por %p1355, %p1356
      %p1358 = scmp.ne.s32.totalorder %s1346, %s1347
      %p1359 = scmp.eq.s32.totalorder %s156, 1
      %p1360 = por %p1358, %p1359
      %p1362 = scmp.ne.s32.totalorder %s1347, %s1361
      %p1363 = scmp.eq.s32.totalorder %s156, 0
      %p1364 = por %p1362, %p1363
      %s1366 = sadd.s32 %s1365, 1
      %p1369 = scmp.eq.s32.totalorder %s150, 1
      %p1370 = scmp.ne.s32.totalorder %s1365, %s1367
      %p1371 = scmp.eq.s32.totalorder %s150, 0
      %p1372 = por %p1370, %p1371
      %p1373 = scmp.ne.s32.totalorder %s1365, %s1367
      %p1374 = scmp.eq.s32.totalorder %s155, 1
      %p1375 = por %p1373, %p1374
      %p1376 = scmp.ne.s32.totalorder %s1367, %s1368
      %p1377 = scmp.eq.s32.totalorder %s155, 0
      %p1378 = por %p1376, %p1377
      %p1379 = scmp.ne.s32.totalorder %s1367, %s1368
      %p1380 = scmp.eq.s32.totalorder %s156, 1
      %p1381 = por %p1379, %p1380
      %p1383 = scmp.ne.s32.totalorder %s1368, %s1382
      %p1384 = scmp.eq.s32.totalorder %s156, 0
      %p1385 = por %p1383, %p1384
      %s1387 = sadd.s32 %s1386, 1
      %p1390 = scmp.eq.s32.totalorder %s150, 1
      %p1391 = scmp.ne.s32.totalorder %s1386, %s1388
      %p1392 = scmp.eq.s32.totalorder %s150, 0
      %p1393 = por %p1391, %p1392
      %p1394 = scmp.ne.s32.totalorder %s1386, %s1388
      %p1395 = scmp.eq.s32.totalorder %s155, 1
      %p1396 = por %p1394, %p1395
      %p1397 = scmp.ne.s32.totalorder %s1388, %s1389
      %p1398 = scmp.eq.s32.totalorder %s155, 0
      %p1399 = por %p1397, %p1398
      %p1400 = scmp.ne.s32.totalorder %s1388, %s1389
      %p1401 = scmp.eq.s32.totalorder %s156, 1
      %p1402 = por %p1400, %p1401
      %p1404 = scmp.ne.s32.totalorder %s1389, %s1403
      %p1405 = scmp.eq.s32.totalorder %s156, 0
      %p1406 = por %p1404, %p1405
      %s1408 = sadd.s32 %s1407, 1
      %p1411 = scmp.eq.s32.totalorder %s150, 1
      %p1412 = scmp.ne.s32.totalorder %s1407, %s1409
      %p1413 = scmp.eq.s32.totalorder %s150, 0
      %p1414 = por %p1412, %p1413
      %p1415 = scmp.ne.s32.totalorder %s1407, %s1409
      %p1416 = scmp.eq.s32.totalorder %s155, 1
      %p1417 = por %p1415, %p1416
      %p1418 = scmp.ne.s32.totalorder %s1409, %s1410
      %p1419 = scmp.eq.s32.totalorder %s155, 0
      %p1420 = por %p1418, %p1419
      %p1421 = scmp.ne.s32.totalorder %s1409, %s1410
      %p1422 = scmp.eq.s32.totalorder %s156, 1
      %p1423 = por %p1421, %p1422
      %p1425 = scmp.ne.s32.totalorder %s1410, %s1424
      %p1426 = scmp.eq.s32.totalorder %s156, 0
      %p1427 = por %p1425, %p1426
      %s1429 = sadd.s32 %s1428, 1
      %p1432 = scmp.eq.s32.totalorder %s150, 1
      %p1433 = scmp.ne.s32.totalorder %s1428, %s1430
      %p1434 = scmp.eq.s32.totalorder %s150, 0
      %p1435 = por %p1433, %p1434
      %p1436 = scmp.ne.s32.totalorder %s1428, %s1430
      %p1437 = scmp.eq.s32.totalorder %s155, 1
      %p1438 = por %p1436, %p1437
      %p1439 = scmp.ne.s32.totalorder %s1430, %s1431
      %p1440 = scmp.eq.s32.totalorder %s155, 0
      %p1441 = por %p1439, %p1440
      %p1442 = scmp.ne.s32.totalorder %s1430, %s1431
      %p1443 = scmp.eq.s32.totalorder %s156, 1
      %p1444 = por %p1442, %p1443
      %p1446 = scmp.ne.s32.totalorder %s1431, %s1445
      %p1447 = scmp.eq.s32.totalorder %s156, 0
      %p1448 = por %p1446, %p1447
      %s1450 = sadd.s32 %s1449, 1
      %p1453 = scmp.eq.s32.totalorder %s150, 1
      %p1454 = scmp.ne.s32.totalorder %s1449, %s1451
      %p1455 = scmp.eq.s32.totalorder %s150, 0
      %p1456 = por %p1454, %p1455
      %p1457 = scmp.ne.s32.totalorder %s1449, %s1451
      %p1458 = scmp.eq.s32.totalorder %s155, 1
      %p1459 = por %p1457, %p1458
      %p1460 = scmp.ne.s32.totalorder %s1451, %s1452
      %p1461 = scmp.eq.s32.totalorder %s155, 0
      %p1462 = por %p1460, %p1461
      %p1463 = scmp.ne.s32.totalorder %s1451, %s1452
      %p1464 = scmp.eq.s32.totalorder %s156, 1
      %p1465 = por %p1463, %p1464
      %p1467 = scmp.ne.s32.totalorder %s1452, %s1466
      %p1468 = scmp.eq.s32.totalorder %s156, 0
      %p1469 = por %p1467, %p1468
      %s1471 = sadd.s32 %s1470, 1
      %p1474 = scmp.eq.s32.totalorder %s150, 1
      %p1475 = scmp.ne.s32.totalorder %s1470, %s1472
      %p1476 = scmp.eq.s32.totalorder %s150, 0
      %p1477 = por %p1475, %p1476
      %p1478 = scmp.ne.s32.totalorder %s1470, %s1472
      %p1479 = scmp.eq.s32.totalorder %s155, 1
      %p1480 = por %p1478, %p1479
      %p1481 = scmp.ne.s32.totalorder %s1472, %s1473
      %p1482 = scmp.eq.s32.totalorder %s155, 0
      %p1483 = por %p1481, %p1482
      %p1484 = scmp.ne.s32.totalorder %s1472, %s1473
      %p1485 = scmp.eq.s32.totalorder %s156, 1
      %p1486 = por %p1484, %p1485
      %p1488 = scmp.ne.s32.totalorder %s1473, %s1487
      %p1489 = scmp.eq.s32.totalorder %s156, 0
      %p1490 = por %p1488, %p1489
      %s1492 = sadd.s32 %s1491, 1
      %p1495 = scmp.eq.s32.totalorder %s150, 1
      %p1496 = scmp.ne.s32.totalorder %s1491, %s1493
      %p1497 = scmp.eq.s32.totalorder %s150, 0
      %p1498 = por %p1496, %p1497
      %p1499 = scmp.ne.s32.totalorder %s1491, %s1493
      %p1500 = scmp.eq.s32.totalorder %s155, 1
      %p1501 = por %p1499, %p1500
      %p1502 = scmp.ne.s32.totalorder %s1493, %s1494
      %p1503 = scmp.eq.s32.totalorder %s155, 0
      %p1504 = por %p1502, %p1503
      %p1505 = scmp.ne.s32.totalorder %s1493, %s1494
      %p1506 = scmp.eq.s32.totalorder %s156, 1
      %p1507 = por %p1505, %p1506
      %p1509 = scmp.ne.s32.totalorder %s1494, %s1508
      %p1510 = scmp.eq.s32.totalorder %s156, 0
      %p1511 = por %p1509, %p1510
      %s1513 = sadd.s32 %s1512, 1
      %p1516 = scmp.eq.s32.totalorder %s150, 1
      %p1517 = scmp.ne.s32.totalorder %s1512, %s1514
      %p1518 = scmp.eq.s32.totalorder %s150, 0
      %p1519 = por %p1517, %p1518
      %p1520 = scmp.ne.s32.totalorder %s1512, %s1514
      %p1521 = scmp.eq.s32.totalorder %s155, 1
      %p1522 = por %p1520, %p1521
      %p1523 = scmp.ne.s32.totalorder %s1514, %s1515
      %p1524 = scmp.eq.s32.totalorder %s155, 0
      %p1525 = por %p1523, %p1524
      %p1526 = scmp.ne.s32.totalorder %s1514, %s1515
      %p1527 = scmp.eq.s32.totalorder %s156, 1
      %p1528 = por %p1526, %p1527
      %p1530 = scmp.ne.s32.totalorder %s1515, %s1529
      %p1531 = scmp.eq.s32.totalorder %s156, 0
      %p1532 = por %p1530, %p1531
      %s1534 = sadd.s32 %s1533, 1
      %p1537 = scmp.eq.s32.totalorder %s150, 1
      %p1538 = scmp.ne.s32.totalorder %s1533, %s1535
      %p1539 = scmp.eq.s32.totalorder %s150, 0
      %p1540 = por %p1538, %p1539
      %p1541 = scmp.ne.s32.totalorder %s1533, %s1535
      %p1542 = scmp.eq.s32.totalorder %s155, 1
      %p1543 = por %p1541, %p1542
      %p1544 = scmp.ne.s32.totalorder %s1535, %s1536
      %p1545 = scmp.eq.s32.totalorder %s155, 0
      %p1546 = por %p1544, %p1545
      %p1547 = scmp.ne.s32.totalorder %s1535, %s1536
      %p1548 = scmp.eq.s32.totalorder %s156, 1
      %p1549 = por %p1547, %p1548
      %p1551 = scmp.ne.s32.totalorder %s1536, %s1550
      %p1552 = scmp.eq.s32.totalorder %s156, 0
      %p1553 = por %p1551, %p1552
      %s1554 = ssub.s32 %s150, %s157
      %p1555 = scmp.eq.s32.totalorder %s1554, 0
      %s1557 = sadd.s32 %s1556, 1
      %s1558 = scalar_select %p1555, %s1556, %s1557
      %p1561 = pneg %p1555
      %p1562 = scmp.eq.s32.totalorder %s150, 1
      %p1563 = por %p1561, %p1562
      %p1564 = scmp.ne.s32.totalorder %s1556, %s1559
      %p1565 = scmp.eq.s32.totalorder %s150, 0
      %p1566 = por %p1564, %p1565
      %p1567 = scmp.ne.s32.totalorder %s1556, %s1559
      %p1568 = scmp.eq.s32.totalorder %s155, 1
      %p1569 = por %p1567, %p1568
      %p1570 = scmp.ne.s32.totalorder %s1559, %s1560
      %p1571 = scmp.eq.s32.totalorder %s155, 0
      %p1572 = por %p1570, %p1571
      %p1573 = scmp.ne.s32.totalorder %s1559, %s1560
      %p1574 = scmp.eq.s32.totalorder %s156, 1
      %p1575 = por %p1573, %p1574
      %p1577 = scmp.ne.s32.totalorder %s1560, %s1576
      %p1578 = scmp.eq.s32.totalorder %s156, 0
      %p1579 = por %p1577, %p1578
      %p1580 = scmp.le.s32.totalorder 1, %s150
      %p1581 = scmp.lt.s32.totalorder %s150, 3
      %p1582 = pnand %p1580, %p1581
      %p1583 = pneg %p1582
      // Predicated region
      $region9: #{sparse_sync_forward.1} parent=5 // pred_check
        _
      $region10: #{sparse_sync_forward.1} parent=5 // pred_check_branch
        %1585 = sbr.rel (%p1582) target = $region12
      $region11: #{sparse_sync_forward.1} parent=5 // pred_region
        %s1586 = ssub.s32 %s150, 1
        // Predicated region
        $region13: #{sparse_sync_forward.1} parent=11 // pred_check
          %p1587 = pneg %p223
        $region14: #{sparse_sync_forward.1} parent=11 // pred_check_branch
          %1589 = sbr.rel (%p1587) target = $region16
        $region15: #{sparse_sync_forward.1} parent=11 // pred_region
          _
        $region16: #{sparse_sync_forward.1} parent=11 // pred_fallthru
          _
        // Predicated region
        $region17: #{sparse_sync_forward.1} parent=11 // pred_check
          %p1590 = pneg %p244
        $region18: #{sparse_sync_forward.1} parent=11 // pred_check_branch
          %1592 = sbr.rel (%p1590) target = $region20
        $region19: #{sparse_sync_forward.1} parent=11 // pred_region
          _
        $region20: #{sparse_sync_forward.1} parent=11 // pred_fallthru
          _
        // Predicated region
        $region21: #{sparse_sync_forward.1} parent=11 // pred_check
          %p1593 = pneg %p265
        $region22: #{sparse_sync_forward.1} parent=11 // pred_check_branch
          %1595 = sbr.rel (%p1593) target = $region24
        $region23: #{sparse_sync_forward.1} parent=11 // pred_region
          _
        $region24: #{sparse_sync_forward.1} parent=11 // pred_fallthru
          _
        // Predicated region
        $region25: #{sparse_sync_forward.1} parent=11 // pred_check
          %p1596 = pneg %p286
        $region26: #{sparse_sync_forward.1} parent=11 // pred_check_branch
          %1598 = sbr.rel (%p1596) target = $region28
        $region27: #{sparse_sync_forward.1} parent=11 // pred_region
          _
        $region28: #{sparse_sync_forward.1} parent=11 // pred_fallthru
          _
        // Predicated region
        $region29: #{sparse_sync_forward.1} parent=11 // pred_check
          %p1599 = pneg %p307
        $region30: #{sparse_sync_forward.1} parent=11 // pred_check_branch
          %1601 = sbr.rel (%p1599) target = $region32
        $region31: #{sparse_sync_forward.1} parent=11 // pred_region
          _
        $region32: #{sparse_sync_forward.1} parent=11 // pred_fallthru
          _
        // Predicated region
        $region33: #{sparse_sync_forward.1} parent=11 // pred_check
          %p1602 = pneg %p328
        $region34: #{sparse_sync_forward.1} parent=11 // pred_check_branch
          %1604 = sbr.rel (%p1602) target = $region36
        $region35: #{sparse_sync_forward.1} parent=11 // pred_region
          _
        $region36: #{sparse_sync_forward.1} parent=11 // pred_fallthru
          _
        // Predicated region
        $region37: #{sparse_sync_forward.1} parent=11 // pred_check
          %p1605 = pneg %p349
        $region38: #{sparse_sync_forward.1} parent=11 // pred_check_branch
          %1607 = sbr.rel (%p1605) target = $region40
        $region39: #{sparse_sync_forward.1} parent=11 // pred_region
          _
        $region40: #{sparse_sync_forward.1} parent=11 // pred_fallthru
          _
        // Predicated region
        $region41: #{sparse_sync_forward.1} parent=11 // pred_check
          %p1608 = pneg %p370
        $region42: #{sparse_sync_forward.1} parent=11 // pred_check_branch
          %1610 = sbr.rel (%p1608) target = $region44
        $region43: #{sparse_sync_forward.1} parent=11 // pred_region
          _
        $region44: #{sparse_sync_forward.1} parent=11 // pred_fallthru
          _
        // Predicated region
        $region45: #{sparse_sync_forward.1} parent=11 // pred_check
          %p1611 = pneg %p391
        $region46: #{sparse_sync_forward.1} parent=11 // pred_check_branch
          %1613 = sbr.rel (%p1611) target = $region48
        $region47: #{sparse_sync_forward.1} parent=11 // pred_region
          _
        $region48: #{sparse_sync_forward.1} parent=11 // pred_fallthru
          _
        // Predicated region
        $region49: #{sparse_sync_forward.1} parent=11 // pred_check
          %p1614 = pneg %p412
        $region50: #{sparse_sync_forward.1} parent=11 // pred_check_branch
          %1616 = sbr.rel (%p1614) target = $region52
        $region51: #{sparse_sync_forward.1} parent=11 // pred_region
          _
        $region52: #{sparse_sync_forward.1} parent=11 // pred_fallthru
          _
        // Predicated region
        $region53: #{sparse_sync_forward.1} parent=11 // pred_check
          %p1617 = pneg %p433
        $region54: #{sparse_sync_forward.1} parent=11 // pred_check_branch
          %1619 = sbr.rel (%p1617) target = $region56
        $region55: #{sparse_sync_forward.1} parent=11 // pred_region
          _
        $region56: #{sparse_sync_forward.1} parent=11 // pred_fallthru
          _
        // Predicated region
        $region57: #{sparse_sync_forward.1} parent=11 // pred_check
          %p1620 = pneg %p454
        $region58: #{sparse_sync_forward.1} parent=11 // pred_check_branch
          %1622 = sbr.rel (%p1620) target = $region60
        $region59: #{sparse_sync_forward.1} parent=11 // pred_region
          _
        $region60: #{sparse_sync_forward.1} parent=11 // pred_fallthru
          _
        // Predicated region
        $region61: #{sparse_sync_forward.1} parent=11 // pred_check
          %p1623 = pneg %p475
        $region62: #{sparse_sync_forward.1} parent=11 // pred_check_branch
          %1625 = sbr.rel (%p1623) target = $region64
        $region63: #{sparse_sync_forward.1} parent=11 // pred_region
          _
        $region64: #{sparse_sync_forward.1} parent=11 // pred_fallthru
          _
        // Predicated region
        $region65: #{sparse_sync_forward.1} parent=11 // pred_check
          %p1626 = pneg %p496
        $region66: #{sparse_sync_forward.1} parent=11 // pred_check_branch
          %1628 = sbr.rel (%p1626) target = $region68
        $region67: #{sparse_sync_forward.1} parent=11 // pred_region
          _
        $region68: #{sparse_sync_forward.1} parent=11 // pred_fallthru
          _
        // Predicated region
        $region69: #{sparse_sync_forward.1} parent=11 // pred_check
          %p1629 = pneg %p517
        $region70: #{sparse_sync_forward.1} parent=11 // pred_check_branch
          %1631 = sbr.rel (%p1629) target = $region72
        $region71: #{sparse_sync_forward.1} parent=11 // pred_region
          _
        $region72: #{sparse_sync_forward.1} parent=11 // pred_fallthru
          _
        // Predicated region
        $region73: #{sparse_sync_forward.1} parent=11 // pred_check
          %p1632 = pneg %p538
        $region74: #{sparse_sync_forward.1} parent=11 // pred_check_branch
          %1634 = sbr.rel (%p1632) target = $region76
        $region75: #{sparse_sync_forward.1} parent=11 // pred_region
          _
        $region76: #{sparse_sync_forward.1} parent=11 // pred_fallthru
          _
        // Predicated region
        $region77: #{sparse_sync_forward.1} parent=11 // pred_check
          %p1635 = pneg %p559
        $region78: #{sparse_sync_forward.1} parent=11 // pred_check_branch
          %1637 = sbr.rel (%p1635) target = $region80
        $region79: #{sparse_sync_forward.1} parent=11 // pred_region
          _
        $region80: #{sparse_sync_forward.1} parent=11 // pred_fallthru
          _
        // Predicated region
        $region81: #{sparse_sync_forward.1} parent=11 // pred_check
          %p1638 = pneg %p580
        $region82: #{sparse_sync_forward.1} parent=11 // pred_check_branch
          %1640 = sbr.rel (%p1638) target = $region84
        $region83: #{sparse_sync_forward.1} parent=11 // pred_region
          _
        $region84: #{sparse_sync_forward.1} parent=11 // pred_fallthru
          _
        // Predicated region
        $region85: #{sparse_sync_forward.1} parent=11 // pred_check
          %p1641 = pneg %p601
        $region86: #{sparse_sync_forward.1} parent=11 // pred_check_branch
          %1643 = sbr.rel (%p1641) target = $region88
        $region87: #{sparse_sync_forward.1} parent=11 // pred_region
          _
        $region88: #{sparse_sync_forward.1} parent=11 // pred_fallthru
          _
        // Predicated region
        $region89: #{sparse_sync_forward.1} parent=11 // pred_check
          %p1644 = pneg %p622
        $region90: #{sparse_sync_forward.1} parent=11 // pred_check_branch
          %1646 = sbr.rel (%p1644) target = $region92
        $region91: #{sparse_sync_forward.1} parent=11 // pred_region
          _
        $region92: #{sparse_sync_forward.1} parent=11 // pred_fallthru
          _
        // Predicated region
        $region93: #{sparse_sync_forward.1} parent=11 // pred_check
          %p1647 = pneg %p643
        $region94: #{sparse_sync_forward.1} parent=11 // pred_check_branch
          %1649 = sbr.rel (%p1647) target = $region96
        $region95: #{sparse_sync_forward.1} parent=11 // pred_region
          _
        $region96: #{sparse_sync_forward.1} parent=11 // pred_fallthru
          _
        // Predicated region
        $region97: #{sparse_sync_forward.1} parent=11 // pred_check
          %p1650 = pneg %p664
        $region98: #{sparse_sync_forward.1} parent=11 // pred_check_branch
          %1652 = sbr.rel (%p1650) target = $region100
        $region99: #{sparse_sync_forward.1} parent=11 // pred_region
          _
        $region100: #{sparse_sync_forward.1} parent=11 // pred_fallthru
          _
        // Predicated region
        $region101: #{sparse_sync_forward.1} parent=11 // pred_check
          %p1653 = pneg %p685
        $region102: #{sparse_sync_forward.1} parent=11 // pred_check_branch
          %1655 = sbr.rel (%p1653) target = $region104
        $region103: #{sparse_sync_forward.1} parent=11 // pred_region
          _
        $region104: #{sparse_sync_forward.1} parent=11 // pred_fallthru
          _
        // Predicated region
        $region105: #{sparse_sync_forward.1} parent=11 // pred_check
          %p1656 = pneg %p706
        $region106: #{sparse_sync_forward.1} parent=11 // pred_check_branch
          %1658 = sbr.rel (%p1656) target = $region108
        $region107: #{sparse_sync_forward.1} parent=11 // pred_region
          _
        $region108: #{sparse_sync_forward.1} parent=11 // pred_fallthru
          _
        // Predicated region
        $region109: #{sparse_sync_forward.1} parent=11 // pred_check
          %p1659 = pneg %p727
        $region110: #{sparse_sync_forward.1} parent=11 // pred_check_branch
          %1661 = sbr.rel (%p1659) target = $region112
        $region111: #{sparse_sync_forward.1} parent=11 // pred_region
          _
        $region112: #{sparse_sync_forward.1} parent=11 // pred_fallthru
          _
        // Predicated region
        $region113: #{sparse_sync_forward.1} parent=11 // pred_check
          %p1662 = pneg %p748
        $region114: #{sparse_sync_forward.1} parent=11 // pred_check_branch
          %1664 = sbr.rel (%p1662) target = $region116
        $region115: #{sparse_sync_forward.1} parent=11 // pred_region
          _
        $region116: #{sparse_sync_forward.1} parent=11 // pred_fallthru
          _
        // Predicated region
        $region117: #{sparse_sync_forward.1} parent=11 // pred_check
          %p1665 = pneg %p769
        $region118: #{sparse_sync_forward.1} parent=11 // pred_check_branch
          %1667 = sbr.rel (%p1665) target = $region120
        $region119: #{sparse_sync_forward.1} parent=11 // pred_region
          _
        $region120: #{sparse_sync_forward.1} parent=11 // pred_fallthru
          _
        // Predicated region
        $region121: #{sparse_sync_forward.1} parent=11 // pred_check
          %p1668 = pneg %p790
        $region122: #{sparse_sync_forward.1} parent=11 // pred_check_branch
          %1670 = sbr.rel (%p1668) target = $region124
        $region123: #{sparse_sync_forward.1} parent=11 // pred_region
          _
        $region124: #{sparse_sync_forward.1} parent=11 // pred_fallthru
          _
        // Predicated region
        $region125: #{sparse_sync_forward.1} parent=11 // pred_check
          %p1671 = pneg %p811
        $region126: #{sparse_sync_forward.1} parent=11 // pred_check_branch
          %1673 = sbr.rel (%p1671) target = $region128
        $region127: #{sparse_sync_forward.1} parent=11 // pred_region
          _
        $region128: #{sparse_sync_forward.1} parent=11 // pred_fallthru
          _
        // Predicated region
        $region129: #{sparse_sync_forward.1} parent=11 // pred_check
          %p1674 = pneg %p832
        $region130: #{sparse_sync_forward.1} parent=11 // pred_check_branch
          %1676 = sbr.rel (%p1674) target = $region132
        $region131: #{sparse_sync_forward.1} parent=11 // pred_region
          _
        $region132: #{sparse_sync_forward.1} parent=11 // pred_fallthru
          _
        // Predicated region
        $region133: #{sparse_sync_forward.1} parent=11 // pred_check
          %p1677 = pneg %p853
        $region134: #{sparse_sync_forward.1} parent=11 // pred_check_branch
          %1679 = sbr.rel (%p1677) target = $region136
        $region135: #{sparse_sync_forward.1} parent=11 // pred_region
          _
        $region136: #{sparse_sync_forward.1} parent=11 // pred_fallthru
          _
        // Predicated region
        $region137: #{sparse_sync_forward.1} parent=11 // pred_check
          %p1680 = pneg %p874
        $region138: #{sparse_sync_forward.1} parent=11 // pred_check_branch
          %1682 = sbr.rel (%p1680) target = $region140
        $region139: #{sparse_sync_forward.1} parent=11 // pred_region
          _
        $region140: #{sparse_sync_forward.1} parent=11 // pred_fallthru
          _
        // Predicated region
        $region141: #{sparse_sync_forward.1} parent=11 // pred_check
          %p1683 = pneg %p895
        $region142: #{sparse_sync_forward.1} parent=11 // pred_check_branch
          %1685 = sbr.rel (%p1683) target = $region144
        $region143: #{sparse_sync_forward.1} parent=11 // pred_region
          _
        $region144: #{sparse_sync_forward.1} parent=11 // pred_fallthru
          _
        // Predicated region
        $region145: #{sparse_sync_forward.1} parent=11 // pred_check
          %p1686 = pneg %p916
        $region146: #{sparse_sync_forward.1} parent=11 // pred_check_branch
          %1688 = sbr.rel (%p1686) target = $region148
        $region147: #{sparse_sync_forward.1} parent=11 // pred_region
          _
        $region148: #{sparse_sync_forward.1} parent=11 // pred_fallthru
          _
        // Predicated region
        $region149: #{sparse_sync_forward.1} parent=11 // pred_check
          %p1689 = pneg %p937
        $region150: #{sparse_sync_forward.1} parent=11 // pred_check_branch
          %1691 = sbr.rel (%p1689) target = $region152
        $region151: #{sparse_sync_forward.1} parent=11 // pred_region
          _
        $region152: #{sparse_sync_forward.1} parent=11 // pred_fallthru
          _
        // Predicated region
        $region153: #{sparse_sync_forward.1} parent=11 // pred_check
          %p1692 = pneg %p958
        $region154: #{sparse_sync_forward.1} parent=11 // pred_check_branch
          %1694 = sbr.rel (%p1692) target = $region156
        $region155: #{sparse_sync_forward.1} parent=11 // pred_region
          _
        $region156: #{sparse_sync_forward.1} parent=11 // pred_fallthru
          _
        // Predicated region
        $region157: #{sparse_sync_forward.1} parent=11 // pred_check
          %p1695 = pneg %p979
        $region158: #{sparse_sync_forward.1} parent=11 // pred_check_branch
          %1697 = sbr.rel (%p1695) target = $region160
        $region159: #{sparse_sync_forward.1} parent=11 // pred_region
          _
        $region160: #{sparse_sync_forward.1} parent=11 // pred_fallthru
          _
        // Predicated region
        $region161: #{sparse_sync_forward.1} parent=11 // pred_check
          %p1698 = pneg %p1000
        $region162: #{sparse_sync_forward.1} parent=11 // pred_check_branch
          %1700 = sbr.rel (%p1698) target = $region164
        $region163: #{sparse_sync_forward.1} parent=11 // pred_region
          _
        $region164: #{sparse_sync_forward.1} parent=11 // pred_fallthru
          _
        // Predicated region
        $region165: #{sparse_sync_forward.1} parent=11 // pred_check
          %p1701 = pneg %p1021
        $region166: #{sparse_sync_forward.1} parent=11 // pred_check_branch
          %1703 = sbr.rel (%p1701) target = $region168
        $region167: #{sparse_sync_forward.1} parent=11 // pred_region
          _
        $region168: #{sparse_sync_forward.1} parent=11 // pred_fallthru
          _
        // Predicated region
        $region169: #{sparse_sync_forward.1} parent=11 // pred_check
          %p1704 = pneg %p1042
        $region170: #{sparse_sync_forward.1} parent=11 // pred_check_branch
          %1706 = sbr.rel (%p1704) target = $region172
        $region171: #{sparse_sync_forward.1} parent=11 // pred_region
          %s1708 = ssub.s32 16, 16
          %1709 = vsyncadd [#allocation4], %s1708
          %s1711 = sshll.u32 [#allocation3], 4
          %s1712 = int_to_ptr.vmem [resolvable:$true] %s1711
          %1714 = dma.hbm_to_vmem [thread:$0]  %s83, 16, %s1712, [#allocation4]
        $region172: #{sparse_sync_forward.1} parent=11 // pred_fallthru
          _
        // Predicated region
        $region173: #{sparse_sync_forward.1} parent=11 // pred_check
          %p1715 = pneg %p1063
        $region174: #{sparse_sync_forward.1} parent=11 // pred_check_branch
          %1717 = sbr.rel (%p1715) target = $region176
        $region175: #{sparse_sync_forward.1} parent=11 // pred_region
          %s1719 = ssub.s32 16, 16
          %1720 = vsyncadd [#allocation7], %s1719
          %s1722 = sshll.u32 [#allocation6], 4
          %s1723 = int_to_ptr.vmem [resolvable:$true] %s1722
          %1725 = dma.hbm_to_vmem [thread:$0]  %s85, 16, %s1723, [#allocation7]
        $region176: #{sparse_sync_forward.1} parent=11 // pred_fallthru
          _
        // Predicated region
        $region177: #{sparse_sync_forward.1} parent=11 // pred_check
          %p1726 = pneg %p1084
        $region178: #{sparse_sync_forward.1} parent=11 // pred_check_branch
          %1728 = sbr.rel (%p1726) target = $region180
        $region179: #{sparse_sync_forward.1} parent=11 // pred_region
          %s1730 = ssub.s32 16, 16
          %1731 = vsyncadd [#allocation7], %s1730
          %s1733 = sshll.u32 [#allocation8], 4
          %s1734 = int_to_ptr.vmem [resolvable:$true] %s1733
          %1736 = dma.hbm_to_vmem [thread:$0]  %s87, 16, %s1734, [#allocation7]
        $region180: #{sparse_sync_forward.1} parent=11 // pred_fallthru
          _
        // Predicated region
        $region181: #{sparse_sync_forward.1} parent=11 // pred_check
          %p1737 = pneg %p1105
        $region182: #{sparse_sync_forward.1} parent=11 // pred_check_branch
          %1739 = sbr.rel (%p1737) target = $region184
        $region183: #{sparse_sync_forward.1} parent=11 // pred_region
          _
        $region184: #{sparse_sync_forward.1} parent=11 // pred_fallthru
          _
        // Predicated region
        $region185: #{sparse_sync_forward.1} parent=11 // pred_check
          %p1740 = pneg %p1126
        $region186: #{sparse_sync_forward.1} parent=11 // pred_check_branch
          %1742 = sbr.rel (%p1740) target = $region188
        $region187: #{sparse_sync_forward.1} parent=11 // pred_region
          _
        $region188: #{sparse_sync_forward.1} parent=11 // pred_fallthru
          _
        // Predicated region
        $region189: #{sparse_sync_forward.1} parent=11 // pred_check
          %p1743 = pneg %p1147
        $region190: #{sparse_sync_forward.1} parent=11 // pred_check_branch
          %1745 = sbr.rel (%p1743) target = $region192
        $region191: #{sparse_sync_forward.1} parent=11 // pred_region
          _
        $region192: #{sparse_sync_forward.1} parent=11 // pred_fallthru
          _
        // Predicated region
        $region193: #{sparse_sync_forward.1} parent=11 // pred_check
          %p1746 = pneg %p1168
        $region194: #{sparse_sync_forward.1} parent=11 // pred_check_branch
          %1748 = sbr.rel (%p1746) target = $region196
        $region195: #{sparse_sync_forward.1} parent=11 // pred_region
          %s1750 = ssub.s32 16, 16
          %1751 = vsyncadd [#allocation10], %s1750
          %s1753 = sshll.u32 [#allocation9], 4
          %s1754 = int_to_ptr.vmem [resolvable:$true] %s1753
          %1756 = dma.hbm_to_vmem [thread:$0]  %s95, 16, %s1754, [#allocation10]
        $region196: #{sparse_sync_forward.1} parent=11 // pred_fallthru
          _
        // Predicated region
        $region197: #{sparse_sync_forward.1} parent=11 // pred_check
          %p1757 = pneg %p1189
        $region198: #{sparse_sync_forward.1} parent=11 // pred_check_branch
          %1759 = sbr.rel (%p1757) target = $region200
        $region199: #{sparse_sync_forward.1} parent=11 // pred_region
          _
        $region200: #{sparse_sync_forward.1} parent=11 // pred_fallthru
          _
        // Predicated region
        $region201: #{sparse_sync_forward.1} parent=11 // pred_check
          %p1760 = pneg %p1210
        $region202: #{sparse_sync_forward.1} parent=11 // pred_check_branch
          %1762 = sbr.rel (%p1760) target = $region204
        $region203: #{sparse_sync_forward.1} parent=11 // pred_region
          %s1764 = ssub.s32 16, 16
          %1765 = vsyncadd [#allocation10], %s1764
          %s1767 = sshll.u32 [#allocation11], 4
          %s1768 = int_to_ptr.vmem [resolvable:$true] %s1767
          %1770 = dma.hbm_to_vmem [thread:$0]  %s99, 16, %s1768, [#allocation10]
        $region204: #{sparse_sync_forward.1} parent=11 // pred_fallthru
          _
        // Predicated region
        $region205: #{sparse_sync_forward.1} parent=11 // pred_check
          %p1771 = pneg %p1231
        $region206: #{sparse_sync_forward.1} parent=11 // pred_check_branch
          %1773 = sbr.rel (%p1771) target = $region208
        $region207: #{sparse_sync_forward.1} parent=11 // pred_region
          _
        $region208: #{sparse_sync_forward.1} parent=11 // pred_fallthru
          _
        // Predicated region
        $region209: #{sparse_sync_forward.1} parent=11 // pred_check
          %p1774 = pneg %p1252
        $region210: #{sparse_sync_forward.1} parent=11 // pred_check_branch
          %1776 = sbr.rel (%p1774) target = $region212
        $region211: #{sparse_sync_forward.1} parent=11 // pred_region
          %s1778 = ssub.s32 16, 16
          %1779 = vsyncadd [#allocation13], %s1778
          %s1781 = sshll.u32 [#allocation12], 4
          %s1782 = int_to_ptr.vmem [resolvable:$true] %s1781
          %1784 = dma.hbm_to_vmem [thread:$0]  %s103, 16, %s1782, [#allocation13]
        $region212: #{sparse_sync_forward.1} parent=11 // pred_fallthru
          _
        // Predicated region
        $region213: #{sparse_sync_forward.1} parent=11 // pred_check
          %p1785 = pneg %p1273
        $region214: #{sparse_sync_forward.1} parent=11 // pred_check_branch
          %1787 = sbr.rel (%p1785) target = $region216
        $region215: #{sparse_sync_forward.1} parent=11 // pred_region
          _
        $region216: #{sparse_sync_forward.1} parent=11 // pred_fallthru
          _
        // Predicated region
        $region217: #{sparse_sync_forward.1} parent=11 // pred_check
          %p1788 = pneg %p1294
        $region218: #{sparse_sync_forward.1} parent=11 // pred_check_branch
          %1790 = sbr.rel (%p1788) target = $region220
        $region219: #{sparse_sync_forward.1} parent=11 // pred_region
          %s1792 = ssub.s32 16, 16
          %1793 = vsyncadd [#allocation13], %s1792
          %s1795 = sshll.u32 [#allocation14], 4
          %s1796 = int_to_ptr.vmem [resolvable:$true] %s1795
          %1798 = dma.hbm_to_vmem [thread:$0]  %s107, 16, %s1796, [#allocation13]
        $region220: #{sparse_sync_forward.1} parent=11 // pred_fallthru
          _
        // Predicated region
        $region221: #{sparse_sync_forward.1} parent=11 // pred_check
          %p1799 = pneg %p1315
        $region222: #{sparse_sync_forward.1} parent=11 // pred_check_branch
          %1801 = sbr.rel (%p1799) target = $region224
        $region223: #{sparse_sync_forward.1} parent=11 // pred_region
          %s1803 = ssub.s32 16, 16
          %1804 = vsyncadd [#allocation16], %s1803
          %s1806 = sshll.u32 [#allocation15], 4
          %s1807 = int_to_ptr.vmem [resolvable:$true] %s1806
          %1809 = dma.hbm_to_vmem [thread:$0]  %s109, 16, %s1807, [#allocation16]
        $region224: #{sparse_sync_forward.1} parent=11 // pred_fallthru
          _
        // Predicated region
        $region225: #{sparse_sync_forward.1} parent=11 // pred_check
          %p1810 = pneg %p1336
        $region226: #{sparse_sync_forward.1} parent=11 // pred_check_branch
          %1812 = sbr.rel (%p1810) target = $region228
        $region227: #{sparse_sync_forward.1} parent=11 // pred_region
          %s1814 = ssub.s32 16, 16
          %1815 = vsyncadd [#allocation16], %s1814
          %s1817 = sshll.u32 [#allocation17], 4
          %s1818 = int_to_ptr.vmem [resolvable:$true] %s1817
          %1820 = dma.hbm_to_vmem [thread:$0]  %s111, 16, %s1818, [#allocation16]
        $region228: #{sparse_sync_forward.1} parent=11 // pred_fallthru
          _
        // Predicated region
        $region229: #{sparse_sync_forward.1} parent=11 // pred_check
          %p1821 = pneg %p1357
        $region230: #{sparse_sync_forward.1} parent=11 // pred_check_branch
          %1823 = sbr.rel (%p1821) target = $region232
        $region231: #{sparse_sync_forward.1} parent=11 // pred_region
          %s1825 = ssub.s32 16, 16
          %1826 = vsyncadd [#allocation19], %s1825
          %s1828 = sshll.u32 [#allocation18], 4
          %s1829 = int_to_ptr.vmem [resolvable:$true] %s1828
          %1831 = dma.hbm_to_vmem [thread:$0]  %s113, 16, %s1829, [#allocation19]
        $region232: #{sparse_sync_forward.1} parent=11 // pred_fallthru
          _
        // Predicated region
        $region233: #{sparse_sync_forward.1} parent=11 // pred_check
          %p1832 = pneg %p1378
        $region234: #{sparse_sync_forward.1} parent=11 // pred_check_branch
          %1834 = sbr.rel (%p1832) target = $region236
        $region235: #{sparse_sync_forward.1} parent=11 // pred_region
          %s1836 = ssub.s32 16, 16
          %1837 = vsyncadd [#allocation19], %s1836
          %s1839 = sshll.u32 [#allocation20], 4
          %s1840 = int_to_ptr.vmem [resolvable:$true] %s1839
          %1842 = dma.hbm_to_vmem [thread:$0]  %s115, 16, %s1840, [#allocation19]
        $region236: #{sparse_sync_forward.1} parent=11 // pred_fallthru
          _
        // Predicated region
        $region237: #{sparse_sync_forward.1} parent=11 // pred_check
          %p1843 = pneg %p1399
        $region238: #{sparse_sync_forward.1} parent=11 // pred_check_branch
          %1845 = sbr.rel (%p1843) target = $region240
        $region239: #{sparse_sync_forward.1} parent=11 // pred_region
          %s1847 = ssub.s32 16, 16
          %1848 = vsyncadd [#allocation22], %s1847
          %s1850 = sshll.u32 [#allocation21], 4
          %s1851 = int_to_ptr.vmem [resolvable:$true] %s1850
          %1853 = dma.hbm_to_vmem [thread:$0]  %s117, 16, %s1851, [#allocation22]
        $region240: #{sparse_sync_forward.1} parent=11 // pred_fallthru
          _
        // Predicated region
        $region241: #{sparse_sync_forward.1} parent=11 // pred_check
          %p1854 = pneg %p1420
        $region242: #{sparse_sync_forward.1} parent=11 // pred_check_branch
          %1856 = sbr.rel (%p1854) target = $region244
        $region243: #{sparse_sync_forward.1} parent=11 // pred_region
          %s1858 = ssub.s32 16, 16
          %1859 = vsyncadd [#allocation22], %s1858
          %s1861 = sshll.u32 [#allocation23], 4
          %s1862 = int_to_ptr.vmem [resolvable:$true] %s1861
          %1864 = dma.hbm_to_vmem [thread:$0]  %s119, 16, %s1862, [#allocation22]
        $region244: #{sparse_sync_forward.1} parent=11 // pred_fallthru
          _
        // Predicated region
        $region245: #{sparse_sync_forward.1} parent=11 // pred_check
          %p1865 = pneg %p1441
        $region246: #{sparse_sync_forward.1} parent=11 // pred_check_branch
          %1867 = sbr.rel (%p1865) target = $region248
        $region247: #{sparse_sync_forward.1} parent=11 // pred_region
          _
        $region248: #{sparse_sync_forward.1} parent=11 // pred_fallthru
          _
        // Predicated region
        $region249: #{sparse_sync_forward.1} parent=11 // pred_check
          %p1868 = pneg %p1462
        $region250: #{sparse_sync_forward.1} parent=11 // pred_check_branch
          %1870 = sbr.rel (%p1868) target = $region252
        $region251: #{sparse_sync_forward.1} parent=11 // pred_region
          _
        $region252: #{sparse_sync_forward.1} parent=11 // pred_fallthru
          _
        // Predicated region
        $region253: #{sparse_sync_forward.1} parent=11 // pred_check
          %p1871 = pneg %p1483
        $region254: #{sparse_sync_forward.1} parent=11 // pred_check_branch
          %1873 = sbr.rel (%p1871) target = $region256
        $region255: #{sparse_sync_forward.1} parent=11 // pred_region
          %s1875 = ssub.s32 16, 16
          %1876 = vsyncadd [#allocation25], %s1875
          %s1878 = sshll.u32 [#allocation24], 4
          %s1879 = int_to_ptr.vmem [resolvable:$true] %s1878
          %1881 = dma.hbm_to_vmem [thread:$0]  %s125, 16, %s1879, [#allocation25]
        $region256: #{sparse_sync_forward.1} parent=11 // pred_fallthru
          _
        // Predicated region
        $region257: #{sparse_sync_forward.1} parent=11 // pred_check
          %p1882 = pneg %p1504
        $region258: #{sparse_sync_forward.1} parent=11 // pred_check_branch
          %1884 = sbr.rel (%p1882) target = $region260
        $region259: #{sparse_sync_forward.1} parent=11 // pred_region
          _
        $region260: #{sparse_sync_forward.1} parent=11 // pred_fallthru
          _
        // Predicated region
        $region261: #{sparse_sync_forward.1} parent=11 // pred_check
          %p1885 = pneg %p1525
        $region262: #{sparse_sync_forward.1} parent=11 // pred_check_branch
          %1887 = sbr.rel (%p1885) target = $region264
        $region263: #{sparse_sync_forward.1} parent=11 // pred_region
          _
        $region264: #{sparse_sync_forward.1} parent=11 // pred_fallthru
          _
        // Predicated region
        $region265: #{sparse_sync_forward.1} parent=11 // pred_check
          %p1888 = pneg %p1546
        $region266: #{sparse_sync_forward.1} parent=11 // pred_check_branch
          %1890 = sbr.rel (%p1888) target = $region268
        $region267: #{sparse_sync_forward.1} parent=11 // pred_region
          _
        $region268: #{sparse_sync_forward.1} parent=11 // pred_fallthru
          _
      $region12: #{sparse_sync_forward.1} parent=5 // pred_fallthru
        _
      %p1891 = scmp.lt.s32.totalorder %s150, 2
      // Predicated region
      $region269: #{sparse_sync_forward.1} parent=5 // pred_check
        %p1892 = pneg %p1891
      $region270: #{sparse_sync_forward.1} parent=5 // pred_check_branch
        %1894 = sbr.rel (%p1892) target = $region272
      $region271: #{sparse_sync_forward.1} parent=5 // pred_region
        // Predicated region
        $region273: #{sparse_sync_forward.1} parent=271 // pred_check
          %p1895 = pneg %p170
        $region274: #{sparse_sync_forward.1} parent=271 // pred_check_branch
          %1897 = sbr.rel (%p1895) target = $region276
        $region275: #{sparse_sync_forward.1} parent=271 // pred_region
          %p1898 = scmp.lt.s32.totalorder %s150, 1
          %s1899 = scalar_select %p1898, %s150, 1
          %s1900 = smul.addr %s1899, 4
          %s1901 = smul.addr %s1900, 8
          %s1902 = scalar_lea.vmem %s1, %s1901
        $region276: #{sparse_sync_forward.1} parent=271 // pred_fallthru
          _
        // Predicated region
        $region277: #{sparse_sync_forward.1} parent=271 // pred_check
          %p1903 = pneg %p196
        $region278: #{sparse_sync_forward.1} parent=271 // pred_check_branch
          %1905 = sbr.rel (%p1903) target = $region280
        $region279: #{sparse_sync_forward.1} parent=271 // pred_region
          %p1906 = scmp.lt.s32.totalorder %s150, 1
          %s1907 = scalar_select %p1906, %s150, 1
          %s1908 = smul.addr %s1907, 4
          %s1909 = smul.addr %s1908, 8
          %s1910 = scalar_lea.vmem %s3, %s1909
        $region280: #{sparse_sync_forward.1} parent=271 // pred_fallthru
          _
      $region272: #{sparse_sync_forward.1} parent=5 // pred_fallthru
        _
      %p1911 = scmp.le.s32.totalorder 1, %s150
      %p1912 = scmp.lt.s32.totalorder %s150, 3
      %p1913 = pnand %p1911, %p1912
      %p1914 = pneg %p1913
      // Predicated region
      $region281: #{sparse_sync_forward.1} parent=5 // pred_check
        _
      $region282: #{sparse_sync_forward.1} parent=5 // pred_check_branch
        %1916 = sbr.rel (%p1913) target = $region284
      $region283: #{sparse_sync_forward.1} parent=5 // pred_region
        %s1917 = ssub.s32 %s150, 1
        // Predicated region
        $region285: #{sparse_sync_forward.1} parent=283 // pred_check
          %p1918 = pneg %p1042
        $region286: #{sparse_sync_forward.1} parent=283 // pred_check_branch
          %1920 = sbr.rel (%p1918) target = $region288
        $region287: #{sparse_sync_forward.1} parent=283 // pred_region
          %1921 = dma.done [#allocation4], 16
        $region288: #{sparse_sync_forward.1} parent=283 // pred_fallthru
          _
        // Predicated region
        $region289: #{sparse_sync_forward.1} parent=283 // pred_check
          %p1922 = pneg %p1063
        $region290: #{sparse_sync_forward.1} parent=283 // pred_check_branch
          %1924 = sbr.rel (%p1922) target = $region292
        $region291: #{sparse_sync_forward.1} parent=283 // pred_region
          %1925 = dma.done [#allocation7], 16
        $region292: #{sparse_sync_forward.1} parent=283 // pred_fallthru
          _
        // Predicated region
        $region293: #{sparse_sync_forward.1} parent=283 // pred_check
          %p1926 = pneg %p1084
        $region294: #{sparse_sync_forward.1} parent=283 // pred_check_branch
          %1928 = sbr.rel (%p1926) target = $region296
        $region295: #{sparse_sync_forward.1} parent=283 // pred_region
          %1929 = dma.done [#allocation7], 16
        $region296: #{sparse_sync_forward.1} parent=283 // pred_fallthru
          _
        // Predicated region
        $region297: #{sparse_sync_forward.1} parent=283 // pred_check
          %p1930 = pneg %p1168
        $region298: #{sparse_sync_forward.1} parent=283 // pred_check_branch
          %1932 = sbr.rel (%p1930) target = $region300
        $region299: #{sparse_sync_forward.1} parent=283 // pred_region
          %1933 = dma.done [#allocation10], 16
        $region300: #{sparse_sync_forward.1} parent=283 // pred_fallthru
          _
        // Predicated region
        $region301: #{sparse_sync_forward.1} parent=283 // pred_check
          %p1934 = pneg %p1210
        $region302: #{sparse_sync_forward.1} parent=283 // pred_check_branch
          %1936 = sbr.rel (%p1934) target = $region304
        $region303: #{sparse_sync_forward.1} parent=283 // pred_region
          %1937 = dma.done [#allocation10], 16
        $region304: #{sparse_sync_forward.1} parent=283 // pred_fallthru
          _
        // Predicated region
        $region305: #{sparse_sync_forward.1} parent=283 // pred_check
          %p1938 = pneg %p1252
        $region306: #{sparse_sync_forward.1} parent=283 // pred_check_branch
          %1940 = sbr.rel (%p1938) target = $region308
        $region307: #{sparse_sync_forward.1} parent=283 // pred_region
          %1941 = dma.done [#allocation13], 16
        $region308: #{sparse_sync_forward.1} parent=283 // pred_fallthru
          _
        // Predicated region
        $region309: #{sparse_sync_forward.1} parent=283 // pred_check
          %p1942 = pneg %p1294
        $region310: #{sparse_sync_forward.1} parent=283 // pred_check_branch
          %1944 = sbr.rel (%p1942) target = $region312
        $region311: #{sparse_sync_forward.1} parent=283 // pred_region
          %1945 = dma.done [#allocation13], 16
        $region312: #{sparse_sync_forward.1} parent=283 // pred_fallthru
          _
        // Predicated region
        $region313: #{sparse_sync_forward.1} parent=283 // pred_check
          %p1946 = pneg %p1315
        $region314: #{sparse_sync_forward.1} parent=283 // pred_check_branch
          %1948 = sbr.rel (%p1946) target = $region316
        $region315: #{sparse_sync_forward.1} parent=283 // pred_region
          %1949 = dma.done [#allocation16], 16
        $region316: #{sparse_sync_forward.1} parent=283 // pred_fallthru
          _
        // Predicated region
        $region317: #{sparse_sync_forward.1} parent=283 // pred_check
          %p1950 = pneg %p1336
        $region318: #{sparse_sync_forward.1} parent=283 // pred_check_branch
          %1952 = sbr.rel (%p1950) target = $region320
        $region319: #{sparse_sync_forward.1} parent=283 // pred_region
          %1953 = dma.done [#allocation16], 16
        $region320: #{sparse_sync_forward.1} parent=283 // pred_fallthru
          _
        // Predicated region
        $region321: #{sparse_sync_forward.1} parent=283 // pred_check
          %p1954 = pneg %p1357
        $region322: #{sparse_sync_forward.1} parent=283 // pred_check_branch
          %1956 = sbr.rel (%p1954) target = $region324
        $region323: #{sparse_sync_forward.1} parent=283 // pred_region
          %1957 = dma.done [#allocation19], 16
        $region324: #{sparse_sync_forward.1} parent=283 // pred_fallthru
          _
        // Predicated region
        $region325: #{sparse_sync_forward.1} parent=283 // pred_check
          %p1958 = pneg %p1378
        $region326: #{sparse_sync_forward.1} parent=283 // pred_check_branch
          %1960 = sbr.rel (%p1958) target = $region328
        $region327: #{sparse_sync_forward.1} parent=283 // pred_region
          %1961 = dma.done [#allocation19], 16
        $region328: #{sparse_sync_forward.1} parent=283 // pred_fallthru
          _
        // Predicated region
        $region329: #{sparse_sync_forward.1} parent=283 // pred_check
          %p1962 = pneg %p1399
        $region330: #{sparse_sync_forward.1} parent=283 // pred_check_branch
          %1964 = sbr.rel (%p1962) target = $region332
        $region331: #{sparse_sync_forward.1} parent=283 // pred_region
          %1965 = dma.done [#allocation22], 16
        $region332: #{sparse_sync_forward.1} parent=283 // pred_fallthru
          _
        // Predicated region
        $region333: #{sparse_sync_forward.1} parent=283 // pred_check
          %p1966 = pneg %p1420
        $region334: #{sparse_sync_forward.1} parent=283 // pred_check_branch
          %1968 = sbr.rel (%p1966) target = $region336
        $region335: #{sparse_sync_forward.1} parent=283 // pred_region
          %1969 = dma.done [#allocation22], 16
        $region336: #{sparse_sync_forward.1} parent=283 // pred_fallthru
          _
        // Predicated region
        $region337: #{sparse_sync_forward.1} parent=283 // pred_check
          %p1970 = pneg %p1483
        $region338: #{sparse_sync_forward.1} parent=283 // pred_check_branch
          %1972 = sbr.rel (%p1970) target = $region340
        $region339: #{sparse_sync_forward.1} parent=283 // pred_region
          %1973 = dma.done [#allocation25], 16
        $region340: #{sparse_sync_forward.1} parent=283 // pred_fallthru
          _
        %p1974 = scmp.lt.s32.totalorder %s155, 1
        %s1975 = scalar_select %p1974, %s155, 1
        %s1976 = smul.addr %s1975, 4
        %s1977 = smul.addr %s1976, 8
        %s1978 = scalar_lea.vmem %s1, %s1977
        %p1979 = pneg %p176
        %p1980 = pneg %p173
        %p1981 = scmp.lt.s32.totalorder %s155, 1
        %s1982 = scalar_select %p1981, %s155, 1
        %s1983 = smul.addr %s1982, 4
        %s1984 = smul.addr %s1983, 8
        %s1985 = scalar_lea.vmem %s3, %s1984
        %p1986 = pneg %p202
        %p1987 = pneg %p199
        %p1988 = pneg %p223
        %p1989 = pneg %p220
        %p1990 = pneg %p244
        %p1991 = pneg %p241
        %p1992 = pneg %p265
        %p1993 = pneg %p262
        %p1994 = pneg %p286
        %p1995 = pneg %p283
        %p1996 = pneg %p307
        %p1997 = pneg %p304
        %p1998 = pneg %p328
        %p1999 = pneg %p325
        %p2000 = pneg %p349
        %p2001 = pneg %p346
        %p2002 = pneg %p370
        %p2003 = pneg %p367
        %p2004 = pneg %p391
        %p2005 = pneg %p388
        %p2006 = pneg %p412
        %p2007 = pneg %p409
        %p2008 = pneg %p433
        %p2009 = pneg %p430
        %p2010 = pneg %p454
        %p2011 = pneg %p451
        %p2012 = pneg %p475
        %p2013 = pneg %p472
        %p2014 = pneg %p496
        %p2015 = pneg %p493
        %p2016 = pneg %p517
        %p2017 = pneg %p514
        %p2018 = pneg %p538
        %p2019 = pneg %p535
        %p2020 = pneg %p559
        %p2021 = pneg %p556
        %p2022 = pneg %p580
        %p2023 = pneg %p577
        %p2024 = pneg %p601
        %p2025 = pneg %p598
        %p2026 = pneg %p622
        %p2027 = pneg %p619
        %p2028 = pneg %p643
        %p2029 = pneg %p640
        %p2030 = pneg %p664
        %p2031 = pneg %p661
        %p2032 = pneg %p685
        %p2033 = pneg %p682
        %p2034 = pneg %p706
        %p2035 = pneg %p703
        %p2036 = pneg %p727
        %p2037 = pneg %p724
        %p2038 = pneg %p748
        %p2039 = pneg %p745
        %p2040 = pneg %p769
        %p2041 = pneg %p766
        %p2042 = pneg %p790
        %p2043 = pneg %p787
        %p2044 = pneg %p811
        %p2045 = pneg %p808
        %p2046 = pneg %p832
        %p2047 = pneg %p829
        %p2048 = pneg %p853
        %p2049 = pneg %p850
        %p2050 = pneg %p874
        %p2051 = pneg %p871
        %p2052 = pneg %p895
        %p2053 = pneg %p892
        %p2054 = pneg %p916
        %p2055 = pneg %p913
        %p2056 = pneg %p937
        %p2057 = pneg %p934
        %p2058 = pneg %p958
        %p2059 = pneg %p955
        %p2060 = pneg %p979
        %p2061 = pneg %p976
        %p2062 = pneg %p1000
        %p2063 = pneg %p997
        %p2064 = pneg %p1021
        %p2065 = pneg %p1018
        %p2066 = pneg %p1042
        %p2067 = pneg %p1039
        %p2068 = pneg %p1063
        %p2069 = pneg %p1060
        %p2070 = pneg %p1084
        %p2071 = pneg %p1081
        %p2072 = pneg %p1105
        %p2073 = pneg %p1102
        %p2074 = pneg %p1126
        %p2075 = pneg %p1123
        %p2076 = pneg %p1147
        %p2077 = pneg %p1144
        %p2078 = pneg %p1168
        %p2079 = pneg %p1165
        %p2080 = pneg %p1189
        %p2081 = pneg %p1186
        %p2082 = pneg %p1210
        %p2083 = pneg %p1207
        %p2084 = pneg %p1231
        %p2085 = pneg %p1228
        %p2086 = pneg %p1252
        %p2087 = pneg %p1249
        %p2088 = pneg %p1273
        %p2089 = pneg %p1270
        %p2090 = pneg %p1294
        %p2091 = pneg %p1291
        %p2092 = pneg %p1315
        %p2093 = pneg %p1312
        %p2094 = pneg %p1336
        %p2095 = pneg %p1333
        %p2096 = pneg %p1357
        %p2097 = pneg %p1354
        %p2098 = pneg %p1378
        %p2099 = pneg %p1375
        %p2100 = pneg %p1399
        %p2101 = pneg %p1396
        %p2102 = pneg %p1420
        %p2103 = pneg %p1417
        %p2104 = pneg %p1441
        %p2105 = pneg %p1438
        %p2106 = pneg %p1462
        %p2107 = pneg %p1459
        %p2108 = pneg %p1483
        %p2109 = pneg %p1480
        %p2110 = pneg %p1504
        %p2111 = pneg %p1501
        %p2112 = pneg %p1525
        %p2113 = pneg %p1522
        %p2114 = pneg %p1546
        %p2115 = pneg %p1543
        %p2116 = pneg %p1572
        %p2117 = pneg %p1569
        %s2118 = sand.u32 %s1559, 1
        %s2119 = scalar_lea.sflag [#allocation5], %s2118
        %s2120 = sand.u32 %s1559, 1
        %s2121 = scalar_lea.vmem [#allocation26], %s2120
        %p2122 = scmp.lt.s32.totalorder %s155, 1
        %s2123 = scalar_select %p2122, %s155, 1
        %s2124 = smul.addr %s2123, 4
        %s2125 = smul.addr %s2124, 8
        %s2126 = scalar_lea.vmem %s1, %s2125
        %p2127 = scmp.lt.s32.totalorder %s155, 1
        %s2128 = scalar_select %p2127, %s155, 1
        %s2129 = smul.addr %s2128, 4
        %s2130 = smul.addr %s2129, 8
        %s2131 = scalar_lea.vmem %s3, %s2130
        %v2132 = vld [vmem:[%s5] sm:$0xff]
        %v2133 = vld [vmem:[%s5 + $0x8] sm:$0xff]
        %v2134 = vld [vmem:[%s5 + $0x10] sm:$0xff]
        %v2135 = vld [vmem:[%s5 + $0x18] sm:$0xff]
        %v2136 = vld [vmem:[%s7] sm:$0x1]
        %v2137 = vld [vmem:[%s9] sm:$0xff]
        %v2138 = vld [vmem:[%s9 + $0x8] sm:$0xff]
        %v2139 = vld [vmem:[%s9 + $0x10] sm:$0xff]
        %v2140 = vld [vmem:[%s9 + $0x18] sm:$0xff]
        %v2141 = vld [vmem:[%s11] sm:$0x1]
        %v2142 = vld [vmem:[%s13] sm:$0xff]
        %v2143 = vld [vmem:[%s13 + $0x8] sm:$0xff]
        %v2144 = vld [vmem:[%s13 + $0x10] sm:$0xff]
        %v2145 = vld [vmem:[%s13 + $0x18] sm:$0xff]
        %v2146 = vld [vmem:[%s15] sm:$0x1]
        %v2147 = vld [vmem:[%s17] sm:$0xff]
        %v2148 = vld [vmem:[%s17 + $0x8] sm:$0xff]
        %v2149 = vld [vmem:[%s17 + $0x10] sm:$0xff]
        %v2150 = vld [vmem:[%s17 + $0x18] sm:$0xff]
        %v2151 = vld [vmem:[%s19] sm:$0x1]
        %v2152 = vld [vmem:[%s21] sm:$0xff]
        %v2153 = vld [vmem:[%s21 + $0x8] sm:$0xff]
        %v2154 = vld [vmem:[%s21 + $0x10] sm:$0xff]
        %v2155 = vld [vmem:[%s21 + $0x18] sm:$0xff]
        %v2156 = vld [vmem:[%s21 + $0x20] sm:$0xff]
        %v2157 = vld [vmem:[%s21 + $0x28] sm:$0xff]
        %v2158 = vld [vmem:[%s21 + $0x30] sm:$0xff]
        %v2159 = vld [vmem:[%s21 + $0x38] sm:$0xff]
        %v2160 = vld [vmem:[%s21 + $0x40] sm:$0xff]
        %v2161 = vld [vmem:[%s21 + $0x48] sm:$0xff]
        %v2162 = vld [vmem:[%s21 + $0x50] sm:$0xff]
        %v2163 = vld [vmem:[%s21 + $0x58] sm:$0xff]
        %v2164 = vld [vmem:[%s21 + $0x60] sm:$0xff]
        %v2165 = vld [vmem:[%s21 + $0x68] sm:$0xff]
        %v2166 = vld [vmem:[%s21 + $0x70] sm:$0xff]
        %v2167 = vld [vmem:[%s21 + $0x78] sm:$0xff]
        %v2168 = vld [vmem:[%s23] sm:$0x1]
        %v2169 = vld [vmem:[%s25] sm:$0x1]
        %v2170 = vld [vmem:[%s27] sm:$0x1]
        %v2171 = vld [vmem:[%s29] sm:$0x1]
        %v2172 = vld [vmem:[%s31] sm:$0x1]
        %v2173 = vld [vmem:[%s33] sm:$0x1]
        %v2174 = vld [vmem:[%s35] sm:$0x1]
        %v2175 = vld [vmem:[%s37] sm:$0xf]
        %v2176 = vld [vmem:[%s39] sm:$0xff]
        %v2177 = vld [vmem:[%s39 + $0x8] sm:$0xff]
        %v2178 = vld [vmem:[%s39 + $0x10] sm:$0xff]
        %v2179 = vld [vmem:[%s39 + $0x18] sm:$0xff]
        %v2180 = vld [vmem:[%s41] sm:$0x1]
        %v2181 = vld [vmem:[%s43] sm:$0xff]
        %v2182 = vld [vmem:[%s43 + $0x8] sm:$0xff]
        %v2183 = vld [vmem:[%s43 + $0x10] sm:$0xff]
        %v2184 = vld [vmem:[%s43 + $0x18] sm:$0xff]
        %v2185 = vld [vmem:[%s45] sm:$0x1]
        %v2186 = vld [vmem:[%s47] sm:$0xff]
        %v2187 = vld [vmem:[%s47 + $0x8] sm:$0xff]
        %v2188 = vld [vmem:[%s47 + $0x10] sm:$0xff]
        %v2189 = vld [vmem:[%s47 + $0x18] sm:$0xff]
        %v2190 = vld [vmem:[%s49] sm:$0xff]
        %v2191 = vld [vmem:[%s51] sm:$0xff]
        %v2192 = vld [vmem:[%s53] sm:$0xff]
        %v2193 = vld [vmem:[%s53 + $0x8] sm:$0xff]
        %v2194 = vld [vmem:[%s53 + $0x10] sm:$0xff]
        %v2195 = vld [vmem:[%s53 + $0x18] sm:$0xff]
        %v2196 = vld [vmem:[%s55] sm:$0x1]
        %v2197 = vld [vmem:[%s57] sm:$0xff]
        %v2198 = vld [vmem:[%s57 + $0x8] sm:$0xff]
        %v2199 = vld [vmem:[%s57 + $0x10] sm:$0xff]
        %v2200 = vld [vmem:[%s57 + $0x18] sm:$0xff]
        %v2201 = vld [vmem:[%s57 + $0x20] sm:$0xff]
        %v2202 = vld [vmem:[%s57 + $0x28] sm:$0xff]
        %v2203 = vld [vmem:[%s57 + $0x30] sm:$0xff]
        %v2204 = vld [vmem:[%s57 + $0x38] sm:$0xff]
        %v2205 = vld [vmem:[%s57 + $0x40] sm:$0xff]
        %v2206 = vld [vmem:[%s57 + $0x48] sm:$0xff]
        %v2207 = vld [vmem:[%s57 + $0x50] sm:$0xff]
        %v2208 = vld [vmem:[%s57 + $0x58] sm:$0xff]
        %v2209 = vld [vmem:[%s57 + $0x60] sm:$0xff]
        %v2210 = vld [vmem:[%s57 + $0x68] sm:$0xff]
        %v2211 = vld [vmem:[%s57 + $0x70] sm:$0xff]
        %v2212 = vld [vmem:[%s57 + $0x78] sm:$0xff]
        %v2213 = vld [vmem:[%s59] sm:$0x1]
        %v2214 = vld [vmem:[%s61] sm:$0x1]
        %v2215 = vld [vmem:[%s63] sm:$0x1]
        %v2216 = vld [vmem:[%s65] sm:$0x1]
        %v2217 = vld [vmem:[%s67] sm:$0x1]
        %v2218 = vld [vmem:[%s69] sm:$0xff]
        %v2219 = vld [vmem:[%s69 + $0x8] sm:$0xff]
        %v2220 = vld [vmem:[%s69 + $0x10] sm:$0xff]
        %v2221 = vld [vmem:[%s69 + $0x18] sm:$0xff]
        %v2222 = vld [vmem:[%s71] sm:$0x1]
        %v2223 = vld [vmem:[%s73] sm:$0xff]
        %v2224 = vld [vmem:[%s73 + $0x8] sm:$0xff]
        %v2225 = vld [vmem:[%s73 + $0x10] sm:$0xff]
        %v2226 = vld [vmem:[%s73 + $0x18] sm:$0xff]
        %v2227 = vld [vmem:[%s75] sm:$0x1]
        %v2228 = vld [vmem:[%s77] sm:$0xff]
        %v2229 = vld [vmem:[%s77 + $0x8] sm:$0xff]
        %v2230 = vld [vmem:[%s77 + $0x10] sm:$0xff]
        %v2231 = vld [vmem:[%s77 + $0x18] sm:$0xff]
        %v2232 = vld [vmem:[%s77 + $0x20] sm:$0xff]
        %v2233 = vld [vmem:[%s77 + $0x28] sm:$0xff]
        %v2234 = vld [vmem:[%s77 + $0x30] sm:$0xff]
        %v2235 = vld [vmem:[%s77 + $0x38] sm:$0xff]
        %v2236 = vld [vmem:[%s77 + $0x40] sm:$0xff]
        %v2237 = vld [vmem:[%s77 + $0x48] sm:$0xff]
        %v2238 = vld [vmem:[%s77 + $0x50] sm:$0xff]
        %v2239 = vld [vmem:[%s77 + $0x58] sm:$0xff]
        %v2240 = vld [vmem:[%s77 + $0x60] sm:$0xff]
        %v2241 = vld [vmem:[%s77 + $0x68] sm:$0xff]
        %v2242 = vld [vmem:[%s77 + $0x70] sm:$0xff]
        %v2243 = vld [vmem:[%s77 + $0x78] sm:$0xff]
        %v2244 = vld [vmem:[%s77 + $0x80] sm:$0xff]
        %v2245 = vld [vmem:[%s77 + $0x88] sm:$0xff]
        %v2246 = vld [vmem:[%s77 + $0x90] sm:$0xff]
        %v2247 = vld [vmem:[%s77 + $0x98] sm:$0xff]
        %v2248 = vld [vmem:[%s77 + $0xa0] sm:$0xff]
        %v2249 = vld [vmem:[%s77 + $0xa8] sm:$0xff]
        %v2250 = vld [vmem:[%s77 + $0xb0] sm:$0xff]
        %v2251 = vld [vmem:[%s77 + $0xb8] sm:$0xff]
        %v2252 = vld [vmem:[%s77 + $0xc0] sm:$0xff]
        %v2253 = vld [vmem:[%s77 + $0xc8] sm:$0xff]
        %v2254 = vld [vmem:[%s77 + $0xd0] sm:$0xff]
        %v2255 = vld [vmem:[%s77 + $0xd8] sm:$0xff]
        %v2256 = vld [vmem:[%s77 + $0xe0] sm:$0xff]
        %v2257 = vld [vmem:[%s77 + $0xe8] sm:$0xff]
        %v2258 = vld [vmem:[%s77 + $0xf0] sm:$0xff]
        %v2259 = vld [vmem:[%s77 + $0xf8] sm:$0xff]
        %v2260 = vld [vmem:[%s79] sm:$0x1]
        %v2261 = vld [vmem:[%s81] sm:$0x1]
        %v2262 = vld [vmem:[#allocation3] sm:$0x1]
        %v2263 = vld [vmem:[#allocation6] sm:$0x1]
        %v2264 = vld [vmem:[#allocation8] sm:$0x1]
        %v2265 = vld [vmem:[%s89] sm:$0xff]
        %v2266 = vld [vmem:[%s89 + $0x8] sm:$0xff]
        %v2267 = vld [vmem:[%s89 + $0x10] sm:$0xff]
        %v2268 = vld [vmem:[%s89 + $0x18] sm:$0xff]
        %v2269 = vld [vmem:[%s91] sm:$0x1]
        %v2270 = vld [vmem:[%s93] sm:$0xff]
        %v2271 = vld [vmem:[%s93 + $0x8] sm:$0xff]
        %v2272 = vld [vmem:[%s93 + $0x10] sm:$0xff]
        %v2273 = vld [vmem:[%s93 + $0x18] sm:$0xff]
        %v2274 = vld [vmem:[#allocation9] sm:$0x1]
        %v2275 = vld [vmem:[%s97] sm:$0xff]
        %v2276 = vld [vmem:[%s97 + $0x8] sm:$0xff]
        %v2277 = vld [vmem:[%s97 + $0x10] sm:$0xff]
        %v2278 = vld [vmem:[%s97 + $0x18] sm:$0xff]
        %v2279 = vld [vmem:[#allocation11] sm:$0x1]
        %v2280 = vld [vmem:[%s101] sm:$0xff]
        %v2281 = vld [vmem:[%s101 + $0x8] sm:$0xff]
        %v2282 = vld [vmem:[%s101 + $0x10] sm:$0xff]
        %v2283 = vld [vmem:[%s101 + $0x18] sm:$0xff]
        %v2284 = vld [vmem:[#allocation12] sm:$0x1]
        %v2285 = vld [vmem:[%s105] sm:$0xff]
        %v2286 = vld [vmem:[%s105 + $0x8] sm:$0xff]
        %v2287 = vld [vmem:[%s105 + $0x10] sm:$0xff]
        %v2288 = vld [vmem:[%s105 + $0x18] sm:$0xff]
        %v2289 = vld [vmem:[%s105 + $0x20] sm:$0xff]
        %v2290 = vld [vmem:[%s105 + $0x28] sm:$0xff]
        %v2291 = vld [vmem:[%s105 + $0x30] sm:$0xff]
        %v2292 = vld [vmem:[%s105 + $0x38] sm:$0xff]
        %v2293 = vld [vmem:[%s105 + $0x40] sm:$0xff]
        %v2294 = vld [vmem:[%s105 + $0x48] sm:$0xff]
        %v2295 = vld [vmem:[%s105 + $0x50] sm:$0xff]
        %v2296 = vld [vmem:[%s105 + $0x58] sm:$0xff]
        %v2297 = vld [vmem:[%s105 + $0x60] sm:$0xff]
        %v2298 = vld [vmem:[%s105 + $0x68] sm:$0xff]
        %v2299 = vld [vmem:[%s105 + $0x70] sm:$0xff]
        %v2300 = vld [vmem:[%s105 + $0x78] sm:$0xff]
        %v2301 = vld [vmem:[#allocation14] sm:$0x1]
        %v2302 = vld [vmem:[#allocation15] sm:$0x1]
        %v2303 = vld [vmem:[#allocation17] sm:$0x1]
        %v2304 = vld [vmem:[#allocation18] sm:$0x1]
        %v2305 = vld [vmem:[#allocation20] sm:$0x1]
        %v2306 = vld [vmem:[#allocation21] sm:$0x1]
        %v2307 = vld [vmem:[#allocation23] sm:$0x1]
        %v2308 = vld [vmem:[%s121] sm:$0xf]
        %v2309 = vld [vmem:[%s123] sm:$0xff]
        %v2310 = vld [vmem:[%s123 + $0x8] sm:$0xff]
        %v2311 = vld [vmem:[%s123 + $0x10] sm:$0xff]
        %v2312 = vld [vmem:[%s123 + $0x18] sm:$0xff]
        %v2313 = vld [vmem:[#allocation24] sm:$0x1]
        %v2314 = vld [vmem:[%s127] sm:$0xff]
        %v2315 = vld [vmem:[%s127 + $0x8] sm:$0xff]
        %v2316 = vld [vmem:[%s127 + $0x10] sm:$0xff]
        %v2317 = vld [vmem:[%s127 + $0x18] sm:$0xff]
        %v2318 = vld [vmem:[%s129] sm:$0x1]
        %v2319 = vld [vmem:[%s131] sm:$0xff]
        %v2320 = vld [vmem:[%s131 + $0x8] sm:$0xff]
        %v2321 = vld [vmem:[%s131 + $0x10] sm:$0xff]
        %v2322 = vld [vmem:[%s131 + $0x18] sm:$0xff]
        %v2323 = vld [vmem:[%s2126] sm:$0xff]
        %v2324 = vld [vmem:[%s2126 + $0x8] sm:$0xff]
        %v2325 = vld [vmem:[%s2126 + $0x10] sm:$0xff]
        %v2326 = vld [vmem:[%s2126 + $0x18] sm:$0xff]
        %vm2327 = vcmask 261120
        %v2328 = vsel %vm2327, %v2323, 0.0
        %2329 = vadd.xlane.f32.xlu0 %v2328
        %v2330 = vpop.xlane.xlu0 %2329
        %v2331 = vsel %vm2327, %v2324, 0.0
        %2332 = vadd.xlane.f32.xlu0 %v2331
        %v2333 = vpop.xlane.xlu0 %2332
        %v2334 = vsel %vm2327, %v2325, 0.0
        %2335 = vadd.xlane.f32.xlu0 %v2334
        %v2336 = vpop.xlane.xlu0 %2335
        %v2337 = vsel %vm2327, %v2326, 0.0
        %2338 = vadd.xlane.f32.xlu0 %v2337
        %v2339 = vpop.xlane.xlu0 %2338
        %v2340 = vrcp.pop 32.0
        %v2341 = vmul.f32 %v2330, %v2340
        %v2342 = vmul.f32 %v2333, %v2340
        %v2343 = vmul.f32 %v2336, %v2340
        %v2344 = vmul.f32 %v2339, %v2340
        %v2345 = vsub.f32 %v2323, %v2341
        %v2346 = vsub.f32 %v2324, %v2342
        %v2347 = vsub.f32 %v2325, %v2343
        %v2348 = vsub.f32 %v2326, %v2344
        %v2349 = vmul.f32 %v2345, %v2345
        %v2350 = vmul.f32 %v2346, %v2346
        %v2351 = vmul.f32 %v2347, %v2347
        %v2352 = vmul.f32 %v2348, %v2348
        %v2353 = vsel %vm2327, %v2349, 0.0
        %2354 = vadd.xlane.f32.xlu0 %v2353
        %v2355 = vpop.xlane.xlu0 %2354
        %v2356 = vsel %vm2327, %v2350, 0.0
        %2357 = vadd.xlane.f32.xlu0 %v2356
        %v2358 = vpop.xlane.xlu0 %2357
        %v2359 = vsel %vm2327, %v2351, 0.0
        %2360 = vadd.xlane.f32.xlu0 %v2359
        %v2361 = vpop.xlane.xlu0 %2360
        %v2362 = vsel %vm2327, %v2352, 0.0
        %2363 = vadd.xlane.f32.xlu0 %v2362
        %v2364 = vpop.xlane.xlu0 %2363
        %v2365 = vmul.f32 %v2355, %v2340
        %v2366 = vmul.f32 %v2358, %v2340
        %v2367 = vmul.f32 %v2361, %v2340
        %v2368 = vmul.f32 %v2364, %v2340
        %v2369 = vadd.f32 %v2365, 1e-05
        %v2370 = vadd.f32 %v2366, 1e-05
        %v2371 = vadd.f32 %v2367, 1e-05
        %v2372 = vadd.f32 %v2368, 1e-05
        %v2373 = vrsqrt.pop %v2369
        %v2374 = vrsqrt.pop %v2370
        %v2375 = vrsqrt.pop %v2371
        %v2376 = vrsqrt.pop %v2372
        %v2377 = vmul.f32 %v2345, %v2373
        %v2378 = vmul.f32 %v2346, %v2374
        %v2379 = vmul.f32 %v2347, %v2375
        %v2380 = vmul.f32 %v2348, %v2376
        %v2382 = vlaneseq
        %v2383 = vshrl.u32 %v2382, 7
        %v2384 = vsub.s32 0, %v2383
        %v2385 = vrot.slane %v2263, %v2384
        %v2387 = vmul.f32 %v2377, %v2385
        %v2388 = vmul.f32 %v2378, %v2385
        %v2389 = vmul.f32 %v2379, %v2385
        %v2390 = vmul.f32 %v2380, %v2385
        %v2392 = vlaneseq
        %v2393 = vshrl.u32 %v2392, 7
        %v2394 = vsub.s32 0, %v2393
        %v2395 = vrot.slane %v2264, %v2394
        %v2397 = vadd.f32 %v2387, %v2395
        %v2398 = vadd.f32 %v2388, %v2395
        %v2399 = vadd.f32 %v2389, %v2395
        %v2400 = vadd.f32 %v2390, %v2395
        %v2401 = vadd.f32 %v2397, %v2319
        %v2402 = vadd.f32 %v2398, %v2320
        %v2403 = vadd.f32 %v2399, %v2321
        %v2404 = vadd.f32 %v2400, %v2322
        %v2405 = vld [vmem:[%s2131] sm:$0xff]
        %v2406 = vld [vmem:[%s2131 + $0x8] sm:$0xff]
        %v2407 = vld [vmem:[%s2131 + $0x10] sm:$0xff]
        %v2408 = vld [vmem:[%s2131 + $0x18] sm:$0xff]
        %v2409 = vsel %vm2327, %v2405, 0.0
        %2410 = vadd.xlane.f32.xlu0 %v2409
        %v2411 = vpop.xlane.xlu0 %2410
        %v2412 = vsel %vm2327, %v2406, 0.0
        %2413 = vadd.xlane.f32.xlu0 %v2412
        %v2414 = vpop.xlane.xlu0 %2413
        %v2415 = vsel %vm2327, %v2407, 0.0
        %2416 = vadd.xlane.f32.xlu0 %v2415
        %v2417 = vpop.xlane.xlu0 %2416
        %v2418 = vsel %vm2327, %v2408, 0.0
        %2419 = vadd.xlane.f32.xlu0 %v2418
        %v2420 = vpop.xlane.xlu0 %2419
        %v2421 = vmul.f32 %v2411, %v2340
        %v2422 = vmul.f32 %v2414, %v2340
        %v2423 = vmul.f32 %v2417, %v2340
        %v2424 = vmul.f32 %v2420, %v2340
        %v2425 = vsub.f32 %v2405, %v2421
        %v2426 = vsub.f32 %v2406, %v2422
        %v2427 = vsub.f32 %v2407, %v2423
        %v2428 = vsub.f32 %v2408, %v2424
        %v2429 = vmul.f32 %v2425, %v2425
        %v2430 = vmul.f32 %v2426, %v2426
        %v2431 = vmul.f32 %v2427, %v2427
        %v2432 = vmul.f32 %v2428, %v2428
        %v2433 = vsel %vm2327, %v2429, 0.0
        %2434 = vadd.xlane.f32.xlu0 %v2433
        %v2435 = vpop.xlane.xlu0 %2434
        %v2436 = vsel %vm2327, %v2430, 0.0
        %2437 = vadd.xlane.f32.xlu0 %v2436
        %v2438 = vpop.xlane.xlu0 %2437
        %v2439 = vsel %vm2327, %v2431, 0.0
        %2440 = vadd.xlane.f32.xlu0 %v2439
        %v2441 = vpop.xlane.xlu0 %2440
        %v2442 = vsel %vm2327, %v2432, 0.0
        %2443 = vadd.xlane.f32.xlu0 %v2442
        %v2444 = vpop.xlane.xlu0 %2443
        %v2445 = vmul.f32 %v2435, %v2340
        %v2446 = vmul.f32 %v2438, %v2340
        %v2447 = vmul.f32 %v2441, %v2340
        %v2448 = vmul.f32 %v2444, %v2340
        %v2449 = vadd.f32 %v2445, 1e-05
        %v2450 = vadd.f32 %v2446, 1e-05
        %v2451 = vadd.f32 %v2447, 1e-05
        %v2452 = vadd.f32 %v2448, 1e-05
        %v2453 = vrsqrt.pop %v2449
        %v2454 = vrsqrt.pop %v2450
        %v2455 = vrsqrt.pop %v2451
        %v2456 = vrsqrt.pop %v2452
        %v2457 = vmul.f32 %v2425, %v2453
        %v2458 = vmul.f32 %v2426, %v2454
        %v2459 = vmul.f32 %v2427, %v2455
        %v2460 = vmul.f32 %v2428, %v2456
        %v2462 = vlaneseq
        %v2463 = vshrl.u32 %v2462, 7
        %v2464 = vsub.s32 0, %v2463
        %v2465 = vrot.slane %v2261, %v2464
        %v2467 = vmul.f32 %v2457, %v2465
        %v2468 = vmul.f32 %v2458, %v2465
        %v2469 = vmul.f32 %v2459, %v2465
        %v2470 = vmul.f32 %v2460, %v2465
        %v2472 = vlaneseq
        %v2473 = vshrl.u32 %v2472, 7
        %v2474 = vsub.s32 0, %v2473
        %v2475 = vrot.slane %v2262, %v2474
        %v2477 = vadd.f32 %v2467, %v2475
        %v2478 = vadd.f32 %v2468, %v2475
        %v2479 = vadd.f32 %v2469, %v2475
        %v2480 = vadd.f32 %v2470, %v2475
        %v2481 = vadd.f32 %v2477, %v2186
        %v2482 = vadd.f32 %v2478, %v2187
        %v2483 = vadd.f32 %v2479, %v2188
        %v2484 = vadd.f32 %v2480, %v2189
        %v2486 = vlaneseq
        %v2487 = vshrl.u32 %v2486, 7
        %v2488 = vsub.s32 0, %v2487
        %v2489 = vrot.slane %v2318, %v2488
        %v2492 = vsel %vm2327, %v2308, 0
        %2494 = vmatprep.subr.mxu0 0.0
        %2495 = vmatpush1.msra.mxu0 %v2314
        %2496 = vmatprep.subr.mxu0 0.0
        %2497 = vmatpush1.msra.mxu0 %v2315
        %2498 = vmatprep.subr.mxu0 0.0
        %2499 = vmatpush1.msra.mxu0 %v2316
        %2500 = vmatprep.subr.mxu0 0.0
        %2501 = vmatpush1.msra.mxu0 %v2317
        %2502 = vmatprep.subr.mxu0 0.0
        %2503 = vmatpush1.msra.mxu0 0.0
        %2504 = vmatprep.subr.mxu0 0.0
        %2505 = vmatpush1.msra.mxu0 0.0
        %2506 = vmatprep.subr.mxu0 0.0
        %2507 = vmatpush1.msra.mxu0 0.0
        %2508 = vmatprep.subr.mxu0 0.0
        %2509 = vmatpush1.msra.mxu0 0.0
        %2510 = vmatprep.subr.mxu0 0.0
        %2511 = vmatpush1.msra.mxu0 0.0
        %2512 = vmatprep.subr.mxu0 0.0
        %2513 = vmatpush1.msra.mxu0 0.0
        %2514 = vmatprep.subr.mxu0 0.0
        %2515 = vmatpush1.msra.mxu0 0.0
        %2516 = vmatprep.subr.mxu0 0.0
        %2517 = vmatpush1.msra.mxu0 0.0
        %2518 = vmatprep.subr.mxu0 0.0
        %2519 = vmatpush1.msra.mxu0 0.0
        %2520 = vmatprep.subr.mxu0 0.0
        %2521 = vmatpush1.msra.mxu0 0.0
        %2522 = vmatprep.subr.mxu0 0.0
        %2523 = vmatpush1.msra.mxu0 0.0
        %2524 = vmatprep.subr.mxu0 0.0
        %2525 = vmatpush1.msra.mxu0 0.0
        %2526 = vmatprep.subr.mxu0 0.0
        %2527 = vmatpush1.msra.mxu0 0.0
        %2528 = vmatprep.subr.mxu0 0.0
        %2529 = vmatpush1.msra.mxu0 0.0
        %2530 = vmatprep.subr.mxu0 0.0
        %2531 = vmatpush1.msra.mxu0 0.0
        %2532 = vmatprep.subr.mxu0 0.0
        %2533 = vmatpush1.msra.mxu0 0.0
        %2534 = vmatprep.subr.mxu0 0.0
        %2535 = vmatpush1.msra.mxu0 0.0
        %2536 = vmatprep.subr.mxu0 0.0
        %2537 = vmatpush1.msra.mxu0 0.0
        %2538 = vmatprep.subr.mxu0 0.0
        %2539 = vmatpush1.msra.mxu0 0.0
        %2540 = vmatprep.subr.mxu0 0.0
        %2541 = vmatpush1.msra.mxu0 0.0
        %2542 = vmatprep.subr.mxu0 0.0
        %2543 = vmatpush1.msra.mxu0 0.0
        %2544 = vmatprep.subr.mxu0 0.0
        %2545 = vmatpush1.msra.mxu0 0.0
        %2546 = vmatprep.subr.mxu0 0.0
        %2547 = vmatpush1.msra.mxu0 0.0
        %2548 = vmatprep.subr.mxu0 0.0
        %2549 = vmatpush1.msra.mxu0 0.0
        %2550 = vmatprep.subr.mxu0 0.0
        %2551 = vmatpush1.msra.mxu0 0.0
        %2552 = vmatprep.subr.mxu0 0.0
        %2553 = vmatpush1.msra.mxu0 0.0
        %2554 = vmatprep.subr.mxu0 0.0
        %2555 = vmatpush1.msra.mxu0 0.0
        %2556 = vmatprep.subr.mxu0 0.0
        %2557 = vmatpush1.msra.mxu0 0.0
        %2558 = vmatprep.mubr.f32.mxu0 0.0
        %2559 = vmatmul.mubr.f32.gmra.mrb[0].mxu0 %v2492
        %v2560 = vpop.f32.mrb[0].mxu0
        %v2561 = vadd.f32 %v2489, %v2560
        %v2562 = vpop.f32.mrb[0].mxu0
        %2563 = vdwg.mxu0
        %2565 = vrot.lane.b32.xlu0 %v2561, 96
        %v2566 = vpop.permute.xlu0 %2565
        %vm2567 = vcmask 64512
        %v2568 = vsel %vm2567, %v2561, 0
        %v2570 = vsel %vm2567, %v2566, 0
        %2572 = vmatprep.subr.mxu0 0.0
        %2573 = vmatpush1.xpose.msra.mxu0 %v2570
        %2574 = vmatprep.subr.mxu0 0.0
        %2575 = vmatpush1.xpose.msra.mxu0 0.0
        %2576 = vmatprep.subr.mxu0 0.0
        %2577 = vmatpush1.xpose.msra.mxu0 0.0
        %2578 = vmatprep.subr.mxu0 0.0
        %2579 = vmatpush1.xpose.msra.mxu0 0.0
        %2580 = vmatprep.subr.mxu0 0.0
        %2581 = vmatpush1.xpose.msra.mxu0 0.0
        %2582 = vmatprep.subr.mxu0 0.0
        %2583 = vmatpush1.xpose.msra.mxu0 0.0
        %2584 = vmatprep.subr.mxu0 0.0
        %2585 = vmatpush1.xpose.msra.mxu0 0.0
        %2586 = vmatprep.subr.mxu0 0.0
        %2587 = vmatpush1.xpose.msra.mxu0 0.0
        %2588 = vmatprep.subr.mxu0 0.0
        %2589 = vmatpush1.xpose.msra.mxu0 0.0
        %2590 = vmatprep.subr.mxu0 0.0
        %2591 = vmatpush1.xpose.msra.mxu0 0.0
        %2592 = vmatprep.subr.mxu0 0.0
        %2593 = vmatpush1.xpose.msra.mxu0 0.0
        %2594 = vmatprep.subr.mxu0 0.0
        %2595 = vmatpush1.xpose.msra.mxu0 0.0
        %2596 = vmatprep.subr.mxu0 0.0
        %2597 = vmatpush1.xpose.msra.mxu0 0.0
        %2598 = vmatprep.subr.mxu0 0.0
        %2599 = vmatpush1.xpose.msra.mxu0 0.0
        %2600 = vmatprep.subr.mxu0 0.0
        %2601 = vmatpush1.xpose.msra.mxu0 0.0
        %2602 = vmatprep.subr.mxu0 0.0
        %2603 = vmatpush1.xpose.msra.mxu0 0.0
        %2604 = vmatprep.subr.mxu0 0.0
        %2605 = vmatpush1.xpose.msra.mxu0 0.0
        %2606 = vmatprep.subr.mxu0 0.0
        %2607 = vmatpush1.xpose.msra.mxu0 0.0
        %2608 = vmatprep.subr.mxu0 0.0
        %2609 = vmatpush1.xpose.msra.mxu0 0.0
        %2610 = vmatprep.subr.mxu0 0.0
        %2611 = vmatpush1.xpose.msra.mxu0 0.0
        %2612 = vmatprep.subr.mxu0 0.0
        %2613 = vmatpush1.xpose.msra.mxu0 0.0
        %2614 = vmatprep.subr.mxu0 0.0
        %2615 = vmatpush1.xpose.msra.mxu0 0.0
        %2616 = vmatprep.subr.mxu0 0.0
        %2617 = vmatpush1.xpose.msra.mxu0 0.0
        %2618 = vmatprep.subr.mxu0 0.0
        %2619 = vmatpush1.xpose.msra.mxu0 0.0
        %2620 = vmatprep.subr.mxu0 0.0
        %2621 = vmatpush1.xpose.msra.mxu0 0.0
        %2622 = vmatprep.subr.mxu0 0.0
        %2623 = vmatpush1.xpose.msra.mxu0 0.0
        %2624 = vmatprep.subr.mxu0 0.0
        %2625 = vmatpush1.xpose.msra.mxu0 0.0
        %2626 = vmatprep.subr.mxu0 0.0
        %2627 = vmatpush1.xpose.msra.mxu0 0.0
        %2628 = vmatprep.subr.mxu0 0.0
        %2629 = vmatpush1.xpose.msra.mxu0 0.0
        %2630 = vmatprep.subr.mxu0 0.0
        %2631 = vmatpush1.xpose.msra.mxu0 0.0
        %2632 = vmatprep.subr.mxu0 0.0
        %2633 = vmatpush1.xpose.msra.mxu0 0.0
        %2634 = vmatprep.subr.mxu0 0.0
        %2635 = vmatpush1.xpose.msra.mxu0 0.0
        %2636 = vmatprep.mubr.f32.mxu0 0.0
        %2637 = vmatmul.mubr.f32.gmra.mrb[0].mxu0 %v2568
        %v2638 = vpop.f32.mrb[0].mxu0
        %v2639 = vadd.f32 0.0, %v2638
        %v2640 = vpop.f32.mrb[0].mxu0
        %2641 = vdwg.mxu0
        %v2642 = vmul.f32 %v2639, 0.35355338
        %vm2643 = vcmask 27648
        %v2644 = vsel %vm2643, %v2642, -inf
        %2645 = vmax.xlane.f32.xlu0 %v2644
        %v2646 = vpop.xlane.xlu0 %2645
        %v2647 = vsub.f32 %v2642, %v2646
        %v2648 = vmul.f32 %v2647, 1.442695
        %v2649 = vpow.pop %v2648
        %v2650 = vsel %vm2643, %v2649, 0.0
        %2651 = vadd.xlane.f32.xlu0 %v2650
        %v2652 = vpop.xlane.xlu0 %2651
        %v2653 = vrcp.pop %v2652
        %v2654 = vmul.f32 %v2649, %v2653
        %2655 = vrot.lane.b32.xlu0 %v2561, 64
        %v2656 = vpop.permute.xlu0 %2655
        %vm2657 = vcmask 31744
        %v2659 = vsel %vm2657, %v2654, 0
        %vm2661 = vcmask 1043456
        %v2662 = vsel %vm2661, %v2656, 0
        %2664 = vmatprep.subr.mxu0 0.0
        %2665 = vmatpush1.msra.mxu0 %v2662
        %2666 = vmatprep.subr.mxu0 0.0
        %2667 = vmatpush1.msra.mxu0 0.0
        %2668 = vmatprep.subr.mxu0 0.0
        %2669 = vmatpush1.msra.mxu0 0.0
        %2670 = vmatprep.subr.mxu0 0.0
        %2671 = vmatpush1.msra.mxu0 0.0
        %2672 = vmatprep.subr.mxu0 0.0
        %2673 = vmatpush1.msra.mxu0 0.0
        %2674 = vmatprep.subr.mxu0 0.0
        %2675 = vmatpush1.msra.mxu0 0.0
        %2676 = vmatprep.subr.mxu0 0.0
        %2677 = vmatpush1.msra.mxu0 0.0
        %2678 = vmatprep.subr.mxu0 0.0
        %2679 = vmatpush1.msra.mxu0 0.0
        %2680 = vmatprep.subr.mxu0 0.0
        %2681 = vmatpush1.msra.mxu0 0.0
        %2682 = vmatprep.subr.mxu0 0.0
        %2683 = vmatpush1.msra.mxu0 0.0
        %2684 = vmatprep.subr.mxu0 0.0
        %2685 = vmatpush1.msra.mxu0 0.0
        %2686 = vmatprep.subr.mxu0 0.0
        %2687 = vmatpush1.msra.mxu0 0.0
        %2688 = vmatprep.subr.mxu0 0.0
        %2689 = vmatpush1.msra.mxu0 0.0
        %2690 = vmatprep.subr.mxu0 0.0
        %2691 = vmatpush1.msra.mxu0 0.0
        %2692 = vmatprep.subr.mxu0 0.0
        %2693 = vmatpush1.msra.mxu0 0.0
        %2694 = vmatprep.subr.mxu0 0.0
        %2695 = vmatpush1.msra.mxu0 0.0
        %2696 = vmatprep.subr.mxu0 0.0
        %2697 = vmatpush1.msra.mxu0 0.0
        %2698 = vmatprep.subr.mxu0 0.0
        %2699 = vmatpush1.msra.mxu0 0.0
        %2700 = vmatprep.subr.mxu0 0.0
        %2701 = vmatpush1.msra.mxu0 0.0
        %2702 = vmatprep.subr.mxu0 0.0
        %2703 = vmatpush1.msra.mxu0 0.0
        %2704 = vmatprep.subr.mxu0 0.0
        %2705 = vmatpush1.msra.mxu0 0.0
        %2706 = vmatprep.subr.mxu0 0.0
        %2707 = vmatpush1.msra.mxu0 0.0
        %2708 = vmatprep.subr.mxu0 0.0
        %2709 = vmatpush1.msra.mxu0 0.0
        %2710 = vmatprep.subr.mxu0 0.0
        %2711 = vmatpush1.msra.mxu0 0.0
        %2712 = vmatprep.subr.mxu0 0.0
        %2713 = vmatpush1.msra.mxu0 0.0
        %2714 = vmatprep.subr.mxu0 0.0
        %2715 = vmatpush1.msra.mxu0 0.0
        %2716 = vmatprep.subr.mxu0 0.0
        %2717 = vmatpush1.msra.mxu0 0.0
        %2718 = vmatprep.subr.mxu0 0.0
        %2719 = vmatpush1.msra.mxu0 0.0
        %2720 = vmatprep.subr.mxu0 0.0
        %2721 = vmatpush1.msra.mxu0 0.0
        %2722 = vmatprep.subr.mxu0 0.0
        %2723 = vmatpush1.msra.mxu0 0.0
        %2724 = vmatprep.subr.mxu0 0.0
        %2725 = vmatpush1.msra.mxu0 0.0
        %2726 = vmatprep.subr.mxu0 0.0
        %2727 = vmatpush1.msra.mxu0 0.0
        %2728 = vmatprep.mubr.f32.mxu0 0.0
        %2729 = vmatmul.mubr.f32.gmra.mrb[0].mxu0 %v2659
        %v2730 = vpop.f32.mrb[0].mxu0
        %v2731 = vadd.f32 0.0, %v2730
        %v2732 = vpop.f32.mrb[0].mxu0
        %2733 = vdwg.mxu0
        %2734 = vrot.lane.b32.xlu0 %v2561, 120
        %v2735 = vpop.permute.xlu0 %2734
        %2736 = vrot.lane.b32.xlu0 %v2561, 88
        %v2737 = vpop.permute.xlu0 %2736
        %v2738 = vsel %vm2567, %v2735, 0
        %v2740 = vsel %vm2567, %v2737, 0
        %2742 = vmatprep.subr.mxu0 0.0
        %2743 = vmatpush1.xpose.msra.mxu0 %v2740
        %2744 = vmatprep.subr.mxu0 0.0
        %2745 = vmatpush1.xpose.msra.mxu0 0.0
        %2746 = vmatprep.subr.mxu0 0.0
        %2747 = vmatpush1.xpose.msra.mxu0 0.0
        %2748 = vmatprep.subr.mxu0 0.0
        %2749 = vmatpush1.xpose.msra.mxu0 0.0
        %2750 = vmatprep.subr.mxu0 0.0
        %2751 = vmatpush1.xpose.msra.mxu0 0.0
        %2752 = vmatprep.subr.mxu0 0.0
        %2753 = vmatpush1.xpose.msra.mxu0 0.0
        %2754 = vmatprep.subr.mxu0 0.0
        %2755 = vmatpush1.xpose.msra.mxu0 0.0
        %2756 = vmatprep.subr.mxu0 0.0
        %2757 = vmatpush1.xpose.msra.mxu0 0.0
        %2758 = vmatprep.subr.mxu0 0.0
        %2759 = vmatpush1.xpose.msra.mxu0 0.0
        %2760 = vmatprep.subr.mxu0 0.0
        %2761 = vmatpush1.xpose.msra.mxu0 0.0
        %2762 = vmatprep.subr.mxu0 0.0
        %2763 = vmatpush1.xpose.msra.mxu0 0.0
        %2764 = vmatprep.subr.mxu0 0.0
        %2765 = vmatpush1.xpose.msra.mxu0 0.0
        %2766 = vmatprep.subr.mxu0 0.0
        %2767 = vmatpush1.xpose.msra.mxu0 0.0
        %2768 = vmatprep.subr.mxu0 0.0
        %2769 = vmatpush1.xpose.msra.mxu0 0.0
        %2770 = vmatprep.subr.mxu0 0.0
        %2771 = vmatpush1.xpose.msra.mxu0 0.0
        %2772 = vmatprep.subr.mxu0 0.0
        %2773 = vmatpush1.xpose.msra.mxu0 0.0
        %2774 = vmatprep.subr.mxu0 0.0
        %2775 = vmatpush1.xpose.msra.mxu0 0.0
        %2776 = vmatprep.subr.mxu0 0.0
        %2777 = vmatpush1.xpose.msra.mxu0 0.0
        %2778 = vmatprep.subr.mxu0 0.0
        %2779 = vmatpush1.xpose.msra.mxu0 0.0
        %2780 = vmatprep.subr.mxu0 0.0
        %2781 = vmatpush1.xpose.msra.mxu0 0.0
        %2782 = vmatprep.subr.mxu0 0.0
        %2783 = vmatpush1.xpose.msra.mxu0 0.0
        %2784 = vmatprep.subr.mxu0 0.0
        %2785 = vmatpush1.xpose.msra.mxu0 0.0
        %2786 = vmatprep.subr.mxu0 0.0
        %2787 = vmatpush1.xpose.msra.mxu0 0.0
        %2788 = vmatprep.subr.mxu0 0.0
        %2789 = vmatpush1.xpose.msra.mxu0 0.0
        %2790 = vmatprep.subr.mxu0 0.0
        %2791 = vmatpush1.xpose.msra.mxu0 0.0
        %2792 = vmatprep.subr.mxu0 0.0
        %2793 = vmatpush1.xpose.msra.mxu0 0.0
        %2794 = vmatprep.subr.mxu0 0.0
        %2795 = vmatpush1.xpose.msra.mxu0 0.0
        %2796 = vmatprep.subr.mxu0 0.0
        %2797 = vmatpush1.xpose.msra.mxu0 0.0
        %2798 = vmatprep.subr.mxu0 0.0
        %2799 = vmatpush1.xpose.msra.mxu0 0.0
        %2800 = vmatprep.subr.mxu0 0.0
        %2801 = vmatpush1.xpose.msra.mxu0 0.0
        %2802 = vmatprep.subr.mxu0 0.0
        %2803 = vmatpush1.xpose.msra.mxu0 0.0
        %2804 = vmatprep.subr.mxu0 0.0
        %2805 = vmatpush1.xpose.msra.mxu0 0.0
        %2806 = vmatprep.mubr.f32.mxu0 0.0
        %2807 = vmatmul.mubr.f32.gmra.mrb[0].mxu0 %v2738
        %v2808 = vpop.f32.mrb[0].mxu0
        %v2809 = vadd.f32 0.0, %v2808
        %v2810 = vpop.f32.mrb[0].mxu0
        %2811 = vdwg.mxu0
        %v2812 = vmul.f32 %v2809, 0.35355338
        %v2813 = vsel %vm2643, %v2812, -inf
        %2814 = vmax.xlane.f32.xlu0 %v2813
        %v2815 = vpop.xlane.xlu0 %2814
        %v2816 = vsub.f32 %v2812, %v2815
        %v2817 = vmul.f32 %v2816, 1.442695
        %v2818 = vpow.pop %v2817
        %v2819 = vsel %vm2643, %v2818, 0.0
        %2820 = vadd.xlane.f32.xlu0 %v2819
        %v2821 = vpop.xlane.xlu0 %2820
        %v2822 = vrcp.pop %v2821
        %v2823 = vmul.f32 %v2818, %v2822
        %2824 = vrot.lane.b32.xlu0 %v2561, 56
        %v2825 = vpop.permute.xlu0 %2824
        %v2827 = vsel %vm2657, %v2823, 0
        %v2829 = vsel %vm2661, %v2825, 0
        %2831 = vmatprep.subr.mxu0 0.0
        %2832 = vmatpush1.msra.mxu0 %v2829
        %2833 = vmatprep.subr.mxu0 0.0
        %2834 = vmatpush1.msra.mxu0 0.0
        %2835 = vmatprep.subr.mxu0 0.0
        %2836 = vmatpush1.msra.mxu0 0.0
        %2837 = vmatprep.subr.mxu0 0.0
        %2838 = vmatpush1.msra.mxu0 0.0
        %2839 = vmatprep.subr.mxu0 0.0
        %2840 = vmatpush1.msra.mxu0 0.0
        %2841 = vmatprep.subr.mxu0 0.0
        %2842 = vmatpush1.msra.mxu0 0.0
        %2843 = vmatprep.subr.mxu0 0.0
        %2844 = vmatpush1.msra.mxu0 0.0
        %2845 = vmatprep.subr.mxu0 0.0
        %2846 = vmatpush1.msra.mxu0 0.0
        %2847 = vmatprep.subr.mxu0 0.0
        %2848 = vmatpush1.msra.mxu0 0.0
        %2849 = vmatprep.subr.mxu0 0.0
        %2850 = vmatpush1.msra.mxu0 0.0
        %2851 = vmatprep.subr.mxu0 0.0
        %2852 = vmatpush1.msra.mxu0 0.0
        %2853 = vmatprep.subr.mxu0 0.0
        %2854 = vmatpush1.msra.mxu0 0.0
        %2855 = vmatprep.subr.mxu0 0.0
        %2856 = vmatpush1.msra.mxu0 0.0
        %2857 = vmatprep.subr.mxu0 0.0
        %2858 = vmatpush1.msra.mxu0 0.0
        %2859 = vmatprep.subr.mxu0 0.0
        %2860 = vmatpush1.msra.mxu0 0.0
        %2861 = vmatprep.subr.mxu0 0.0
        %2862 = vmatpush1.msra.mxu0 0.0
        %2863 = vmatprep.subr.mxu0 0.0
        %2864 = vmatpush1.msra.mxu0 0.0
        %2865 = vmatprep.subr.mxu0 0.0
        %2866 = vmatpush1.msra.mxu0 0.0
        %2867 = vmatprep.subr.mxu0 0.0
        %2868 = vmatpush1.msra.mxu0 0.0
        %2869 = vmatprep.subr.mxu0 0.0
        %2870 = vmatpush1.msra.mxu0 0.0
        %2871 = vmatprep.subr.mxu0 0.0
        %2872 = vmatpush1.msra.mxu0 0.0
        %2873 = vmatprep.subr.mxu0 0.0
        %2874 = vmatpush1.msra.mxu0 0.0
        %2875 = vmatprep.subr.mxu0 0.0
        %2876 = vmatpush1.msra.mxu0 0.0
        %2877 = vmatprep.subr.mxu0 0.0
        %2878 = vmatpush1.msra.mxu0 0.0
        %2879 = vmatprep.subr.mxu0 0.0
        %2880 = vmatpush1.msra.mxu0 0.0
        %2881 = vmatprep.subr.mxu0 0.0
        %2882 = vmatpush1.msra.mxu0 0.0
        %2883 = vmatprep.subr.mxu0 0.0
        %2884 = vmatpush1.msra.mxu0 0.0
        %2885 = vmatprep.subr.mxu0 0.0
        %2886 = vmatpush1.msra.mxu0 0.0
        %2887 = vmatprep.subr.mxu0 0.0
        %2888 = vmatpush1.msra.mxu0 0.0
        %2889 = vmatprep.subr.mxu0 0.0
        %2890 = vmatpush1.msra.mxu0 0.0
        %2891 = vmatprep.subr.mxu0 0.0
        %2892 = vmatpush1.msra.mxu0 0.0
        %2893 = vmatprep.subr.mxu0 0.0
        %2894 = vmatpush1.msra.mxu0 0.0
        %2895 = vmatprep.mubr.f32.mxu0 0.0
        %2896 = vmatmul.mubr.f32.gmra.mrb[0].mxu0 %v2827
        %v2897 = vpop.f32.mrb[0].mxu0
        %v2898 = vadd.f32 0.0, %v2897
        %v2899 = vpop.f32.mrb[0].mxu0
        %2900 = vdwg.mxu0
        %2901 = vrot.lane.b32.xlu0 %v2561, 112
        %v2902 = vpop.permute.xlu0 %2901
        %2903 = vrot.lane.b32.xlu0 %v2561, 80
        %v2904 = vpop.permute.xlu0 %2903
        %v2905 = vsel %vm2567, %v2902, 0
        %v2907 = vsel %vm2567, %v2904, 0
        %2909 = vmatprep.subr.mxu0 0.0
        %2910 = vmatpush1.xpose.msra.mxu0 %v2907
        %2911 = vmatprep.subr.mxu0 0.0
        %2912 = vmatpush1.xpose.msra.mxu0 0.0
        %2913 = vmatprep.subr.mxu0 0.0
        %2914 = vmatpush1.xpose.msra.mxu0 0.0
        %2915 = vmatprep.subr.mxu0 0.0
        %2916 = vmatpush1.xpose.msra.mxu0 0.0
        %2917 = vmatprep.subr.mxu0 0.0
        %2918 = vmatpush1.xpose.msra.mxu0 0.0
        %2919 = vmatprep.subr.mxu0 0.0
        %2920 = vmatpush1.xpose.msra.mxu0 0.0
        %2921 = vmatprep.subr.mxu0 0.0
        %2922 = vmatpush1.xpose.msra.mxu0 0.0
        %2923 = vmatprep.subr.mxu0 0.0
        %2924 = vmatpush1.xpose.msra.mxu0 0.0
        %2925 = vmatprep.subr.mxu0 0.0
        %2926 = vmatpush1.xpose.msra.mxu0 0.0
        %2927 = vmatprep.subr.mxu0 0.0
        %2928 = vmatpush1.xpose.msra.mxu0 0.0
        %2929 = vmatprep.subr.mxu0 0.0
        %2930 = vmatpush1.xpose.msra.mxu0 0.0
        %2931 = vmatprep.subr.mxu0 0.0
        %2932 = vmatpush1.xpose.msra.mxu0 0.0
        %2933 = vmatprep.subr.mxu0 0.0
        %2934 = vmatpush1.xpose.msra.mxu0 0.0
        %2935 = vmatprep.subr.mxu0 0.0
        %2936 = vmatpush1.xpose.msra.mxu0 0.0
        %2937 = vmatprep.subr.mxu0 0.0
        %2938 = vmatpush1.xpose.msra.mxu0 0.0
        %2939 = vmatprep.subr.mxu0 0.0
        %2940 = vmatpush1.xpose.msra.mxu0 0.0
        %2941 = vmatprep.subr.mxu0 0.0
        %2942 = vmatpush1.xpose.msra.mxu0 0.0
        %2943 = vmatprep.subr.mxu0 0.0
        %2944 = vmatpush1.xpose.msra.mxu0 0.0
        %2945 = vmatprep.subr.mxu0 0.0
        %2946 = vmatpush1.xpose.msra.mxu0 0.0
        %2947 = vmatprep.subr.mxu0 0.0
        %2948 = vmatpush1.xpose.msra.mxu0 0.0
        %2949 = vmatprep.subr.mxu0 0.0
        %2950 = vmatpush1.xpose.msra.mxu0 0.0
        %2951 = vmatprep.subr.mxu0 0.0
        %2952 = vmatpush1.xpose.msra.mxu0 0.0
        %2953 = vmatprep.subr.mxu0 0.0
        %2954 = vmatpush1.xpose.msra.mxu0 0.0
        %2955 = vmatprep.subr.mxu0 0.0
        %2956 = vmatpush1.xpose.msra.mxu0 0.0
        %2957 = vmatprep.subr.mxu0 0.0
        %2958 = vmatpush1.xpose.msra.mxu0 0.0
        %2959 = vmatprep.subr.mxu0 0.0
        %2960 = vmatpush1.xpose.msra.mxu0 0.0
        %2961 = vmatprep.subr.mxu0 0.0
        %2962 = vmatpush1.xpose.msra.mxu0 0.0
        %2963 = vmatprep.subr.mxu0 0.0
        %2964 = vmatpush1.xpose.msra.mxu0 0.0
        %2965 = vmatprep.subr.mxu0 0.0
        %2966 = vmatpush1.xpose.msra.mxu0 0.0
        %2967 = vmatprep.subr.mxu0 0.0
        %2968 = vmatpush1.xpose.msra.mxu0 0.0
        %2969 = vmatprep.subr.mxu0 0.0
        %2970 = vmatpush1.xpose.msra.mxu0 0.0
        %2971 = vmatprep.subr.mxu0 0.0
        %2972 = vmatpush1.xpose.msra.mxu0 0.0
        %2973 = vmatprep.mubr.f32.mxu0 0.0
        %2974 = vmatmul.mubr.f32.gmra.mrb[0].mxu0 %v2905
        %v2975 = vpop.f32.mrb[0].mxu0
        %v2976 = vadd.f32 0.0, %v2975
        %v2977 = vpop.f32.mrb[0].mxu0
        %2978 = vdwg.mxu0
        %v2979 = vmul.f32 %v2976, 0.35355338
        %v2980 = vsel %vm2643, %v2979, -inf
        %2981 = vmax.xlane.f32.xlu0 %v2980
        %v2982 = vpop.xlane.xlu0 %2981
        %v2983 = vsub.f32 %v2979, %v2982
        %v2984 = vmul.f32 %v2983, 1.442695
        %v2985 = vpow.pop %v2984
        %v2986 = vsel %vm2643, %v2985, 0.0
        %2987 = vadd.xlane.f32.xlu0 %v2986
        %v2988 = vpop.xlane.xlu0 %2987
        %v2989 = vrcp.pop %v2988
        %v2990 = vmul.f32 %v2985, %v2989
        %2991 = vrot.lane.b32.xlu0 %v2561, 48
        %v2992 = vpop.permute.xlu0 %2991
        %v2994 = vsel %vm2657, %v2990, 0
        %v2996 = vsel %vm2661, %v2992, 0
        %2998 = vmatprep.subr.mxu0 0.0
        %2999 = vmatpush1.msra.mxu0 %v2996
        %3000 = vmatprep.subr.mxu0 0.0
        %3001 = vmatpush1.msra.mxu0 0.0
        %3002 = vmatprep.subr.mxu0 0.0
        %3003 = vmatpush1.msra.mxu0 0.0
        %3004 = vmatprep.subr.mxu0 0.0
        %3005 = vmatpush1.msra.mxu0 0.0
        %3006 = vmatprep.subr.mxu0 0.0
        %3007 = vmatpush1.msra.mxu0 0.0
        %3008 = vmatprep.subr.mxu0 0.0
        %3009 = vmatpush1.msra.mxu0 0.0
        %3010 = vmatprep.subr.mxu0 0.0
        %3011 = vmatpush1.msra.mxu0 0.0
        %3012 = vmatprep.subr.mxu0 0.0
        %3013 = vmatpush1.msra.mxu0 0.0
        %3014 = vmatprep.subr.mxu0 0.0
        %3015 = vmatpush1.msra.mxu0 0.0
        %3016 = vmatprep.subr.mxu0 0.0
        %3017 = vmatpush1.msra.mxu0 0.0
        %3018 = vmatprep.subr.mxu0 0.0
        %3019 = vmatpush1.msra.mxu0 0.0
        %3020 = vmatprep.subr.mxu0 0.0
        %3021 = vmatpush1.msra.mxu0 0.0
        %3022 = vmatprep.subr.mxu0 0.0
        %3023 = vmatpush1.msra.mxu0 0.0
        %3024 = vmatprep.subr.mxu0 0.0
        %3025 = vmatpush1.msra.mxu0 0.0
        %3026 = vmatprep.subr.mxu0 0.0
        %3027 = vmatpush1.msra.mxu0 0.0
        %3028 = vmatprep.subr.mxu0 0.0
        %3029 = vmatpush1.msra.mxu0 0.0
        %3030 = vmatprep.subr.mxu0 0.0
        %3031 = vmatpush1.msra.mxu0 0.0
        %3032 = vmatprep.subr.mxu0 0.0
        %3033 = vmatpush1.msra.mxu0 0.0
        %3034 = vmatprep.subr.mxu0 0.0
        %3035 = vmatpush1.msra.mxu0 0.0
        %3036 = vmatprep.subr.mxu0 0.0
        %3037 = vmatpush1.msra.mxu0 0.0
        %3038 = vmatprep.subr.mxu0 0.0
        %3039 = vmatpush1.msra.mxu0 0.0
        %3040 = vmatprep.subr.mxu0 0.0
        %3041 = vmatpush1.msra.mxu0 0.0
        %3042 = vmatprep.subr.mxu0 0.0
        %3043 = vmatpush1.msra.mxu0 0.0
        %3044 = vmatprep.subr.mxu0 0.0
        %3045 = vmatpush1.msra.mxu0 0.0
        %3046 = vmatprep.subr.mxu0 0.0
        %3047 = vmatpush1.msra.mxu0 0.0
        %3048 = vmatprep.subr.mxu0 0.0
        %3049 = vmatpush1.msra.mxu0 0.0
        %3050 = vmatprep.subr.mxu0 0.0
        %3051 = vmatpush1.msra.mxu0 0.0
        %3052 = vmatprep.subr.mxu0 0.0
        %3053 = vmatpush1.msra.mxu0 0.0
        %3054 = vmatprep.subr.mxu0 0.0
        %3055 = vmatpush1.msra.mxu0 0.0
        %3056 = vmatprep.subr.mxu0 0.0
        %3057 = vmatpush1.msra.mxu0 0.0
        %3058 = vmatprep.subr.mxu0 0.0
        %3059 = vmatpush1.msra.mxu0 0.0
        %3060 = vmatprep.subr.mxu0 0.0
        %3061 = vmatpush1.msra.mxu0 0.0
        %3062 = vmatprep.mubr.f32.mxu0 0.0
        %3063 = vmatmul.mubr.f32.gmra.mrb[0].mxu0 %v2994
        %v3064 = vpop.f32.mrb[0].mxu0
        %v3065 = vadd.f32 0.0, %v3064
        %v3066 = vpop.f32.mrb[0].mxu0
        %3067 = vdwg.mxu0
        %3068 = vrot.lane.b32.xlu0 %v2561, 104
        %v3069 = vpop.permute.xlu0 %3068
        %3070 = vrot.lane.b32.xlu0 %v2561, 72
        %v3071 = vpop.permute.xlu0 %3070
        %v3072 = vsel %vm2567, %v3069, 0
        %v3074 = vsel %vm2567, %v3071, 0
        %3076 = vmatprep.subr.mxu0 0.0
        %3077 = vmatpush1.xpose.msra.mxu0 %v3074
        %3078 = vmatprep.subr.mxu0 0.0
        %3079 = vmatpush1.xpose.msra.mxu0 0.0
        %3080 = vmatprep.subr.mxu0 0.0
        %3081 = vmatpush1.xpose.msra.mxu0 0.0
        %3082 = vmatprep.subr.mxu0 0.0
        %3083 = vmatpush1.xpose.msra.mxu0 0.0
        %3084 = vmatprep.subr.mxu0 0.0
        %3085 = vmatpush1.xpose.msra.mxu0 0.0
        %3086 = vmatprep.subr.mxu0 0.0
        %3087 = vmatpush1.xpose.msra.mxu0 0.0
        %3088 = vmatprep.subr.mxu0 0.0
        %3089 = vmatpush1.xpose.msra.mxu0 0.0
        %3090 = vmatprep.subr.mxu0 0.0
        %3091 = vmatpush1.xpose.msra.mxu0 0.0
        %3092 = vmatprep.subr.mxu0 0.0
        %3093 = vmatpush1.xpose.msra.mxu0 0.0
        %3094 = vmatprep.subr.mxu0 0.0
        %3095 = vmatpush1.xpose.msra.mxu0 0.0
        %3096 = vmatprep.subr.mxu0 0.0
        %3097 = vmatpush1.xpose.msra.mxu0 0.0
        %3098 = vmatprep.subr.mxu0 0.0
        %3099 = vmatpush1.xpose.msra.mxu0 0.0
        %3100 = vmatprep.subr.mxu0 0.0
        %3101 = vmatpush1.xpose.msra.mxu0 0.0
        %3102 = vmatprep.subr.mxu0 0.0
        %3103 = vmatpush1.xpose.msra.mxu0 0.0
        %3104 = vmatprep.subr.mxu0 0.0
        %3105 = vmatpush1.xpose.msra.mxu0 0.0
        %3106 = vmatprep.subr.mxu0 0.0
        %3107 = vmatpush1.xpose.msra.mxu0 0.0
        %3108 = vmatprep.subr.mxu0 0.0
        %3109 = vmatpush1.xpose.msra.mxu0 0.0
        %3110 = vmatprep.subr.mxu0 0.0
        %3111 = vmatpush1.xpose.msra.mxu0 0.0
        %3112 = vmatprep.subr.mxu0 0.0
        %3113 = vmatpush1.xpose.msra.mxu0 0.0
        %3114 = vmatprep.subr.mxu0 0.0
        %3115 = vmatpush1.xpose.msra.mxu0 0.0
        %3116 = vmatprep.subr.mxu0 0.0
        %3117 = vmatpush1.xpose.msra.mxu0 0.0
        %3118 = vmatprep.subr.mxu0 0.0
        %3119 = vmatpush1.xpose.msra.mxu0 0.0
        %3120 = vmatprep.subr.mxu0 0.0
        %3121 = vmatpush1.xpose.msra.mxu0 0.0
        %3122 = vmatprep.subr.mxu0 0.0
        %3123 = vmatpush1.xpose.msra.mxu0 0.0
        %3124 = vmatprep.subr.mxu0 0.0
        %3125 = vmatpush1.xpose.msra.mxu0 0.0
        %3126 = vmatprep.subr.mxu0 0.0
        %3127 = vmatpush1.xpose.msra.mxu0 0.0
        %3128 = vmatprep.subr.mxu0 0.0
        %3129 = vmatpush1.xpose.msra.mxu0 0.0
        %3130 = vmatprep.subr.mxu0 0.0
        %3131 = vmatpush1.xpose.msra.mxu0 0.0
        %3132 = vmatprep.subr.mxu0 0.0
        %3133 = vmatpush1.xpose.msra.mxu0 0.0
        %3134 = vmatprep.subr.mxu0 0.0
        %3135 = vmatpush1.xpose.msra.mxu0 0.0
        %3136 = vmatprep.subr.mxu0 0.0
        %3137 = vmatpush1.xpose.msra.mxu0 0.0
        %3138 = vmatprep.subr.mxu0 0.0
        %3139 = vmatpush1.xpose.msra.mxu0 0.0
        %3140 = vmatprep.mubr.f32.mxu0 0.0
        %3141 = vmatmul.mubr.f32.gmra.mrb[0].mxu0 %v3072
        %v3142 = vpop.f32.mrb[0].mxu0
        %v3143 = vadd.f32 0.0, %v3142
        %v3144 = vpop.f32.mrb[0].mxu0
        %3145 = vdwg.mxu0
        %v3146 = vmul.f32 %v3143, 0.35355338
        %v3147 = vsel %vm2643, %v3146, -inf
        %3148 = vmax.xlane.f32.xlu0 %v3147
        %v3149 = vpop.xlane.xlu0 %3148
        %v3150 = vsub.f32 %v3146, %v3149
        %v3151 = vmul.f32 %v3150, 1.442695
        %v3152 = vpow.pop %v3151
        %v3153 = vsel %vm2643, %v3152, 0.0
        %3154 = vadd.xlane.f32.xlu0 %v3153
        %v3155 = vpop.xlane.xlu0 %3154
        %v3156 = vrcp.pop %v3155
        %v3157 = vmul.f32 %v3152, %v3156
        %3158 = vrot.lane.b32.xlu0 %v2561, 40
        %v3159 = vpop.permute.xlu0 %3158
        %v3161 = vsel %vm2657, %v3157, 0
        %v3163 = vsel %vm2661, %v3159, 0
        %3165 = vmatprep.subr.mxu0 0.0
        %3166 = vmatpush1.msra.mxu0 %v3163
        %3167 = vmatprep.subr.mxu0 0.0
        %3168 = vmatpush1.msra.mxu0 0.0
        %3169 = vmatprep.subr.mxu0 0.0
        %3170 = vmatpush1.msra.mxu0 0.0
        %3171 = vmatprep.subr.mxu0 0.0
        %3172 = vmatpush1.msra.mxu0 0.0
        %3173 = vmatprep.subr.mxu0 0.0
        %3174 = vmatpush1.msra.mxu0 0.0
        %3175 = vmatprep.subr.mxu0 0.0
        %3176 = vmatpush1.msra.mxu0 0.0
        %3177 = vmatprep.subr.mxu0 0.0
        %3178 = vmatpush1.msra.mxu0 0.0
        %3179 = vmatprep.subr.mxu0 0.0
        %3180 = vmatpush1.msra.mxu0 0.0
        %3181 = vmatprep.subr.mxu0 0.0
        %3182 = vmatpush1.msra.mxu0 0.0
        %3183 = vmatprep.subr.mxu0 0.0
        %3184 = vmatpush1.msra.mxu0 0.0
        %3185 = vmatprep.subr.mxu0 0.0
        %3186 = vmatpush1.msra.mxu0 0.0
        %3187 = vmatprep.subr.mxu0 0.0
        %3188 = vmatpush1.msra.mxu0 0.0
        %3189 = vmatprep.subr.mxu0 0.0
        %3190 = vmatpush1.msra.mxu0 0.0
        %3191 = vmatprep.subr.mxu0 0.0
        %3192 = vmatpush1.msra.mxu0 0.0
        %3193 = vmatprep.subr.mxu0 0.0
        %3194 = vmatpush1.msra.mxu0 0.0
        %3195 = vmatprep.subr.mxu0 0.0
        %3196 = vmatpush1.msra.mxu0 0.0
        %3197 = vmatprep.subr.mxu0 0.0
        %3198 = vmatpush1.msra.mxu0 0.0
        %3199 = vmatprep.subr.mxu0 0.0
        %3200 = vmatpush1.msra.mxu0 0.0
        %3201 = vmatprep.subr.mxu0 0.0
        %3202 = vmatpush1.msra.mxu0 0.0
        %3203 = vmatprep.subr.mxu0 0.0
        %3204 = vmatpush1.msra.mxu0 0.0
        %3205 = vmatprep.subr.mxu0 0.0
        %3206 = vmatpush1.msra.mxu0 0.0
        %3207 = vmatprep.subr.mxu0 0.0
        %3208 = vmatpush1.msra.mxu0 0.0
        %3209 = vmatprep.subr.mxu0 0.0
        %3210 = vmatpush1.msra.mxu0 0.0
        %3211 = vmatprep.subr.mxu0 0.0
        %3212 = vmatpush1.msra.mxu0 0.0
        %3213 = vmatprep.subr.mxu0 0.0
        %3214 = vmatpush1.msra.mxu0 0.0
        %3215 = vmatprep.subr.mxu0 0.0
        %3216 = vmatpush1.msra.mxu0 0.0
        %3217 = vmatprep.subr.mxu0 0.0
        %3218 = vmatpush1.msra.mxu0 0.0
        %3219 = vmatprep.subr.mxu0 0.0
        %3220 = vmatpush1.msra.mxu0 0.0
        %3221 = vmatprep.subr.mxu0 0.0
        %3222 = vmatpush1.msra.mxu0 0.0
        %3223 = vmatprep.subr.mxu0 0.0
        %3224 = vmatpush1.msra.mxu0 0.0
        %3225 = vmatprep.subr.mxu0 0.0
        %3226 = vmatpush1.msra.mxu0 0.0
        %3227 = vmatprep.subr.mxu0 0.0
        %3228 = vmatpush1.msra.mxu0 0.0
        %3229 = vmatprep.mubr.f32.mxu0 0.0
        %3230 = vmatmul.mubr.f32.gmra.mrb[0].mxu0 %v3161
        %v3231 = vpop.f32.mrb[0].mxu0
        %v3232 = vadd.f32 0.0, %v3231
        %v3233 = vpop.f32.mrb[0].mxu0
        %3234 = vdwg.mxu0
        %3236 = vrot.lane.b32.xlu0 %v2898, 8
        %v3237 = vpop.permute.xlu0 %3236
        %3240 = vrot.lane.b32.xlu0 %v3065, 16
        %v3241 = vpop.permute.xlu0 %3240
        %3244 = vrot.lane.b32.xlu0 %v3232, 24
        %v3245 = vpop.permute.xlu0 %3244
        %v3247 = vsel %vm2567, %v2731, %v3237
        %vm3248 = vcmask 130048
        %v3249 = vsel %vm3248, %v3247, %v3241
        %vm3250 = vcmask 195584
        %v3251 = vsel %vm3250, %v3249, %v3245
        %v3253 = vlaneseq
        %v3254 = vshrl.u32 %v3253, 7
        %v3255 = vsub.s32 0, %v3254
        %v3256 = vrot.slane %v2313, %v3255
        %v3259 = vsel %vm2327, %v3251, 0
        %3261 = vmatprep.subr.mxu0 0.0
        %3262 = vmatpush1.msra.mxu0 %v2309
        %3263 = vmatprep.subr.mxu0 0.0
        %3264 = vmatpush1.msra.mxu0 %v2310
        %3265 = vmatprep.subr.mxu0 0.0
        %3266 = vmatpush1.msra.mxu0 %v2311
        %3267 = vmatprep.subr.mxu0 0.0
        %3268 = vmatpush1.msra.mxu0 %v2312
        %3269 = vmatprep.subr.mxu0 0.0
        %3270 = vmatpush1.msra.mxu0 0.0
        %3271 = vmatprep.subr.mxu0 0.0
        %3272 = vmatpush1.msra.mxu0 0.0
        %3273 = vmatprep.subr.mxu0 0.0
        %3274 = vmatpush1.msra.mxu0 0.0
        %3275 = vmatprep.subr.mxu0 0.0
        %3276 = vmatpush1.msra.mxu0 0.0
        %3277 = vmatprep.subr.mxu0 0.0
        %3278 = vmatpush1.msra.mxu0 0.0
        %3279 = vmatprep.subr.mxu0 0.0
        %3280 = vmatpush1.msra.mxu0 0.0
        %3281 = vmatprep.subr.mxu0 0.0
        %3282 = vmatpush1.msra.mxu0 0.0
        %3283 = vmatprep.subr.mxu0 0.0
        %3284 = vmatpush1.msra.mxu0 0.0
        %3285 = vmatprep.subr.mxu0 0.0
        %3286 = vmatpush1.msra.mxu0 0.0
        %3287 = vmatprep.subr.mxu0 0.0
        %3288 = vmatpush1.msra.mxu0 0.0
        %3289 = vmatprep.subr.mxu0 0.0
        %3290 = vmatpush1.msra.mxu0 0.0
        %3291 = vmatprep.subr.mxu0 0.0
        %3292 = vmatpush1.msra.mxu0 0.0
        %3293 = vmatprep.subr.mxu0 0.0
        %3294 = vmatpush1.msra.mxu0 0.0
        %3295 = vmatprep.subr.mxu0 0.0
        %3296 = vmatpush1.msra.mxu0 0.0
        %3297 = vmatprep.subr.mxu0 0.0
        %3298 = vmatpush1.msra.mxu0 0.0
        %3299 = vmatprep.subr.mxu0 0.0
        %3300 = vmatpush1.msra.mxu0 0.0
        %3301 = vmatprep.subr.mxu0 0.0
        %3302 = vmatpush1.msra.mxu0 0.0
        %3303 = vmatprep.subr.mxu0 0.0
        %3304 = vmatpush1.msra.mxu0 0.0
        %3305 = vmatprep.subr.mxu0 0.0
        %3306 = vmatpush1.msra.mxu0 0.0
        %3307 = vmatprep.subr.mxu0 0.0
        %3308 = vmatpush1.msra.mxu0 0.0
        %3309 = vmatprep.subr.mxu0 0.0
        %3310 = vmatpush1.msra.mxu0 0.0
        %3311 = vmatprep.subr.mxu0 0.0
        %3312 = vmatpush1.msra.mxu0 0.0
        %3313 = vmatprep.subr.mxu0 0.0
        %3314 = vmatpush1.msra.mxu0 0.0
        %3315 = vmatprep.subr.mxu0 0.0
        %3316 = vmatpush1.msra.mxu0 0.0
        %3317 = vmatprep.subr.mxu0 0.0
        %3318 = vmatpush1.msra.mxu0 0.0
        %3319 = vmatprep.subr.mxu0 0.0
        %3320 = vmatpush1.msra.mxu0 0.0
        %3321 = vmatprep.subr.mxu0 0.0
        %3322 = vmatpush1.msra.mxu0 0.0
        %3323 = vmatprep.subr.mxu0 0.0
        %3324 = vmatpush1.msra.mxu0 0.0
        %3325 = vmatprep.mubr.f32.mxu0 0.0
        %3326 = vmatmul.mubr.f32.gmra.mrb[0].mxu0 %v3259
        %v3327 = vpop.f32.mrb[0].mxu0
        %v3328 = vadd.f32 %v3256, %v3327
        %v3329 = vpop.f32.mrb[0].mxu0
        %3330 = vdwg.mxu0
        %v3331 = vadd.f32 %v2308, %v3328
        %vm3332 = vcmask 257024
        %v3333 = vsel %vm3332, %v3331, 0.0
        %3334 = vadd.xlane.f32.xlu0 %v3333
        %v3335 = vpop.xlane.xlu0 %3334
        %v3336 = vmul.f32 %v3335, %v2340
        %v3337 = vsub.f32 %v3331, %v3336
        %v3338 = vmul.f32 %v3337, %v3337
        %v3339 = vsel %vm3332, %v3338, 0.0
        %3340 = vadd.xlane.f32.xlu0 %v3339
        %v3341 = vpop.xlane.xlu0 %3340
        %v3342 = vmul.f32 %v3341, %v2340
        %v3343 = vadd.f32 %v3342, 1e-05
        %v3344 = vrsqrt.pop %v3343
        %v3345 = vmul.f32 %v3337, %v3344
        %v3347 = vlaneseq
        %v3348 = vshrl.u32 %v3347, 7
        %v3349 = vsub.s32 0, %v3348
        %v3350 = vrot.slane %v2302, %v3349
        %v3352 = vmul.f32 %v3345, %v3350
        %v3354 = vlaneseq
        %v3355 = vshrl.u32 %v3354, 7
        %v3356 = vsub.s32 0, %v3355
        %v3357 = vrot.slane %v2303, %v3356
        %v3359 = vadd.f32 %v3352, %v3357
        %v3361 = vlaneseq
        %v3362 = vshrl.u32 %v3361, 7
        %v3363 = vsub.s32 0, %v3362
        %v3364 = vrot.slane %v2279, %v3363
        %v3367 = vsel %vm2327, %v3359, 0
        %3369 = vmatprep.subr.mxu0 0.0
        %3370 = vmatpush1.msra.mxu0 %v2275
        %3371 = vmatprep.subr.mxu0 0.0
        %3372 = vmatpush1.msra.mxu0 %v2276
        %3373 = vmatprep.subr.mxu0 0.0
        %3374 = vmatpush1.msra.mxu0 %v2277
        %3375 = vmatprep.subr.mxu0 0.0
        %3376 = vmatpush1.msra.mxu0 %v2278
        %3377 = vmatprep.subr.mxu0 0.0
        %3378 = vmatpush1.msra.mxu0 0.0
        %3379 = vmatprep.subr.mxu0 0.0
        %3380 = vmatpush1.msra.mxu0 0.0
        %3381 = vmatprep.subr.mxu0 0.0
        %3382 = vmatpush1.msra.mxu0 0.0
        %3383 = vmatprep.subr.mxu0 0.0
        %3384 = vmatpush1.msra.mxu0 0.0
        %3385 = vmatprep.subr.mxu0 0.0
        %3386 = vmatpush1.msra.mxu0 0.0
        %3387 = vmatprep.subr.mxu0 0.0
        %3388 = vmatpush1.msra.mxu0 0.0
        %3389 = vmatprep.subr.mxu0 0.0
        %3390 = vmatpush1.msra.mxu0 0.0
        %3391 = vmatprep.subr.mxu0 0.0
        %3392 = vmatpush1.msra.mxu0 0.0
        %3393 = vmatprep.subr.mxu0 0.0
        %3394 = vmatpush1.msra.mxu0 0.0
        %3395 = vmatprep.subr.mxu0 0.0
        %3396 = vmatpush1.msra.mxu0 0.0
        %3397 = vmatprep.subr.mxu0 0.0
        %3398 = vmatpush1.msra.mxu0 0.0
        %3399 = vmatprep.subr.mxu0 0.0
        %3400 = vmatpush1.msra.mxu0 0.0
        %3401 = vmatprep.subr.mxu0 0.0
        %3402 = vmatpush1.msra.mxu0 0.0
        %3403 = vmatprep.subr.mxu0 0.0
        %3404 = vmatpush1.msra.mxu0 0.0
        %3405 = vmatprep.subr.mxu0 0.0
        %3406 = vmatpush1.msra.mxu0 0.0
        %3407 = vmatprep.subr.mxu0 0.0
        %3408 = vmatpush1.msra.mxu0 0.0
        %3409 = vmatprep.subr.mxu0 0.0
        %3410 = vmatpush1.msra.mxu0 0.0
        %3411 = vmatprep.subr.mxu0 0.0
        %3412 = vmatpush1.msra.mxu0 0.0
        %3413 = vmatprep.subr.mxu0 0.0
        %3414 = vmatpush1.msra.mxu0 0.0
        %3415 = vmatprep.subr.mxu0 0.0
        %3416 = vmatpush1.msra.mxu0 0.0
        %3417 = vmatprep.subr.mxu0 0.0
        %3418 = vmatpush1.msra.mxu0 0.0
        %3419 = vmatprep.subr.mxu0 0.0
        %3420 = vmatpush1.msra.mxu0 0.0
        %3421 = vmatprep.subr.mxu0 0.0
        %3422 = vmatpush1.msra.mxu0 0.0
        %3423 = vmatprep.subr.mxu0 0.0
        %3424 = vmatpush1.msra.mxu0 0.0
        %3425 = vmatprep.subr.mxu0 0.0
        %3426 = vmatpush1.msra.mxu0 0.0
        %3427 = vmatprep.subr.mxu0 0.0
        %3428 = vmatpush1.msra.mxu0 0.0
        %3429 = vmatprep.subr.mxu0 0.0
        %3430 = vmatpush1.msra.mxu0 0.0
        %3431 = vmatprep.subr.mxu0 0.0
        %3432 = vmatpush1.msra.mxu0 0.0
        %3433 = vmatprep.mubr.f32.mxu0 0.0
        %3434 = vmatmul.mubr.f32.gmra.mrb[0].mxu0 %v3367
        %v3435 = vpop.f32.mrb[0].mxu0
        %v3436 = vadd.f32 %v3364, %v3435
        %v3437 = vpop.f32.mrb[0].mxu0
        %3438 = vdwg.mxu0
        %v3440 = vlaneseq
        %v3441 = vshrl.u32 %v3440, 7
        %v3442 = vsub.s32 0, %v3441
        %v3443 = vrot.slane %v2269, %v3442
        %v3446 = vsel %vm2327, %v2401, 0
        %v3449 = vsel %vm2327, %v2402, 0
        %v3452 = vsel %vm2327, %v2403, 0
        %v3455 = vsel %vm2327, %v2404, 0
        %3457 = vmatprep.subr.mxu0 0.0
        %3458 = vmatpush1.msra.mxu0 %v2265
        %3459 = vmatprep.subr.mxu0 0.0
        %3460 = vmatpush1.msra.mxu0 %v2266
        %3461 = vmatprep.subr.mxu0 0.0
        %3462 = vmatpush1.msra.mxu0 %v2267
        %3463 = vmatprep.subr.mxu0 0.0
        %3464 = vmatpush1.msra.mxu0 %v2268
        %3465 = vmatprep.subr.mxu0 0.0
        %3466 = vmatpush1.msra.mxu0 0.0
        %3467 = vmatprep.subr.mxu0 0.0
        %3468 = vmatpush1.msra.mxu0 0.0
        %3469 = vmatprep.subr.mxu0 0.0
        %3470 = vmatpush1.msra.mxu0 0.0
        %3471 = vmatprep.subr.mxu0 0.0
        %3472 = vmatpush1.msra.mxu0 0.0
        %3473 = vmatprep.subr.mxu0 0.0
        %3474 = vmatpush1.msra.mxu0 0.0
        %3475 = vmatprep.subr.mxu0 0.0
        %3476 = vmatpush1.msra.mxu0 0.0
        %3477 = vmatprep.subr.mxu0 0.0
        %3478 = vmatpush1.msra.mxu0 0.0
        %3479 = vmatprep.subr.mxu0 0.0
        %3480 = vmatpush1.msra.mxu0 0.0
        %3481 = vmatprep.subr.mxu0 0.0
        %3482 = vmatpush1.msra.mxu0 0.0
        %3483 = vmatprep.subr.mxu0 0.0
        %3484 = vmatpush1.msra.mxu0 0.0
        %3485 = vmatprep.subr.mxu0 0.0
        %3486 = vmatpush1.msra.mxu0 0.0
        %3487 = vmatprep.subr.mxu0 0.0
        %3488 = vmatpush1.msra.mxu0 0.0
        %3489 = vmatprep.subr.mxu0 0.0
        %3490 = vmatpush1.msra.mxu0 0.0
        %3491 = vmatprep.subr.mxu0 0.0
        %3492 = vmatpush1.msra.mxu0 0.0
        %3493 = vmatprep.subr.mxu0 0.0
        %3494 = vmatpush1.msra.mxu0 0.0
        %3495 = vmatprep.subr.mxu0 0.0
        %3496 = vmatpush1.msra.mxu0 0.0
        %3497 = vmatprep.subr.mxu0 0.0
        %3498 = vmatpush1.msra.mxu0 0.0
        %3499 = vmatprep.subr.mxu0 0.0
        %3500 = vmatpush1.msra.mxu0 0.0
        %3501 = vmatprep.subr.mxu0 0.0
        %3502 = vmatpush1.msra.mxu0 0.0
        %3503 = vmatprep.subr.mxu0 0.0
        %3504 = vmatpush1.msra.mxu0 0.0
        %3505 = vmatprep.subr.mxu0 0.0
        %3506 = vmatpush1.msra.mxu0 0.0
        %3507 = vmatprep.subr.mxu0 0.0
        %3508 = vmatpush1.msra.mxu0 0.0
        %3509 = vmatprep.subr.mxu0 0.0
        %3510 = vmatpush1.msra.mxu0 0.0
        %3511 = vmatprep.subr.mxu0 0.0
        %3512 = vmatpush1.msra.mxu0 0.0
        %3513 = vmatprep.subr.mxu0 0.0
        %3514 = vmatpush1.msra.mxu0 0.0
        %3515 = vmatprep.subr.mxu0 0.0
        %3516 = vmatpush1.msra.mxu0 0.0
        %3517 = vmatprep.subr.mxu0 0.0
        %3518 = vmatpush1.msra.mxu0 0.0
        %3519 = vmatprep.subr.mxu0 0.0
        %3520 = vmatpush1.msra.mxu0 0.0
        %3521 = vmatprep.mubr.f32.mxu0 0.0
        %3522 = vmatmul.mubr.f32.gmra.mrb[0].mxu0 %v3446
        %v3523 = vpop.f32.mrb[0].mxu0
        %v3524 = vadd.f32 %v3443, %v3523
        %v3525 = vpop.f32.mrb[0].mxu0
        %3526 = vmatprep.mubr.f32.mxu0 0.0
        %3527 = vmatmul.mubr.f32.gmra.mrb[0].mxu0 %v3449
        %v3528 = vpop.f32.mrb[0].mxu0
        %v3529 = vadd.f32 %v3443, %v3528
        %v3530 = vpop.f32.mrb[0].mxu0
        %3531 = vmatprep.mubr.f32.mxu0 0.0
        %3532 = vmatmul.mubr.f32.gmra.mrb[0].mxu0 %v3452
        %v3533 = vpop.f32.mrb[0].mxu0
        %v3534 = vadd.f32 %v3443, %v3533
        %v3535 = vpop.f32.mrb[0].mxu0
        %3536 = vmatprep.mubr.f32.mxu0 0.0
        %3537 = vmatmul.mubr.f32.gmra.mrb[0].mxu0 %v3455
        %v3538 = vpop.f32.mrb[0].mxu0
        %v3539 = vadd.f32 %v3443, %v3538
        %v3540 = vpop.f32.mrb[0].mxu0
        %3541 = vdwg.mxu0
        %v3543 = vsel %vm2567, %v3436, 0
        %v3546 = vsel %vm2567, %v3524, 0
        %v3549 = vsel %vm2567, %v3529, 0
        %v3552 = vsel %vm2567, %v3534, 0
        %v3555 = vsel %vm2567, %v3539, 0
        %3557 = vmatprep.subr.mxu0 0.0
        %3558 = vmatpush1.xpose.msra.mxu0 %v3546
        %3559 = vmatprep.subr.mxu0 0.0
        %3560 = vmatpush1.xpose.msra.mxu0 %v3549
        %3561 = vmatprep.subr.mxu0 0.0
        %3562 = vmatpush1.xpose.msra.mxu0 %v3552
        %3563 = vmatprep.subr.mxu0 0.0
        %3564 = vmatpush1.xpose.msra.mxu0 %v3555
        %3565 = vmatprep.subr.mxu0 0.0
        %3566 = vmatpush1.xpose.msra.mxu0 0.0
        %3567 = vmatprep.subr.mxu0 0.0
        %3568 = vmatpush1.xpose.msra.mxu0 0.0
        %3569 = vmatprep.subr.mxu0 0.0
        %3570 = vmatpush1.xpose.msra.mxu0 0.0
        %3571 = vmatprep.subr.mxu0 0.0
        %3572 = vmatpush1.xpose.msra.mxu0 0.0
        %3573 = vmatprep.subr.mxu0 0.0
        %3574 = vmatpush1.xpose.msra.mxu0 0.0
        %3575 = vmatprep.subr.mxu0 0.0
        %3576 = vmatpush1.xpose.msra.mxu0 0.0
        %3577 = vmatprep.subr.mxu0 0.0
        %3578 = vmatpush1.xpose.msra.mxu0 0.0
        %3579 = vmatprep.subr.mxu0 0.0
        %3580 = vmatpush1.xpose.msra.mxu0 0.0
        %3581 = vmatprep.subr.mxu0 0.0
        %3582 = vmatpush1.xpose.msra.mxu0 0.0
        %3583 = vmatprep.subr.mxu0 0.0
        %3584 = vmatpush1.xpose.msra.mxu0 0.0
        %3585 = vmatprep.subr.mxu0 0.0
        %3586 = vmatpush1.xpose.msra.mxu0 0.0
        %3587 = vmatprep.subr.mxu0 0.0
        %3588 = vmatpush1.xpose.msra.mxu0 0.0
        %3589 = vmatprep.subr.mxu0 0.0
        %3590 = vmatpush1.xpose.msra.mxu0 0.0
        %3591 = vmatprep.subr.mxu0 0.0
        %3592 = vmatpush1.xpose.msra.mxu0 0.0
        %3593 = vmatprep.subr.mxu0 0.0
        %3594 = vmatpush1.xpose.msra.mxu0 0.0
        %3595 = vmatprep.subr.mxu0 0.0
        %3596 = vmatpush1.xpose.msra.mxu0 0.0
        %3597 = vmatprep.subr.mxu0 0.0
        %3598 = vmatpush1.xpose.msra.mxu0 0.0
        %3599 = vmatprep.subr.mxu0 0.0
        %3600 = vmatpush1.xpose.msra.mxu0 0.0
        %3601 = vmatprep.subr.mxu0 0.0
        %3602 = vmatpush1.xpose.msra.mxu0 0.0
        %3603 = vmatprep.subr.mxu0 0.0
        %3604 = vmatpush1.xpose.msra.mxu0 0.0
        %3605 = vmatprep.subr.mxu0 0.0
        %3606 = vmatpush1.xpose.msra.mxu0 0.0
        %3607 = vmatprep.subr.mxu0 0.0
        %3608 = vmatpush1.xpose.msra.mxu0 0.0
        %3609 = vmatprep.subr.mxu0 0.0
        %3610 = vmatpush1.xpose.msra.mxu0 0.0
        %3611 = vmatprep.subr.mxu0 0.0
        %3612 = vmatpush1.xpose.msra.mxu0 0.0
        %3613 = vmatprep.subr.mxu0 0.0
        %3614 = vmatpush1.xpose.msra.mxu0 0.0
        %3615 = vmatprep.subr.mxu0 0.0
        %3616 = vmatpush1.xpose.msra.mxu0 0.0
        %3617 = vmatprep.subr.mxu0 0.0
        %3618 = vmatpush1.xpose.msra.mxu0 0.0
        %3619 = vmatprep.subr.mxu0 0.0
        %3620 = vmatpush1.xpose.msra.mxu0 0.0
        %3621 = vmatprep.mubr.f32.mxu0 0.0
        %3622 = vmatmul.mubr.f32.gmra.mrb[0].mxu0 %v3543
        %v3623 = vpop.f32.mrb[0].mxu0
        %v3624 = vadd.f32 0.0, %v3623
        %v3625 = vpop.f32.mrb[0].mxu0
        %3626 = vdwg.mxu0
        %v3627 = vmul.f32 %v3624, 0.35355338
        %v3628 = vsel %vm3332, %v3627, -inf
        %3629 = vmax.xlane.f32.xlu0 %v3628
        %v3630 = vpop.xlane.xlu0 %3629
        %v3631 = vsub.f32 %v3627, %v3630
        %v3632 = vmul.f32 %v3631, 1.442695
        %v3633 = vpow.pop %v3632
        %v3634 = vsel %vm3332, %v3633, 0.0
        %3635 = vadd.xlane.f32.xlu0 %v3634
        %v3636 = vpop.xlane.xlu0 %3635
        %v3637 = vrcp.pop %v3636
        %v3638 = vmul.f32 %v3633, %v3637
        %3639 = vrot.lane.b32.xlu0 %v3524, 96
        %v3640 = vpop.permute.xlu0 %3639
        %3641 = vrot.lane.b32.xlu0 %v3529, 96
        %v3642 = vpop.permute.xlu0 %3641
        %3643 = vrot.lane.b32.xlu0 %v3534, 96
        %v3644 = vpop.permute.xlu0 %3643
        %3645 = vrot.lane.b32.xlu0 %v3539, 96
        %v3646 = vpop.permute.xlu0 %3645
        %v3652 = vsel %vm2327, %v3638, 0
        %3654 = vmatprep.subr.mxu0 0.0
        %3655 = vmatpush1.msra.mxu0 %v3640
        %3656 = vmatprep.subr.mxu0 0.0
        %3657 = vmatpush1.msra.mxu0 %v3642
        %3658 = vmatprep.subr.mxu0 0.0
        %3659 = vmatpush1.msra.mxu0 %v3644
        %3660 = vmatprep.subr.mxu0 0.0
        %3661 = vmatpush1.msra.mxu0 %v3646
        %3662 = vmatprep.subr.mxu0 0.0
        %3663 = vmatpush1.msra.mxu0 0.0
        %3664 = vmatprep.subr.mxu0 0.0
        %3665 = vmatpush1.msra.mxu0 0.0
        %3666 = vmatprep.subr.mxu0 0.0
        %3667 = vmatpush1.msra.mxu0 0.0
        %3668 = vmatprep.subr.mxu0 0.0
        %3669 = vmatpush1.msra.mxu0 0.0
        %3670 = vmatprep.subr.mxu0 0.0
        %3671 = vmatpush1.msra.mxu0 0.0
        %3672 = vmatprep.subr.mxu0 0.0
        %3673 = vmatpush1.msra.mxu0 0.0
        %3674 = vmatprep.subr.mxu0 0.0
        %3675 = vmatpush1.msra.mxu0 0.0
        %3676 = vmatprep.subr.mxu0 0.0
        %3677 = vmatpush1.msra.mxu0 0.0
        %3678 = vmatprep.subr.mxu0 0.0
        %3679 = vmatpush1.msra.mxu0 0.0
        %3680 = vmatprep.subr.mxu0 0.0
        %3681 = vmatpush1.msra.mxu0 0.0
        %3682 = vmatprep.subr.mxu0 0.0
        %3683 = vmatpush1.msra.mxu0 0.0
        %3684 = vmatprep.subr.mxu0 0.0
        %3685 = vmatpush1.msra.mxu0 0.0
        %3686 = vmatprep.subr.mxu0 0.0
        %3687 = vmatpush1.msra.mxu0 0.0
        %3688 = vmatprep.subr.mxu0 0.0
        %3689 = vmatpush1.msra.mxu0 0.0
        %3690 = vmatprep.subr.mxu0 0.0
        %3691 = vmatpush1.msra.mxu0 0.0
        %3692 = vmatprep.subr.mxu0 0.0
        %3693 = vmatpush1.msra.mxu0 0.0
        %3694 = vmatprep.subr.mxu0 0.0
        %3695 = vmatpush1.msra.mxu0 0.0
        %3696 = vmatprep.subr.mxu0 0.0
        %3697 = vmatpush1.msra.mxu0 0.0
        %3698 = vmatprep.subr.mxu0 0.0
        %3699 = vmatpush1.msra.mxu0 0.0
        %3700 = vmatprep.subr.mxu0 0.0
        %3701 = vmatpush1.msra.mxu0 0.0
        %3702 = vmatprep.subr.mxu0 0.0
        %3703 = vmatpush1.msra.mxu0 0.0
        %3704 = vmatprep.subr.mxu0 0.0
        %3705 = vmatpush1.msra.mxu0 0.0
        %3706 = vmatprep.subr.mxu0 0.0
        %3707 = vmatpush1.msra.mxu0 0.0
        %3708 = vmatprep.subr.mxu0 0.0
        %3709 = vmatpush1.msra.mxu0 0.0
        %3710 = vmatprep.subr.mxu0 0.0
        %3711 = vmatpush1.msra.mxu0 0.0
        %3712 = vmatprep.subr.mxu0 0.0
        %3713 = vmatpush1.msra.mxu0 0.0
        %3714 = vmatprep.subr.mxu0 0.0
        %3715 = vmatpush1.msra.mxu0 0.0
        %3716 = vmatprep.subr.mxu0 0.0
        %3717 = vmatpush1.msra.mxu0 0.0
        %3718 = vmatprep.mubr.f32.mxu0 0.0
        %3719 = vmatmul.mubr.f32.gmra.mrb[0].mxu0 %v3652
        %v3720 = vpop.f32.mrb[0].mxu0
        %v3721 = vadd.f32 0.0, %v3720
        %v3722 = vpop.f32.mrb[0].mxu0
        %3723 = vdwg.mxu0
        %3724 = vrot.lane.b32.xlu0 %v3436, 120
        %v3725 = vpop.permute.xlu0 %3724
        %3726 = vrot.lane.b32.xlu0 %v3524, 120
        %v3727 = vpop.permute.xlu0 %3726
        %3728 = vrot.lane.b32.xlu0 %v3529, 120
        %v3729 = vpop.permute.xlu0 %3728
        %3730 = vrot.lane.b32.xlu0 %v3534, 120
        %v3731 = vpop.permute.xlu0 %3730
        %3732 = vrot.lane.b32.xlu0 %v3539, 120
        %v3733 = vpop.permute.xlu0 %3732
        %v3734 = vsel %vm2567, %v3725, 0
        %v3736 = vsel %vm2567, %v3727, 0
        %v3738 = vsel %vm2567, %v3729, 0
        %v3740 = vsel %vm2567, %v3731, 0
        %v3742 = vsel %vm2567, %v3733, 0
        %3744 = vmatprep.subr.mxu0 0.0
        %3745 = vmatpush1.xpose.msra.mxu0 %v3736
        %3746 = vmatprep.subr.mxu0 0.0
        %3747 = vmatpush1.xpose.msra.mxu0 %v3738
        %3748 = vmatprep.subr.mxu0 0.0
        %3749 = vmatpush1.xpose.msra.mxu0 %v3740
        %3750 = vmatprep.subr.mxu0 0.0
        %3751 = vmatpush1.xpose.msra.mxu0 %v3742
        %3752 = vmatprep.subr.mxu0 0.0
        %3753 = vmatpush1.xpose.msra.mxu0 0.0
        %3754 = vmatprep.subr.mxu0 0.0
        %3755 = vmatpush1.xpose.msra.mxu0 0.0
        %3756 = vmatprep.subr.mxu0 0.0
        %3757 = vmatpush1.xpose.msra.mxu0 0.0
        %3758 = vmatprep.subr.mxu0 0.0
        %3759 = vmatpush1.xpose.msra.mxu0 0.0
        %3760 = vmatprep.subr.mxu0 0.0
        %3761 = vmatpush1.xpose.msra.mxu0 0.0
        %3762 = vmatprep.subr.mxu0 0.0
        %3763 = vmatpush1.xpose.msra.mxu0 0.0
        %3764 = vmatprep.subr.mxu0 0.0
        %3765 = vmatpush1.xpose.msra.mxu0 0.0
        %3766 = vmatprep.subr.mxu0 0.0
        %3767 = vmatpush1.xpose.msra.mxu0 0.0
        %3768 = vmatprep.subr.mxu0 0.0
        %3769 = vmatpush1.xpose.msra.mxu0 0.0
        %3770 = vmatprep.subr.mxu0 0.0
        %3771 = vmatpush1.xpose.msra.mxu0 0.0
        %3772 = vmatprep.subr.mxu0 0.0
        %3773 = vmatpush1.xpose.msra.mxu0 0.0
        %3774 = vmatprep.subr.mxu0 0.0
        %3775 = vmatpush1.xpose.msra.mxu0 0.0
        %3776 = vmatprep.subr.mxu0 0.0
        %3777 = vmatpush1.xpose.msra.mxu0 0.0
        %3778 = vmatprep.subr.mxu0 0.0
        %3779 = vmatpush1.xpose.msra.mxu0 0.0
        %3780 = vmatprep.subr.mxu0 0.0
        %3781 = vmatpush1.xpose.msra.mxu0 0.0
        %3782 = vmatprep.subr.mxu0 0.0
        %3783 = vmatpush1.xpose.msra.mxu0 0.0
        %3784 = vmatprep.subr.mxu0 0.0
        %3785 = vmatpush1.xpose.msra.mxu0 0.0
        %3786 = vmatprep.subr.mxu0 0.0
        %3787 = vmatpush1.xpose.msra.mxu0 0.0
        %3788 = vmatprep.subr.mxu0 0.0
        %3789 = vmatpush1.xpose.msra.mxu0 0.0
        %3790 = vmatprep.subr.mxu0 0.0
        %3791 = vmatpush1.xpose.msra.mxu0 0.0
        %3792 = vmatprep.subr.mxu0 0.0
        %3793 = vmatpush1.xpose.msra.mxu0 0.0
        %3794 = vmatprep.subr.mxu0 0.0
        %3795 = vmatpush1.xpose.msra.mxu0 0.0
        %3796 = vmatprep.subr.mxu0 0.0
        %3797 = vmatpush1.xpose.msra.mxu0 0.0
        %3798 = vmatprep.subr.mxu0 0.0
        %3799 = vmatpush1.xpose.msra.mxu0 0.0
        %3800 = vmatprep.subr.mxu0 0.0
        %3801 = vmatpush1.xpose.msra.mxu0 0.0
        %3802 = vmatprep.subr.mxu0 0.0
        %3803 = vmatpush1.xpose.msra.mxu0 0.0
        %3804 = vmatprep.subr.mxu0 0.0
        %3805 = vmatpush1.xpose.msra.mxu0 0.0
        %3806 = vmatprep.subr.mxu0 0.0
        %3807 = vmatpush1.xpose.msra.mxu0 0.0
        %3808 = vmatprep.mubr.f32.mxu0 0.0
        %3809 = vmatmul.mubr.f32.gmra.mrb[0].mxu0 %v3734
        %v3810 = vpop.f32.mrb[0].mxu0
        %v3811 = vadd.f32 0.0, %v3810
        %v3812 = vpop.f32.mrb[0].mxu0
        %3813 = vdwg.mxu0
        %v3814 = vmul.f32 %v3811, 0.35355338
        %v3815 = vsel %vm3332, %v3814, -inf
        %3816 = vmax.xlane.f32.xlu0 %v3815
        %v3817 = vpop.xlane.xlu0 %3816
        %v3818 = vsub.f32 %v3814, %v3817
        %v3819 = vmul.f32 %v3818, 1.442695
        %v3820 = vpow.pop %v3819
        %v3821 = vsel %vm3332, %v3820, 0.0
        %3822 = vadd.xlane.f32.xlu0 %v3821
        %v3823 = vpop.xlane.xlu0 %3822
        %v3824 = vrcp.pop %v3823
        %v3825 = vmul.f32 %v3820, %v3824
        %3826 = vrot.lane.b32.xlu0 %v3524, 88
        %v3827 = vpop.permute.xlu0 %3826
        %3828 = vrot.lane.b32.xlu0 %v3529, 88
        %v3829 = vpop.permute.xlu0 %3828
        %3830 = vrot.lane.b32.xlu0 %v3534, 88
        %v3831 = vpop.permute.xlu0 %3830
        %3832 = vrot.lane.b32.xlu0 %v3539, 88
        %v3833 = vpop.permute.xlu0 %3832
        %v3839 = vsel %vm2327, %v3825, 0
        %3841 = vmatprep.subr.mxu0 0.0
        %3842 = vmatpush1.msra.mxu0 %v3827
        %3843 = vmatprep.subr.mxu0 0.0
        %3844 = vmatpush1.msra.mxu0 %v3829
        %3845 = vmatprep.subr.mxu0 0.0
        %3846 = vmatpush1.msra.mxu0 %v3831
        %3847 = vmatprep.subr.mxu0 0.0
        %3848 = vmatpush1.msra.mxu0 %v3833
        %3849 = vmatprep.subr.mxu0 0.0
        %3850 = vmatpush1.msra.mxu0 0.0
        %3851 = vmatprep.subr.mxu0 0.0
        %3852 = vmatpush1.msra.mxu0 0.0
        %3853 = vmatprep.subr.mxu0 0.0
        %3854 = vmatpush1.msra.mxu0 0.0
        %3855 = vmatprep.subr.mxu0 0.0
        %3856 = vmatpush1.msra.mxu0 0.0
        %3857 = vmatprep.subr.mxu0 0.0
        %3858 = vmatpush1.msra.mxu0 0.0
        %3859 = vmatprep.subr.mxu0 0.0
        %3860 = vmatpush1.msra.mxu0 0.0
        %3861 = vmatprep.subr.mxu0 0.0
        %3862 = vmatpush1.msra.mxu0 0.0
        %3863 = vmatprep.subr.mxu0 0.0
        %3864 = vmatpush1.msra.mxu0 0.0
        %3865 = vmatprep.subr.mxu0 0.0
        %3866 = vmatpush1.msra.mxu0 0.0
        %3867 = vmatprep.subr.mxu0 0.0
        %3868 = vmatpush1.msra.mxu0 0.0
        %3869 = vmatprep.subr.mxu0 0.0
        %3870 = vmatpush1.msra.mxu0 0.0
        %3871 = vmatprep.subr.mxu0 0.0
        %3872 = vmatpush1.msra.mxu0 0.0
        %3873 = vmatprep.subr.mxu0 0.0
        %3874 = vmatpush1.msra.mxu0 0.0
        %3875 = vmatprep.subr.mxu0 0.0
        %3876 = vmatpush1.msra.mxu0 0.0
        %3877 = vmatprep.subr.mxu0 0.0
        %3878 = vmatpush1.msra.mxu0 0.0
        %3879 = vmatprep.subr.mxu0 0.0
        %3880 = vmatpush1.msra.mxu0 0.0
        %3881 = vmatprep.subr.mxu0 0.0
        %3882 = vmatpush1.msra.mxu0 0.0
        %3883 = vmatprep.subr.mxu0 0.0
        %3884 = vmatpush1.msra.mxu0 0.0
        %3885 = vmatprep.subr.mxu0 0.0
        %3886 = vmatpush1.msra.mxu0 0.0
        %3887 = vmatprep.subr.mxu0 0.0
        %3888 = vmatpush1.msra.mxu0 0.0
        %3889 = vmatprep.subr.mxu0 0.0
        %3890 = vmatpush1.msra.mxu0 0.0
        %3891 = vmatprep.subr.mxu0 0.0
        %3892 = vmatpush1.msra.mxu0 0.0
        %3893 = vmatprep.subr.mxu0 0.0
        %3894 = vmatpush1.msra.mxu0 0.0
        %3895 = vmatprep.subr.mxu0 0.0
        %3896 = vmatpush1.msra.mxu0 0.0
        %3897 = vmatprep.subr.mxu0 0.0
        %3898 = vmatpush1.msra.mxu0 0.0
        %3899 = vmatprep.subr.mxu0 0.0
        %3900 = vmatpush1.msra.mxu0 0.0
        %3901 = vmatprep.subr.mxu0 0.0
        %3902 = vmatpush1.msra.mxu0 0.0
        %3903 = vmatprep.subr.mxu0 0.0
        %3904 = vmatpush1.msra.mxu0 0.0
        %3905 = vmatprep.mubr.f32.mxu0 0.0
        %3906 = vmatmul.mubr.f32.gmra.mrb[0].mxu0 %v3839
        %v3907 = vpop.f32.mrb[0].mxu0
        %v3908 = vadd.f32 0.0, %v3907
        %v3909 = vpop.f32.mrb[0].mxu0
        %3910 = vdwg.mxu0
        %3911 = vrot.lane.b32.xlu0 %v3436, 112
        %v3912 = vpop.permute.xlu0 %3911
        %3913 = vrot.lane.b32.xlu0 %v3524, 112
        %v3914 = vpop.permute.xlu0 %3913
        %3915 = vrot.lane.b32.xlu0 %v3529, 112
        %v3916 = vpop.permute.xlu0 %3915
        %3917 = vrot.lane.b32.xlu0 %v3534, 112
        %v3918 = vpop.permute.xlu0 %3917
        %3919 = vrot.lane.b32.xlu0 %v3539, 112
        %v3920 = vpop.permute.xlu0 %3919
        %v3921 = vsel %vm2567, %v3912, 0
        %v3923 = vsel %vm2567, %v3914, 0
        %v3925 = vsel %vm2567, %v3916, 0
        %v3927 = vsel %vm2567, %v3918, 0
        %v3929 = vsel %vm2567, %v3920, 0
        %3931 = vmatprep.subr.mxu0 0.0
        %3932 = vmatpush1.xpose.msra.mxu0 %v3923
        %3933 = vmatprep.subr.mxu0 0.0
        %3934 = vmatpush1.xpose.msra.mxu0 %v3925
        %3935 = vmatprep.subr.mxu0 0.0
        %3936 = vmatpush1.xpose.msra.mxu0 %v3927
        %3937 = vmatprep.subr.mxu0 0.0
        %3938 = vmatpush1.xpose.msra.mxu0 %v3929
        %3939 = vmatprep.subr.mxu0 0.0
        %3940 = vmatpush1.xpose.msra.mxu0 0.0
        %3941 = vmatprep.subr.mxu0 0.0
        %3942 = vmatpush1.xpose.msra.mxu0 0.0
        %3943 = vmatprep.subr.mxu0 0.0
        %3944 = vmatpush1.xpose.msra.mxu0 0.0
        %3945 = vmatprep.subr.mxu0 0.0
        %3946 = vmatpush1.xpose.msra.mxu0 0.0
        %3947 = vmatprep.subr.mxu0 0.0
        %3948 = vmatpush1.xpose.msra.mxu0 0.0
        %3949 = vmatprep.subr.mxu0 0.0
        %3950 = vmatpush1.xpose.msra.mxu0 0.0
        %3951 = vmatprep.subr.mxu0 0.0
        %3952 = vmatpush1.xpose.msra.mxu0 0.0
        %3953 = vmatprep.subr.mxu0 0.0
        %3954 = vmatpush1.xpose.msra.mxu0 0.0
        %3955 = vmatprep.subr.mxu0 0.0
        %3956 = vmatpush1.xpose.msra.mxu0 0.0
        %3957 = vmatprep.subr.mxu0 0.0
        %3958 = vmatpush1.xpose.msra.mxu0 0.0
        %3959 = vmatprep.subr.mxu0 0.0
        %3960 = vmatpush1.xpose.msra.mxu0 0.0
        %3961 = vmatprep.subr.mxu0 0.0
        %3962 = vmatpush1.xpose.msra.mxu0 0.0
        %3963 = vmatprep.subr.mxu0 0.0
        %3964 = vmatpush1.xpose.msra.mxu0 0.0
        %3965 = vmatprep.subr.mxu0 0.0
        %3966 = vmatpush1.xpose.msra.mxu0 0.0
        %3967 = vmatprep.subr.mxu0 0.0
        %3968 = vmatpush1.xpose.msra.mxu0 0.0
        %3969 = vmatprep.subr.mxu0 0.0
        %3970 = vmatpush1.xpose.msra.mxu0 0.0
        %3971 = vmatprep.subr.mxu0 0.0
        %3972 = vmatpush1.xpose.msra.mxu0 0.0
        %3973 = vmatprep.subr.mxu0 0.0
        %3974 = vmatpush1.xpose.msra.mxu0 0.0
        %3975 = vmatprep.subr.mxu0 0.0
        %3976 = vmatpush1.xpose.msra.mxu0 0.0
        %3977 = vmatprep.subr.mxu0 0.0
        %3978 = vmatpush1.xpose.msra.mxu0 0.0
        %3979 = vmatprep.subr.mxu0 0.0
        %3980 = vmatpush1.xpose.msra.mxu0 0.0
        %3981 = vmatprep.subr.mxu0 0.0
        %3982 = vmatpush1.xpose.msra.mxu0 0.0
        %3983 = vmatprep.subr.mxu0 0.0
        %3984 = vmatpush1.xpose.msra.mxu0 0.0
        %3985 = vmatprep.subr.mxu0 0.0
        %3986 = vmatpush1.xpose.msra.mxu0 0.0
        %3987 = vmatprep.subr.mxu0 0.0
        %3988 = vmatpush1.xpose.msra.mxu0 0.0
        %3989 = vmatprep.subr.mxu0 0.0
        %3990 = vmatpush1.xpose.msra.mxu0 0.0
        %3991 = vmatprep.subr.mxu0 0.0
        %3992 = vmatpush1.xpose.msra.mxu0 0.0
        %3993 = vmatprep.subr.mxu0 0.0
        %3994 = vmatpush1.xpose.msra.mxu0 0.0
        %3995 = vmatprep.mubr.f32.mxu0 0.0
        %3996 = vmatmul.mubr.f32.gmra.mrb[0].mxu0 %v3921
        %v3997 = vpop.f32.mrb[0].mxu0
        %v3998 = vadd.f32 0.0, %v3997
        %v3999 = vpop.f32.mrb[0].mxu0
        %4000 = vdwg.mxu0
        %v4001 = vmul.f32 %v3998, 0.35355338
        %v4002 = vsel %vm3332, %v4001, -inf
        %4003 = vmax.xlane.f32.xlu0 %v4002
        %v4004 = vpop.xlane.xlu0 %4003
        %v4005 = vsub.f32 %v4001, %v4004
        %v4006 = vmul.f32 %v4005, 1.442695
        %v4007 = vpow.pop %v4006
        %v4008 = vsel %vm3332, %v4007, 0.0
        %4009 = vadd.xlane.f32.xlu0 %v4008
        %v4010 = vpop.xlane.xlu0 %4009
        %v4011 = vrcp.pop %v4010
        %v4012 = vmul.f32 %v4007, %v4011
        %4013 = vrot.lane.b32.xlu0 %v3524, 80
        %v4014 = vpop.permute.xlu0 %4013
        %4015 = vrot.lane.b32.xlu0 %v3529, 80
        %v4016 = vpop.permute.xlu0 %4015
        %4017 = vrot.lane.b32.xlu0 %v3534, 80
        %v4018 = vpop.permute.xlu0 %4017
        %4019 = vrot.lane.b32.xlu0 %v3539, 80
        %v4020 = vpop.permute.xlu0 %4019
        %v4026 = vsel %vm2327, %v4012, 0
        %4028 = vmatprep.subr.mxu0 0.0
        %4029 = vmatpush1.msra.mxu0 %v4014
        %4030 = vmatprep.subr.mxu0 0.0
        %4031 = vmatpush1.msra.mxu0 %v4016
        %4032 = vmatprep.subr.mxu0 0.0
        %4033 = vmatpush1.msra.mxu0 %v4018
        %4034 = vmatprep.subr.mxu0 0.0
        %4035 = vmatpush1.msra.mxu0 %v4020
        %4036 = vmatprep.subr.mxu0 0.0
        %4037 = vmatpush1.msra.mxu0 0.0
        %4038 = vmatprep.subr.mxu0 0.0
        %4039 = vmatpush1.msra.mxu0 0.0
        %4040 = vmatprep.subr.mxu0 0.0
        %4041 = vmatpush1.msra.mxu0 0.0
        %4042 = vmatprep.subr.mxu0 0.0
        %4043 = vmatpush1.msra.mxu0 0.0
        %4044 = vmatprep.subr.mxu0 0.0
        %4045 = vmatpush1.msra.mxu0 0.0
        %4046 = vmatprep.subr.mxu0 0.0
        %4047 = vmatpush1.msra.mxu0 0.0
        %4048 = vmatprep.subr.mxu0 0.0
        %4049 = vmatpush1.msra.mxu0 0.0
        %4050 = vmatprep.subr.mxu0 0.0
        %4051 = vmatpush1.msra.mxu0 0.0
        %4052 = vmatprep.subr.mxu0 0.0
        %4053 = vmatpush1.msra.mxu0 0.0
        %4054 = vmatprep.subr.mxu0 0.0
        %4055 = vmatpush1.msra.mxu0 0.0
        %4056 = vmatprep.subr.mxu0 0.0
        %4057 = vmatpush1.msra.mxu0 0.0
        %4058 = vmatprep.subr.mxu0 0.0
        %4059 = vmatpush1.msra.mxu0 0.0
        %4060 = vmatprep.subr.mxu0 0.0
        %4061 = vmatpush1.msra.mxu0 0.0
        %4062 = vmatprep.subr.mxu0 0.0
        %4063 = vmatpush1.msra.mxu0 0.0
        %4064 = vmatprep.subr.mxu0 0.0
        %4065 = vmatpush1.msra.mxu0 0.0
        %4066 = vmatprep.subr.mxu0 0.0
        %4067 = vmatpush1.msra.mxu0 0.0
        %4068 = vmatprep.subr.mxu0 0.0
        %4069 = vmatpush1.msra.mxu0 0.0
        %4070 = vmatprep.subr.mxu0 0.0
        %4071 = vmatpush1.msra.mxu0 0.0
        %4072 = vmatprep.subr.mxu0 0.0
        %4073 = vmatpush1.msra.mxu0 0.0
        %4074 = vmatprep.subr.mxu0 0.0
        %4075 = vmatpush1.msra.mxu0 0.0
        %4076 = vmatprep.subr.mxu0 0.0
        %4077 = vmatpush1.msra.mxu0 0.0
        %4078 = vmatprep.subr.mxu0 0.0
        %4079 = vmatpush1.msra.mxu0 0.0
        %4080 = vmatprep.subr.mxu0 0.0
        %4081 = vmatpush1.msra.mxu0 0.0
        %4082 = vmatprep.subr.mxu0 0.0
        %4083 = vmatpush1.msra.mxu0 0.0
        %4084 = vmatprep.subr.mxu0 0.0
        %4085 = vmatpush1.msra.mxu0 0.0
        %4086 = vmatprep.subr.mxu0 0.0
        %4087 = vmatpush1.msra.mxu0 0.0
        %4088 = vmatprep.subr.mxu0 0.0
        %4089 = vmatpush1.msra.mxu0 0.0
        %4090 = vmatprep.subr.mxu0 0.0
        %4091 = vmatpush1.msra.mxu0 0.0
        %4092 = vmatprep.mubr.f32.mxu0 0.0
        %4093 = vmatmul.mubr.f32.gmra.mrb[0].mxu0 %v4026
        %v4094 = vpop.f32.mrb[0].mxu0
        %v4095 = vadd.f32 0.0, %v4094
        %v4096 = vpop.f32.mrb[0].mxu0
        %4097 = vdwg.mxu0
        %4098 = vrot.lane.b32.xlu0 %v3436, 104
        %v4099 = vpop.permute.xlu0 %4098
        %4100 = vrot.lane.b32.xlu0 %v3524, 104
        %v4101 = vpop.permute.xlu0 %4100
        %4102 = vrot.lane.b32.xlu0 %v3529, 104
        %v4103 = vpop.permute.xlu0 %4102
        %4104 = vrot.lane.b32.xlu0 %v3534, 104
        %v4105 = vpop.permute.xlu0 %4104
        %4106 = vrot.lane.b32.xlu0 %v3539, 104
        %v4107 = vpop.permute.xlu0 %4106
        %v4108 = vsel %vm2567, %v4099, 0
        %v4110 = vsel %vm2567, %v4101, 0
        %v4112 = vsel %vm2567, %v4103, 0
        %v4114 = vsel %vm2567, %v4105, 0
        %v4116 = vsel %vm2567, %v4107, 0
        %4118 = vmatprep.subr.mxu0 0.0
        %4119 = vmatpush1.xpose.msra.mxu0 %v4110
        %4120 = vmatprep.subr.mxu0 0.0
        %4121 = vmatpush1.xpose.msra.mxu0 %v4112
        %4122 = vmatprep.subr.mxu0 0.0
        %4123 = vmatpush1.xpose.msra.mxu0 %v4114
        %4124 = vmatprep.subr.mxu0 0.0
        %4125 = vmatpush1.xpose.msra.mxu0 %v4116
        %4126 = vmatprep.subr.mxu0 0.0
        %4127 = vmatpush1.xpose.msra.mxu0 0.0
        %4128 = vmatprep.subr.mxu0 0.0
        %4129 = vmatpush1.xpose.msra.mxu0 0.0
        %4130 = vmatprep.subr.mxu0 0.0
        %4131 = vmatpush1.xpose.msra.mxu0 0.0
        %4132 = vmatprep.subr.mxu0 0.0
        %4133 = vmatpush1.xpose.msra.mxu0 0.0
        %4134 = vmatprep.subr.mxu0 0.0
        %4135 = vmatpush1.xpose.msra.mxu0 0.0
        %4136 = vmatprep.subr.mxu0 0.0
        %4137 = vmatpush1.xpose.msra.mxu0 0.0
        %4138 = vmatprep.subr.mxu0 0.0
        %4139 = vmatpush1.xpose.msra.mxu0 0.0
        %4140 = vmatprep.subr.mxu0 0.0
        %4141 = vmatpush1.xpose.msra.mxu0 0.0
        %4142 = vmatprep.subr.mxu0 0.0
        %4143 = vmatpush1.xpose.msra.mxu0 0.0
        %4144 = vmatprep.subr.mxu0 0.0
        %4145 = vmatpush1.xpose.msra.mxu0 0.0
        %4146 = vmatprep.subr.mxu0 0.0
        %4147 = vmatpush1.xpose.msra.mxu0 0.0
        %4148 = vmatprep.subr.mxu0 0.0
        %4149 = vmatpush1.xpose.msra.mxu0 0.0
        %4150 = vmatprep.subr.mxu0 0.0
        %4151 = vmatpush1.xpose.msra.mxu0 0.0
        %4152 = vmatprep.subr.mxu0 0.0
        %4153 = vmatpush1.xpose.msra.mxu0 0.0
        %4154 = vmatprep.subr.mxu0 0.0
        %4155 = vmatpush1.xpose.msra.mxu0 0.0
        %4156 = vmatprep.subr.mxu0 0.0
        %4157 = vmatpush1.xpose.msra.mxu0 0.0
        %4158 = vmatprep.subr.mxu0 0.0
        %4159 = vmatpush1.xpose.msra.mxu0 0.0
        %4160 = vmatprep.subr.mxu0 0.0
        %4161 = vmatpush1.xpose.msra.mxu0 0.0
        %4162 = vmatprep.subr.mxu0 0.0
        %4163 = vmatpush1.xpose.msra.mxu0 0.0
        %4164 = vmatprep.subr.mxu0 0.0
        %4165 = vmatpush1.xpose.msra.mxu0 0.0
        %4166 = vmatprep.subr.mxu0 0.0
        %4167 = vmatpush1.xpose.msra.mxu0 0.0
        %4168 = vmatprep.subr.mxu0 0.0
        %4169 = vmatpush1.xpose.msra.mxu0 0.0
        %4170 = vmatprep.subr.mxu0 0.0
        %4171 = vmatpush1.xpose.msra.mxu0 0.0
        %4172 = vmatprep.subr.mxu0 0.0
        %4173 = vmatpush1.xpose.msra.mxu0 0.0
        %4174 = vmatprep.subr.mxu0 0.0
        %4175 = vmatpush1.xpose.msra.mxu0 0.0
        %4176 = vmatprep.subr.mxu0 0.0
        %4177 = vmatpush1.xpose.msra.mxu0 0.0
        %4178 = vmatprep.subr.mxu0 0.0
        %4179 = vmatpush1.xpose.msra.mxu0 0.0
        %4180 = vmatprep.subr.mxu0 0.0
        %4181 = vmatpush1.xpose.msra.mxu0 0.0
        %4182 = vmatprep.mubr.f32.mxu0 0.0
        %4183 = vmatmul.mubr.f32.gmra.mrb[0].mxu0 %v4108
        %v4184 = vpop.f32.mrb[0].mxu0
        %v4185 = vadd.f32 0.0, %v4184
        %v4186 = vpop.f32.mrb[0].mxu0
        %4187 = vdwg.mxu0
        %v4188 = vmul.f32 %v4185, 0.35355338
        %v4189 = vsel %vm3332, %v4188, -inf
        %4190 = vmax.xlane.f32.xlu0 %v4189
        %v4191 = vpop.xlane.xlu0 %4190
        %v4192 = vsub.f32 %v4188, %v4191
        %v4193 = vmul.f32 %v4192, 1.442695
        %v4194 = vpow.pop %v4193
        %v4195 = vsel %vm3332, %v4194, 0.0
        %4196 = vadd.xlane.f32.xlu0 %v4195
        %v4197 = vpop.xlane.xlu0 %4196
        %v4198 = vrcp.pop %v4197
        %v4199 = vmul.f32 %v4194, %v4198
        %4200 = vrot.lane.b32.xlu0 %v3524, 72
        %v4201 = vpop.permute.xlu0 %4200
        %4202 = vrot.lane.b32.xlu0 %v3529, 72
        %v4203 = vpop.permute.xlu0 %4202
        %4204 = vrot.lane.b32.xlu0 %v3534, 72
        %v4205 = vpop.permute.xlu0 %4204
        %4206 = vrot.lane.b32.xlu0 %v3539, 72
        %v4207 = vpop.permute.xlu0 %4206
        %v4213 = vsel %vm2327, %v4199, 0
        %4215 = vmatprep.subr.mxu0 0.0
        %4216 = vmatpush1.msra.mxu0 %v4201
        %4217 = vmatprep.subr.mxu0 0.0
        %4218 = vmatpush1.msra.mxu0 %v4203
        %4219 = vmatprep.subr.mxu0 0.0
        %4220 = vmatpush1.msra.mxu0 %v4205
        %4221 = vmatprep.subr.mxu0 0.0
        %4222 = vmatpush1.msra.mxu0 %v4207
        %4223 = vmatprep.subr.mxu0 0.0
        %4224 = vmatpush1.msra.mxu0 0.0
        %4225 = vmatprep.subr.mxu0 0.0
        %4226 = vmatpush1.msra.mxu0 0.0
        %4227 = vmatprep.subr.mxu0 0.0
        %4228 = vmatpush1.msra.mxu0 0.0
        %4229 = vmatprep.subr.mxu0 0.0
        %4230 = vmatpush1.msra.mxu0 0.0
        %4231 = vmatprep.subr.mxu0 0.0
        %4232 = vmatpush1.msra.mxu0 0.0
        %4233 = vmatprep.subr.mxu0 0.0
        %4234 = vmatpush1.msra.mxu0 0.0
        %4235 = vmatprep.subr.mxu0 0.0
        %4236 = vmatpush1.msra.mxu0 0.0
        %4237 = vmatprep.subr.mxu0 0.0
        %4238 = vmatpush1.msra.mxu0 0.0
        %4239 = vmatprep.subr.mxu0 0.0
        %4240 = vmatpush1.msra.mxu0 0.0
        %4241 = vmatprep.subr.mxu0 0.0
        %4242 = vmatpush1.msra.mxu0 0.0
        %4243 = vmatprep.subr.mxu0 0.0
        %4244 = vmatpush1.msra.mxu0 0.0
        %4245 = vmatprep.subr.mxu0 0.0
        %4246 = vmatpush1.msra.mxu0 0.0
        %4247 = vmatprep.subr.mxu0 0.0
        %4248 = vmatpush1.msra.mxu0 0.0
        %4249 = vmatprep.subr.mxu0 0.0
        %4250 = vmatpush1.msra.mxu0 0.0
        %4251 = vmatprep.subr.mxu0 0.0
        %4252 = vmatpush1.msra.mxu0 0.0
        %4253 = vmatprep.subr.mxu0 0.0
        %4254 = vmatpush1.msra.mxu0 0.0
        %4255 = vmatprep.subr.mxu0 0.0
        %4256 = vmatpush1.msra.mxu0 0.0
        %4257 = vmatprep.subr.mxu0 0.0
        %4258 = vmatpush1.msra.mxu0 0.0
        %4259 = vmatprep.subr.mxu0 0.0
        %4260 = vmatpush1.msra.mxu0 0.0
        %4261 = vmatprep.subr.mxu0 0.0
        %4262 = vmatpush1.msra.mxu0 0.0
        %4263 = vmatprep.subr.mxu0 0.0
        %4264 = vmatpush1.msra.mxu0 0.0
        %4265 = vmatprep.subr.mxu0 0.0
        %4266 = vmatpush1.msra.mxu0 0.0
        %4267 = vmatprep.subr.mxu0 0.0
        %4268 = vmatpush1.msra.mxu0 0.0
        %4269 = vmatprep.subr.mxu0 0.0
        %4270 = vmatpush1.msra.mxu0 0.0
        %4271 = vmatprep.subr.mxu0 0.0
        %4272 = vmatpush1.msra.mxu0 0.0
        %4273 = vmatprep.subr.mxu0 0.0
        %4274 = vmatpush1.msra.mxu0 0.0
        %4275 = vmatprep.subr.mxu0 0.0
        %4276 = vmatpush1.msra.mxu0 0.0
        %4277 = vmatprep.subr.mxu0 0.0
        %4278 = vmatpush1.msra.mxu0 0.0
        %4279 = vmatprep.mubr.f32.mxu0 0.0
        %4280 = vmatmul.mubr.f32.gmra.mrb[0].mxu0 %v4213
        %v4281 = vpop.f32.mrb[0].mxu0
        %v4282 = vadd.f32 0.0, %v4281
        %v4283 = vpop.f32.mrb[0].mxu0
        %4284 = vdwg.mxu0
        %4286 = vrot.lane.b32.xlu0 %v3908, 8
        %v4287 = vpop.permute.xlu0 %4286
        %4290 = vrot.lane.b32.xlu0 %v4095, 16
        %v4291 = vpop.permute.xlu0 %4290
        %4294 = vrot.lane.b32.xlu0 %v4282, 24
        %v4295 = vpop.permute.xlu0 %4294
        %v4297 = vsel %vm2567, %v3721, %v4287
        %v4298 = vsel %vm3248, %v4297, %v4291
        %v4299 = vsel %vm3250, %v4298, %v4295
        %v4301 = vlaneseq
        %v4302 = vshrl.u32 %v4301, 7
        %v4303 = vsub.s32 0, %v4302
        %v4304 = vrot.slane %v2274, %v4303
        %v4307 = vsel %vm2327, %v4299, 0
        %4309 = vmatprep.subr.mxu0 0.0
        %4310 = vmatpush1.msra.mxu0 %v2270
        %4311 = vmatprep.subr.mxu0 0.0
        %4312 = vmatpush1.msra.mxu0 %v2271
        %4313 = vmatprep.subr.mxu0 0.0
        %4314 = vmatpush1.msra.mxu0 %v2272
        %4315 = vmatprep.subr.mxu0 0.0
        %4316 = vmatpush1.msra.mxu0 %v2273
        %4317 = vmatprep.subr.mxu0 0.0
        %4318 = vmatpush1.msra.mxu0 0.0
        %4319 = vmatprep.subr.mxu0 0.0
        %4320 = vmatpush1.msra.mxu0 0.0
        %4321 = vmatprep.subr.mxu0 0.0
        %4322 = vmatpush1.msra.mxu0 0.0
        %4323 = vmatprep.subr.mxu0 0.0
        %4324 = vmatpush1.msra.mxu0 0.0
        %4325 = vmatprep.subr.mxu0 0.0
        %4326 = vmatpush1.msra.mxu0 0.0
        %4327 = vmatprep.subr.mxu0 0.0
        %4328 = vmatpush1.msra.mxu0 0.0
        %4329 = vmatprep.subr.mxu0 0.0
        %4330 = vmatpush1.msra.mxu0 0.0
        %4331 = vmatprep.subr.mxu0 0.0
        %4332 = vmatpush1.msra.mxu0 0.0
        %4333 = vmatprep.subr.mxu0 0.0
        %4334 = vmatpush1.msra.mxu0 0.0
        %4335 = vmatprep.subr.mxu0 0.0
        %4336 = vmatpush1.msra.mxu0 0.0
        %4337 = vmatprep.subr.mxu0 0.0
        %4338 = vmatpush1.msra.mxu0 0.0
        %4339 = vmatprep.subr.mxu0 0.0
        %4340 = vmatpush1.msra.mxu0 0.0
        %4341 = vmatprep.subr.mxu0 0.0
        %4342 = vmatpush1.msra.mxu0 0.0
        %4343 = vmatprep.subr.mxu0 0.0
        %4344 = vmatpush1.msra.mxu0 0.0
        %4345 = vmatprep.subr.mxu0 0.0
        %4346 = vmatpush1.msra.mxu0 0.0
        %4347 = vmatprep.subr.mxu0 0.0
        %4348 = vmatpush1.msra.mxu0 0.0
        %4349 = vmatprep.subr.mxu0 0.0
        %4350 = vmatpush1.msra.mxu0 0.0
        %4351 = vmatprep.subr.mxu0 0.0
        %4352 = vmatpush1.msra.mxu0 0.0
        %4353 = vmatprep.subr.mxu0 0.0
        %4354 = vmatpush1.msra.mxu0 0.0
        %4355 = vmatprep.subr.mxu0 0.0
        %4356 = vmatpush1.msra.mxu0 0.0
        %4357 = vmatprep.subr.mxu0 0.0
        %4358 = vmatpush1.msra.mxu0 0.0
        %4359 = vmatprep.subr.mxu0 0.0
        %4360 = vmatpush1.msra.mxu0 0.0
        %4361 = vmatprep.subr.mxu0 0.0
        %4362 = vmatpush1.msra.mxu0 0.0
        %4363 = vmatprep.subr.mxu0 0.0
        %4364 = vmatpush1.msra.mxu0 0.0
        %4365 = vmatprep.subr.mxu0 0.0
        %4366 = vmatpush1.msra.mxu0 0.0
        %4367 = vmatprep.subr.mxu0 0.0
        %4368 = vmatpush1.msra.mxu0 0.0
        %4369 = vmatprep.subr.mxu0 0.0
        %4370 = vmatpush1.msra.mxu0 0.0
        %4371 = vmatprep.subr.mxu0 0.0
        %4372 = vmatpush1.msra.mxu0 0.0
        %4373 = vmatprep.mubr.f32.mxu0 0.0
        %4374 = vmatmul.mubr.f32.gmra.mrb[0].mxu0 %v4307
        %v4375 = vpop.f32.mrb[0].mxu0
        %v4376 = vadd.f32 %v4304, %v4375
        %v4377 = vpop.f32.mrb[0].mxu0
        %4378 = vdwg.mxu0
        %v4379 = vadd.f32 %v3359, %v4376
        %v4380 = vsel %vm3332, %v4379, 0.0
        %4381 = vadd.xlane.f32.xlu0 %v4380
        %v4382 = vpop.xlane.xlu0 %4381
        %v4383 = vmul.f32 %v4382, %v2340
        %v4384 = vsub.f32 %v4379, %v4383
        %v4385 = vmul.f32 %v4384, %v4384
        %v4386 = vsel %vm3332, %v4385, 0.0
        %4387 = vadd.xlane.f32.xlu0 %v4386
        %v4388 = vpop.xlane.xlu0 %4387
        %v4389 = vmul.f32 %v4388, %v2340
        %v4390 = vadd.f32 %v4389, 1e-05
        %v4391 = vrsqrt.pop %v4390
        %v4392 = vmul.f32 %v4384, %v4391
        %v4394 = vlaneseq
        %v4395 = vshrl.u32 %v4394, 7
        %v4396 = vsub.s32 0, %v4395
        %v4397 = vrot.slane %v2304, %v4396
        %v4399 = vmul.f32 %v4392, %v4397
        %v4401 = vlaneseq
        %v4402 = vshrl.u32 %v4401, 7
        %v4403 = vsub.s32 0, %v4402
        %v4404 = vrot.slane %v2305, %v4403
        %v4406 = vadd.f32 %v4399, %v4404
        %v4408 = vlaneseq
        %v4409 = vshrl.u32 %v4408, 7
        %v4410 = vsub.s32 0, %v4409
        %v4411 = vrot.slane %v2284, %v4410
        %v4414 = vsel %vm2327, %v4406, 0
        %4416 = vmatprep.subr.mxu0 0.0
        %4417 = vmatpush1.msra.mxu0 %v2280
        %4418 = vmatprep.subr.mxu0 0.0
        %4419 = vmatpush1.msra.mxu0 %v2281
        %4420 = vmatprep.subr.mxu0 0.0
        %4421 = vmatpush1.msra.mxu0 %v2282
        %4422 = vmatprep.subr.mxu0 0.0
        %4423 = vmatpush1.msra.mxu0 %v2283
        %4424 = vmatprep.subr.mxu0 0.0
        %4425 = vmatpush1.msra.mxu0 0.0
        %4426 = vmatprep.subr.mxu0 0.0
        %4427 = vmatpush1.msra.mxu0 0.0
        %4428 = vmatprep.subr.mxu0 0.0
        %4429 = vmatpush1.msra.mxu0 0.0
        %4430 = vmatprep.subr.mxu0 0.0
        %4431 = vmatpush1.msra.mxu0 0.0
        %4432 = vmatprep.subr.mxu0 0.0
        %4433 = vmatpush1.msra.mxu0 0.0
        %4434 = vmatprep.subr.mxu0 0.0
        %4435 = vmatpush1.msra.mxu0 0.0
        %4436 = vmatprep.subr.mxu0 0.0
        %4437 = vmatpush1.msra.mxu0 0.0
        %4438 = vmatprep.subr.mxu0 0.0
        %4439 = vmatpush1.msra.mxu0 0.0
        %4440 = vmatprep.subr.mxu0 0.0
        %4441 = vmatpush1.msra.mxu0 0.0
        %4442 = vmatprep.subr.mxu0 0.0
        %4443 = vmatpush1.msra.mxu0 0.0
        %4444 = vmatprep.subr.mxu0 0.0
        %4445 = vmatpush1.msra.mxu0 0.0
        %4446 = vmatprep.subr.mxu0 0.0
        %4447 = vmatpush1.msra.mxu0 0.0
        %4448 = vmatprep.subr.mxu0 0.0
        %4449 = vmatpush1.msra.mxu0 0.0
        %4450 = vmatprep.subr.mxu0 0.0
        %4451 = vmatpush1.msra.mxu0 0.0
        %4452 = vmatprep.subr.mxu0 0.0
        %4453 = vmatpush1.msra.mxu0 0.0
        %4454 = vmatprep.subr.mxu0 0.0
        %4455 = vmatpush1.msra.mxu0 0.0
        %4456 = vmatprep.subr.mxu0 0.0
        %4457 = vmatpush1.msra.mxu0 0.0
        %4458 = vmatprep.subr.mxu0 0.0
        %4459 = vmatpush1.msra.mxu0 0.0
        %4460 = vmatprep.subr.mxu0 0.0
        %4461 = vmatpush1.msra.mxu0 0.0
        %4462 = vmatprep.subr.mxu0 0.0
        %4463 = vmatpush1.msra.mxu0 0.0
        %4464 = vmatprep.subr.mxu0 0.0
        %4465 = vmatpush1.msra.mxu0 0.0
        %4466 = vmatprep.subr.mxu0 0.0
        %4467 = vmatpush1.msra.mxu0 0.0
        %4468 = vmatprep.subr.mxu0 0.0
        %4469 = vmatpush1.msra.mxu0 0.0
        %4470 = vmatprep.subr.mxu0 0.0
        %4471 = vmatpush1.msra.mxu0 0.0
        %4472 = vmatprep.subr.mxu0 0.0
        %4473 = vmatpush1.msra.mxu0 0.0
        %4474 = vmatprep.subr.mxu0 0.0
        %4475 = vmatpush1.msra.mxu0 0.0
        %4476 = vmatprep.subr.mxu0 0.0
        %4477 = vmatpush1.msra.mxu0 0.0
        %4478 = vmatprep.subr.mxu0 0.0
        %4479 = vmatpush1.msra.mxu0 0.0
        %4480 = vmatprep.mubr.f32.mxu0 0.0
        %4481 = vmatmul.mubr.f32.gmra.mrb[0].mxu0 %v4414
        %v4482 = vpop.f32.mrb[0].mxu0
        %v4483 = vadd.f32 %v4411, %v4482
        %v4484 = vpop.f32.mrb[0].mxu0
        %4485 = vdwg.mxu0
        %v4486 = vmax.f32 %v4483, 0.0
        %v4488 = vlaneseq
        %v4489 = vshrl.u32 %v4488, 7
        %v4490 = vsub.s32 0, %v4489
        %v4491 = vrot.slane %v2301, %v4490
        %4493 = vmatprep.subr.mxu0 0.0
        %4494 = vmatpush1.msra.mxu0 %v2285
        %4495 = vmatprep.subr.mxu0 0.0
        %4496 = vmatpush1.msra.mxu0 %v2286
        %4497 = vmatprep.subr.mxu0 0.0
        %4498 = vmatpush1.msra.mxu0 %v2287
        %4499 = vmatprep.subr.mxu0 0.0
        %4500 = vmatpush1.msra.mxu0 %v2288
        %4501 = vmatprep.subr.mxu0 0.0
        %4502 = vmatpush1.msra.mxu0 %v2289
        %4503 = vmatprep.subr.mxu0 0.0
        %4504 = vmatpush1.msra.mxu0 %v2290
        %4505 = vmatprep.subr.mxu0 0.0
        %4506 = vmatpush1.msra.mxu0 %v2291
        %4507 = vmatprep.subr.mxu0 0.0
        %4508 = vmatpush1.msra.mxu0 %v2292
        %4509 = vmatprep.subr.mxu0 0.0
        %4510 = vmatpush1.msra.mxu0 %v2293
        %4511 = vmatprep.subr.mxu0 0.0
        %4512 = vmatpush1.msra.mxu0 %v2294
        %4513 = vmatprep.subr.mxu0 0.0
        %4514 = vmatpush1.msra.mxu0 %v2295
        %4515 = vmatprep.subr.mxu0 0.0
        %4516 = vmatpush1.msra.mxu0 %v2296
        %4517 = vmatprep.subr.mxu0 0.0
        %4518 = vmatpush1.msra.mxu0 %v2297
        %4519 = vmatprep.subr.mxu0 0.0
        %4520 = vmatpush1.msra.mxu0 %v2298
        %4521 = vmatprep.subr.mxu0 0.0
        %4522 = vmatpush1.msra.mxu0 %v2299
        %4523 = vmatprep.subr.mxu0 0.0
        %4524 = vmatpush1.msra.mxu0 %v2300
        %4525 = vmatprep.subr.mxu0 0.0
        %4526 = vmatpush1.msra.mxu0 0.0
        %4527 = vmatprep.subr.mxu0 0.0
        %4528 = vmatpush1.msra.mxu0 0.0
        %4529 = vmatprep.subr.mxu0 0.0
        %4530 = vmatpush1.msra.mxu0 0.0
        %4531 = vmatprep.subr.mxu0 0.0
        %4532 = vmatpush1.msra.mxu0 0.0
        %4533 = vmatprep.subr.mxu0 0.0
        %4534 = vmatpush1.msra.mxu0 0.0
        %4535 = vmatprep.subr.mxu0 0.0
        %4536 = vmatpush1.msra.mxu0 0.0
        %4537 = vmatprep.subr.mxu0 0.0
        %4538 = vmatpush1.msra.mxu0 0.0
        %4539 = vmatprep.subr.mxu0 0.0
        %4540 = vmatpush1.msra.mxu0 0.0
        %4541 = vmatprep.subr.mxu0 0.0
        %4542 = vmatpush1.msra.mxu0 0.0
        %4543 = vmatprep.subr.mxu0 0.0
        %4544 = vmatpush1.msra.mxu0 0.0
        %4545 = vmatprep.subr.mxu0 0.0
        %4546 = vmatpush1.msra.mxu0 0.0
        %4547 = vmatprep.subr.mxu0 0.0
        %4548 = vmatpush1.msra.mxu0 0.0
        %4549 = vmatprep.subr.mxu0 0.0
        %4550 = vmatpush1.msra.mxu0 0.0
        %4551 = vmatprep.subr.mxu0 0.0
        %4552 = vmatpush1.msra.mxu0 0.0
        %4553 = vmatprep.subr.mxu0 0.0
        %4554 = vmatpush1.msra.mxu0 0.0
        %4555 = vmatprep.subr.mxu0 0.0
        %4556 = vmatpush1.msra.mxu0 0.0
        %4557 = vmatprep.mubr.f32.mxu0 0.0
        %4558 = vmatmul.mubr.f32.gmra.mrb[0].mxu0 %v4486
        %v4559 = vpop.f32.mrb[0].mxu0
        %v4560 = vadd.f32 %v4491, %v4559
        %v4561 = vpop.f32.mrb[0].mxu0
        %4562 = vdwg.mxu0
        %v4563 = vadd.f32 %v4406, %v4560
        %v4564 = vsel %vm3332, %v4563, 0.0
        %4565 = vadd.xlane.f32.xlu0 %v4564
        %v4566 = vpop.xlane.xlu0 %4565
        %v4567 = vmul.f32 %v4566, %v2340
        %v4568 = vsub.f32 %v4563, %v4567
        %v4569 = vmul.f32 %v4568, %v4568
        %v4570 = vsel %vm3332, %v4569, 0.0
        %4571 = vadd.xlane.f32.xlu0 %v4570
        %v4572 = vpop.xlane.xlu0 %4571
        %v4573 = vmul.f32 %v4572, %v2340
        %v4574 = vadd.f32 %v4573, 1e-05
        %v4575 = vrsqrt.pop %v4574
        %v4576 = vmul.f32 %v4568, %v4575
        %v4578 = vlaneseq
        %v4579 = vshrl.u32 %v4578, 7
        %v4580 = vsub.s32 0, %v4579
        %v4581 = vrot.slane %v2306, %v4580
        %v4583 = vmul.f32 %v4576, %v4581
        %v4585 = vlaneseq
        %v4586 = vshrl.u32 %v4585, 7
        %v4587 = vsub.s32 0, %v4586
        %v4588 = vrot.slane %v2307, %v4587
        %v4590 = vadd.f32 %v4583, %v4588
        %v4592 = vlaneseq
        %v4593 = vshrl.u32 %v4592, 7
        %v4594 = vsub.s32 0, %v4593
        %v4595 = vrot.slane %v2185, %v4594
        %v4598 = vsel %vm2327, %v2175, 0
        %4600 = vmatprep.subr.mxu0 0.0
        %4601 = vmatpush1.msra.mxu0 %v2181
        %4602 = vmatprep.subr.mxu0 0.0
        %4603 = vmatpush1.msra.mxu0 %v2182
        %4604 = vmatprep.subr.mxu0 0.0
        %4605 = vmatpush1.msra.mxu0 %v2183
        %4606 = vmatprep.subr.mxu0 0.0
        %4607 = vmatpush1.msra.mxu0 %v2184
        %4608 = vmatprep.subr.mxu0 0.0
        %4609 = vmatpush1.msra.mxu0 0.0
        %4610 = vmatprep.subr.mxu0 0.0
        %4611 = vmatpush1.msra.mxu0 0.0
        %4612 = vmatprep.subr.mxu0 0.0
        %4613 = vmatpush1.msra.mxu0 0.0
        %4614 = vmatprep.subr.mxu0 0.0
        %4615 = vmatpush1.msra.mxu0 0.0
        %4616 = vmatprep.subr.mxu0 0.0
        %4617 = vmatpush1.msra.mxu0 0.0
        %4618 = vmatprep.subr.mxu0 0.0
        %4619 = vmatpush1.msra.mxu0 0.0
        %4620 = vmatprep.subr.mxu0 0.0
        %4621 = vmatpush1.msra.mxu0 0.0
        %4622 = vmatprep.subr.mxu0 0.0
        %4623 = vmatpush1.msra.mxu0 0.0
        %4624 = vmatprep.subr.mxu0 0.0
        %4625 = vmatpush1.msra.mxu0 0.0
        %4626 = vmatprep.subr.mxu0 0.0
        %4627 = vmatpush1.msra.mxu0 0.0
        %4628 = vmatprep.subr.mxu0 0.0
        %4629 = vmatpush1.msra.mxu0 0.0
        %4630 = vmatprep.subr.mxu0 0.0
        %4631 = vmatpush1.msra.mxu0 0.0
        %4632 = vmatprep.subr.mxu0 0.0
        %4633 = vmatpush1.msra.mxu0 0.0
        %4634 = vmatprep.subr.mxu0 0.0
        %4635 = vmatpush1.msra.mxu0 0.0
        %4636 = vmatprep.subr.mxu0 0.0
        %4637 = vmatpush1.msra.mxu0 0.0
        %4638 = vmatprep.subr.mxu0 0.0
        %4639 = vmatpush1.msra.mxu0 0.0
        %4640 = vmatprep.subr.mxu0 0.0
        %4641 = vmatpush1.msra.mxu0 0.0
        %4642 = vmatprep.subr.mxu0 0.0
        %4643 = vmatpush1.msra.mxu0 0.0
        %4644 = vmatprep.subr.mxu0 0.0
        %4645 = vmatpush1.msra.mxu0 0.0
        %4646 = vmatprep.subr.mxu0 0.0
        %4647 = vmatpush1.msra.mxu0 0.0
        %4648 = vmatprep.subr.mxu0 0.0
        %4649 = vmatpush1.msra.mxu0 0.0
        %4650 = vmatprep.subr.mxu0 0.0
        %4651 = vmatpush1.msra.mxu0 0.0
        %4652 = vmatprep.subr.mxu0 0.0
        %4653 = vmatpush1.msra.mxu0 0.0
        %4654 = vmatprep.subr.mxu0 0.0
        %4655 = vmatpush1.msra.mxu0 0.0
        %4656 = vmatprep.subr.mxu0 0.0
        %4657 = vmatpush1.msra.mxu0 0.0
        %4658 = vmatprep.subr.mxu0 0.0
        %4659 = vmatpush1.msra.mxu0 0.0
        %4660 = vmatprep.subr.mxu0 0.0
        %4661 = vmatpush1.msra.mxu0 0.0
        %4662 = vmatprep.subr.mxu0 0.0
        %4663 = vmatpush1.msra.mxu0 0.0
        %4664 = vmatprep.mubr.f32.mxu0 0.0
        %4665 = vmatmul.mubr.f32.gmra.mrb[0].mxu0 %v4598
        %v4666 = vpop.f32.mrb[0].mxu0
        %v4667 = vadd.f32 %v4595, %v4666
        %v4668 = vpop.f32.mrb[0].mxu0
        %4669 = vdwg.mxu0
        %4671 = vrot.lane.b32.xlu0 %v4667, 96
        %v4672 = vpop.permute.xlu0 %4671
        %v4673 = vsel %vm2567, %v4667, 0
        %v4675 = vsel %vm2567, %v4672, 0
        %4677 = vmatprep.subr.mxu0 0.0
        %4678 = vmatpush1.xpose.msra.mxu0 %v4675
        %4679 = vmatprep.subr.mxu0 0.0
        %4680 = vmatpush1.xpose.msra.mxu0 0.0
        %4681 = vmatprep.subr.mxu0 0.0
        %4682 = vmatpush1.xpose.msra.mxu0 0.0
        %4683 = vmatprep.subr.mxu0 0.0
        %4684 = vmatpush1.xpose.msra.mxu0 0.0
        %4685 = vmatprep.subr.mxu0 0.0
        %4686 = vmatpush1.xpose.msra.mxu0 0.0
        %4687 = vmatprep.subr.mxu0 0.0
        %4688 = vmatpush1.xpose.msra.mxu0 0.0
        %4689 = vmatprep.subr.mxu0 0.0
        %4690 = vmatpush1.xpose.msra.mxu0 0.0
        %4691 = vmatprep.subr.mxu0 0.0
        %4692 = vmatpush1.xpose.msra.mxu0 0.0
        %4693 = vmatprep.subr.mxu0 0.0
        %4694 = vmatpush1.xpose.msra.mxu0 0.0
        %4695 = vmatprep.subr.mxu0 0.0
        %4696 = vmatpush1.xpose.msra.mxu0 0.0
        %4697 = vmatprep.subr.mxu0 0.0
        %4698 = vmatpush1.xpose.msra.mxu0 0.0
        %4699 = vmatprep.subr.mxu0 0.0
        %4700 = vmatpush1.xpose.msra.mxu0 0.0
        %4701 = vmatprep.subr.mxu0 0.0
        %4702 = vmatpush1.xpose.msra.mxu0 0.0
        %4703 = vmatprep.subr.mxu0 0.0
        %4704 = vmatpush1.xpose.msra.mxu0 0.0
        %4705 = vmatprep.subr.mxu0 0.0
        %4706 = vmatpush1.xpose.msra.mxu0 0.0
        %4707 = vmatprep.subr.mxu0 0.0
        %4708 = vmatpush1.xpose.msra.mxu0 0.0
        %4709 = vmatprep.subr.mxu0 0.0
        %4710 = vmatpush1.xpose.msra.mxu0 0.0
        %4711 = vmatprep.subr.mxu0 0.0
        %4712 = vmatpush1.xpose.msra.mxu0 0.0
        %4713 = vmatprep.subr.mxu0 0.0
        %4714 = vmatpush1.xpose.msra.mxu0 0.0
        %4715 = vmatprep.subr.mxu0 0.0
        %4716 = vmatpush1.xpose.msra.mxu0 0.0
        %4717 = vmatprep.subr.mxu0 0.0
        %4718 = vmatpush1.xpose.msra.mxu0 0.0
        %4719 = vmatprep.subr.mxu0 0.0
        %4720 = vmatpush1.xpose.msra.mxu0 0.0
        %4721 = vmatprep.subr.mxu0 0.0
        %4722 = vmatpush1.xpose.msra.mxu0 0.0
        %4723 = vmatprep.subr.mxu0 0.0
        %4724 = vmatpush1.xpose.msra.mxu0 0.0
        %4725 = vmatprep.subr.mxu0 0.0
        %4726 = vmatpush1.xpose.msra.mxu0 0.0
        %4727 = vmatprep.subr.mxu0 0.0
        %4728 = vmatpush1.xpose.msra.mxu0 0.0
        %4729 = vmatprep.subr.mxu0 0.0
        %4730 = vmatpush1.xpose.msra.mxu0 0.0
        %4731 = vmatprep.subr.mxu0 0.0
        %4732 = vmatpush1.xpose.msra.mxu0 0.0
        %4733 = vmatprep.subr.mxu0 0.0
        %4734 = vmatpush1.xpose.msra.mxu0 0.0
        %4735 = vmatprep.subr.mxu0 0.0
        %4736 = vmatpush1.xpose.msra.mxu0 0.0
        %4737 = vmatprep.subr.mxu0 0.0
        %4738 = vmatpush1.xpose.msra.mxu0 0.0
        %4739 = vmatprep.subr.mxu0 0.0
        %4740 = vmatpush1.xpose.msra.mxu0 0.0
        %4741 = vmatprep.mubr.f32.mxu0 0.0
        %4742 = vmatmul.mubr.f32.gmra.mrb[0].mxu0 %v4673
        %v4743 = vpop.f32.mrb[0].mxu0
        %v4744 = vadd.f32 0.0, %v4743
        %v4745 = vpop.f32.mrb[0].mxu0
        %4746 = vdwg.mxu0
        %v4747 = vmul.f32 %v4744, 0.35355338
        %v4748 = vsel %vm2643, %v4747, -inf
        %4749 = vmax.xlane.f32.xlu0 %v4748
        %v4750 = vpop.xlane.xlu0 %4749
        %v4751 = vsub.f32 %v4747, %v4750
        %v4752 = vmul.f32 %v4751, 1.442695
        %v4753 = vpow.pop %v4752
        %v4754 = vsel %vm2643, %v4753, 0.0
        %4755 = vadd.xlane.f32.xlu0 %v4754
        %v4756 = vpop.xlane.xlu0 %4755
        %v4757 = vrcp.pop %v4756
        %v4758 = vmul.f32 %v4753, %v4757
        %4759 = vrot.lane.b32.xlu0 %v4667, 64
        %v4760 = vpop.permute.xlu0 %4759
        %v4762 = vsel %vm2657, %v4758, 0
        %v4764 = vsel %vm2661, %v4760, 0
        %4766 = vmatprep.subr.mxu0 0.0
        %4767 = vmatpush1.msra.mxu0 %v4764
        %4768 = vmatprep.subr.mxu0 0.0
        %4769 = vmatpush1.msra.mxu0 0.0
        %4770 = vmatprep.subr.mxu0 0.0
        %4771 = vmatpush1.msra.mxu0 0.0
        %4772 = vmatprep.subr.mxu0 0.0
        %4773 = vmatpush1.msra.mxu0 0.0
        %4774 = vmatprep.subr.mxu0 0.0
        %4775 = vmatpush1.msra.mxu0 0.0
        %4776 = vmatprep.subr.mxu0 0.0
        %4777 = vmatpush1.msra.mxu0 0.0
        %4778 = vmatprep.subr.mxu0 0.0
        %4779 = vmatpush1.msra.mxu0 0.0
        %4780 = vmatprep.subr.mxu0 0.0
        %4781 = vmatpush1.msra.mxu0 0.0
        %4782 = vmatprep.subr.mxu0 0.0
        %4783 = vmatpush1.msra.mxu0 0.0
        %4784 = vmatprep.subr.mxu0 0.0
        %4785 = vmatpush1.msra.mxu0 0.0
        %4786 = vmatprep.subr.mxu0 0.0
        %4787 = vmatpush1.msra.mxu0 0.0
        %4788 = vmatprep.subr.mxu0 0.0
        %4789 = vmatpush1.msra.mxu0 0.0
        %4790 = vmatprep.subr.mxu0 0.0
        %4791 = vmatpush1.msra.mxu0 0.0
        %4792 = vmatprep.subr.mxu0 0.0
        %4793 = vmatpush1.msra.mxu0 0.0
        %4794 = vmatprep.subr.mxu0 0.0
        %4795 = vmatpush1.msra.mxu0 0.0
        %4796 = vmatprep.subr.mxu0 0.0
        %4797 = vmatpush1.msra.mxu0 0.0
        %4798 = vmatprep.subr.mxu0 0.0
        %4799 = vmatpush1.msra.mxu0 0.0
        %4800 = vmatprep.subr.mxu0 0.0
        %4801 = vmatpush1.msra.mxu0 0.0
        %4802 = vmatprep.subr.mxu0 0.0
        %4803 = vmatpush1.msra.mxu0 0.0
        %4804 = vmatprep.subr.mxu0 0.0
        %4805 = vmatpush1.msra.mxu0 0.0
        %4806 = vmatprep.subr.mxu0 0.0
        %4807 = vmatpush1.msra.mxu0 0.0
        %4808 = vmatprep.subr.mxu0 0.0
        %4809 = vmatpush1.msra.mxu0 0.0
        %4810 = vmatprep.subr.mxu0 0.0
        %4811 = vmatpush1.msra.mxu0 0.0
        %4812 = vmatprep.subr.mxu0 0.0
        %4813 = vmatpush1.msra.mxu0 0.0
        %4814 = vmatprep.subr.mxu0 0.0
        %4815 = vmatpush1.msra.mxu0 0.0
        %4816 = vmatprep.subr.mxu0 0.0
        %4817 = vmatpush1.msra.mxu0 0.0
        %4818 = vmatprep.subr.mxu0 0.0
        %4819 = vmatpush1.msra.mxu0 0.0
        %4820 = vmatprep.subr.mxu0 0.0
        %4821 = vmatpush1.msra.mxu0 0.0
        %4822 = vmatprep.subr.mxu0 0.0
        %4823 = vmatpush1.msra.mxu0 0.0
        %4824 = vmatprep.subr.mxu0 0.0
        %4825 = vmatpush1.msra.mxu0 0.0
        %4826 = vmatprep.subr.mxu0 0.0
        %4827 = vmatpush1.msra.mxu0 0.0
        %4828 = vmatprep.subr.mxu0 0.0
        %4829 = vmatpush1.msra.mxu0 0.0
        %4830 = vmatprep.mubr.f32.mxu0 0.0
        %4831 = vmatmul.mubr.f32.gmra.mrb[0].mxu0 %v4762
        %v4832 = vpop.f32.mrb[0].mxu0
        %v4833 = vadd.f32 0.0, %v4832
        %v4834 = vpop.f32.mrb[0].mxu0
        %4835 = vdwg.mxu0
        %4836 = vrot.lane.b32.xlu0 %v4667, 120
        %v4837 = vpop.permute.xlu0 %4836
        %4838 = vrot.lane.b32.xlu0 %v4667, 88
        %v4839 = vpop.permute.xlu0 %4838
        %v4840 = vsel %vm2567, %v4837, 0
        %v4842 = vsel %vm2567, %v4839, 0
        %4844 = vmatprep.subr.mxu0 0.0
        %4845 = vmatpush1.xpose.msra.mxu0 %v4842
        %4846 = vmatprep.subr.mxu0 0.0
        %4847 = vmatpush1.xpose.msra.mxu0 0.0
        %4848 = vmatprep.subr.mxu0 0.0
        %4849 = vmatpush1.xpose.msra.mxu0 0.0
        %4850 = vmatprep.subr.mxu0 0.0
        %4851 = vmatpush1.xpose.msra.mxu0 0.0
        %4852 = vmatprep.subr.mxu0 0.0
        %4853 = vmatpush1.xpose.msra.mxu0 0.0
        %4854 = vmatprep.subr.mxu0 0.0
        %4855 = vmatpush1.xpose.msra.mxu0 0.0
        %4856 = vmatprep.subr.mxu0 0.0
        %4857 = vmatpush1.xpose.msra.mxu0 0.0
        %4858 = vmatprep.subr.mxu0 0.0
        %4859 = vmatpush1.xpose.msra.mxu0 0.0
        %4860 = vmatprep.subr.mxu0 0.0
        %4861 = vmatpush1.xpose.msra.mxu0 0.0
        %4862 = vmatprep.subr.mxu0 0.0
        %4863 = vmatpush1.xpose.msra.mxu0 0.0
        %4864 = vmatprep.subr.mxu0 0.0
        %4865 = vmatpush1.xpose.msra.mxu0 0.0
        %4866 = vmatprep.subr.mxu0 0.0
        %4867 = vmatpush1.xpose.msra.mxu0 0.0
        %4868 = vmatprep.subr.mxu0 0.0
        %4869 = vmatpush1.xpose.msra.mxu0 0.0
        %4870 = vmatprep.subr.mxu0 0.0
        %4871 = vmatpush1.xpose.msra.mxu0 0.0
        %4872 = vmatprep.subr.mxu0 0.0
        %4873 = vmatpush1.xpose.msra.mxu0 0.0
        %4874 = vmatprep.subr.mxu0 0.0
        %4875 = vmatpush1.xpose.msra.mxu0 0.0
        %4876 = vmatprep.subr.mxu0 0.0
        %4877 = vmatpush1.xpose.msra.mxu0 0.0
        %4878 = vmatprep.subr.mxu0 0.0
        %4879 = vmatpush1.xpose.msra.mxu0 0.0
        %4880 = vmatprep.subr.mxu0 0.0
        %4881 = vmatpush1.xpose.msra.mxu0 0.0
        %4882 = vmatprep.subr.mxu0 0.0
        %4883 = vmatpush1.xpose.msra.mxu0 0.0
        %4884 = vmatprep.subr.mxu0 0.0
        %4885 = vmatpush1.xpose.msra.mxu0 0.0
        %4886 = vmatprep.subr.mxu0 0.0
        %4887 = vmatpush1.xpose.msra.mxu0 0.0
        %4888 = vmatprep.subr.mxu0 0.0
        %4889 = vmatpush1.xpose.msra.mxu0 0.0
        %4890 = vmatprep.subr.mxu0 0.0
        %4891 = vmatpush1.xpose.msra.mxu0 0.0
        %4892 = vmatprep.subr.mxu0 0.0
        %4893 = vmatpush1.xpose.msra.mxu0 0.0
        %4894 = vmatprep.subr.mxu0 0.0
        %4895 = vmatpush1.xpose.msra.mxu0 0.0
        %4896 = vmatprep.subr.mxu0 0.0
        %4897 = vmatpush1.xpose.msra.mxu0 0.0
        %4898 = vmatprep.subr.mxu0 0.0
        %4899 = vmatpush1.xpose.msra.mxu0 0.0
        %4900 = vmatprep.subr.mxu0 0.0
        %4901 = vmatpush1.xpose.msra.mxu0 0.0
        %4902 = vmatprep.subr.mxu0 0.0
        %4903 = vmatpush1.xpose.msra.mxu0 0.0
        %4904 = vmatprep.subr.mxu0 0.0
        %4905 = vmatpush1.xpose.msra.mxu0 0.0
        %4906 = vmatprep.subr.mxu0 0.0
        %4907 = vmatpush1.xpose.msra.mxu0 0.0
        %4908 = vmatprep.mubr.f32.mxu0 0.0
        %4909 = vmatmul.mubr.f32.gmra.mrb[0].mxu0 %v4840
        %v4910 = vpop.f32.mrb[0].mxu0
        %v4911 = vadd.f32 0.0, %v4910
        %v4912 = vpop.f32.mrb[0].mxu0
        %4913 = vdwg.mxu0
        %v4914 = vmul.f32 %v4911, 0.35355338
        %v4915 = vsel %vm2643, %v4914, -inf
        %4916 = vmax.xlane.f32.xlu0 %v4915
        %v4917 = vpop.xlane.xlu0 %4916
        %v4918 = vsub.f32 %v4914, %v4917
        %v4919 = vmul.f32 %v4918, 1.442695
        %v4920 = vpow.pop %v4919
        %v4921 = vsel %vm2643, %v4920, 0.0
        %4922 = vadd.xlane.f32.xlu0 %v4921
        %v4923 = vpop.xlane.xlu0 %4922
        %v4924 = vrcp.pop %v4923
        %v4925 = vmul.f32 %v4920, %v4924
        %4926 = vrot.lane.b32.xlu0 %v4667, 56
        %v4927 = vpop.permute.xlu0 %4926
        %v4929 = vsel %vm2657, %v4925, 0
        %v4931 = vsel %vm2661, %v4927, 0
        %4933 = vmatprep.subr.mxu0 0.0
        %4934 = vmatpush1.msra.mxu0 %v4931
        %4935 = vmatprep.subr.mxu0 0.0
        %4936 = vmatpush1.msra.mxu0 0.0
        %4937 = vmatprep.subr.mxu0 0.0
        %4938 = vmatpush1.msra.mxu0 0.0
        %4939 = vmatprep.subr.mxu0 0.0
        %4940 = vmatpush1.msra.mxu0 0.0
        %4941 = vmatprep.subr.mxu0 0.0
        %4942 = vmatpush1.msra.mxu0 0.0
        %4943 = vmatprep.subr.mxu0 0.0
        %4944 = vmatpush1.msra.mxu0 0.0
        %4945 = vmatprep.subr.mxu0 0.0
        %4946 = vmatpush1.msra.mxu0 0.0
        %4947 = vmatprep.subr.mxu0 0.0
        %4948 = vmatpush1.msra.mxu0 0.0
        %4949 = vmatprep.subr.mxu0 0.0
        %4950 = vmatpush1.msra.mxu0 0.0
        %4951 = vmatprep.subr.mxu0 0.0
        %4952 = vmatpush1.msra.mxu0 0.0
        %4953 = vmatprep.subr.mxu0 0.0
        %4954 = vmatpush1.msra.mxu0 0.0
        %4955 = vmatprep.subr.mxu0 0.0
        %4956 = vmatpush1.msra.mxu0 0.0
        %4957 = vmatprep.subr.mxu0 0.0
        %4958 = vmatpush1.msra.mxu0 0.0
        %4959 = vmatprep.subr.mxu0 0.0
        %4960 = vmatpush1.msra.mxu0 0.0
        %4961 = vmatprep.subr.mxu0 0.0
        %4962 = vmatpush1.msra.mxu0 0.0
        %4963 = vmatprep.subr.mxu0 0.0
        %4964 = vmatpush1.msra.mxu0 0.0
        %4965 = vmatprep.subr.mxu0 0.0
        %4966 = vmatpush1.msra.mxu0 0.0
        %4967 = vmatprep.subr.mxu0 0.0
        %4968 = vmatpush1.msra.mxu0 0.0
        %4969 = vmatprep.subr.mxu0 0.0
        %4970 = vmatpush1.msra.mxu0 0.0
        %4971 = vmatprep.subr.mxu0 0.0
        %4972 = vmatpush1.msra.mxu0 0.0
        %4973 = vmatprep.subr.mxu0 0.0
        %4974 = vmatpush1.msra.mxu0 0.0
        %4975 = vmatprep.subr.mxu0 0.0
        %4976 = vmatpush1.msra.mxu0 0.0
        %4977 = vmatprep.subr.mxu0 0.0
        %4978 = vmatpush1.msra.mxu0 0.0
        %4979 = vmatprep.subr.mxu0 0.0
        %4980 = vmatpush1.msra.mxu0 0.0
        %4981 = vmatprep.subr.mxu0 0.0
        %4982 = vmatpush1.msra.mxu0 0.0
        %4983 = vmatprep.subr.mxu0 0.0
        %4984 = vmatpush1.msra.mxu0 0.0
        %4985 = vmatprep.subr.mxu0 0.0
        %4986 = vmatpush1.msra.mxu0 0.0
        %4987 = vmatprep.subr.mxu0 0.0
        %4988 = vmatpush1.msra.mxu0 0.0
        %4989 = vmatprep.subr.mxu0 0.0
        %4990 = vmatpush1.msra.mxu0 0.0
        %4991 = vmatprep.subr.mxu0 0.0
        %4992 = vmatpush1.msra.mxu0 0.0
        %4993 = vmatprep.subr.mxu0 0.0
        %4994 = vmatpush1.msra.mxu0 0.0
        %4995 = vmatprep.subr.mxu0 0.0
        %4996 = vmatpush1.msra.mxu0 0.0
        %4997 = vmatprep.mubr.f32.mxu0 0.0
        %4998 = vmatmul.mubr.f32.gmra.mrb[0].mxu0 %v4929
        %v4999 = vpop.f32.mrb[0].mxu0
        %v5000 = vadd.f32 0.0, %v4999
        %v5001 = vpop.f32.mrb[0].mxu0
        %5002 = vdwg.mxu0
        %5003 = vrot.lane.b32.xlu0 %v4667, 112
        %v5004 = vpop.permute.xlu0 %5003
        %5005 = vrot.lane.b32.xlu0 %v4667, 80
        %v5006 = vpop.permute.xlu0 %5005
        %v5007 = vsel %vm2567, %v5004, 0
        %v5009 = vsel %vm2567, %v5006, 0
        %5011 = vmatprep.subr.mxu0 0.0
        %5012 = vmatpush1.xpose.msra.mxu0 %v5009
        %5013 = vmatprep.subr.mxu0 0.0
        %5014 = vmatpush1.xpose.msra.mxu0 0.0
        %5015 = vmatprep.subr.mxu0 0.0
        %5016 = vmatpush1.xpose.msra.mxu0 0.0
        %5017 = vmatprep.subr.mxu0 0.0
        %5018 = vmatpush1.xpose.msra.mxu0 0.0
        %5019 = vmatprep.subr.mxu0 0.0
        %5020 = vmatpush1.xpose.msra.mxu0 0.0
        %5021 = vmatprep.subr.mxu0 0.0
        %5022 = vmatpush1.xpose.msra.mxu0 0.0
        %5023 = vmatprep.subr.mxu0 0.0
        %5024 = vmatpush1.xpose.msra.mxu0 0.0
        %5025 = vmatprep.subr.mxu0 0.0
        %5026 = vmatpush1.xpose.msra.mxu0 0.0
        %5027 = vmatprep.subr.mxu0 0.0
        %5028 = vmatpush1.xpose.msra.mxu0 0.0
        %5029 = vmatprep.subr.mxu0 0.0
        %5030 = vmatpush1.xpose.msra.mxu0 0.0
        %5031 = vmatprep.subr.mxu0 0.0
        %5032 = vmatpush1.xpose.msra.mxu0 0.0
        %5033 = vmatprep.subr.mxu0 0.0
        %5034 = vmatpush1.xpose.msra.mxu0 0.0
        %5035 = vmatprep.subr.mxu0 0.0
        %5036 = vmatpush1.xpose.msra.mxu0 0.0
        %5037 = vmatprep.subr.mxu0 0.0
        %5038 = vmatpush1.xpose.msra.mxu0 0.0
        %5039 = vmatprep.subr.mxu0 0.0
        %5040 = vmatpush1.xpose.msra.mxu0 0.0
        %5041 = vmatprep.subr.mxu0 0.0
        %5042 = vmatpush1.xpose.msra.mxu0 0.0
        %5043 = vmatprep.subr.mxu0 0.0
        %5044 = vmatpush1.xpose.msra.mxu0 0.0
        %5045 = vmatprep.subr.mxu0 0.0
        %5046 = vmatpush1.xpose.msra.mxu0 0.0
        %5047 = vmatprep.subr.mxu0 0.0
        %5048 = vmatpush1.xpose.msra.mxu0 0.0
        %5049 = vmatprep.subr.mxu0 0.0
        %5050 = vmatpush1.xpose.msra.mxu0 0.0
        %5051 = vmatprep.subr.mxu0 0.0
        %5052 = vmatpush1.xpose.msra.mxu0 0.0
        %5053 = vmatprep.subr.mxu0 0.0
        %5054 = vmatpush1.xpose.msra.mxu0 0.0
        %5055 = vmatprep.subr.mxu0 0.0
        %5056 = vmatpush1.xpose.msra.mxu0 0.0
        %5057 = vmatprep.subr.mxu0 0.0
        %5058 = vmatpush1.xpose.msra.mxu0 0.0
        %5059 = vmatprep.subr.mxu0 0.0
        %5060 = vmatpush1.xpose.msra.mxu0 0.0
        %5061 = vmatprep.subr.mxu0 0.0
        %5062 = vmatpush1.xpose.msra.mxu0 0.0
        %5063 = vmatprep.subr.mxu0 0.0
        %5064 = vmatpush1.xpose.msra.mxu0 0.0
        %5065 = vmatprep.subr.mxu0 0.0
        %5066 = vmatpush1.xpose.msra.mxu0 0.0
        %5067 = vmatprep.subr.mxu0 0.0
        %5068 = vmatpush1.xpose.msra.mxu0 0.0
        %5069 = vmatprep.subr.mxu0 0.0
        %5070 = vmatpush1.xpose.msra.mxu0 0.0
        %5071 = vmatprep.subr.mxu0 0.0
        %5072 = vmatpush1.xpose.msra.mxu0 0.0
        %5073 = vmatprep.subr.mxu0 0.0
        %5074 = vmatpush1.xpose.msra.mxu0 0.0
        %5075 = vmatprep.mubr.f32.mxu0 0.0
        %5076 = vmatmul.mubr.f32.gmra.mrb[0].mxu0 %v5007
        %v5077 = vpop.f32.mrb[0].mxu0
        %v5078 = vadd.f32 0.0, %v5077
        %v5079 = vpop.f32.mrb[0].mxu0
        %5080 = vdwg.mxu0
        %v5081 = vmul.f32 %v5078, 0.35355338
        %v5082 = vsel %vm2643, %v5081, -inf
        %5083 = vmax.xlane.f32.xlu0 %v5082
        %v5084 = vpop.xlane.xlu0 %5083
        %v5085 = vsub.f32 %v5081, %v5084
        %v5086 = vmul.f32 %v5085, 1.442695
        %v5087 = vpow.pop %v5086
        %v5088 = vsel %vm2643, %v5087, 0.0
        %5089 = vadd.xlane.f32.xlu0 %v5088
        %v5090 = vpop.xlane.xlu0 %5089
        %v5091 = vrcp.pop %v5090
        %v5092 = vmul.f32 %v5087, %v5091
        %5093 = vrot.lane.b32.xlu0 %v4667, 48
        %v5094 = vpop.permute.xlu0 %5093
        %v5096 = vsel %vm2657, %v5092, 0
        %v5098 = vsel %vm2661, %v5094, 0
        %5100 = vmatprep.subr.mxu0 0.0
        %5101 = vmatpush1.msra.mxu0 %v5098
        %5102 = vmatprep.subr.mxu0 0.0
        %5103 = vmatpush1.msra.mxu0 0.0
        %5104 = vmatprep.subr.mxu0 0.0
        %5105 = vmatpush1.msra.mxu0 0.0
        %5106 = vmatprep.subr.mxu0 0.0
        %5107 = vmatpush1.msra.mxu0 0.0
        %5108 = vmatprep.subr.mxu0 0.0
        %5109 = vmatpush1.msra.mxu0 0.0
        %5110 = vmatprep.subr.mxu0 0.0
        %5111 = vmatpush1.msra.mxu0 0.0
        %5112 = vmatprep.subr.mxu0 0.0
        %5113 = vmatpush1.msra.mxu0 0.0
        %5114 = vmatprep.subr.mxu0 0.0
        %5115 = vmatpush1.msra.mxu0 0.0
        %5116 = vmatprep.subr.mxu0 0.0
        %5117 = vmatpush1.msra.mxu0 0.0
        %5118 = vmatprep.subr.mxu0 0.0
        %5119 = vmatpush1.msra.mxu0 0.0
        %5120 = vmatprep.subr.mxu0 0.0
        %5121 = vmatpush1.msra.mxu0 0.0
        %5122 = vmatprep.subr.mxu0 0.0
        %5123 = vmatpush1.msra.mxu0 0.0
        %5124 = vmatprep.subr.mxu0 0.0
        %5125 = vmatpush1.msra.mxu0 0.0
        %5126 = vmatprep.subr.mxu0 0.0
        %5127 = vmatpush1.msra.mxu0 0.0
        %5128 = vmatprep.subr.mxu0 0.0
        %5129 = vmatpush1.msra.mxu0 0.0
        %5130 = vmatprep.subr.mxu0 0.0
        %5131 = vmatpush1.msra.mxu0 0.0
        %5132 = vmatprep.subr.mxu0 0.0
        %5133 = vmatpush1.msra.mxu0 0.0
        %5134 = vmatprep.subr.mxu0 0.0
        %5135 = vmatpush1.msra.mxu0 0.0
        %5136 = vmatprep.subr.mxu0 0.0
        %5137 = vmatpush1.msra.mxu0 0.0
        %5138 = vmatprep.subr.mxu0 0.0
        %5139 = vmatpush1.msra.mxu0 0.0
        %5140 = vmatprep.subr.mxu0 0.0
        %5141 = vmatpush1.msra.mxu0 0.0
        %5142 = vmatprep.subr.mxu0 0.0
        %5143 = vmatpush1.msra.mxu0 0.0
        %5144 = vmatprep.subr.mxu0 0.0
        %5145 = vmatpush1.msra.mxu0 0.0
        %5146 = vmatprep.subr.mxu0 0.0
        %5147 = vmatpush1.msra.mxu0 0.0
        %5148 = vmatprep.subr.mxu0 0.0
        %5149 = vmatpush1.msra.mxu0 0.0
        %5150 = vmatprep.subr.mxu0 0.0
        %5151 = vmatpush1.msra.mxu0 0.0
        %5152 = vmatprep.subr.mxu0 0.0
        %5153 = vmatpush1.msra.mxu0 0.0
        %5154 = vmatprep.subr.mxu0 0.0
        %5155 = vmatpush1.msra.mxu0 0.0
        %5156 = vmatprep.subr.mxu0 0.0
        %5157 = vmatpush1.msra.mxu0 0.0
        %5158 = vmatprep.subr.mxu0 0.0
        %5159 = vmatpush1.msra.mxu0 0.0
        %5160 = vmatprep.subr.mxu0 0.0
        %5161 = vmatpush1.msra.mxu0 0.0
        %5162 = vmatprep.subr.mxu0 0.0
        %5163 = vmatpush1.msra.mxu0 0.0
        %5164 = vmatprep.mubr.f32.mxu0 0.0
        %5165 = vmatmul.mubr.f32.gmra.mrb[0].mxu0 %v5096
        %v5166 = vpop.f32.mrb[0].mxu0
        %v5167 = vadd.f32 0.0, %v5166
        %v5168 = vpop.f32.mrb[0].mxu0
        %5169 = vdwg.mxu0
        %5170 = vrot.lane.b32.xlu0 %v4667, 104
        %v5171 = vpop.permute.xlu0 %5170
        %5172 = vrot.lane.b32.xlu0 %v4667, 72
        %v5173 = vpop.permute.xlu0 %5172
        %v5174 = vsel %vm2567, %v5171, 0
        %v5176 = vsel %vm2567, %v5173, 0
        %5178 = vmatprep.subr.mxu0 0.0
        %5179 = vmatpush1.xpose.msra.mxu0 %v5176
        %5180 = vmatprep.subr.mxu0 0.0
        %5181 = vmatpush1.xpose.msra.mxu0 0.0
        %5182 = vmatprep.subr.mxu0 0.0
        %5183 = vmatpush1.xpose.msra.mxu0 0.0
        %5184 = vmatprep.subr.mxu0 0.0
        %5185 = vmatpush1.xpose.msra.mxu0 0.0
        %5186 = vmatprep.subr.mxu0 0.0
        %5187 = vmatpush1.xpose.msra.mxu0 0.0
        %5188 = vmatprep.subr.mxu0 0.0
        %5189 = vmatpush1.xpose.msra.mxu0 0.0
        %5190 = vmatprep.subr.mxu0 0.0
        %5191 = vmatpush1.xpose.msra.mxu0 0.0
        %5192 = vmatprep.subr.mxu0 0.0
        %5193 = vmatpush1.xpose.msra.mxu0 0.0
        %5194 = vmatprep.subr.mxu0 0.0
        %5195 = vmatpush1.xpose.msra.mxu0 0.0
        %5196 = vmatprep.subr.mxu0 0.0
        %5197 = vmatpush1.xpose.msra.mxu0 0.0
        %5198 = vmatprep.subr.mxu0 0.0
        %5199 = vmatpush1.xpose.msra.mxu0 0.0
        %5200 = vmatprep.subr.mxu0 0.0
        %5201 = vmatpush1.xpose.msra.mxu0 0.0
        %5202 = vmatprep.subr.mxu0 0.0
        %5203 = vmatpush1.xpose.msra.mxu0 0.0
        %5204 = vmatprep.subr.mxu0 0.0
        %5205 = vmatpush1.xpose.msra.mxu0 0.0
        %5206 = vmatprep.subr.mxu0 0.0
        %5207 = vmatpush1.xpose.msra.mxu0 0.0
        %5208 = vmatprep.subr.mxu0 0.0
        %5209 = vmatpush1.xpose.msra.mxu0 0.0
        %5210 = vmatprep.subr.mxu0 0.0
        %5211 = vmatpush1.xpose.msra.mxu0 0.0
        %5212 = vmatprep.subr.mxu0 0.0
        %5213 = vmatpush1.xpose.msra.mxu0 0.0
        %5214 = vmatprep.subr.mxu0 0.0
        %5215 = vmatpush1.xpose.msra.mxu0 0.0
        %5216 = vmatprep.subr.mxu0 0.0
        %5217 = vmatpush1.xpose.msra.mxu0 0.0
        %5218 = vmatprep.subr.mxu0 0.0
        %5219 = vmatpush1.xpose.msra.mxu0 0.0
        %5220 = vmatprep.subr.mxu0 0.0
        %5221 = vmatpush1.xpose.msra.mxu0 0.0
        %5222 = vmatprep.subr.mxu0 0.0
        %5223 = vmatpush1.xpose.msra.mxu0 0.0
        %5224 = vmatprep.subr.mxu0 0.0
        %5225 = vmatpush1.xpose.msra.mxu0 0.0
        %5226 = vmatprep.subr.mxu0 0.0
        %5227 = vmatpush1.xpose.msra.mxu0 0.0
        %5228 = vmatprep.subr.mxu0 0.0
        %5229 = vmatpush1.xpose.msra.mxu0 0.0
        %5230 = vmatprep.subr.mxu0 0.0
        %5231 = vmatpush1.xpose.msra.mxu0 0.0
        %5232 = vmatprep.subr.mxu0 0.0
        %5233 = vmatpush1.xpose.msra.mxu0 0.0
        %5234 = vmatprep.subr.mxu0 0.0
        %5235 = vmatpush1.xpose.msra.mxu0 0.0
        %5236 = vmatprep.subr.mxu0 0.0
        %5237 = vmatpush1.xpose.msra.mxu0 0.0
        %5238 = vmatprep.subr.mxu0 0.0
        %5239 = vmatpush1.xpose.msra.mxu0 0.0
        %5240 = vmatprep.subr.mxu0 0.0
        %5241 = vmatpush1.xpose.msra.mxu0 0.0
        %5242 = vmatprep.mubr.f32.mxu0 0.0
        %5243 = vmatmul.mubr.f32.gmra.mrb[0].mxu0 %v5174
        %v5244 = vpop.f32.mrb[0].mxu0
        %v5245 = vadd.f32 0.0, %v5244
        %v5246 = vpop.f32.mrb[0].mxu0
        %5247 = vdwg.mxu0
        %v5248 = vmul.f32 %v5245, 0.35355338
        %v5249 = vsel %vm2643, %v5248, -inf
        %5250 = vmax.xlane.f32.xlu0 %v5249
        %v5251 = vpop.xlane.xlu0 %5250
        %v5252 = vsub.f32 %v5248, %v5251
        %v5253 = vmul.f32 %v5252, 1.442695
        %v5254 = vpow.pop %v5253
        %v5255 = vsel %vm2643, %v5254, 0.0
        %5256 = vadd.xlane.f32.xlu0 %v5255
        %v5257 = vpop.xlane.xlu0 %5256
        %v5258 = vrcp.pop %v5257
        %v5259 = vmul.f32 %v5254, %v5258
        %5260 = vrot.lane.b32.xlu0 %v4667, 40
        %v5261 = vpop.permute.xlu0 %5260
        %v5263 = vsel %vm2657, %v5259, 0
        %v5265 = vsel %vm2661, %v5261, 0
        %5267 = vmatprep.subr.mxu0 0.0
        %5268 = vmatpush1.msra.mxu0 %v5265
        %5269 = vmatprep.subr.mxu0 0.0
        %5270 = vmatpush1.msra.mxu0 0.0
        %5271 = vmatprep.subr.mxu0 0.0
        %5272 = vmatpush1.msra.mxu0 0.0
        %5273 = vmatprep.subr.mxu0 0.0
        %5274 = vmatpush1.msra.mxu0 0.0
        %5275 = vmatprep.subr.mxu0 0.0
        %5276 = vmatpush1.msra.mxu0 0.0
        %5277 = vmatprep.subr.mxu0 0.0
        %5278 = vmatpush1.msra.mxu0 0.0
        %5279 = vmatprep.subr.mxu0 0.0
        %5280 = vmatpush1.msra.mxu0 0.0
        %5281 = vmatprep.subr.mxu0 0.0
        %5282 = vmatpush1.msra.mxu0 0.0
        %5283 = vmatprep.subr.mxu0 0.0
        %5284 = vmatpush1.msra.mxu0 0.0
        %5285 = vmatprep.subr.mxu0 0.0
        %5286 = vmatpush1.msra.mxu0 0.0
        %5287 = vmatprep.subr.mxu0 0.0
        %5288 = vmatpush1.msra.mxu0 0.0
        %5289 = vmatprep.subr.mxu0 0.0
        %5290 = vmatpush1.msra.mxu0 0.0
        %5291 = vmatprep.subr.mxu0 0.0
        %5292 = vmatpush1.msra.mxu0 0.0
        %5293 = vmatprep.subr.mxu0 0.0
        %5294 = vmatpush1.msra.mxu0 0.0
        %5295 = vmatprep.subr.mxu0 0.0
        %5296 = vmatpush1.msra.mxu0 0.0
        %5297 = vmatprep.subr.mxu0 0.0
        %5298 = vmatpush1.msra.mxu0 0.0
        %5299 = vmatprep.subr.mxu0 0.0
        %5300 = vmatpush1.msra.mxu0 0.0
        %5301 = vmatprep.subr.mxu0 0.0
        %5302 = vmatpush1.msra.mxu0 0.0
        %5303 = vmatprep.subr.mxu0 0.0
        %5304 = vmatpush1.msra.mxu0 0.0
        %5305 = vmatprep.subr.mxu0 0.0
        %5306 = vmatpush1.msra.mxu0 0.0
        %5307 = vmatprep.subr.mxu0 0.0
        %5308 = vmatpush1.msra.mxu0 0.0
        %5309 = vmatprep.subr.mxu0 0.0
        %5310 = vmatpush1.msra.mxu0 0.0
        %5311 = vmatprep.subr.mxu0 0.0
        %5312 = vmatpush1.msra.mxu0 0.0
        %5313 = vmatprep.subr.mxu0 0.0
        %5314 = vmatpush1.msra.mxu0 0.0
        %5315 = vmatprep.subr.mxu0 0.0
        %5316 = vmatpush1.msra.mxu0 0.0
        %5317 = vmatprep.subr.mxu0 0.0
        %5318 = vmatpush1.msra.mxu0 0.0
        %5319 = vmatprep.subr.mxu0 0.0
        %5320 = vmatpush1.msra.mxu0 0.0
        %5321 = vmatprep.subr.mxu0 0.0
        %5322 = vmatpush1.msra.mxu0 0.0
        %5323 = vmatprep.subr.mxu0 0.0
        %5324 = vmatpush1.msra.mxu0 0.0
        %5325 = vmatprep.subr.mxu0 0.0
        %5326 = vmatpush1.msra.mxu0 0.0
        %5327 = vmatprep.subr.mxu0 0.0
        %5328 = vmatpush1.msra.mxu0 0.0
        %5329 = vmatprep.subr.mxu0 0.0
        %5330 = vmatpush1.msra.mxu0 0.0
        %5331 = vmatprep.mubr.f32.mxu0 0.0
        %5332 = vmatmul.mubr.f32.gmra.mrb[0].mxu0 %v5263
        %v5333 = vpop.f32.mrb[0].mxu0
        %v5334 = vadd.f32 0.0, %v5333
        %v5335 = vpop.f32.mrb[0].mxu0
        %5336 = vdwg.mxu0
        %5338 = vrot.lane.b32.xlu0 %v5000, 8
        %v5339 = vpop.permute.xlu0 %5338
        %5342 = vrot.lane.b32.xlu0 %v5167, 16
        %v5343 = vpop.permute.xlu0 %5342
        %5346 = vrot.lane.b32.xlu0 %v5334, 24
        %v5347 = vpop.permute.xlu0 %5346
        %v5349 = vsel %vm2567, %v4833, %v5339
        %v5350 = vsel %vm3248, %v5349, %v5343
        %v5351 = vsel %vm3250, %v5350, %v5347
        %v5353 = vlaneseq
        %v5354 = vshrl.u32 %v5353, 7
        %v5355 = vsub.s32 0, %v5354
        %v5356 = vrot.slane %v2180, %v5355
        %v5359 = vsel %vm2327, %v5351, 0
        %5361 = vmatprep.subr.mxu0 0.0
        %5362 = vmatpush1.msra.mxu0 %v2176
        %5363 = vmatprep.subr.mxu0 0.0
        %5364 = vmatpush1.msra.mxu0 %v2177
        %5365 = vmatprep.subr.mxu0 0.0
        %5366 = vmatpush1.msra.mxu0 %v2178
        %5367 = vmatprep.subr.mxu0 0.0
        %5368 = vmatpush1.msra.mxu0 %v2179
        %5369 = vmatprep.subr.mxu0 0.0
        %5370 = vmatpush1.msra.mxu0 0.0
        %5371 = vmatprep.subr.mxu0 0.0
        %5372 = vmatpush1.msra.mxu0 0.0
        %5373 = vmatprep.subr.mxu0 0.0
        %5374 = vmatpush1.msra.mxu0 0.0
        %5375 = vmatprep.subr.mxu0 0.0
        %5376 = vmatpush1.msra.mxu0 0.0
        %5377 = vmatprep.subr.mxu0 0.0
        %5378 = vmatpush1.msra.mxu0 0.0
        %5379 = vmatprep.subr.mxu0 0.0
        %5380 = vmatpush1.msra.mxu0 0.0
        %5381 = vmatprep.subr.mxu0 0.0
        %5382 = vmatpush1.msra.mxu0 0.0
        %5383 = vmatprep.subr.mxu0 0.0
        %5384 = vmatpush1.msra.mxu0 0.0
        %5385 = vmatprep.subr.mxu0 0.0
        %5386 = vmatpush1.msra.mxu0 0.0
        %5387 = vmatprep.subr.mxu0 0.0
        %5388 = vmatpush1.msra.mxu0 0.0
        %5389 = vmatprep.subr.mxu0 0.0
        %5390 = vmatpush1.msra.mxu0 0.0
        %5391 = vmatprep.subr.mxu0 0.0
        %5392 = vmatpush1.msra.mxu0 0.0
        %5393 = vmatprep.subr.mxu0 0.0
        %5394 = vmatpush1.msra.mxu0 0.0
        %5395 = vmatprep.subr.mxu0 0.0
        %5396 = vmatpush1.msra.mxu0 0.0
        %5397 = vmatprep.subr.mxu0 0.0
        %5398 = vmatpush1.msra.mxu0 0.0
        %5399 = vmatprep.subr.mxu0 0.0
        %5400 = vmatpush1.msra.mxu0 0.0
        %5401 = vmatprep.subr.mxu0 0.0
        %5402 = vmatpush1.msra.mxu0 0.0
        %5403 = vmatprep.subr.mxu0 0.0
        %5404 = vmatpush1.msra.mxu0 0.0
        %5405 = vmatprep.subr.mxu0 0.0
        %5406 = vmatpush1.msra.mxu0 0.0
        %5407 = vmatprep.subr.mxu0 0.0
        %5408 = vmatpush1.msra.mxu0 0.0
        %5409 = vmatprep.subr.mxu0 0.0
        %5410 = vmatpush1.msra.mxu0 0.0
        %5411 = vmatprep.subr.mxu0 0.0
        %5412 = vmatpush1.msra.mxu0 0.0
        %5413 = vmatprep.subr.mxu0 0.0
        %5414 = vmatpush1.msra.mxu0 0.0
        %5415 = vmatprep.subr.mxu0 0.0
        %5416 = vmatpush1.msra.mxu0 0.0
        %5417 = vmatprep.subr.mxu0 0.0
        %5418 = vmatpush1.msra.mxu0 0.0
        %5419 = vmatprep.subr.mxu0 0.0
        %5420 = vmatpush1.msra.mxu0 0.0
        %5421 = vmatprep.subr.mxu0 0.0
        %5422 = vmatpush1.msra.mxu0 0.0
        %5423 = vmatprep.subr.mxu0 0.0
        %5424 = vmatpush1.msra.mxu0 0.0
        %5425 = vmatprep.mubr.f32.mxu0 0.0
        %5426 = vmatmul.mubr.f32.gmra.mrb[0].mxu0 %v5359
        %v5427 = vpop.f32.mrb[0].mxu0
        %v5428 = vadd.f32 %v5356, %v5427
        %v5429 = vpop.f32.mrb[0].mxu0
        %5430 = vdwg.mxu0
        %v5431 = vadd.f32 %v2175, %v5428
        %v5432 = vsel %vm3332, %v5431, 0.0
        %5433 = vadd.xlane.f32.xlu0 %v5432
        %v5434 = vpop.xlane.xlu0 %5433
        %v5435 = vmul.f32 %v5434, %v2340
        %v5436 = vsub.f32 %v5431, %v5435
        %v5437 = vmul.f32 %v5436, %v5436
        %v5438 = vsel %vm3332, %v5437, 0.0
        %5439 = vadd.xlane.f32.xlu0 %v5438
        %v5440 = vpop.xlane.xlu0 %5439
        %v5441 = vmul.f32 %v5440, %v2340
        %v5442 = vadd.f32 %v5441, 1e-05
        %v5443 = vrsqrt.pop %v5442
        %v5444 = vmul.f32 %v5436, %v5443
        %v5446 = vlaneseq
        %v5447 = vshrl.u32 %v5446, 7
        %v5448 = vsub.s32 0, %v5447
        %v5449 = vrot.slane %v2169, %v5448
        %v5451 = vmul.f32 %v5444, %v5449
        %v5453 = vlaneseq
        %v5454 = vshrl.u32 %v5453, 7
        %v5455 = vsub.s32 0, %v5454
        %v5456 = vrot.slane %v2170, %v5455
        %v5458 = vadd.f32 %v5451, %v5456
        %v5460 = vlaneseq
        %v5461 = vshrl.u32 %v5460, 7
        %v5462 = vsub.s32 0, %v5461
        %v5463 = vrot.slane %v2146, %v5462
        %v5466 = vsel %vm2327, %v5458, 0
        %5468 = vmatprep.subr.mxu0 0.0
        %5469 = vmatpush1.msra.mxu0 %v2142
        %5470 = vmatprep.subr.mxu0 0.0
        %5471 = vmatpush1.msra.mxu0 %v2143
        %5472 = vmatprep.subr.mxu0 0.0
        %5473 = vmatpush1.msra.mxu0 %v2144
        %5474 = vmatprep.subr.mxu0 0.0
        %5475 = vmatpush1.msra.mxu0 %v2145
        %5476 = vmatprep.subr.mxu0 0.0
        %5477 = vmatpush1.msra.mxu0 0.0
        %5478 = vmatprep.subr.mxu0 0.0
        %5479 = vmatpush1.msra.mxu0 0.0
        %5480 = vmatprep.subr.mxu0 0.0
        %5481 = vmatpush1.msra.mxu0 0.0
        %5482 = vmatprep.subr.mxu0 0.0
        %5483 = vmatpush1.msra.mxu0 0.0
        %5484 = vmatprep.subr.mxu0 0.0
        %5485 = vmatpush1.msra.mxu0 0.0
        %5486 = vmatprep.subr.mxu0 0.0
        %5487 = vmatpush1.msra.mxu0 0.0
        %5488 = vmatprep.subr.mxu0 0.0
        %5489 = vmatpush1.msra.mxu0 0.0
        %5490 = vmatprep.subr.mxu0 0.0
        %5491 = vmatpush1.msra.mxu0 0.0
        %5492 = vmatprep.subr.mxu0 0.0
        %5493 = vmatpush1.msra.mxu0 0.0
        %5494 = vmatprep.subr.mxu0 0.0
        %5495 = vmatpush1.msra.mxu0 0.0
        %5496 = vmatprep.subr.mxu0 0.0
        %5497 = vmatpush1.msra.mxu0 0.0
        %5498 = vmatprep.subr.mxu0 0.0
        %5499 = vmatpush1.msra.mxu0 0.0
        %5500 = vmatprep.subr.mxu0 0.0
        %5501 = vmatpush1.msra.mxu0 0.0
        %5502 = vmatprep.subr.mxu0 0.0
        %5503 = vmatpush1.msra.mxu0 0.0
        %5504 = vmatprep.subr.mxu0 0.0
        %5505 = vmatpush1.msra.mxu0 0.0
        %5506 = vmatprep.subr.mxu0 0.0
        %5507 = vmatpush1.msra.mxu0 0.0
        %5508 = vmatprep.subr.mxu0 0.0
        %5509 = vmatpush1.msra.mxu0 0.0
        %5510 = vmatprep.subr.mxu0 0.0
        %5511 = vmatpush1.msra.mxu0 0.0
        %5512 = vmatprep.subr.mxu0 0.0
        %5513 = vmatpush1.msra.mxu0 0.0
        %5514 = vmatprep.subr.mxu0 0.0
        %5515 = vmatpush1.msra.mxu0 0.0
        %5516 = vmatprep.subr.mxu0 0.0
        %5517 = vmatpush1.msra.mxu0 0.0
        %5518 = vmatprep.subr.mxu0 0.0
        %5519 = vmatpush1.msra.mxu0 0.0
        %5520 = vmatprep.subr.mxu0 0.0
        %5521 = vmatpush1.msra.mxu0 0.0
        %5522 = vmatprep.subr.mxu0 0.0
        %5523 = vmatpush1.msra.mxu0 0.0
        %5524 = vmatprep.subr.mxu0 0.0
        %5525 = vmatpush1.msra.mxu0 0.0
        %5526 = vmatprep.subr.mxu0 0.0
        %5527 = vmatpush1.msra.mxu0 0.0
        %5528 = vmatprep.subr.mxu0 0.0
        %5529 = vmatpush1.msra.mxu0 0.0
        %5530 = vmatprep.subr.mxu0 0.0
        %5531 = vmatpush1.msra.mxu0 0.0
        %5532 = vmatprep.mubr.f32.mxu0 0.0
        %5533 = vmatmul.mubr.f32.gmra.mrb[0].mxu0 %v5466
        %v5534 = vpop.f32.mrb[0].mxu0
        %v5535 = vadd.f32 %v5463, %v5534
        %v5536 = vpop.f32.mrb[0].mxu0
        %5537 = vdwg.mxu0
        %v5539 = vlaneseq
        %v5540 = vshrl.u32 %v5539, 7
        %v5541 = vsub.s32 0, %v5540
        %v5542 = vrot.slane %v2136, %v5541
        %v5545 = vsel %vm2327, %v2481, 0
        %v5548 = vsel %vm2327, %v2482, 0
        %v5551 = vsel %vm2327, %v2483, 0
        %v5554 = vsel %vm2327, %v2484, 0
        %5556 = vmatprep.subr.mxu0 0.0
        %5557 = vmatpush1.msra.mxu0 %v2132
        %5558 = vmatprep.subr.mxu0 0.0
        %5559 = vmatpush1.msra.mxu0 %v2133
        %5560 = vmatprep.subr.mxu0 0.0
        %5561 = vmatpush1.msra.mxu0 %v2134
        %5562 = vmatprep.subr.mxu0 0.0
        %5563 = vmatpush1.msra.mxu0 %v2135
        %5564 = vmatprep.subr.mxu0 0.0
        %5565 = vmatpush1.msra.mxu0 0.0
        %5566 = vmatprep.subr.mxu0 0.0
        %5567 = vmatpush1.msra.mxu0 0.0
        %5568 = vmatprep.subr.mxu0 0.0
        %5569 = vmatpush1.msra.mxu0 0.0
        %5570 = vmatprep.subr.mxu0 0.0
        %5571 = vmatpush1.msra.mxu0 0.0
        %5572 = vmatprep.subr.mxu0 0.0
        %5573 = vmatpush1.msra.mxu0 0.0
        %5574 = vmatprep.subr.mxu0 0.0
        %5575 = vmatpush1.msra.mxu0 0.0
        %5576 = vmatprep.subr.mxu0 0.0
        %5577 = vmatpush1.msra.mxu0 0.0
        %5578 = vmatprep.subr.mxu0 0.0
        %5579 = vmatpush1.msra.mxu0 0.0
        %5580 = vmatprep.subr.mxu0 0.0
        %5581 = vmatpush1.msra.mxu0 0.0
        %5582 = vmatprep.subr.mxu0 0.0
        %5583 = vmatpush1.msra.mxu0 0.0
        %5584 = vmatprep.subr.mxu0 0.0
        %5585 = vmatpush1.msra.mxu0 0.0
        %5586 = vmatprep.subr.mxu0 0.0
        %5587 = vmatpush1.msra.mxu0 0.0
        %5588 = vmatprep.subr.mxu0 0.0
        %5589 = vmatpush1.msra.mxu0 0.0
        %5590 = vmatprep.subr.mxu0 0.0
        %5591 = vmatpush1.msra.mxu0 0.0
        %5592 = vmatprep.subr.mxu0 0.0
        %5593 = vmatpush1.msra.mxu0 0.0
        %5594 = vmatprep.subr.mxu0 0.0
        %5595 = vmatpush1.msra.mxu0 0.0
        %5596 = vmatprep.subr.mxu0 0.0
        %5597 = vmatpush1.msra.mxu0 0.0
        %5598 = vmatprep.subr.mxu0 0.0
        %5599 = vmatpush1.msra.mxu0 0.0
        %5600 = vmatprep.subr.mxu0 0.0
        %5601 = vmatpush1.msra.mxu0 0.0
        %5602 = vmatprep.subr.mxu0 0.0
        %5603 = vmatpush1.msra.mxu0 0.0
        %5604 = vmatprep.subr.mxu0 0.0
        %5605 = vmatpush1.msra.mxu0 0.0
        %5606 = vmatprep.subr.mxu0 0.0
        %5607 = vmatpush1.msra.mxu0 0.0
        %5608 = vmatprep.subr.mxu0 0.0
        %5609 = vmatpush1.msra.mxu0 0.0
        %5610 = vmatprep.subr.mxu0 0.0
        %5611 = vmatpush1.msra.mxu0 0.0
        %5612 = vmatprep.subr.mxu0 0.0
        %5613 = vmatpush1.msra.mxu0 0.0
        %5614 = vmatprep.subr.mxu0 0.0
        %5615 = vmatpush1.msra.mxu0 0.0
        %5616 = vmatprep.subr.mxu0 0.0
        %5617 = vmatpush1.msra.mxu0 0.0
        %5618 = vmatprep.subr.mxu0 0.0
        %5619 = vmatpush1.msra.mxu0 0.0
        %5620 = vmatprep.mubr.f32.mxu0 0.0
        %5621 = vmatmul.mubr.f32.gmra.mrb[0].mxu0 %v5545
        %v5622 = vpop.f32.mrb[0].mxu0
        %v5623 = vadd.f32 %v5542, %v5622
        %v5624 = vpop.f32.mrb[0].mxu0
        %5625 = vmatprep.mubr.f32.mxu0 0.0
        %5626 = vmatmul.mubr.f32.gmra.mrb[0].mxu0 %v5548
        %v5627 = vpop.f32.mrb[0].mxu0
        %v5628 = vadd.f32 %v5542, %v5627
        %v5629 = vpop.f32.mrb[0].mxu0
        %5630 = vmatprep.mubr.f32.mxu0 0.0
        %5631 = vmatmul.mubr.f32.gmra.mrb[0].mxu0 %v5551
        %v5632 = vpop.f32.mrb[0].mxu0
        %v5633 = vadd.f32 %v5542, %v5632
        %v5634 = vpop.f32.mrb[0].mxu0
        %5635 = vmatprep.mubr.f32.mxu0 0.0
        %5636 = vmatmul.mubr.f32.gmra.mrb[0].mxu0 %v5554
        %v5637 = vpop.f32.mrb[0].mxu0
        %v5638 = vadd.f32 %v5542, %v5637
        %v5639 = vpop.f32.mrb[0].mxu0
        %5640 = vdwg.mxu0
        %v5642 = vsel %vm2567, %v5535, 0
        %v5645 = vsel %vm2567, %v5623, 0
        %v5648 = vsel %vm2567, %v5628, 0
        %v5651 = vsel %vm2567, %v5633, 0
        %v5654 = vsel %vm2567, %v5638, 0
        %5656 = vmatprep.subr.mxu0 0.0
        %5657 = vmatpush1.xpose.msra.mxu0 %v5645
        %5658 = vmatprep.subr.mxu0 0.0
        %5659 = vmatpush1.xpose.msra.mxu0 %v5648
        %5660 = vmatprep.subr.mxu0 0.0
        %5661 = vmatpush1.xpose.msra.mxu0 %v5651
        %5662 = vmatprep.subr.mxu0 0.0
        %5663 = vmatpush1.xpose.msra.mxu0 %v5654
        %5664 = vmatprep.subr.mxu0 0.0
        %5665 = vmatpush1.xpose.msra.mxu0 0.0
        %5666 = vmatprep.subr.mxu0 0.0
        %5667 = vmatpush1.xpose.msra.mxu0 0.0
        %5668 = vmatprep.subr.mxu0 0.0
        %5669 = vmatpush1.xpose.msra.mxu0 0.0
        %5670 = vmatprep.subr.mxu0 0.0
        %5671 = vmatpush1.xpose.msra.mxu0 0.0
        %5672 = vmatprep.subr.mxu0 0.0
        %5673 = vmatpush1.xpose.msra.mxu0 0.0
        %5674 = vmatprep.subr.mxu0 0.0
        %5675 = vmatpush1.xpose.msra.mxu0 0.0
        %5676 = vmatprep.subr.mxu0 0.0
        %5677 = vmatpush1.xpose.msra.mxu0 0.0
        %5678 = vmatprep.subr.mxu0 0.0
        %5679 = vmatpush1.xpose.msra.mxu0 0.0
        %5680 = vmatprep.subr.mxu0 0.0
        %5681 = vmatpush1.xpose.msra.mxu0 0.0
        %5682 = vmatprep.subr.mxu0 0.0
        %5683 = vmatpush1.xpose.msra.mxu0 0.0
        %5684 = vmatprep.subr.mxu0 0.0
        %5685 = vmatpush1.xpose.msra.mxu0 0.0
        %5686 = vmatprep.subr.mxu0 0.0
        %5687 = vmatpush1.xpose.msra.mxu0 0.0
        %5688 = vmatprep.subr.mxu0 0.0
        %5689 = vmatpush1.xpose.msra.mxu0 0.0
        %5690 = vmatprep.subr.mxu0 0.0
        %5691 = vmatpush1.xpose.msra.mxu0 0.0
        %5692 = vmatprep.subr.mxu0 0.0
        %5693 = vmatpush1.xpose.msra.mxu0 0.0
        %5694 = vmatprep.subr.mxu0 0.0
        %5695 = vmatpush1.xpose.msra.mxu0 0.0
        %5696 = vmatprep.subr.mxu0 0.0
        %5697 = vmatpush1.xpose.msra.mxu0 0.0
        %5698 = vmatprep.subr.mxu0 0.0
        %5699 = vmatpush1.xpose.msra.mxu0 0.0
        %5700 = vmatprep.subr.mxu0 0.0
        %5701 = vmatpush1.xpose.msra.mxu0 0.0
        %5702 = vmatprep.subr.mxu0 0.0
        %5703 = vmatpush1.xpose.msra.mxu0 0.0
        %5704 = vmatprep.subr.mxu0 0.0
        %5705 = vmatpush1.xpose.msra.mxu0 0.0
        %5706 = vmatprep.subr.mxu0 0.0
        %5707 = vmatpush1.xpose.msra.mxu0 0.0
        %5708 = vmatprep.subr.mxu0 0.0
        %5709 = vmatpush1.xpose.msra.mxu0 0.0
        %5710 = vmatprep.subr.mxu0 0.0
        %5711 = vmatpush1.xpose.msra.mxu0 0.0
        %5712 = vmatprep.subr.mxu0 0.0
        %5713 = vmatpush1.xpose.msra.mxu0 0.0
        %5714 = vmatprep.subr.mxu0 0.0
        %5715 = vmatpush1.xpose.msra.mxu0 0.0
        %5716 = vmatprep.subr.mxu0 0.0
        %5717 = vmatpush1.xpose.msra.mxu0 0.0
        %5718 = vmatprep.subr.mxu0 0.0
        %5719 = vmatpush1.xpose.msra.mxu0 0.0
        %5720 = vmatprep.mubr.f32.mxu0 0.0
        %5721 = vmatmul.mubr.f32.gmra.mrb[0].mxu0 %v5642
        %v5722 = vpop.f32.mrb[0].mxu0
        %v5723 = vadd.f32 0.0, %v5722
        %v5724 = vpop.f32.mrb[0].mxu0
        %5725 = vdwg.mxu0
        %v5726 = vmul.f32 %v5723, 0.35355338
        %v5727 = vsel %vm3332, %v5726, -inf
        %5728 = vmax.xlane.f32.xlu0 %v5727
        %v5729 = vpop.xlane.xlu0 %5728
        %v5730 = vsub.f32 %v5726, %v5729
        %v5731 = vmul.f32 %v5730, 1.442695
        %v5732 = vpow.pop %v5731
        %v5733 = vsel %vm3332, %v5732, 0.0
        %5734 = vadd.xlane.f32.xlu0 %v5733
        %v5735 = vpop.xlane.xlu0 %5734
        %v5736 = vrcp.pop %v5735
        %v5737 = vmul.f32 %v5732, %v5736
        %5738 = vrot.lane.b32.xlu0 %v5623, 96
        %v5739 = vpop.permute.xlu0 %5738
        %5740 = vrot.lane.b32.xlu0 %v5628, 96
        %v5741 = vpop.permute.xlu0 %5740
        %5742 = vrot.lane.b32.xlu0 %v5633, 96
        %v5743 = vpop.permute.xlu0 %5742
        %5744 = vrot.lane.b32.xlu0 %v5638, 96
        %v5745 = vpop.permute.xlu0 %5744
        %v5751 = vsel %vm2327, %v5737, 0
        %5753 = vmatprep.subr.mxu0 0.0
        %5754 = vmatpush1.msra.mxu0 %v5739
        %5755 = vmatprep.subr.mxu0 0.0
        %5756 = vmatpush1.msra.mxu0 %v5741
        %5757 = vmatprep.subr.mxu0 0.0
        %5758 = vmatpush1.msra.mxu0 %v5743
        %5759 = vmatprep.subr.mxu0 0.0
        %5760 = vmatpush1.msra.mxu0 %v5745
        %5761 = vmatprep.subr.mxu0 0.0
        %5762 = vmatpush1.msra.mxu0 0.0
        %5763 = vmatprep.subr.mxu0 0.0
        %5764 = vmatpush1.msra.mxu0 0.0
        %5765 = vmatprep.subr.mxu0 0.0
        %5766 = vmatpush1.msra.mxu0 0.0
        %5767 = vmatprep.subr.mxu0 0.0
        %5768 = vmatpush1.msra.mxu0 0.0
        %5769 = vmatprep.subr.mxu0 0.0
        %5770 = vmatpush1.msra.mxu0 0.0
        %5771 = vmatprep.subr.mxu0 0.0
        %5772 = vmatpush1.msra.mxu0 0.0
        %5773 = vmatprep.subr.mxu0 0.0
        %5774 = vmatpush1.msra.mxu0 0.0
        %5775 = vmatprep.subr.mxu0 0.0
        %5776 = vmatpush1.msra.mxu0 0.0
        %5777 = vmatprep.subr.mxu0 0.0
        %5778 = vmatpush1.msra.mxu0 0.0
        %5779 = vmatprep.subr.mxu0 0.0
        %5780 = vmatpush1.msra.mxu0 0.0
        %5781 = vmatprep.subr.mxu0 0.0
        %5782 = vmatpush1.msra.mxu0 0.0
        %5783 = vmatprep.subr.mxu0 0.0
        %5784 = vmatpush1.msra.mxu0 0.0
        %5785 = vmatprep.subr.mxu0 0.0
        %5786 = vmatpush1.msra.mxu0 0.0
        %5787 = vmatprep.subr.mxu0 0.0
        %5788 = vmatpush1.msra.mxu0 0.0
        %5789 = vmatprep.subr.mxu0 0.0
        %5790 = vmatpush1.msra.mxu0 0.0
        %5791 = vmatprep.subr.mxu0 0.0
        %5792 = vmatpush1.msra.mxu0 0.0
        %5793 = vmatprep.subr.mxu0 0.0
        %5794 = vmatpush1.msra.mxu0 0.0
        %5795 = vmatprep.subr.mxu0 0.0
        %5796 = vmatpush1.msra.mxu0 0.0
        %5797 = vmatprep.subr.mxu0 0.0
        %5798 = vmatpush1.msra.mxu0 0.0
        %5799 = vmatprep.subr.mxu0 0.0
        %5800 = vmatpush1.msra.mxu0 0.0
        %5801 = vmatprep.subr.mxu0 0.0
        %5802 = vmatpush1.msra.mxu0 0.0
        %5803 = vmatprep.subr.mxu0 0.0
        %5804 = vmatpush1.msra.mxu0 0.0
        %5805 = vmatprep.subr.mxu0 0.0
        %5806 = vmatpush1.msra.mxu0 0.0
        %5807 = vmatprep.subr.mxu0 0.0
        %5808 = vmatpush1.msra.mxu0 0.0
        %5809 = vmatprep.subr.mxu0 0.0
        %5810 = vmatpush1.msra.mxu0 0.0
        %5811 = vmatprep.subr.mxu0 0.0
        %5812 = vmatpush1.msra.mxu0 0.0
        %5813 = vmatprep.subr.mxu0 0.0
        %5814 = vmatpush1.msra.mxu0 0.0
        %5815 = vmatprep.subr.mxu0 0.0
        %5816 = vmatpush1.msra.mxu0 0.0
        %5817 = vmatprep.mubr.f32.mxu0 0.0
        %5818 = vmatmul.mubr.f32.gmra.mrb[0].mxu0 %v5751
        %v5819 = vpop.f32.mrb[0].mxu0
        %v5820 = vadd.f32 0.0, %v5819
        %v5821 = vpop.f32.mrb[0].mxu0
        %5822 = vdwg.mxu0
        %5823 = vrot.lane.b32.xlu0 %v5535, 120
        %v5824 = vpop.permute.xlu0 %5823
        %5825 = vrot.lane.b32.xlu0 %v5623, 120
        %v5826 = vpop.permute.xlu0 %5825
        %5827 = vrot.lane.b32.xlu0 %v5628, 120
        %v5828 = vpop.permute.xlu0 %5827
        %5829 = vrot.lane.b32.xlu0 %v5633, 120
        %v5830 = vpop.permute.xlu0 %5829
        %5831 = vrot.lane.b32.xlu0 %v5638, 120
        %v5832 = vpop.permute.xlu0 %5831
        %v5833 = vsel %vm2567, %v5824, 0
        %v5835 = vsel %vm2567, %v5826, 0
        %v5837 = vsel %vm2567, %v5828, 0
        %v5839 = vsel %vm2567, %v5830, 0
        %v5841 = vsel %vm2567, %v5832, 0
        %5843 = vmatprep.subr.mxu0 0.0
        %5844 = vmatpush1.xpose.msra.mxu0 %v5835
        %5845 = vmatprep.subr.mxu0 0.0
        %5846 = vmatpush1.xpose.msra.mxu0 %v5837
        %5847 = vmatprep.subr.mxu0 0.0
        %5848 = vmatpush1.xpose.msra.mxu0 %v5839
        %5849 = vmatprep.subr.mxu0 0.0
        %5850 = vmatpush1.xpose.msra.mxu0 %v5841
        %5851 = vmatprep.subr.mxu0 0.0
        %5852 = vmatpush1.xpose.msra.mxu0 0.0
        %5853 = vmatprep.subr.mxu0 0.0
        %5854 = vmatpush1.xpose.msra.mxu0 0.0
        %5855 = vmatprep.subr.mxu0 0.0
        %5856 = vmatpush1.xpose.msra.mxu0 0.0
        %5857 = vmatprep.subr.mxu0 0.0
        %5858 = vmatpush1.xpose.msra.mxu0 0.0
        %5859 = vmatprep.subr.mxu0 0.0
        %5860 = vmatpush1.xpose.msra.mxu0 0.0
        %5861 = vmatprep.subr.mxu0 0.0
        %5862 = vmatpush1.xpose.msra.mxu0 0.0
        %5863 = vmatprep.subr.mxu0 0.0
        %5864 = vmatpush1.xpose.msra.mxu0 0.0
        %5865 = vmatprep.subr.mxu0 0.0
        %5866 = vmatpush1.xpose.msra.mxu0 0.0
        %5867 = vmatprep.subr.mxu0 0.0
        %5868 = vmatpush1.xpose.msra.mxu0 0.0
        %5869 = vmatprep.subr.mxu0 0.0
        %5870 = vmatpush1.xpose.msra.mxu0 0.0
        %5871 = vmatprep.subr.mxu0 0.0
        %5872 = vmatpush1.xpose.msra.mxu0 0.0
        %5873 = vmatprep.subr.mxu0 0.0
        %5874 = vmatpush1.xpose.msra.mxu0 0.0
        %5875 = vmatprep.subr.mxu0 0.0
        %5876 = vmatpush1.xpose.msra.mxu0 0.0
        %5877 = vmatprep.subr.mxu0 0.0
        %5878 = vmatpush1.xpose.msra.mxu0 0.0
        %5879 = vmatprep.subr.mxu0 0.0
        %5880 = vmatpush1.xpose.msra.mxu0 0.0
        %5881 = vmatprep.subr.mxu0 0.0
        %5882 = vmatpush1.xpose.msra.mxu0 0.0
        %5883 = vmatprep.subr.mxu0 0.0
        %5884 = vmatpush1.xpose.msra.mxu0 0.0
        %5885 = vmatprep.subr.mxu0 0.0
        %5886 = vmatpush1.xpose.msra.mxu0 0.0
        %5887 = vmatprep.subr.mxu0 0.0
        %5888 = vmatpush1.xpose.msra.mxu0 0.0
        %5889 = vmatprep.subr.mxu0 0.0
        %5890 = vmatpush1.xpose.msra.mxu0 0.0
        %5891 = vmatprep.subr.mxu0 0.0
        %5892 = vmatpush1.xpose.msra.mxu0 0.0
        %5893 = vmatprep.subr.mxu0 0.0
        %5894 = vmatpush1.xpose.msra.mxu0 0.0
        %5895 = vmatprep.subr.mxu0 0.0
        %5896 = vmatpush1.xpose.msra.mxu0 0.0
        %5897 = vmatprep.subr.mxu0 0.0
        %5898 = vmatpush1.xpose.msra.mxu0 0.0
        %5899 = vmatprep.subr.mxu0 0.0
        %5900 = vmatpush1.xpose.msra.mxu0 0.0
        %5901 = vmatprep.subr.mxu0 0.0
        %5902 = vmatpush1.xpose.msra.mxu0 0.0
        %5903 = vmatprep.subr.mxu0 0.0
        %5904 = vmatpush1.xpose.msra.mxu0 0.0
        %5905 = vmatprep.subr.mxu0 0.0
        %5906 = vmatpush1.xpose.msra.mxu0 0.0
        %5907 = vmatprep.mubr.f32.mxu0 0.0
        %5908 = vmatmul.mubr.f32.gmra.mrb[0].mxu0 %v5833
        %v5909 = vpop.f32.mrb[0].mxu0
        %v5910 = vadd.f32 0.0, %v5909
        %v5911 = vpop.f32.mrb[0].mxu0
        %5912 = vdwg.mxu0
        %v5913 = vmul.f32 %v5910, 0.35355338
        %v5914 = vsel %vm3332, %v5913, -inf
        %5915 = vmax.xlane.f32.xlu0 %v5914
        %v5916 = vpop.xlane.xlu0 %5915
        %v5917 = vsub.f32 %v5913, %v5916
        %v5918 = vmul.f32 %v5917, 1.442695
        %v5919 = vpow.pop %v5918
        %v5920 = vsel %vm3332, %v5919, 0.0
        %5921 = vadd.xlane.f32.xlu0 %v5920
        %v5922 = vpop.xlane.xlu0 %5921
        %v5923 = vrcp.pop %v5922
        %v5924 = vmul.f32 %v5919, %v5923
        %5925 = vrot.lane.b32.xlu0 %v5623, 88
        %v5926 = vpop.permute.xlu0 %5925
        %5927 = vrot.lane.b32.xlu0 %v5628, 88
        %v5928 = vpop.permute.xlu0 %5927
        %5929 = vrot.lane.b32.xlu0 %v5633, 88
        %v5930 = vpop.permute.xlu0 %5929
        %5931 = vrot.lane.b32.xlu0 %v5638, 88
        %v5932 = vpop.permute.xlu0 %5931
        %v5938 = vsel %vm2327, %v5924, 0
        %5940 = vmatprep.subr.mxu0 0.0
        %5941 = vmatpush1.msra.mxu0 %v5926
        %5942 = vmatprep.subr.mxu0 0.0
        %5943 = vmatpush1.msra.mxu0 %v5928
        %5944 = vmatprep.subr.mxu0 0.0
        %5945 = vmatpush1.msra.mxu0 %v5930
        %5946 = vmatprep.subr.mxu0 0.0
        %5947 = vmatpush1.msra.mxu0 %v5932
        %5948 = vmatprep.subr.mxu0 0.0
        %5949 = vmatpush1.msra.mxu0 0.0
        %5950 = vmatprep.subr.mxu0 0.0
        %5951 = vmatpush1.msra.mxu0 0.0
        %5952 = vmatprep.subr.mxu0 0.0
        %5953 = vmatpush1.msra.mxu0 0.0
        %5954 = vmatprep.subr.mxu0 0.0
        %5955 = vmatpush1.msra.mxu0 0.0
        %5956 = vmatprep.subr.mxu0 0.0
        %5957 = vmatpush1.msra.mxu0 0.0
        %5958 = vmatprep.subr.mxu0 0.0
        %5959 = vmatpush1.msra.mxu0 0.0
        %5960 = vmatprep.subr.mxu0 0.0
        %5961 = vmatpush1.msra.mxu0 0.0
        %5962 = vmatprep.subr.mxu0 0.0
        %5963 = vmatpush1.msra.mxu0 0.0
        %5964 = vmatprep.subr.mxu0 0.0
        %5965 = vmatpush1.msra.mxu0 0.0
        %5966 = vmatprep.subr.mxu0 0.0
        %5967 = vmatpush1.msra.mxu0 0.0
        %5968 = vmatprep.subr.mxu0 0.0
        %5969 = vmatpush1.msra.mxu0 0.0
        %5970 = vmatprep.subr.mxu0 0.0
        %5971 = vmatpush1.msra.mxu0 0.0
        %5972 = vmatprep.subr.mxu0 0.0
        %5973 = vmatpush1.msra.mxu0 0.0
        %5974 = vmatprep.subr.mxu0 0.0
        %5975 = vmatpush1.msra.mxu0 0.0
        %5976 = vmatprep.subr.mxu0 0.0
        %5977 = vmatpush1.msra.mxu0 0.0
        %5978 = vmatprep.subr.mxu0 0.0
        %5979 = vmatpush1.msra.mxu0 0.0
        %5980 = vmatprep.subr.mxu0 0.0
        %5981 = vmatpush1.msra.mxu0 0.0
        %5982 = vmatprep.subr.mxu0 0.0
        %5983 = vmatpush1.msra.mxu0 0.0
        %5984 = vmatprep.subr.mxu0 0.0
        %5985 = vmatpush1.msra.mxu0 0.0
        %5986 = vmatprep.subr.mxu0 0.0
        %5987 = vmatpush1.msra.mxu0 0.0
        %5988 = vmatprep.subr.mxu0 0.0
        %5989 = vmatpush1.msra.mxu0 0.0
        %5990 = vmatprep.subr.mxu0 0.0
        %5991 = vmatpush1.msra.mxu0 0.0
        %5992 = vmatprep.subr.mxu0 0.0
        %5993 = vmatpush1.msra.mxu0 0.0
        %5994 = vmatprep.subr.mxu0 0.0
        %5995 = vmatpush1.msra.mxu0 0.0
        %5996 = vmatprep.subr.mxu0 0.0
        %5997 = vmatpush1.msra.mxu0 0.0
        %5998 = vmatprep.subr.mxu0 0.0
        %5999 = vmatpush1.msra.mxu0 0.0
        %6000 = vmatprep.subr.mxu0 0.0
        %6001 = vmatpush1.msra.mxu0 0.0
        %6002 = vmatprep.subr.mxu0 0.0
        %6003 = vmatpush1.msra.mxu0 0.0
        %6004 = vmatprep.mubr.f32.mxu0 0.0
        %6005 = vmatmul.mubr.f32.gmra.mrb[0].mxu0 %v5938
        %v6006 = vpop.f32.mrb[0].mxu0
        %v6007 = vadd.f32 0.0, %v6006
        %v6008 = vpop.f32.mrb[0].mxu0
        %6009 = vdwg.mxu0
        %6010 = vrot.lane.b32.xlu0 %v5535, 112
        %v6011 = vpop.permute.xlu0 %6010
        %6012 = vrot.lane.b32.xlu0 %v5623, 112
        %v6013 = vpop.permute.xlu0 %6012
        %6014 = vrot.lane.b32.xlu0 %v5628, 112
        %v6015 = vpop.permute.xlu0 %6014
        %6016 = vrot.lane.b32.xlu0 %v5633, 112
        %v6017 = vpop.permute.xlu0 %6016
        %6018 = vrot.lane.b32.xlu0 %v5638, 112
        %v6019 = vpop.permute.xlu0 %6018
        %v6020 = vsel %vm2567, %v6011, 0
        %v6022 = vsel %vm2567, %v6013, 0
        %v6024 = vsel %vm2567, %v6015, 0
        %v6026 = vsel %vm2567, %v6017, 0
        %v6028 = vsel %vm2567, %v6019, 0
        %6030 = vmatprep.subr.mxu0 0.0
        %6031 = vmatpush1.xpose.msra.mxu0 %v6022
        %6032 = vmatprep.subr.mxu0 0.0
        %6033 = vmatpush1.xpose.msra.mxu0 %v6024
        %6034 = vmatprep.subr.mxu0 0.0
        %6035 = vmatpush1.xpose.msra.mxu0 %v6026
        %6036 = vmatprep.subr.mxu0 0.0
        %6037 = vmatpush1.xpose.msra.mxu0 %v6028
        %6038 = vmatprep.subr.mxu0 0.0
        %6039 = vmatpush1.xpose.msra.mxu0 0.0
        %6040 = vmatprep.subr.mxu0 0.0
        %6041 = vmatpush1.xpose.msra.mxu0 0.0
        %6042 = vmatprep.subr.mxu0 0.0
        %6043 = vmatpush1.xpose.msra.mxu0 0.0
        %6044 = vmatprep.subr.mxu0 0.0
        %6045 = vmatpush1.xpose.msra.mxu0 0.0
        %6046 = vmatprep.subr.mxu0 0.0
        %6047 = vmatpush1.xpose.msra.mxu0 0.0
        %6048 = vmatprep.subr.mxu0 0.0
        %6049 = vmatpush1.xpose.msra.mxu0 0.0
        %6050 = vmatprep.subr.mxu0 0.0
        %6051 = vmatpush1.xpose.msra.mxu0 0.0
        %6052 = vmatprep.subr.mxu0 0.0
        %6053 = vmatpush1.xpose.msra.mxu0 0.0
        %6054 = vmatprep.subr.mxu0 0.0
        %6055 = vmatpush1.xpose.msra.mxu0 0.0
        %6056 = vmatprep.subr.mxu0 0.0
        %6057 = vmatpush1.xpose.msra.mxu0 0.0
        %6058 = vmatprep.subr.mxu0 0.0
        %6059 = vmatpush1.xpose.msra.mxu0 0.0
        %6060 = vmatprep.subr.mxu0 0.0
        %6061 = vmatpush1.xpose.msra.mxu0 0.0
        %6062 = vmatprep.subr.mxu0 0.0
        %6063 = vmatpush1.xpose.msra.mxu0 0.0
        %6064 = vmatprep.subr.mxu0 0.0
        %6065 = vmatpush1.xpose.msra.mxu0 0.0
        %6066 = vmatprep.subr.mxu0 0.0
        %6067 = vmatpush1.xpose.msra.mxu0 0.0
        %6068 = vmatprep.subr.mxu0 0.0
        %6069 = vmatpush1.xpose.msra.mxu0 0.0
        %6070 = vmatprep.subr.mxu0 0.0
        %6071 = vmatpush1.xpose.msra.mxu0 0.0
        %6072 = vmatprep.subr.mxu0 0.0
        %6073 = vmatpush1.xpose.msra.mxu0 0.0
        %6074 = vmatprep.subr.mxu0 0.0
        %6075 = vmatpush1.xpose.msra.mxu0 0.0
        %6076 = vmatprep.subr.mxu0 0.0
        %6077 = vmatpush1.xpose.msra.mxu0 0.0
        %6078 = vmatprep.subr.mxu0 0.0
        %6079 = vmatpush1.xpose.msra.mxu0 0.0
        %6080 = vmatprep.subr.mxu0 0.0
        %6081 = vmatpush1.xpose.msra.mxu0 0.0
        %6082 = vmatprep.subr.mxu0 0.0
        %6083 = vmatpush1.xpose.msra.mxu0 0.0
        %6084 = vmatprep.subr.mxu0 0.0
        %6085 = vmatpush1.xpose.msra.mxu0 0.0
        %6086 = vmatprep.subr.mxu0 0.0
        %6087 = vmatpush1.xpose.msra.mxu0 0.0
        %6088 = vmatprep.subr.mxu0 0.0
        %6089 = vmatpush1.xpose.msra.mxu0 0.0
        %6090 = vmatprep.subr.mxu0 0.0
        %6091 = vmatpush1.xpose.msra.mxu0 0.0
        %6092 = vmatprep.subr.mxu0 0.0
        %6093 = vmatpush1.xpose.msra.mxu0 0.0
        %6094 = vmatprep.mubr.f32.mxu0 0.0
        %6095 = vmatmul.mubr.f32.gmra.mrb[0].mxu0 %v6020
        %v6096 = vpop.f32.mrb[0].mxu0
        %v6097 = vadd.f32 0.0, %v6096
        %v6098 = vpop.f32.mrb[0].mxu0
        %6099 = vdwg.mxu0
        %v6100 = vmul.f32 %v6097, 0.35355338
        %v6101 = vsel %vm3332, %v6100, -inf
        %6102 = vmax.xlane.f32.xlu0 %v6101
        %v6103 = vpop.xlane.xlu0 %6102
        %v6104 = vsub.f32 %v6100, %v6103
        %v6105 = vmul.f32 %v6104, 1.442695
        %v6106 = vpow.pop %v6105
        %v6107 = vsel %vm3332, %v6106, 0.0
        %6108 = vadd.xlane.f32.xlu0 %v6107
        %v6109 = vpop.xlane.xlu0 %6108
        %v6110 = vrcp.pop %v6109
        %v6111 = vmul.f32 %v6106, %v6110
        %6112 = vrot.lane.b32.xlu0 %v5623, 80
        %v6113 = vpop.permute.xlu0 %6112
        %6114 = vrot.lane.b32.xlu0 %v5628, 80
        %v6115 = vpop.permute.xlu0 %6114
        %6116 = vrot.lane.b32.xlu0 %v5633, 80
        %v6117 = vpop.permute.xlu0 %6116
        %6118 = vrot.lane.b32.xlu0 %v5638, 80
        %v6119 = vpop.permute.xlu0 %6118
        %v6125 = vsel %vm2327, %v6111, 0
        %6127 = vmatprep.subr.mxu0 0.0
        %6128 = vmatpush1.msra.mxu0 %v6113
        %6129 = vmatprep.subr.mxu0 0.0
        %6130 = vmatpush1.msra.mxu0 %v6115
        %6131 = vmatprep.subr.mxu0 0.0
        %6132 = vmatpush1.msra.mxu0 %v6117
        %6133 = vmatprep.subr.mxu0 0.0
        %6134 = vmatpush1.msra.mxu0 %v6119
        %6135 = vmatprep.subr.mxu0 0.0
        %6136 = vmatpush1.msra.mxu0 0.0
        %6137 = vmatprep.subr.mxu0 0.0
        %6138 = vmatpush1.msra.mxu0 0.0
        %6139 = vmatprep.subr.mxu0 0.0
        %6140 = vmatpush1.msra.mxu0 0.0
        %6141 = vmatprep.subr.mxu0 0.0
        %6142 = vmatpush1.msra.mxu0 0.0
        %6143 = vmatprep.subr.mxu0 0.0
        %6144 = vmatpush1.msra.mxu0 0.0
        %6145 = vmatprep.subr.mxu0 0.0
        %6146 = vmatpush1.msra.mxu0 0.0
        %6147 = vmatprep.subr.mxu0 0.0
        %6148 = vmatpush1.msra.mxu0 0.0
        %6149 = vmatprep.subr.mxu0 0.0
        %6150 = vmatpush1.msra.mxu0 0.0
        %6151 = vmatprep.subr.mxu0 0.0
        %6152 = vmatpush1.msra.mxu0 0.0
        %6153 = vmatprep.subr.mxu0 0.0
        %6154 = vmatpush1.msra.mxu0 0.0
        %6155 = vmatprep.subr.mxu0 0.0
        %6156 = vmatpush1.msra.mxu0 0.0
        %6157 = vmatprep.subr.mxu0 0.0
        %6158 = vmatpush1.msra.mxu0 0.0
        %6159 = vmatprep.subr.mxu0 0.0
        %6160 = vmatpush1.msra.mxu0 0.0
        %6161 = vmatprep.subr.mxu0 0.0
        %6162 = vmatpush1.msra.mxu0 0.0
        %6163 = vmatprep.subr.mxu0 0.0
        %6164 = vmatpush1.msra.mxu0 0.0
        %6165 = vmatprep.subr.mxu0 0.0
        %6166 = vmatpush1.msra.mxu0 0.0
        %6167 = vmatprep.subr.mxu0 0.0
        %6168 = vmatpush1.msra.mxu0 0.0
        %6169 = vmatprep.subr.mxu0 0.0
        %6170 = vmatpush1.msra.mxu0 0.0
        %6171 = vmatprep.subr.mxu0 0.0
        %6172 = vmatpush1.msra.mxu0 0.0
        %6173 = vmatprep.subr.mxu0 0.0
        %6174 = vmatpush1.msra.mxu0 0.0
        %6175 = vmatprep.subr.mxu0 0.0
        %6176 = vmatpush1.msra.mxu0 0.0
        %6177 = vmatprep.subr.mxu0 0.0
        %6178 = vmatpush1.msra.mxu0 0.0
        %6179 = vmatprep.subr.mxu0 0.0
        %6180 = vmatpush1.msra.mxu0 0.0
        %6181 = vmatprep.subr.mxu0 0.0
        %6182 = vmatpush1.msra.mxu0 0.0
        %6183 = vmatprep.subr.mxu0 0.0
        %6184 = vmatpush1.msra.mxu0 0.0
        %6185 = vmatprep.subr.mxu0 0.0
        %6186 = vmatpush1.msra.mxu0 0.0
        %6187 = vmatprep.subr.mxu0 0.0
        %6188 = vmatpush1.msra.mxu0 0.0
        %6189 = vmatprep.subr.mxu0 0.0
        %6190 = vmatpush1.msra.mxu0 0.0
        %6191 = vmatprep.mubr.f32.mxu0 0.0
        %6192 = vmatmul.mubr.f32.gmra.mrb[0].mxu0 %v6125
        %v6193 = vpop.f32.mrb[0].mxu0
        %v6194 = vadd.f32 0.0, %v6193
        %v6195 = vpop.f32.mrb[0].mxu0
        %6196 = vdwg.mxu0
        %6197 = vrot.lane.b32.xlu0 %v5535, 104
        %v6198 = vpop.permute.xlu0 %6197
        %6199 = vrot.lane.b32.xlu0 %v5623, 104
        %v6200 = vpop.permute.xlu0 %6199
        %6201 = vrot.lane.b32.xlu0 %v5628, 104
        %v6202 = vpop.permute.xlu0 %6201
        %6203 = vrot.lane.b32.xlu0 %v5633, 104
        %v6204 = vpop.permute.xlu0 %6203
        %6205 = vrot.lane.b32.xlu0 %v5638, 104
        %v6206 = vpop.permute.xlu0 %6205
        %v6207 = vsel %vm2567, %v6198, 0
        %v6209 = vsel %vm2567, %v6200, 0
        %v6211 = vsel %vm2567, %v6202, 0
        %v6213 = vsel %vm2567, %v6204, 0
        %v6215 = vsel %vm2567, %v6206, 0
        %6217 = vmatprep.subr.mxu0 0.0
        %6218 = vmatpush1.xpose.msra.mxu0 %v6209
        %6219 = vmatprep.subr.mxu0 0.0
        %6220 = vmatpush1.xpose.msra.mxu0 %v6211
        %6221 = vmatprep.subr.mxu0 0.0
        %6222 = vmatpush1.xpose.msra.mxu0 %v6213
        %6223 = vmatprep.subr.mxu0 0.0
        %6224 = vmatpush1.xpose.msra.mxu0 %v6215
        %6225 = vmatprep.subr.mxu0 0.0
        %6226 = vmatpush1.xpose.msra.mxu0 0.0
        %6227 = vmatprep.subr.mxu0 0.0
        %6228 = vmatpush1.xpose.msra.mxu0 0.0
        %6229 = vmatprep.subr.mxu0 0.0
        %6230 = vmatpush1.xpose.msra.mxu0 0.0
        %6231 = vmatprep.subr.mxu0 0.0
        %6232 = vmatpush1.xpose.msra.mxu0 0.0
        %6233 = vmatprep.subr.mxu0 0.0
        %6234 = vmatpush1.xpose.msra.mxu0 0.0
        %6235 = vmatprep.subr.mxu0 0.0
        %6236 = vmatpush1.xpose.msra.mxu0 0.0
        %6237 = vmatprep.subr.mxu0 0.0
        %6238 = vmatpush1.xpose.msra.mxu0 0.0
        %6239 = vmatprep.subr.mxu0 0.0
        %6240 = vmatpush1.xpose.msra.mxu0 0.0
        %6241 = vmatprep.subr.mxu0 0.0
        %6242 = vmatpush1.xpose.msra.mxu0 0.0
        %6243 = vmatprep.subr.mxu0 0.0
        %6244 = vmatpush1.xpose.msra.mxu0 0.0
        %6245 = vmatprep.subr.mxu0 0.0
        %6246 = vmatpush1.xpose.msra.mxu0 0.0
        %6247 = vmatprep.subr.mxu0 0.0
        %6248 = vmatpush1.xpose.msra.mxu0 0.0
        %6249 = vmatprep.subr.mxu0 0.0
        %6250 = vmatpush1.xpose.msra.mxu0 0.0
        %6251 = vmatprep.subr.mxu0 0.0
        %6252 = vmatpush1.xpose.msra.mxu0 0.0
        %6253 = vmatprep.subr.mxu0 0.0
        %6254 = vmatpush1.xpose.msra.mxu0 0.0
        %6255 = vmatprep.subr.mxu0 0.0
        %6256 = vmatpush1.xpose.msra.mxu0 0.0
        %6257 = vmatprep.subr.mxu0 0.0
        %6258 = vmatpush1.xpose.msra.mxu0 0.0
        %6259 = vmatprep.subr.mxu0 0.0
        %6260 = vmatpush1.xpose.msra.mxu0 0.0
        %6261 = vmatprep.subr.mxu0 0.0
        %6262 = vmatpush1.xpose.msra.mxu0 0.0
        %6263 = vmatprep.subr.mxu0 0.0
        %6264 = vmatpush1.xpose.msra.mxu0 0.0
        %6265 = vmatprep.subr.mxu0 0.0
        %6266 = vmatpush1.xpose.msra.mxu0 0.0
        %6267 = vmatprep.subr.mxu0 0.0
        %6268 = vmatpush1.xpose.msra.mxu0 0.0
        %6269 = vmatprep.subr.mxu0 0.0
        %6270 = vmatpush1.xpose.msra.mxu0 0.0
        %6271 = vmatprep.subr.mxu0 0.0
        %6272 = vmatpush1.xpose.msra.mxu0 0.0
        %6273 = vmatprep.subr.mxu0 0.0
        %6274 = vmatpush1.xpose.msra.mxu0 0.0
        %6275 = vmatprep.subr.mxu0 0.0
        %6276 = vmatpush1.xpose.msra.mxu0 0.0
        %6277 = vmatprep.subr.mxu0 0.0
        %6278 = vmatpush1.xpose.msra.mxu0 0.0
        %6279 = vmatprep.subr.mxu0 0.0
        %6280 = vmatpush1.xpose.msra.mxu0 0.0
        %6281 = vmatprep.mubr.f32.mxu0 0.0
        %6282 = vmatmul.mubr.f32.gmra.mrb[0].mxu0 %v6207
        %v6283 = vpop.f32.mrb[0].mxu0
        %v6284 = vadd.f32 0.0, %v6283
        %v6285 = vpop.f32.mrb[0].mxu0
        %6286 = vdwg.mxu0
        %v6287 = vmul.f32 %v6284, 0.35355338
        %v6288 = vsel %vm3332, %v6287, -inf
        %6289 = vmax.xlane.f32.xlu0 %v6288
        %v6290 = vpop.xlane.xlu0 %6289
        %v6291 = vsub.f32 %v6287, %v6290
        %v6292 = vmul.f32 %v6291, 1.442695
        %v6293 = vpow.pop %v6292
        %v6294 = vsel %vm3332, %v6293, 0.0
        %6295 = vadd.xlane.f32.xlu0 %v6294
        %v6296 = vpop.xlane.xlu0 %6295
        %v6297 = vrcp.pop %v6296
        %v6298 = vmul.f32 %v6293, %v6297
        %6299 = vrot.lane.b32.xlu0 %v5623, 72
        %v6300 = vpop.permute.xlu0 %6299
        %6301 = vrot.lane.b32.xlu0 %v5628, 72
        %v6302 = vpop.permute.xlu0 %6301
        %6303 = vrot.lane.b32.xlu0 %v5633, 72
        %v6304 = vpop.permute.xlu0 %6303
        %6305 = vrot.lane.b32.xlu0 %v5638, 72
        %v6306 = vpop.permute.xlu0 %6305
        %v6312 = vsel %vm2327, %v6298, 0
        %6314 = vmatprep.subr.mxu0 0.0
        %6315 = vmatpush1.msra.mxu0 %v6300
        %6316 = vmatprep.subr.mxu0 0.0
        %6317 = vmatpush1.msra.mxu0 %v6302
        %6318 = vmatprep.subr.mxu0 0.0
        %6319 = vmatpush1.msra.mxu0 %v6304
        %6320 = vmatprep.subr.mxu0 0.0
        %6321 = vmatpush1.msra.mxu0 %v6306
        %6322 = vmatprep.subr.mxu0 0.0
        %6323 = vmatpush1.msra.mxu0 0.0
        %6324 = vmatprep.subr.mxu0 0.0
        %6325 = vmatpush1.msra.mxu0 0.0
        %6326 = vmatprep.subr.mxu0 0.0
        %6327 = vmatpush1.msra.mxu0 0.0
        %6328 = vmatprep.subr.mxu0 0.0
        %6329 = vmatpush1.msra.mxu0 0.0
        %6330 = vmatprep.subr.mxu0 0.0
        %6331 = vmatpush1.msra.mxu0 0.0
        %6332 = vmatprep.subr.mxu0 0.0
        %6333 = vmatpush1.msra.mxu0 0.0
        %6334 = vmatprep.subr.mxu0 0.0
        %6335 = vmatpush1.msra.mxu0 0.0
        %6336 = vmatprep.subr.mxu0 0.0
        %6337 = vmatpush1.msra.mxu0 0.0
        %6338 = vmatprep.subr.mxu0 0.0
        %6339 = vmatpush1.msra.mxu0 0.0
        %6340 = vmatprep.subr.mxu0 0.0
        %6341 = vmatpush1.msra.mxu0 0.0
        %6342 = vmatprep.subr.mxu0 0.0
        %6343 = vmatpush1.msra.mxu0 0.0
        %6344 = vmatprep.subr.mxu0 0.0
        %6345 = vmatpush1.msra.mxu0 0.0
        %6346 = vmatprep.subr.mxu0 0.0
        %6347 = vmatpush1.msra.mxu0 0.0
        %6348 = vmatprep.subr.mxu0 0.0
        %6349 = vmatpush1.msra.mxu0 0.0
        %6350 = vmatprep.subr.mxu0 0.0
        %6351 = vmatpush1.msra.mxu0 0.0
        %6352 = vmatprep.subr.mxu0 0.0
        %6353 = vmatpush1.msra.mxu0 0.0
        %6354 = vmatprep.subr.mxu0 0.0
        %6355 = vmatpush1.msra.mxu0 0.0
        %6356 = vmatprep.subr.mxu0 0.0
        %6357 = vmatpush1.msra.mxu0 0.0
        %6358 = vmatprep.subr.mxu0 0.0
        %6359 = vmatpush1.msra.mxu0 0.0
        %6360 = vmatprep.subr.mxu0 0.0
        %6361 = vmatpush1.msra.mxu0 0.0
        %6362 = vmatprep.subr.mxu0 0.0
        %6363 = vmatpush1.msra.mxu0 0.0
        %6364 = vmatprep.subr.mxu0 0.0
        %6365 = vmatpush1.msra.mxu0 0.0
        %6366 = vmatprep.subr.mxu0 0.0
        %6367 = vmatpush1.msra.mxu0 0.0
        %6368 = vmatprep.subr.mxu0 0.0
        %6369 = vmatpush1.msra.mxu0 0.0
        %6370 = vmatprep.subr.mxu0 0.0
        %6371 = vmatpush1.msra.mxu0 0.0
        %6372 = vmatprep.subr.mxu0 0.0
        %6373 = vmatpush1.msra.mxu0 0.0
        %6374 = vmatprep.subr.mxu0 0.0
        %6375 = vmatpush1.msra.mxu0 0.0
        %6376 = vmatprep.subr.mxu0 0.0
        %6377 = vmatpush1.msra.mxu0 0.0
        %6378 = vmatprep.mubr.f32.mxu0 0.0
        %6379 = vmatmul.mubr.f32.gmra.mrb[0].mxu0 %v6312
        %v6380 = vpop.f32.mrb[0].mxu0
        %v6381 = vadd.f32 0.0, %v6380
        %v6382 = vpop.f32.mrb[0].mxu0
        %6383 = vdwg.mxu0
        %6385 = vrot.lane.b32.xlu0 %v6007, 8
        %v6386 = vpop.permute.xlu0 %6385
        %6389 = vrot.lane.b32.xlu0 %v6194, 16
        %v6390 = vpop.permute.xlu0 %6389
        %6393 = vrot.lane.b32.xlu0 %v6381, 24
        %v6394 = vpop.permute.xlu0 %6393
        %v6396 = vsel %vm2567, %v5820, %v6386
        %v6397 = vsel %vm3248, %v6396, %v6390
        %v6398 = vsel %vm3250, %v6397, %v6394
        %v6400 = vlaneseq
        %v6401 = vshrl.u32 %v6400, 7
        %v6402 = vsub.s32 0, %v6401
        %v6403 = vrot.slane %v2141, %v6402
        %v6406 = vsel %vm2327, %v6398, 0
        %6408 = vmatprep.subr.mxu0 0.0
        %6409 = vmatpush1.msra.mxu0 %v2137
        %6410 = vmatprep.subr.mxu0 0.0
        %6411 = vmatpush1.msra.mxu0 %v2138
        %6412 = vmatprep.subr.mxu0 0.0
        %6413 = vmatpush1.msra.mxu0 %v2139
        %6414 = vmatprep.subr.mxu0 0.0
        %6415 = vmatpush1.msra.mxu0 %v2140
        %6416 = vmatprep.subr.mxu0 0.0
        %6417 = vmatpush1.msra.mxu0 0.0
        %6418 = vmatprep.subr.mxu0 0.0
        %6419 = vmatpush1.msra.mxu0 0.0
        %6420 = vmatprep.subr.mxu0 0.0
        %6421 = vmatpush1.msra.mxu0 0.0
        %6422 = vmatprep.subr.mxu0 0.0
        %6423 = vmatpush1.msra.mxu0 0.0
        %6424 = vmatprep.subr.mxu0 0.0
        %6425 = vmatpush1.msra.mxu0 0.0
        %6426 = vmatprep.subr.mxu0 0.0
        %6427 = vmatpush1.msra.mxu0 0.0
        %6428 = vmatprep.subr.mxu0 0.0
        %6429 = vmatpush1.msra.mxu0 0.0
        %6430 = vmatprep.subr.mxu0 0.0
        %6431 = vmatpush1.msra.mxu0 0.0
        %6432 = vmatprep.subr.mxu0 0.0
        %6433 = vmatpush1.msra.mxu0 0.0
        %6434 = vmatprep.subr.mxu0 0.0
        %6435 = vmatpush1.msra.mxu0 0.0
        %6436 = vmatprep.subr.mxu0 0.0
        %6437 = vmatpush1.msra.mxu0 0.0
        %6438 = vmatprep.subr.mxu0 0.0
        %6439 = vmatpush1.msra.mxu0 0.0
        %6440 = vmatprep.subr.mxu0 0.0
        %6441 = vmatpush1.msra.mxu0 0.0
        %6442 = vmatprep.subr.mxu0 0.0
        %6443 = vmatpush1.msra.mxu0 0.0
        %6444 = vmatprep.subr.mxu0 0.0
        %6445 = vmatpush1.msra.mxu0 0.0
        %6446 = vmatprep.subr.mxu0 0.0
        %6447 = vmatpush1.msra.mxu0 0.0
        %6448 = vmatprep.subr.mxu0 0.0
        %6449 = vmatpush1.msra.mxu0 0.0
        %6450 = vmatprep.subr.mxu0 0.0
        %6451 = vmatpush1.msra.mxu0 0.0
        %6452 = vmatprep.subr.mxu0 0.0
        %6453 = vmatpush1.msra.mxu0 0.0
        %6454 = vmatprep.subr.mxu0 0.0
        %6455 = vmatpush1.msra.mxu0 0.0
        %6456 = vmatprep.subr.mxu0 0.0
        %6457 = vmatpush1.msra.mxu0 0.0
        %6458 = vmatprep.subr.mxu0 0.0
        %6459 = vmatpush1.msra.mxu0 0.0
        %6460 = vmatprep.subr.mxu0 0.0
        %6461 = vmatpush1.msra.mxu0 0.0
        %6462 = vmatprep.subr.mxu0 0.0
        %6463 = vmatpush1.msra.mxu0 0.0
        %6464 = vmatprep.subr.mxu0 0.0
        %6465 = vmatpush1.msra.mxu0 0.0
        %6466 = vmatprep.subr.mxu0 0.0
        %6467 = vmatpush1.msra.mxu0 0.0
        %6468 = vmatprep.subr.mxu0 0.0
        %6469 = vmatpush1.msra.mxu0 0.0
        %6470 = vmatprep.subr.mxu0 0.0
        %6471 = vmatpush1.msra.mxu0 0.0
        %6472 = vmatprep.mubr.f32.mxu0 0.0
        %6473 = vmatmul.mubr.f32.gmra.mrb[0].mxu0 %v6406
        %v6474 = vpop.f32.mrb[0].mxu0
        %v6475 = vadd.f32 %v6403, %v6474
        %v6476 = vpop.f32.mrb[0].mxu0
        %6477 = vdwg.mxu0
        %v6478 = vadd.f32 %v5458, %v6475
        %v6479 = vsel %vm3332, %v6478, 0.0
        %6480 = vadd.xlane.f32.xlu0 %v6479
        %v6481 = vpop.xlane.xlu0 %6480
        %v6482 = vmul.f32 %v6481, %v2340
        %v6483 = vsub.f32 %v6478, %v6482
        %v6484 = vmul.f32 %v6483, %v6483
        %v6485 = vsel %vm3332, %v6484, 0.0
        %6486 = vadd.xlane.f32.xlu0 %v6485
        %v6487 = vpop.xlane.xlu0 %6486
        %v6488 = vmul.f32 %v6487, %v2340
        %v6489 = vadd.f32 %v6488, 1e-05
        %v6490 = vrsqrt.pop %v6489
        %v6491 = vmul.f32 %v6483, %v6490
        %v6493 = vlaneseq
        %v6494 = vshrl.u32 %v6493, 7
        %v6495 = vsub.s32 0, %v6494
        %v6496 = vrot.slane %v2171, %v6495
        %v6498 = vmul.f32 %v6491, %v6496
        %v6500 = vlaneseq
        %v6501 = vshrl.u32 %v6500, 7
        %v6502 = vsub.s32 0, %v6501
        %v6503 = vrot.slane %v2172, %v6502
        %v6505 = vadd.f32 %v6498, %v6503
        %v6507 = vlaneseq
        %v6508 = vshrl.u32 %v6507, 7
        %v6509 = vsub.s32 0, %v6508
        %v6510 = vrot.slane %v2151, %v6509
        %v6513 = vsel %vm2327, %v6505, 0
        %6515 = vmatprep.subr.mxu0 0.0
        %6516 = vmatpush1.msra.mxu0 %v2147
        %6517 = vmatprep.subr.mxu0 0.0
        %6518 = vmatpush1.msra.mxu0 %v2148
        %6519 = vmatprep.subr.mxu0 0.0
        %6520 = vmatpush1.msra.mxu0 %v2149
        %6521 = vmatprep.subr.mxu0 0.0
        %6522 = vmatpush1.msra.mxu0 %v2150
        %6523 = vmatprep.subr.mxu0 0.0
        %6524 = vmatpush1.msra.mxu0 0.0
        %6525 = vmatprep.subr.mxu0 0.0
        %6526 = vmatpush1.msra.mxu0 0.0
        %6527 = vmatprep.subr.mxu0 0.0
        %6528 = vmatpush1.msra.mxu0 0.0
        %6529 = vmatprep.subr.mxu0 0.0
        %6530 = vmatpush1.msra.mxu0 0.0
        %6531 = vmatprep.subr.mxu0 0.0
        %6532 = vmatpush1.msra.mxu0 0.0
        %6533 = vmatprep.subr.mxu0 0.0
        %6534 = vmatpush1.msra.mxu0 0.0
        %6535 = vmatprep.subr.mxu0 0.0
        %6536 = vmatpush1.msra.mxu0 0.0
        %6537 = vmatprep.subr.mxu0 0.0
        %6538 = vmatpush1.msra.mxu0 0.0
        %6539 = vmatprep.subr.mxu0 0.0
        %6540 = vmatpush1.msra.mxu0 0.0
        %6541 = vmatprep.subr.mxu0 0.0
        %6542 = vmatpush1.msra.mxu0 0.0
        %6543 = vmatprep.subr.mxu0 0.0
        %6544 = vmatpush1.msra.mxu0 0.0
        %6545 = vmatprep.subr.mxu0 0.0
        %6546 = vmatpush1.msra.mxu0 0.0
        %6547 = vmatprep.subr.mxu0 0.0
        %6548 = vmatpush1.msra.mxu0 0.0
        %6549 = vmatprep.subr.mxu0 0.0
        %6550 = vmatpush1.msra.mxu0 0.0
        %6551 = vmatprep.subr.mxu0 0.0
        %6552 = vmatpush1.msra.mxu0 0.0
        %6553 = vmatprep.subr.mxu0 0.0
        %6554 = vmatpush1.msra.mxu0 0.0
        %6555 = vmatprep.subr.mxu0 0.0
        %6556 = vmatpush1.msra.mxu0 0.0
        %6557 = vmatprep.subr.mxu0 0.0
        %6558 = vmatpush1.msra.mxu0 0.0
        %6559 = vmatprep.subr.mxu0 0.0
        %6560 = vmatpush1.msra.mxu0 0.0
        %6561 = vmatprep.subr.mxu0 0.0
        %6562 = vmatpush1.msra.mxu0 0.0
        %6563 = vmatprep.subr.mxu0 0.0
        %6564 = vmatpush1.msra.mxu0 0.0
        %6565 = vmatprep.subr.mxu0 0.0
        %6566 = vmatpush1.msra.mxu0 0.0
        %6567 = vmatprep.subr.mxu0 0.0
        %6568 = vmatpush1.msra.mxu0 0.0
        %6569 = vmatprep.subr.mxu0 0.0
        %6570 = vmatpush1.msra.mxu0 0.0
        %6571 = vmatprep.subr.mxu0 0.0
        %6572 = vmatpush1.msra.mxu0 0.0
        %6573 = vmatprep.subr.mxu0 0.0
        %6574 = vmatpush1.msra.mxu0 0.0
        %6575 = vmatprep.subr.mxu0 0.0
        %6576 = vmatpush1.msra.mxu0 0.0
        %6577 = vmatprep.subr.mxu0 0.0
        %6578 = vmatpush1.msra.mxu0 0.0
        %6579 = vmatprep.mubr.f32.mxu0 0.0
        %6580 = vmatmul.mubr.f32.gmra.mrb[0].mxu0 %v6513
        %v6581 = vpop.f32.mrb[0].mxu0
        %v6582 = vadd.f32 %v6510, %v6581
        %v6583 = vpop.f32.mrb[0].mxu0
        %6584 = vdwg.mxu0
        %v6585 = vmax.f32 %v6582, 0.0
        %v6587 = vlaneseq
        %v6588 = vshrl.u32 %v6587, 7
        %v6589 = vsub.s32 0, %v6588
        %v6590 = vrot.slane %v2168, %v6589
        %6592 = vmatprep.subr.mxu0 0.0
        %6593 = vmatpush1.msra.mxu0 %v2152
        %6594 = vmatprep.subr.mxu0 0.0
        %6595 = vmatpush1.msra.mxu0 %v2153
        %6596 = vmatprep.subr.mxu0 0.0
        %6597 = vmatpush1.msra.mxu0 %v2154
        %6598 = vmatprep.subr.mxu0 0.0
        %6599 = vmatpush1.msra.mxu0 %v2155
        %6600 = vmatprep.subr.mxu0 0.0
        %6601 = vmatpush1.msra.mxu0 %v2156
        %6602 = vmatprep.subr.mxu0 0.0
        %6603 = vmatpush1.msra.mxu0 %v2157
        %6604 = vmatprep.subr.mxu0 0.0
        %6605 = vmatpush1.msra.mxu0 %v2158
        %6606 = vmatprep.subr.mxu0 0.0
        %6607 = vmatpush1.msra.mxu0 %v2159
        %6608 = vmatprep.subr.mxu0 0.0
        %6609 = vmatpush1.msra.mxu0 %v2160
        %6610 = vmatprep.subr.mxu0 0.0
        %6611 = vmatpush1.msra.mxu0 %v2161
        %6612 = vmatprep.subr.mxu0 0.0
        %6613 = vmatpush1.msra.mxu0 %v2162
        %6614 = vmatprep.subr.mxu0 0.0
        %6615 = vmatpush1.msra.mxu0 %v2163
        %6616 = vmatprep.subr.mxu0 0.0
        %6617 = vmatpush1.msra.mxu0 %v2164
        %6618 = vmatprep.subr.mxu0 0.0
        %6619 = vmatpush1.msra.mxu0 %v2165
        %6620 = vmatprep.subr.mxu0 0.0
        %6621 = vmatpush1.msra.mxu0 %v2166
        %6622 = vmatprep.subr.mxu0 0.0
        %6623 = vmatpush1.msra.mxu0 %v2167
        %6624 = vmatprep.subr.mxu0 0.0
        %6625 = vmatpush1.msra.mxu0 0.0
        %6626 = vmatprep.subr.mxu0 0.0
        %6627 = vmatpush1.msra.mxu0 0.0
        %6628 = vmatprep.subr.mxu0 0.0
        %6629 = vmatpush1.msra.mxu0 0.0
        %6630 = vmatprep.subr.mxu0 0.0
        %6631 = vmatpush1.msra.mxu0 0.0
        %6632 = vmatprep.subr.mxu0 0.0
        %6633 = vmatpush1.msra.mxu0 0.0
        %6634 = vmatprep.subr.mxu0 0.0
        %6635 = vmatpush1.msra.mxu0 0.0
        %6636 = vmatprep.subr.mxu0 0.0
        %6637 = vmatpush1.msra.mxu0 0.0
        %6638 = vmatprep.subr.mxu0 0.0
        %6639 = vmatpush1.msra.mxu0 0.0
        %6640 = vmatprep.subr.mxu0 0.0
        %6641 = vmatpush1.msra.mxu0 0.0
        %6642 = vmatprep.subr.mxu0 0.0
        %6643 = vmatpush1.msra.mxu0 0.0
        %6644 = vmatprep.subr.mxu0 0.0
        %6645 = vmatpush1.msra.mxu0 0.0
        %6646 = vmatprep.subr.mxu0 0.0
        %6647 = vmatpush1.msra.mxu0 0.0
        %6648 = vmatprep.subr.mxu0 0.0
        %6649 = vmatpush1.msra.mxu0 0.0
        %6650 = vmatprep.subr.mxu0 0.0
        %6651 = vmatpush1.msra.mxu0 0.0
        %6652 = vmatprep.subr.mxu0 0.0
        %6653 = vmatpush1.msra.mxu0 0.0
        %6654 = vmatprep.subr.mxu0 0.0
        %6655 = vmatpush1.msra.mxu0 0.0
        %6656 = vmatprep.mubr.f32.mxu0 0.0
        %6657 = vmatmul.mubr.f32.gmra.mrb[0].mxu0 %v6585
        %v6658 = vpop.f32.mrb[0].mxu0
        %v6659 = vadd.f32 %v6590, %v6658
        %v6660 = vpop.f32.mrb[0].mxu0
        %6661 = vdwg.mxu0
        %v6662 = vadd.f32 %v6505, %v6659
        %v6663 = vsel %vm3332, %v6662, 0.0
        %6664 = vadd.xlane.f32.xlu0 %v6663
        %v6665 = vpop.xlane.xlu0 %6664
        %v6666 = vmul.f32 %v6665, %v2340
        %v6667 = vsub.f32 %v6662, %v6666
        %v6668 = vmul.f32 %v6667, %v6667
        %v6669 = vsel %vm3332, %v6668, 0.0
        %6670 = vadd.xlane.f32.xlu0 %v6669
        %v6671 = vpop.xlane.xlu0 %6670
        %v6672 = vmul.f32 %v6671, %v2340
        %v6673 = vadd.f32 %v6672, 1e-05
        %v6674 = vrsqrt.pop %v6673
        %v6675 = vmul.f32 %v6667, %v6674
        %v6677 = vlaneseq
        %v6678 = vshrl.u32 %v6677, 7
        %v6679 = vsub.s32 0, %v6678
        %v6680 = vrot.slane %v2173, %v6679
        %v6682 = vmul.f32 %v6675, %v6680
        %v6684 = vlaneseq
        %v6685 = vshrl.u32 %v6684, 7
        %v6686 = vsub.s32 0, %v6685
        %v6687 = vrot.slane %v2174, %v6686
        %v6689 = vadd.f32 %v6682, %v6687
        %v6691 = vrot.slane %v6689, 4
        %v6693 = vsel %vm2661, %v4590, %v6691
        %v6695 = vlaneseq
        %v6696 = vshrl.u32 %v6695, 7
        %v6697 = vsub.s32 0, %v6696
        %v6698 = vrot.slane %v2227, %v6697
        %v6701 = vsel %vm2327, %v6693, 0
        %6703 = vmatprep.subr.mxu0 0.0
        %6704 = vmatpush1.msra.mxu0 %v2223
        %6705 = vmatprep.subr.mxu0 0.0
        %6706 = vmatpush1.msra.mxu0 %v2224
        %6707 = vmatprep.subr.mxu0 0.0
        %6708 = vmatpush1.msra.mxu0 %v2225
        %6709 = vmatprep.subr.mxu0 0.0
        %6710 = vmatpush1.msra.mxu0 %v2226
        %6711 = vmatprep.subr.mxu0 0.0
        %6712 = vmatpush1.msra.mxu0 0.0
        %6713 = vmatprep.subr.mxu0 0.0
        %6714 = vmatpush1.msra.mxu0 0.0
        %6715 = vmatprep.subr.mxu0 0.0
        %6716 = vmatpush1.msra.mxu0 0.0
        %6717 = vmatprep.subr.mxu0 0.0
        %6718 = vmatpush1.msra.mxu0 0.0
        %6719 = vmatprep.subr.mxu0 0.0
        %6720 = vmatpush1.msra.mxu0 0.0
        %6721 = vmatprep.subr.mxu0 0.0
        %6722 = vmatpush1.msra.mxu0 0.0
        %6723 = vmatprep.subr.mxu0 0.0
        %6724 = vmatpush1.msra.mxu0 0.0
        %6725 = vmatprep.subr.mxu0 0.0
        %6726 = vmatpush1.msra.mxu0 0.0
        %6727 = vmatprep.subr.mxu0 0.0
        %6728 = vmatpush1.msra.mxu0 0.0
        %6729 = vmatprep.subr.mxu0 0.0
        %6730 = vmatpush1.msra.mxu0 0.0
        %6731 = vmatprep.subr.mxu0 0.0
        %6732 = vmatpush1.msra.mxu0 0.0
        %6733 = vmatprep.subr.mxu0 0.0
        %6734 = vmatpush1.msra.mxu0 0.0
        %6735 = vmatprep.subr.mxu0 0.0
        %6736 = vmatpush1.msra.mxu0 0.0
        %6737 = vmatprep.subr.mxu0 0.0
        %6738 = vmatpush1.msra.mxu0 0.0
        %6739 = vmatprep.subr.mxu0 0.0
        %6740 = vmatpush1.msra.mxu0 0.0
        %6741 = vmatprep.subr.mxu0 0.0
        %6742 = vmatpush1.msra.mxu0 0.0
        %6743 = vmatprep.subr.mxu0 0.0
        %6744 = vmatpush1.msra.mxu0 0.0
        %6745 = vmatprep.subr.mxu0 0.0
        %6746 = vmatpush1.msra.mxu0 0.0
        %6747 = vmatprep.subr.mxu0 0.0
        %6748 = vmatpush1.msra.mxu0 0.0
        %6749 = vmatprep.subr.mxu0 0.0
        %6750 = vmatpush1.msra.mxu0 0.0
        %6751 = vmatprep.subr.mxu0 0.0
        %6752 = vmatpush1.msra.mxu0 0.0
        %6753 = vmatprep.subr.mxu0 0.0
        %6754 = vmatpush1.msra.mxu0 0.0
        %6755 = vmatprep.subr.mxu0 0.0
        %6756 = vmatpush1.msra.mxu0 0.0
        %6757 = vmatprep.subr.mxu0 0.0
        %6758 = vmatpush1.msra.mxu0 0.0
        %6759 = vmatprep.subr.mxu0 0.0
        %6760 = vmatpush1.msra.mxu0 0.0
        %6761 = vmatprep.subr.mxu0 0.0
        %6762 = vmatpush1.msra.mxu0 0.0
        %6763 = vmatprep.subr.mxu0 0.0
        %6764 = vmatpush1.msra.mxu0 0.0
        %6765 = vmatprep.subr.mxu0 0.0
        %6766 = vmatpush1.msra.mxu0 0.0
        %6767 = vmatprep.mubr.f32.mxu0 0.0
        %6768 = vmatmul.mubr.f32.gmra.mrb[0].mxu0 %v6701
        %v6769 = vpop.f32.mrb[0].mxu0
        %v6770 = vadd.f32 %v6698, %v6769
        %v6771 = vpop.f32.mrb[0].mxu0
        %6772 = vdwg.mxu0
        %6774 = vrot.lane.b32.xlu0 %v6770, 96
        %v6775 = vpop.permute.xlu0 %6774
        %v6776 = vsel %vm2567, %v6770, 0
        %v6778 = vsel %vm2567, %v6775, 0
        %6780 = vmatprep.subr.mxu0 0.0
        %6781 = vmatpush1.xpose.msra.mxu0 %v6778
        %6782 = vmatprep.subr.mxu0 0.0
        %6783 = vmatpush1.xpose.msra.mxu0 0.0
        %6784 = vmatprep.subr.mxu0 0.0
        %6785 = vmatpush1.xpose.msra.mxu0 0.0
        %6786 = vmatprep.subr.mxu0 0.0
        %6787 = vmatpush1.xpose.msra.mxu0 0.0
        %6788 = vmatprep.subr.mxu0 0.0
        %6789 = vmatpush1.xpose.msra.mxu0 0.0
        %6790 = vmatprep.subr.mxu0 0.0
        %6791 = vmatpush1.xpose.msra.mxu0 0.0
        %6792 = vmatprep.subr.mxu0 0.0
        %6793 = vmatpush1.xpose.msra.mxu0 0.0
        %6794 = vmatprep.subr.mxu0 0.0
        %6795 = vmatpush1.xpose.msra.mxu0 0.0
        %6796 = vmatprep.subr.mxu0 0.0
        %6797 = vmatpush1.xpose.msra.mxu0 0.0
        %6798 = vmatprep.subr.mxu0 0.0
        %6799 = vmatpush1.xpose.msra.mxu0 0.0
        %6800 = vmatprep.subr.mxu0 0.0
        %6801 = vmatpush1.xpose.msra.mxu0 0.0
        %6802 = vmatprep.subr.mxu0 0.0
        %6803 = vmatpush1.xpose.msra.mxu0 0.0
        %6804 = vmatprep.subr.mxu0 0.0
        %6805 = vmatpush1.xpose.msra.mxu0 0.0
        %6806 = vmatprep.subr.mxu0 0.0
        %6807 = vmatpush1.xpose.msra.mxu0 0.0
        %6808 = vmatprep.subr.mxu0 0.0
        %6809 = vmatpush1.xpose.msra.mxu0 0.0
        %6810 = vmatprep.subr.mxu0 0.0
        %6811 = vmatpush1.xpose.msra.mxu0 0.0
        %6812 = vmatprep.subr.mxu0 0.0
        %6813 = vmatpush1.xpose.msra.mxu0 0.0
        %6814 = vmatprep.subr.mxu0 0.0
        %6815 = vmatpush1.xpose.msra.mxu0 0.0
        %6816 = vmatprep.subr.mxu0 0.0
        %6817 = vmatpush1.xpose.msra.mxu0 0.0
        %6818 = vmatprep.subr.mxu0 0.0
        %6819 = vmatpush1.xpose.msra.mxu0 0.0
        %6820 = vmatprep.subr.mxu0 0.0
        %6821 = vmatpush1.xpose.msra.mxu0 0.0
        %6822 = vmatprep.subr.mxu0 0.0
        %6823 = vmatpush1.xpose.msra.mxu0 0.0
        %6824 = vmatprep.subr.mxu0 0.0
        %6825 = vmatpush1.xpose.msra.mxu0 0.0
        %6826 = vmatprep.subr.mxu0 0.0
        %6827 = vmatpush1.xpose.msra.mxu0 0.0
        %6828 = vmatprep.subr.mxu0 0.0
        %6829 = vmatpush1.xpose.msra.mxu0 0.0
        %6830 = vmatprep.subr.mxu0 0.0
        %6831 = vmatpush1.xpose.msra.mxu0 0.0
        %6832 = vmatprep.subr.mxu0 0.0
        %6833 = vmatpush1.xpose.msra.mxu0 0.0
        %6834 = vmatprep.subr.mxu0 0.0
        %6835 = vmatpush1.xpose.msra.mxu0 0.0
        %6836 = vmatprep.subr.mxu0 0.0
        %6837 = vmatpush1.xpose.msra.mxu0 0.0
        %6838 = vmatprep.subr.mxu0 0.0
        %6839 = vmatpush1.xpose.msra.mxu0 0.0
        %6840 = vmatprep.subr.mxu0 0.0
        %6841 = vmatpush1.xpose.msra.mxu0 0.0
        %6842 = vmatprep.subr.mxu0 0.0
        %6843 = vmatpush1.xpose.msra.mxu0 0.0
        %6844 = vmatprep.mubr.f32.mxu0 0.0
        %6845 = vmatmul.mubr.f32.gmra.mrb[0].mxu0 %v6776
        %v6846 = vpop.f32.mrb[0].mxu0
        %v6847 = vadd.f32 0.0, %v6846
        %v6848 = vpop.f32.mrb[0].mxu0
        %6849 = vdwg.mxu0
        %v6850 = vmul.f32 %v6847, 0.35355338
        %v6851 = vsel %vm2567, %v6850, -inf
        %6852 = vmax.xlane.f32.xlu0 %v6851
        %v6853 = vpop.xlane.xlu0 %6852
        %v6854 = vsub.f32 %v6850, %v6853
        %v6855 = vmul.f32 %v6854, 1.442695
        %v6856 = vpow.pop %v6855
        %v6857 = vsel %vm2567, %v6856, 0.0
        %6858 = vadd.xlane.f32.xlu0 %v6857
        %v6859 = vpop.xlane.xlu0 %6858
        %v6860 = vrcp.pop %v6859
        %v6861 = vmul.f32 %v6856, %v6860
        %6862 = vrot.lane.b32.xlu0 %v6770, 64
        %v6863 = vpop.permute.xlu0 %6862
        %v6866 = vsel %vm2567, %v6861, 0
        %6868 = vmatprep.subr.mxu0 0.0
        %6869 = vmatpush1.msra.mxu0 %v6863
        %6870 = vmatprep.subr.mxu0 0.0
        %6871 = vmatpush1.msra.mxu0 0.0
        %6872 = vmatprep.subr.mxu0 0.0
        %6873 = vmatpush1.msra.mxu0 0.0
        %6874 = vmatprep.subr.mxu0 0.0
        %6875 = vmatpush1.msra.mxu0 0.0
        %6876 = vmatprep.subr.mxu0 0.0
        %6877 = vmatpush1.msra.mxu0 0.0
        %6878 = vmatprep.subr.mxu0 0.0
        %6879 = vmatpush1.msra.mxu0 0.0
        %6880 = vmatprep.subr.mxu0 0.0
        %6881 = vmatpush1.msra.mxu0 0.0
        %6882 = vmatprep.subr.mxu0 0.0
        %6883 = vmatpush1.msra.mxu0 0.0
        %6884 = vmatprep.subr.mxu0 0.0
        %6885 = vmatpush1.msra.mxu0 0.0
        %6886 = vmatprep.subr.mxu0 0.0
        %6887 = vmatpush1.msra.mxu0 0.0
        %6888 = vmatprep.subr.mxu0 0.0
        %6889 = vmatpush1.msra.mxu0 0.0
        %6890 = vmatprep.subr.mxu0 0.0
        %6891 = vmatpush1.msra.mxu0 0.0
        %6892 = vmatprep.subr.mxu0 0.0
        %6893 = vmatpush1.msra.mxu0 0.0
        %6894 = vmatprep.subr.mxu0 0.0
        %6895 = vmatpush1.msra.mxu0 0.0
        %6896 = vmatprep.subr.mxu0 0.0
        %6897 = vmatpush1.msra.mxu0 0.0
        %6898 = vmatprep.subr.mxu0 0.0
        %6899 = vmatpush1.msra.mxu0 0.0
        %6900 = vmatprep.subr.mxu0 0.0
        %6901 = vmatpush1.msra.mxu0 0.0
        %6902 = vmatprep.subr.mxu0 0.0
        %6903 = vmatpush1.msra.mxu0 0.0
        %6904 = vmatprep.subr.mxu0 0.0
        %6905 = vmatpush1.msra.mxu0 0.0
        %6906 = vmatprep.subr.mxu0 0.0
        %6907 = vmatpush1.msra.mxu0 0.0
        %6908 = vmatprep.subr.mxu0 0.0
        %6909 = vmatpush1.msra.mxu0 0.0
        %6910 = vmatprep.subr.mxu0 0.0
        %6911 = vmatpush1.msra.mxu0 0.0
        %6912 = vmatprep.subr.mxu0 0.0
        %6913 = vmatpush1.msra.mxu0 0.0
        %6914 = vmatprep.subr.mxu0 0.0
        %6915 = vmatpush1.msra.mxu0 0.0
        %6916 = vmatprep.subr.mxu0 0.0
        %6917 = vmatpush1.msra.mxu0 0.0
        %6918 = vmatprep.subr.mxu0 0.0
        %6919 = vmatpush1.msra.mxu0 0.0
        %6920 = vmatprep.subr.mxu0 0.0
        %6921 = vmatpush1.msra.mxu0 0.0
        %6922 = vmatprep.subr.mxu0 0.0
        %6923 = vmatpush1.msra.mxu0 0.0
        %6924 = vmatprep.subr.mxu0 0.0
        %6925 = vmatpush1.msra.mxu0 0.0
        %6926 = vmatprep.subr.mxu0 0.0
        %6927 = vmatpush1.msra.mxu0 0.0
        %6928 = vmatprep.subr.mxu0 0.0
        %6929 = vmatpush1.msra.mxu0 0.0
        %6930 = vmatprep.subr.mxu0 0.0
        %6931 = vmatpush1.msra.mxu0 0.0
        %6932 = vmatprep.mubr.f32.mxu0 0.0
        %6933 = vmatmul.mubr.f32.gmra.mrb[0].mxu0 %v6866
        %v6934 = vpop.f32.mrb[0].mxu0
        %v6935 = vadd.f32 0.0, %v6934
        %v6936 = vpop.f32.mrb[0].mxu0
        %6937 = vdwg.mxu0
        %6938 = vrot.lane.b32.xlu0 %v6770, 120
        %v6939 = vpop.permute.xlu0 %6938
        %6940 = vrot.lane.b32.xlu0 %v6770, 88
        %v6941 = vpop.permute.xlu0 %6940
        %v6942 = vsel %vm2567, %v6939, 0
        %v6944 = vsel %vm2567, %v6941, 0
        %6946 = vmatprep.subr.mxu0 0.0
        %6947 = vmatpush1.xpose.msra.mxu0 %v6944
        %6948 = vmatprep.subr.mxu0 0.0
        %6949 = vmatpush1.xpose.msra.mxu0 0.0
        %6950 = vmatprep.subr.mxu0 0.0
        %6951 = vmatpush1.xpose.msra.mxu0 0.0
        %6952 = vmatprep.subr.mxu0 0.0
        %6953 = vmatpush1.xpose.msra.mxu0 0.0
        %6954 = vmatprep.subr.mxu0 0.0
        %6955 = vmatpush1.xpose.msra.mxu0 0.0
        %6956 = vmatprep.subr.mxu0 0.0
        %6957 = vmatpush1.xpose.msra.mxu0 0.0
        %6958 = vmatprep.subr.mxu0 0.0
        %6959 = vmatpush1.xpose.msra.mxu0 0.0
        %6960 = vmatprep.subr.mxu0 0.0
        %6961 = vmatpush1.xpose.msra.mxu0 0.0
        %6962 = vmatprep.subr.mxu0 0.0
        %6963 = vmatpush1.xpose.msra.mxu0 0.0
        %6964 = vmatprep.subr.mxu0 0.0
        %6965 = vmatpush1.xpose.msra.mxu0 0.0
        %6966 = vmatprep.subr.mxu0 0.0
        %6967 = vmatpush1.xpose.msra.mxu0 0.0
        %6968 = vmatprep.subr.mxu0 0.0
        %6969 = vmatpush1.xpose.msra.mxu0 0.0
        %6970 = vmatprep.subr.mxu0 0.0
        %6971 = vmatpush1.xpose.msra.mxu0 0.0
        %6972 = vmatprep.subr.mxu0 0.0
        %6973 = vmatpush1.xpose.msra.mxu0 0.0
        %6974 = vmatprep.subr.mxu0 0.0
        %6975 = vmatpush1.xpose.msra.mxu0 0.0
        %6976 = vmatprep.subr.mxu0 0.0
        %6977 = vmatpush1.xpose.msra.mxu0 0.0
        %6978 = vmatprep.subr.mxu0 0.0
        %6979 = vmatpush1.xpose.msra.mxu0 0.0
        %6980 = vmatprep.subr.mxu0 0.0
        %6981 = vmatpush1.xpose.msra.mxu0 0.0
        %6982 = vmatprep.subr.mxu0 0.0
        %6983 = vmatpush1.xpose.msra.mxu0 0.0
        %6984 = vmatprep.subr.mxu0 0.0
        %6985 = vmatpush1.xpose.msra.mxu0 0.0
        %6986 = vmatprep.subr.mxu0 0.0
        %6987 = vmatpush1.xpose.msra.mxu0 0.0
        %6988 = vmatprep.subr.mxu0 0.0
        %6989 = vmatpush1.xpose.msra.mxu0 0.0
        %6990 = vmatprep.subr.mxu0 0.0
        %6991 = vmatpush1.xpose.msra.mxu0 0.0
        %6992 = vmatprep.subr.mxu0 0.0
        %6993 = vmatpush1.xpose.msra.mxu0 0.0
        %6994 = vmatprep.subr.mxu0 0.0
        %6995 = vmatpush1.xpose.msra.mxu0 0.0
        %6996 = vmatprep.subr.mxu0 0.0
        %6997 = vmatpush1.xpose.msra.mxu0 0.0
        %6998 = vmatprep.subr.mxu0 0.0
        %6999 = vmatpush1.xpose.msra.mxu0 0.0
        %7000 = vmatprep.subr.mxu0 0.0
        %7001 = vmatpush1.xpose.msra.mxu0 0.0
        %7002 = vmatprep.subr.mxu0 0.0
        %7003 = vmatpush1.xpose.msra.mxu0 0.0
        %7004 = vmatprep.subr.mxu0 0.0
        %7005 = vmatpush1.xpose.msra.mxu0 0.0
        %7006 = vmatprep.subr.mxu0 0.0
        %7007 = vmatpush1.xpose.msra.mxu0 0.0
        %7008 = vmatprep.subr.mxu0 0.0
        %7009 = vmatpush1.xpose.msra.mxu0 0.0
        %7010 = vmatprep.mubr.f32.mxu0 0.0
        %7011 = vmatmul.mubr.f32.gmra.mrb[0].mxu0 %v6942
        %v7012 = vpop.f32.mrb[0].mxu0
        %v7013 = vadd.f32 0.0, %v7012
        %v7014 = vpop.f32.mrb[0].mxu0
        %7015 = vdwg.mxu0
        %v7016 = vmul.f32 %v7013, 0.35355338
        %v7017 = vsel %vm2567, %v7016, -inf
        %7018 = vmax.xlane.f32.xlu0 %v7017
        %v7019 = vpop.xlane.xlu0 %7018
        %v7020 = vsub.f32 %v7016, %v7019
        %v7021 = vmul.f32 %v7020, 1.442695
        %v7022 = vpow.pop %v7021
        %v7023 = vsel %vm2567, %v7022, 0.0
        %7024 = vadd.xlane.f32.xlu0 %v7023
        %v7025 = vpop.xlane.xlu0 %7024
        %v7026 = vrcp.pop %v7025
        %v7027 = vmul.f32 %v7022, %v7026
        %7028 = vrot.lane.b32.xlu0 %v6770, 56
        %v7029 = vpop.permute.xlu0 %7028
        %v7032 = vsel %vm2567, %v7027, 0
        %7034 = vmatprep.subr.mxu0 0.0
        %7035 = vmatpush1.msra.mxu0 %v7029
        %7036 = vmatprep.subr.mxu0 0.0
        %7037 = vmatpush1.msra.mxu0 0.0
        %7038 = vmatprep.subr.mxu0 0.0
        %7039 = vmatpush1.msra.mxu0 0.0
        %7040 = vmatprep.subr.mxu0 0.0
        %7041 = vmatpush1.msra.mxu0 0.0
        %7042 = vmatprep.subr.mxu0 0.0
        %7043 = vmatpush1.msra.mxu0 0.0
        %7044 = vmatprep.subr.mxu0 0.0
        %7045 = vmatpush1.msra.mxu0 0.0
        %7046 = vmatprep.subr.mxu0 0.0
        %7047 = vmatpush1.msra.mxu0 0.0
        %7048 = vmatprep.subr.mxu0 0.0
        %7049 = vmatpush1.msra.mxu0 0.0
        %7050 = vmatprep.subr.mxu0 0.0
        %7051 = vmatpush1.msra.mxu0 0.0
        %7052 = vmatprep.subr.mxu0 0.0
        %7053 = vmatpush1.msra.mxu0 0.0
        %7054 = vmatprep.subr.mxu0 0.0
        %7055 = vmatpush1.msra.mxu0 0.0
        %7056 = vmatprep.subr.mxu0 0.0
        %7057 = vmatpush1.msra.mxu0 0.0
        %7058 = vmatprep.subr.mxu0 0.0
        %7059 = vmatpush1.msra.mxu0 0.0
        %7060 = vmatprep.subr.mxu0 0.0
        %7061 = vmatpush1.msra.mxu0 0.0
        %7062 = vmatprep.subr.mxu0 0.0
        %7063 = vmatpush1.msra.mxu0 0.0
        %7064 = vmatprep.subr.mxu0 0.0
        %7065 = vmatpush1.msra.mxu0 0.0
        %7066 = vmatprep.subr.mxu0 0.0
        %7067 = vmatpush1.msra.mxu0 0.0
        %7068 = vmatprep.subr.mxu0 0.0
        %7069 = vmatpush1.msra.mxu0 0.0
        %7070 = vmatprep.subr.mxu0 0.0
        %7071 = vmatpush1.msra.mxu0 0.0
        %7072 = vmatprep.subr.mxu0 0.0
        %7073 = vmatpush1.msra.mxu0 0.0
        %7074 = vmatprep.subr.mxu0 0.0
        %7075 = vmatpush1.msra.mxu0 0.0
        %7076 = vmatprep.subr.mxu0 0.0
        %7077 = vmatpush1.msra.mxu0 0.0
        %7078 = vmatprep.subr.mxu0 0.0
        %7079 = vmatpush1.msra.mxu0 0.0
        %7080 = vmatprep.subr.mxu0 0.0
        %7081 = vmatpush1.msra.mxu0 0.0
        %7082 = vmatprep.subr.mxu0 0.0
        %7083 = vmatpush1.msra.mxu0 0.0
        %7084 = vmatprep.subr.mxu0 0.0
        %7085 = vmatpush1.msra.mxu0 0.0
        %7086 = vmatprep.subr.mxu0 0.0
        %7087 = vmatpush1.msra.mxu0 0.0
        %7088 = vmatprep.subr.mxu0 0.0
        %7089 = vmatpush1.msra.mxu0 0.0
        %7090 = vmatprep.subr.mxu0 0.0
        %7091 = vmatpush1.msra.mxu0 0.0
        %7092 = vmatprep.subr.mxu0 0.0
        %7093 = vmatpush1.msra.mxu0 0.0
        %7094 = vmatprep.subr.mxu0 0.0
        %7095 = vmatpush1.msra.mxu0 0.0
        %7096 = vmatprep.subr.mxu0 0.0
        %7097 = vmatpush1.msra.mxu0 0.0
        %7098 = vmatprep.mubr.f32.mxu0 0.0
        %7099 = vmatmul.mubr.f32.gmra.mrb[0].mxu0 %v7032
        %v7100 = vpop.f32.mrb[0].mxu0
        %v7101 = vadd.f32 0.0, %v7100
        %v7102 = vpop.f32.mrb[0].mxu0
        %7103 = vdwg.mxu0
        %7104 = vrot.lane.b32.xlu0 %v6770, 112
        %v7105 = vpop.permute.xlu0 %7104
        %7106 = vrot.lane.b32.xlu0 %v6770, 80
        %v7107 = vpop.permute.xlu0 %7106
        %v7108 = vsel %vm2567, %v7105, 0
        %v7110 = vsel %vm2567, %v7107, 0
        %7112 = vmatprep.subr.mxu0 0.0
        %7113 = vmatpush1.xpose.msra.mxu0 %v7110
        %7114 = vmatprep.subr.mxu0 0.0
        %7115 = vmatpush1.xpose.msra.mxu0 0.0
        %7116 = vmatprep.subr.mxu0 0.0
        %7117 = vmatpush1.xpose.msra.mxu0 0.0
        %7118 = vmatprep.subr.mxu0 0.0
        %7119 = vmatpush1.xpose.msra.mxu0 0.0
        %7120 = vmatprep.subr.mxu0 0.0
        %7121 = vmatpush1.xpose.msra.mxu0 0.0
        %7122 = vmatprep.subr.mxu0 0.0
        %7123 = vmatpush1.xpose.msra.mxu0 0.0
        %7124 = vmatprep.subr.mxu0 0.0
        %7125 = vmatpush1.xpose.msra.mxu0 0.0
        %7126 = vmatprep.subr.mxu0 0.0
        %7127 = vmatpush1.xpose.msra.mxu0 0.0
        %7128 = vmatprep.subr.mxu0 0.0
        %7129 = vmatpush1.xpose.msra.mxu0 0.0
        %7130 = vmatprep.subr.mxu0 0.0
        %7131 = vmatpush1.xpose.msra.mxu0 0.0
        %7132 = vmatprep.subr.mxu0 0.0
        %7133 = vmatpush1.xpose.msra.mxu0 0.0
        %7134 = vmatprep.subr.mxu0 0.0
        %7135 = vmatpush1.xpose.msra.mxu0 0.0
        %7136 = vmatprep.subr.mxu0 0.0
        %7137 = vmatpush1.xpose.msra.mxu0 0.0
        %7138 = vmatprep.subr.mxu0 0.0
        %7139 = vmatpush1.xpose.msra.mxu0 0.0
        %7140 = vmatprep.subr.mxu0 0.0
        %7141 = vmatpush1.xpose.msra.mxu0 0.0
        %7142 = vmatprep.subr.mxu0 0.0
        %7143 = vmatpush1.xpose.msra.mxu0 0.0
        %7144 = vmatprep.subr.mxu0 0.0
        %7145 = vmatpush1.xpose.msra.mxu0 0.0
        %7146 = vmatprep.subr.mxu0 0.0
        %7147 = vmatpush1.xpose.msra.mxu0 0.0
        %7148 = vmatprep.subr.mxu0 0.0
        %7149 = vmatpush1.xpose.msra.mxu0 0.0
        %7150 = vmatprep.subr.mxu0 0.0
        %7151 = vmatpush1.xpose.msra.mxu0 0.0
        %7152 = vmatprep.subr.mxu0 0.0
        %7153 = vmatpush1.xpose.msra.mxu0 0.0
        %7154 = vmatprep.subr.mxu0 0.0
        %7155 = vmatpush1.xpose.msra.mxu0 0.0
        %7156 = vmatprep.subr.mxu0 0.0
        %7157 = vmatpush1.xpose.msra.mxu0 0.0
        %7158 = vmatprep.subr.mxu0 0.0
        %7159 = vmatpush1.xpose.msra.mxu0 0.0
        %7160 = vmatprep.subr.mxu0 0.0
        %7161 = vmatpush1.xpose.msra.mxu0 0.0
        %7162 = vmatprep.subr.mxu0 0.0
        %7163 = vmatpush1.xpose.msra.mxu0 0.0
        %7164 = vmatprep.subr.mxu0 0.0
        %7165 = vmatpush1.xpose.msra.mxu0 0.0
        %7166 = vmatprep.subr.mxu0 0.0
        %7167 = vmatpush1.xpose.msra.mxu0 0.0
        %7168 = vmatprep.subr.mxu0 0.0
        %7169 = vmatpush1.xpose.msra.mxu0 0.0
        %7170 = vmatprep.subr.mxu0 0.0
        %7171 = vmatpush1.xpose.msra.mxu0 0.0
        %7172 = vmatprep.subr.mxu0 0.0
        %7173 = vmatpush1.xpose.msra.mxu0 0.0
        %7174 = vmatprep.subr.mxu0 0.0
        %7175 = vmatpush1.xpose.msra.mxu0 0.0
        %7176 = vmatprep.mubr.f32.mxu0 0.0
        %7177 = vmatmul.mubr.f32.gmra.mrb[0].mxu0 %v7108
        %v7178 = vpop.f32.mrb[0].mxu0
        %v7179 = vadd.f32 0.0, %v7178
        %v7180 = vpop.f32.mrb[0].mxu0
        %7181 = vdwg.mxu0
        %v7182 = vmul.f32 %v7179, 0.35355338
        %v7183 = vsel %vm2567, %v7182, -inf
        %7184 = vmax.xlane.f32.xlu0 %v7183
        %v7185 = vpop.xlane.xlu0 %7184
        %v7186 = vsub.f32 %v7182, %v7185
        %v7187 = vmul.f32 %v7186, 1.442695
        %v7188 = vpow.pop %v7187
        %v7189 = vsel %vm2567, %v7188, 0.0
        %7190 = vadd.xlane.f32.xlu0 %v7189
        %v7191 = vpop.xlane.xlu0 %7190
        %v7192 = vrcp.pop %v7191
        %v7193 = vmul.f32 %v7188, %v7192
        %7194 = vrot.lane.b32.xlu0 %v6770, 48
        %v7195 = vpop.permute.xlu0 %7194
        %v7198 = vsel %vm2567, %v7193, 0
        %7200 = vmatprep.subr.mxu0 0.0
        %7201 = vmatpush1.msra.mxu0 %v7195
        %7202 = vmatprep.subr.mxu0 0.0
        %7203 = vmatpush1.msra.mxu0 0.0
        %7204 = vmatprep.subr.mxu0 0.0
        %7205 = vmatpush1.msra.mxu0 0.0
        %7206 = vmatprep.subr.mxu0 0.0
        %7207 = vmatpush1.msra.mxu0 0.0
        %7208 = vmatprep.subr.mxu0 0.0
        %7209 = vmatpush1.msra.mxu0 0.0
        %7210 = vmatprep.subr.mxu0 0.0
        %7211 = vmatpush1.msra.mxu0 0.0
        %7212 = vmatprep.subr.mxu0 0.0
        %7213 = vmatpush1.msra.mxu0 0.0
        %7214 = vmatprep.subr.mxu0 0.0
        %7215 = vmatpush1.msra.mxu0 0.0
        %7216 = vmatprep.subr.mxu0 0.0
        %7217 = vmatpush1.msra.mxu0 0.0
        %7218 = vmatprep.subr.mxu0 0.0
        %7219 = vmatpush1.msra.mxu0 0.0
        %7220 = vmatprep.subr.mxu0 0.0
        %7221 = vmatpush1.msra.mxu0 0.0
        %7222 = vmatprep.subr.mxu0 0.0
        %7223 = vmatpush1.msra.mxu0 0.0
        %7224 = vmatprep.subr.mxu0 0.0
        %7225 = vmatpush1.msra.mxu0 0.0
        %7226 = vmatprep.subr.mxu0 0.0
        %7227 = vmatpush1.msra.mxu0 0.0
        %7228 = vmatprep.subr.mxu0 0.0
        %7229 = vmatpush1.msra.mxu0 0.0
        %7230 = vmatprep.subr.mxu0 0.0
        %7231 = vmatpush1.msra.mxu0 0.0
        %7232 = vmatprep.subr.mxu0 0.0
        %7233 = vmatpush1.msra.mxu0 0.0
        %7234 = vmatprep.subr.mxu0 0.0
        %7235 = vmatpush1.msra.mxu0 0.0
        %7236 = vmatprep.subr.mxu0 0.0
        %7237 = vmatpush1.msra.mxu0 0.0
        %7238 = vmatprep.subr.mxu0 0.0
        %7239 = vmatpush1.msra.mxu0 0.0
        %7240 = vmatprep.subr.mxu0 0.0
        %7241 = vmatpush1.msra.mxu0 0.0
        %7242 = vmatprep.subr.mxu0 0.0
        %7243 = vmatpush1.msra.mxu0 0.0
        %7244 = vmatprep.subr.mxu0 0.0
        %7245 = vmatpush1.msra.mxu0 0.0
        %7246 = vmatprep.subr.mxu0 0.0
        %7247 = vmatpush1.msra.mxu0 0.0
        %7248 = vmatprep.subr.mxu0 0.0
        %7249 = vmatpush1.msra.mxu0 0.0
        %7250 = vmatprep.subr.mxu0 0.0
        %7251 = vmatpush1.msra.mxu0 0.0
        %7252 = vmatprep.subr.mxu0 0.0
        %7253 = vmatpush1.msra.mxu0 0.0
        %7254 = vmatprep.subr.mxu0 0.0
        %7255 = vmatpush1.msra.mxu0 0.0
        %7256 = vmatprep.subr.mxu0 0.0
        %7257 = vmatpush1.msra.mxu0 0.0
        %7258 = vmatprep.subr.mxu0 0.0
        %7259 = vmatpush1.msra.mxu0 0.0
        %7260 = vmatprep.subr.mxu0 0.0
        %7261 = vmatpush1.msra.mxu0 0.0
        %7262 = vmatprep.subr.mxu0 0.0
        %7263 = vmatpush1.msra.mxu0 0.0
        %7264 = vmatprep.mubr.f32.mxu0 0.0
        %7265 = vmatmul.mubr.f32.gmra.mrb[0].mxu0 %v7198
        %v7266 = vpop.f32.mrb[0].mxu0
        %v7267 = vadd.f32 0.0, %v7266
        %v7268 = vpop.f32.mrb[0].mxu0
        %7269 = vdwg.mxu0
        %7270 = vrot.lane.b32.xlu0 %v6770, 104
        %v7271 = vpop.permute.xlu0 %7270
        %7272 = vrot.lane.b32.xlu0 %v6770, 72
        %v7273 = vpop.permute.xlu0 %7272
        %v7274 = vsel %vm2567, %v7271, 0
        %v7276 = vsel %vm2567, %v7273, 0
        %7278 = vmatprep.subr.mxu0 0.0
        %7279 = vmatpush1.xpose.msra.mxu0 %v7276
        %7280 = vmatprep.subr.mxu0 0.0
        %7281 = vmatpush1.xpose.msra.mxu0 0.0
        %7282 = vmatprep.subr.mxu0 0.0
        %7283 = vmatpush1.xpose.msra.mxu0 0.0
        %7284 = vmatprep.subr.mxu0 0.0
        %7285 = vmatpush1.xpose.msra.mxu0 0.0
        %7286 = vmatprep.subr.mxu0 0.0
        %7287 = vmatpush1.xpose.msra.mxu0 0.0
        %7288 = vmatprep.subr.mxu0 0.0
        %7289 = vmatpush1.xpose.msra.mxu0 0.0
        %7290 = vmatprep.subr.mxu0 0.0
        %7291 = vmatpush1.xpose.msra.mxu0 0.0
        %7292 = vmatprep.subr.mxu0 0.0
        %7293 = vmatpush1.xpose.msra.mxu0 0.0
        %7294 = vmatprep.subr.mxu0 0.0
        %7295 = vmatpush1.xpose.msra.mxu0 0.0
        %7296 = vmatprep.subr.mxu0 0.0
        %7297 = vmatpush1.xpose.msra.mxu0 0.0
        %7298 = vmatprep.subr.mxu0 0.0
        %7299 = vmatpush1.xpose.msra.mxu0 0.0
        %7300 = vmatprep.subr.mxu0 0.0
        %7301 = vmatpush1.xpose.msra.mxu0 0.0
        %7302 = vmatprep.subr.mxu0 0.0
        %7303 = vmatpush1.xpose.msra.mxu0 0.0
        %7304 = vmatprep.subr.mxu0 0.0
        %7305 = vmatpush1.xpose.msra.mxu0 0.0
        %7306 = vmatprep.subr.mxu0 0.0
        %7307 = vmatpush1.xpose.msra.mxu0 0.0
        %7308 = vmatprep.subr.mxu0 0.0
        %7309 = vmatpush1.xpose.msra.mxu0 0.0
        %7310 = vmatprep.subr.mxu0 0.0
        %7311 = vmatpush1.xpose.msra.mxu0 0.0
        %7312 = vmatprep.subr.mxu0 0.0
        %7313 = vmatpush1.xpose.msra.mxu0 0.0
        %7314 = vmatprep.subr.mxu0 0.0
        %7315 = vmatpush1.xpose.msra.mxu0 0.0
        %7316 = vmatprep.subr.mxu0 0.0
        %7317 = vmatpush1.xpose.msra.mxu0 0.0
        %7318 = vmatprep.subr.mxu0 0.0
        %7319 = vmatpush1.xpose.msra.mxu0 0.0
        %7320 = vmatprep.subr.mxu0 0.0
        %7321 = vmatpush1.xpose.msra.mxu0 0.0
        %7322 = vmatprep.subr.mxu0 0.0
        %7323 = vmatpush1.xpose.msra.mxu0 0.0
        %7324 = vmatprep.subr.mxu0 0.0
        %7325 = vmatpush1.xpose.msra.mxu0 0.0
        %7326 = vmatprep.subr.mxu0 0.0
        %7327 = vmatpush1.xpose.msra.mxu0 0.0
        %7328 = vmatprep.subr.mxu0 0.0
        %7329 = vmatpush1.xpose.msra.mxu0 0.0
        %7330 = vmatprep.subr.mxu0 0.0
        %7331 = vmatpush1.xpose.msra.mxu0 0.0
        %7332 = vmatprep.subr.mxu0 0.0
        %7333 = vmatpush1.xpose.msra.mxu0 0.0
        %7334 = vmatprep.subr.mxu0 0.0
        %7335 = vmatpush1.xpose.msra.mxu0 0.0
        %7336 = vmatprep.subr.mxu0 0.0
        %7337 = vmatpush1.xpose.msra.mxu0 0.0
        %7338 = vmatprep.subr.mxu0 0.0
        %7339 = vmatpush1.xpose.msra.mxu0 0.0
        %7340 = vmatprep.subr.mxu0 0.0
        %7341 = vmatpush1.xpose.msra.mxu0 0.0
        %7342 = vmatprep.mubr.f32.mxu0 0.0
        %7343 = vmatmul.mubr.f32.gmra.mrb[0].mxu0 %v7274
        %v7344 = vpop.f32.mrb[0].mxu0
        %v7345 = vadd.f32 0.0, %v7344
        %v7346 = vpop.f32.mrb[0].mxu0
        %7347 = vdwg.mxu0
        %v7348 = vmul.f32 %v7345, 0.35355338
        %v7349 = vsel %vm2567, %v7348, -inf
        %7350 = vmax.xlane.f32.xlu0 %v7349
        %v7351 = vpop.xlane.xlu0 %7350
        %v7352 = vsub.f32 %v7348, %v7351
        %v7353 = vmul.f32 %v7352, 1.442695
        %v7354 = vpow.pop %v7353
        %v7355 = vsel %vm2567, %v7354, 0.0
        %7356 = vadd.xlane.f32.xlu0 %v7355
        %v7357 = vpop.xlane.xlu0 %7356
        %v7358 = vrcp.pop %v7357
        %v7359 = vmul.f32 %v7354, %v7358
        %7360 = vrot.lane.b32.xlu0 %v6770, 40
        %v7361 = vpop.permute.xlu0 %7360
        %v7364 = vsel %vm2567, %v7359, 0
        %7366 = vmatprep.subr.mxu0 0.0
        %7367 = vmatpush1.msra.mxu0 %v7361
        %7368 = vmatprep.subr.mxu0 0.0
        %7369 = vmatpush1.msra.mxu0 0.0
        %7370 = vmatprep.subr.mxu0 0.0
        %7371 = vmatpush1.msra.mxu0 0.0
        %7372 = vmatprep.subr.mxu0 0.0
        %7373 = vmatpush1.msra.mxu0 0.0
        %7374 = vmatprep.subr.mxu0 0.0
        %7375 = vmatpush1.msra.mxu0 0.0
        %7376 = vmatprep.subr.mxu0 0.0
        %7377 = vmatpush1.msra.mxu0 0.0
        %7378 = vmatprep.subr.mxu0 0.0
        %7379 = vmatpush1.msra.mxu0 0.0
        %7380 = vmatprep.subr.mxu0 0.0
        %7381 = vmatpush1.msra.mxu0 0.0
        %7382 = vmatprep.subr.mxu0 0.0
        %7383 = vmatpush1.msra.mxu0 0.0
        %7384 = vmatprep.subr.mxu0 0.0
        %7385 = vmatpush1.msra.mxu0 0.0
        %7386 = vmatprep.subr.mxu0 0.0
        %7387 = vmatpush1.msra.mxu0 0.0
        %7388 = vmatprep.subr.mxu0 0.0
        %7389 = vmatpush1.msra.mxu0 0.0
        %7390 = vmatprep.subr.mxu0 0.0
        %7391 = vmatpush1.msra.mxu0 0.0
        %7392 = vmatprep.subr.mxu0 0.0
        %7393 = vmatpush1.msra.mxu0 0.0
        %7394 = vmatprep.subr.mxu0 0.0
        %7395 = vmatpush1.msra.mxu0 0.0
        %7396 = vmatprep.subr.mxu0 0.0
        %7397 = vmatpush1.msra.mxu0 0.0
        %7398 = vmatprep.subr.mxu0 0.0
        %7399 = vmatpush1.msra.mxu0 0.0
        %7400 = vmatprep.subr.mxu0 0.0
        %7401 = vmatpush1.msra.mxu0 0.0
        %7402 = vmatprep.subr.mxu0 0.0
        %7403 = vmatpush1.msra.mxu0 0.0
        %7404 = vmatprep.subr.mxu0 0.0
        %7405 = vmatpush1.msra.mxu0 0.0
        %7406 = vmatprep.subr.mxu0 0.0
        %7407 = vmatpush1.msra.mxu0 0.0
        %7408 = vmatprep.subr.mxu0 0.0
        %7409 = vmatpush1.msra.mxu0 0.0
        %7410 = vmatprep.subr.mxu0 0.0
        %7411 = vmatpush1.msra.mxu0 0.0
        %7412 = vmatprep.subr.mxu0 0.0
        %7413 = vmatpush1.msra.mxu0 0.0
        %7414 = vmatprep.subr.mxu0 0.0
        %7415 = vmatpush1.msra.mxu0 0.0
        %7416 = vmatprep.subr.mxu0 0.0
        %7417 = vmatpush1.msra.mxu0 0.0
        %7418 = vmatprep.subr.mxu0 0.0
        %7419 = vmatpush1.msra.mxu0 0.0
        %7420 = vmatprep.subr.mxu0 0.0
        %7421 = vmatpush1.msra.mxu0 0.0
        %7422 = vmatprep.subr.mxu0 0.0
        %7423 = vmatpush1.msra.mxu0 0.0
        %7424 = vmatprep.subr.mxu0 0.0
        %7425 = vmatpush1.msra.mxu0 0.0
        %7426 = vmatprep.subr.mxu0 0.0
        %7427 = vmatpush1.msra.mxu0 0.0
        %7428 = vmatprep.subr.mxu0 0.0
        %7429 = vmatpush1.msra.mxu0 0.0
        %7430 = vmatprep.mubr.f32.mxu0 0.0
        %7431 = vmatmul.mubr.f32.gmra.mrb[0].mxu0 %v7364
        %v7432 = vpop.f32.mrb[0].mxu0
        %v7433 = vadd.f32 0.0, %v7432
        %v7434 = vpop.f32.mrb[0].mxu0
        %7435 = vdwg.mxu0
        %7437 = vrot.lane.b32.xlu0 %v7101, 8
        %v7438 = vpop.permute.xlu0 %7437
        %7441 = vrot.lane.b32.xlu0 %v7267, 16
        %v7442 = vpop.permute.xlu0 %7441
        %7445 = vrot.lane.b32.xlu0 %v7433, 24
        %v7446 = vpop.permute.xlu0 %7445
        %v7448 = vsel %vm2567, %v6935, %v7438
        %v7449 = vsel %vm3248, %v7448, %v7442
        %v7450 = vsel %vm3250, %v7449, %v7446
        %v7452 = vlaneseq
        %v7453 = vshrl.u32 %v7452, 7
        %v7454 = vsub.s32 0, %v7453
        %v7455 = vrot.slane %v2222, %v7454
        %v7458 = vsel %vm2327, %v7450, 0
        %7460 = vmatprep.subr.mxu0 0.0
        %7461 = vmatpush1.msra.mxu0 %v2218
        %7462 = vmatprep.subr.mxu0 0.0
        %7463 = vmatpush1.msra.mxu0 %v2219
        %7464 = vmatprep.subr.mxu0 0.0
        %7465 = vmatpush1.msra.mxu0 %v2220
        %7466 = vmatprep.subr.mxu0 0.0
        %7467 = vmatpush1.msra.mxu0 %v2221
        %7468 = vmatprep.subr.mxu0 0.0
        %7469 = vmatpush1.msra.mxu0 0.0
        %7470 = vmatprep.subr.mxu0 0.0
        %7471 = vmatpush1.msra.mxu0 0.0
        %7472 = vmatprep.subr.mxu0 0.0
        %7473 = vmatpush1.msra.mxu0 0.0
        %7474 = vmatprep.subr.mxu0 0.0
        %7475 = vmatpush1.msra.mxu0 0.0
        %7476 = vmatprep.subr.mxu0 0.0
        %7477 = vmatpush1.msra.mxu0 0.0
        %7478 = vmatprep.subr.mxu0 0.0
        %7479 = vmatpush1.msra.mxu0 0.0
        %7480 = vmatprep.subr.mxu0 0.0
        %7481 = vmatpush1.msra.mxu0 0.0
        %7482 = vmatprep.subr.mxu0 0.0
        %7483 = vmatpush1.msra.mxu0 0.0
        %7484 = vmatprep.subr.mxu0 0.0
        %7485 = vmatpush1.msra.mxu0 0.0
        %7486 = vmatprep.subr.mxu0 0.0
        %7487 = vmatpush1.msra.mxu0 0.0
        %7488 = vmatprep.subr.mxu0 0.0
        %7489 = vmatpush1.msra.mxu0 0.0
        %7490 = vmatprep.subr.mxu0 0.0
        %7491 = vmatpush1.msra.mxu0 0.0
        %7492 = vmatprep.subr.mxu0 0.0
        %7493 = vmatpush1.msra.mxu0 0.0
        %7494 = vmatprep.subr.mxu0 0.0
        %7495 = vmatpush1.msra.mxu0 0.0
        %7496 = vmatprep.subr.mxu0 0.0
        %7497 = vmatpush1.msra.mxu0 0.0
        %7498 = vmatprep.subr.mxu0 0.0
        %7499 = vmatpush1.msra.mxu0 0.0
        %7500 = vmatprep.subr.mxu0 0.0
        %7501 = vmatpush1.msra.mxu0 0.0
        %7502 = vmatprep.subr.mxu0 0.0
        %7503 = vmatpush1.msra.mxu0 0.0
        %7504 = vmatprep.subr.mxu0 0.0
        %7505 = vmatpush1.msra.mxu0 0.0
        %7506 = vmatprep.subr.mxu0 0.0
        %7507 = vmatpush1.msra.mxu0 0.0
        %7508 = vmatprep.subr.mxu0 0.0
        %7509 = vmatpush1.msra.mxu0 0.0
        %7510 = vmatprep.subr.mxu0 0.0
        %7511 = vmatpush1.msra.mxu0 0.0
        %7512 = vmatprep.subr.mxu0 0.0
        %7513 = vmatpush1.msra.mxu0 0.0
        %7514 = vmatprep.subr.mxu0 0.0
        %7515 = vmatpush1.msra.mxu0 0.0
        %7516 = vmatprep.subr.mxu0 0.0
        %7517 = vmatpush1.msra.mxu0 0.0
        %7518 = vmatprep.subr.mxu0 0.0
        %7519 = vmatpush1.msra.mxu0 0.0
        %7520 = vmatprep.subr.mxu0 0.0
        %7521 = vmatpush1.msra.mxu0 0.0
        %7522 = vmatprep.subr.mxu0 0.0
        %7523 = vmatpush1.msra.mxu0 0.0
        %7524 = vmatprep.mubr.f32.mxu0 0.0
        %7525 = vmatmul.mubr.f32.gmra.mrb[0].mxu0 %v7458
        %v7526 = vpop.f32.mrb[0].mxu0
        %v7527 = vadd.f32 %v7455, %v7526
        %v7528 = vpop.f32.mrb[0].mxu0
        %7529 = vdwg.mxu0
        %v7530 = vadd.f32 %v6693, %v7527
        %v7531 = vsel %vm2327, %v7530, 0.0
        %7532 = vadd.xlane.f32.xlu0 %v7531
        %v7533 = vpop.xlane.xlu0 %7532
        %v7534 = vmul.f32 %v7533, %v2340
        %v7535 = vsub.f32 %v7530, %v7534
        %v7536 = vmul.f32 %v7535, %v7535
        %v7537 = vsel %vm2327, %v7536, 0.0
        %7538 = vadd.xlane.f32.xlu0 %v7537
        %v7539 = vpop.xlane.xlu0 %7538
        %v7540 = vmul.f32 %v7539, %v2340
        %v7541 = vadd.f32 %v7540, 1e-05
        %v7542 = vrsqrt.pop %v7541
        %v7543 = vmul.f32 %v7535, %v7542
        %v7545 = vlaneseq
        %v7546 = vshrl.u32 %v7545, 7
        %v7547 = vsub.s32 0, %v7546
        %v7548 = vrot.slane %v2214, %v7547
        %v7550 = vmul.f32 %v7543, %v7548
        %v7552 = vlaneseq
        %v7553 = vshrl.u32 %v7552, 7
        %v7554 = vsub.s32 0, %v7553
        %v7555 = vrot.slane %v2215, %v7554
        %v7557 = vadd.f32 %v7550, %v7555
        %v7559 = vlaneseq
        %v7560 = vshrl.u32 %v7559, 7
        %v7561 = vsub.s32 0, %v7560
        %v7562 = vrot.slane %v2196, %v7561
        %v7565 = vsel %vm2327, %v7557, 0
        %7567 = vmatprep.subr.mxu0 0.0
        %7568 = vmatpush1.msra.mxu0 %v2192
        %7569 = vmatprep.subr.mxu0 0.0
        %7570 = vmatpush1.msra.mxu0 %v2193
        %7571 = vmatprep.subr.mxu0 0.0
        %7572 = vmatpush1.msra.mxu0 %v2194
        %7573 = vmatprep.subr.mxu0 0.0
        %7574 = vmatpush1.msra.mxu0 %v2195
        %7575 = vmatprep.subr.mxu0 0.0
        %7576 = vmatpush1.msra.mxu0 0.0
        %7577 = vmatprep.subr.mxu0 0.0
        %7578 = vmatpush1.msra.mxu0 0.0
        %7579 = vmatprep.subr.mxu0 0.0
        %7580 = vmatpush1.msra.mxu0 0.0
        %7581 = vmatprep.subr.mxu0 0.0
        %7582 = vmatpush1.msra.mxu0 0.0
        %7583 = vmatprep.subr.mxu0 0.0
        %7584 = vmatpush1.msra.mxu0 0.0
        %7585 = vmatprep.subr.mxu0 0.0
        %7586 = vmatpush1.msra.mxu0 0.0
        %7587 = vmatprep.subr.mxu0 0.0
        %7588 = vmatpush1.msra.mxu0 0.0
        %7589 = vmatprep.subr.mxu0 0.0
        %7590 = vmatpush1.msra.mxu0 0.0
        %7591 = vmatprep.subr.mxu0 0.0
        %7592 = vmatpush1.msra.mxu0 0.0
        %7593 = vmatprep.subr.mxu0 0.0
        %7594 = vmatpush1.msra.mxu0 0.0
        %7595 = vmatprep.subr.mxu0 0.0
        %7596 = vmatpush1.msra.mxu0 0.0
        %7597 = vmatprep.subr.mxu0 0.0
        %7598 = vmatpush1.msra.mxu0 0.0
        %7599 = vmatprep.subr.mxu0 0.0
        %7600 = vmatpush1.msra.mxu0 0.0
        %7601 = vmatprep.subr.mxu0 0.0
        %7602 = vmatpush1.msra.mxu0 0.0
        %7603 = vmatprep.subr.mxu0 0.0
        %7604 = vmatpush1.msra.mxu0 0.0
        %7605 = vmatprep.subr.mxu0 0.0
        %7606 = vmatpush1.msra.mxu0 0.0
        %7607 = vmatprep.subr.mxu0 0.0
        %7608 = vmatpush1.msra.mxu0 0.0
        %7609 = vmatprep.subr.mxu0 0.0
        %7610 = vmatpush1.msra.mxu0 0.0
        %7611 = vmatprep.subr.mxu0 0.0
        %7612 = vmatpush1.msra.mxu0 0.0
        %7613 = vmatprep.subr.mxu0 0.0
        %7614 = vmatpush1.msra.mxu0 0.0
        %7615 = vmatprep.subr.mxu0 0.0
        %7616 = vmatpush1.msra.mxu0 0.0
        %7617 = vmatprep.subr.mxu0 0.0
        %7618 = vmatpush1.msra.mxu0 0.0
        %7619 = vmatprep.subr.mxu0 0.0
        %7620 = vmatpush1.msra.mxu0 0.0
        %7621 = vmatprep.subr.mxu0 0.0
        %7622 = vmatpush1.msra.mxu0 0.0
        %7623 = vmatprep.subr.mxu0 0.0
        %7624 = vmatpush1.msra.mxu0 0.0
        %7625 = vmatprep.subr.mxu0 0.0
        %7626 = vmatpush1.msra.mxu0 0.0
        %7627 = vmatprep.subr.mxu0 0.0
        %7628 = vmatpush1.msra.mxu0 0.0
        %7629 = vmatprep.subr.mxu0 0.0
        %7630 = vmatpush1.msra.mxu0 0.0
        %7631 = vmatprep.mubr.f32.mxu0 0.0
        %7632 = vmatmul.mubr.f32.gmra.mrb[0].mxu0 %v7565
        %v7633 = vpop.f32.mrb[0].mxu0
        %v7634 = vadd.f32 %v7562, %v7633
        %v7635 = vpop.f32.mrb[0].mxu0
        %7636 = vdwg.mxu0
        %v7637 = vmax.f32 %v7634, 0.0
        %v7639 = vlaneseq
        %v7640 = vshrl.u32 %v7639, 7
        %v7641 = vsub.s32 0, %v7640
        %v7642 = vrot.slane %v2213, %v7641
        %7644 = vmatprep.subr.mxu0 0.0
        %7645 = vmatpush1.msra.mxu0 %v2197
        %7646 = vmatprep.subr.mxu0 0.0
        %7647 = vmatpush1.msra.mxu0 %v2198
        %7648 = vmatprep.subr.mxu0 0.0
        %7649 = vmatpush1.msra.mxu0 %v2199
        %7650 = vmatprep.subr.mxu0 0.0
        %7651 = vmatpush1.msra.mxu0 %v2200
        %7652 = vmatprep.subr.mxu0 0.0
        %7653 = vmatpush1.msra.mxu0 %v2201
        %7654 = vmatprep.subr.mxu0 0.0
        %7655 = vmatpush1.msra.mxu0 %v2202
        %7656 = vmatprep.subr.mxu0 0.0
        %7657 = vmatpush1.msra.mxu0 %v2203
        %7658 = vmatprep.subr.mxu0 0.0
        %7659 = vmatpush1.msra.mxu0 %v2204
        %7660 = vmatprep.subr.mxu0 0.0
        %7661 = vmatpush1.msra.mxu0 %v2205
        %7662 = vmatprep.subr.mxu0 0.0
        %7663 = vmatpush1.msra.mxu0 %v2206
        %7664 = vmatprep.subr.mxu0 0.0
        %7665 = vmatpush1.msra.mxu0 %v2207
        %7666 = vmatprep.subr.mxu0 0.0
        %7667 = vmatpush1.msra.mxu0 %v2208
        %7668 = vmatprep.subr.mxu0 0.0
        %7669 = vmatpush1.msra.mxu0 %v2209
        %7670 = vmatprep.subr.mxu0 0.0
        %7671 = vmatpush1.msra.mxu0 %v2210
        %7672 = vmatprep.subr.mxu0 0.0
        %7673 = vmatpush1.msra.mxu0 %v2211
        %7674 = vmatprep.subr.mxu0 0.0
        %7675 = vmatpush1.msra.mxu0 %v2212
        %7676 = vmatprep.subr.mxu0 0.0
        %7677 = vmatpush1.msra.mxu0 0.0
        %7678 = vmatprep.subr.mxu0 0.0
        %7679 = vmatpush1.msra.mxu0 0.0
        %7680 = vmatprep.subr.mxu0 0.0
        %7681 = vmatpush1.msra.mxu0 0.0
        %7682 = vmatprep.subr.mxu0 0.0
        %7683 = vmatpush1.msra.mxu0 0.0
        %7684 = vmatprep.subr.mxu0 0.0
        %7685 = vmatpush1.msra.mxu0 0.0
        %7686 = vmatprep.subr.mxu0 0.0
        %7687 = vmatpush1.msra.mxu0 0.0
        %7688 = vmatprep.subr.mxu0 0.0
        %7689 = vmatpush1.msra.mxu0 0.0
        %7690 = vmatprep.subr.mxu0 0.0
        %7691 = vmatpush1.msra.mxu0 0.0
        %7692 = vmatprep.subr.mxu0 0.0
        %7693 = vmatpush1.msra.mxu0 0.0
        %7694 = vmatprep.subr.mxu0 0.0
        %7695 = vmatpush1.msra.mxu0 0.0
        %7696 = vmatprep.subr.mxu0 0.0
        %7697 = vmatpush1.msra.mxu0 0.0
        %7698 = vmatprep.subr.mxu0 0.0
        %7699 = vmatpush1.msra.mxu0 0.0
        %7700 = vmatprep.subr.mxu0 0.0
        %7701 = vmatpush1.msra.mxu0 0.0
        %7702 = vmatprep.subr.mxu0 0.0
        %7703 = vmatpush1.msra.mxu0 0.0
        %7704 = vmatprep.subr.mxu0 0.0
        %7705 = vmatpush1.msra.mxu0 0.0
        %7706 = vmatprep.subr.mxu0 0.0
        %7707 = vmatpush1.msra.mxu0 0.0
        %7708 = vmatprep.mubr.f32.mxu0 0.0
        %7709 = vmatmul.mubr.f32.gmra.mrb[0].mxu0 %v7637
        %v7710 = vpop.f32.mrb[0].mxu0
        %v7711 = vadd.f32 %v7642, %v7710
        %v7712 = vpop.f32.mrb[0].mxu0
        %7713 = vdwg.mxu0
        %v7714 = vadd.f32 %v7557, %v7711
        %v7715 = vsel %vm2327, %v7714, 0.0
        %7716 = vadd.xlane.f32.xlu0 %v7715
        %v7717 = vpop.xlane.xlu0 %7716
        %v7718 = vmul.f32 %v7717, %v2340
        %v7719 = vsub.f32 %v7714, %v7718
        %v7720 = vmul.f32 %v7719, %v7719
        %v7721 = vsel %vm2327, %v7720, 0.0
        %7722 = vadd.xlane.f32.xlu0 %v7721
        %v7723 = vpop.xlane.xlu0 %7722
        %v7724 = vmul.f32 %v7723, %v2340
        %v7725 = vadd.f32 %v7724, 1e-05
        %v7726 = vrsqrt.pop %v7725
        %v7727 = vmul.f32 %v7719, %v7726
        %v7729 = vlaneseq
        %v7730 = vshrl.u32 %v7729, 7
        %v7731 = vsub.s32 0, %v7730
        %v7732 = vrot.slane %v2216, %v7731
        %v7734 = vmul.f32 %v7727, %v7732
        %v7736 = vlaneseq
        %v7737 = vshrl.u32 %v7736, 7
        %v7738 = vsub.s32 0, %v7737
        %v7739 = vrot.slane %v2217, %v7738
        %v7741 = vadd.f32 %v7734, %v7739
        %v7742 = vsel %vm2327, %v7741, 0.0
        %7743 = vadd.xlane.f32.xlu0 %v7742
        %v7744 = vpop.xlane.xlu0 %7743
        %v7745 = vmul.f32 %v7744, %v2340
        %v7746 = vsub.f32 %v7741, %v7745
        %v7747 = vmul.f32 %v7746, %v7746
        %v7748 = vsel %vm2327, %v7747, 0.0
        %7749 = vadd.xlane.f32.xlu0 %v7748
        %v7750 = vpop.xlane.xlu0 %7749
        %v7751 = vmul.f32 %v7750, %v2340
        %v7752 = vadd.f32 %v7751, 1e-05
        %v7753 = vrsqrt.pop %v7752
        %v7754 = vmul.f32 %v7746, %v7753
        %v7755 = vmul.f32 %v7754, %v2191
        %v7756 = vadd.f32 %v7755, %v2190
        %7757 = vst.msk [vmem:[#allocation2] sm:$0xff] %vm2327, %v7756
        %v7758 = vld [vmem:[#allocation2] sm:$0x1]
        %v7760 = vsel %vm2327, %v7758, 0
        %7762 = vmatprep.subr.mxu0 0.0
        %7763 = vmatpush1.msra.mxu0 %v2228
        %7764 = vmatprep.subr.mxu0 0.0
        %7765 = vmatpush1.msra.mxu0 %v2229
        %7766 = vmatprep.subr.mxu0 0.0
        %7767 = vmatpush1.msra.mxu0 %v2230
        %7768 = vmatprep.subr.mxu0 0.0
        %7769 = vmatpush1.msra.mxu0 %v2231
        %7770 = vmatprep.subr.mxu0 0.0
        %7771 = vmatpush1.msra.mxu0 0.0
        %7772 = vmatprep.subr.mxu0 0.0
        %7773 = vmatpush1.msra.mxu0 0.0
        %7774 = vmatprep.subr.mxu0 0.0
        %7775 = vmatpush1.msra.mxu0 0.0
        %7776 = vmatprep.subr.mxu0 0.0
        %7777 = vmatpush1.msra.mxu0 0.0
        %7778 = vmatprep.subr.mxu0 0.0
        %7779 = vmatpush1.msra.mxu0 0.0
        %7780 = vmatprep.subr.mxu0 0.0
        %7781 = vmatpush1.msra.mxu0 0.0
        %7782 = vmatprep.subr.mxu0 0.0
        %7783 = vmatpush1.msra.mxu0 0.0
        %7784 = vmatprep.subr.mxu0 0.0
        %7785 = vmatpush1.msra.mxu0 0.0
        %7786 = vmatprep.subr.mxu0 0.0
        %7787 = vmatpush1.msra.mxu0 0.0
        %7788 = vmatprep.subr.mxu0 0.0
        %7789 = vmatpush1.msra.mxu0 0.0
        %7790 = vmatprep.subr.mxu0 0.0
        %7791 = vmatpush1.msra.mxu0 0.0
        %7792 = vmatprep.subr.mxu0 0.0
        %7793 = vmatpush1.msra.mxu0 0.0
        %7794 = vmatprep.subr.mxu0 0.0
        %7795 = vmatpush1.msra.mxu0 0.0
        %7796 = vmatprep.subr.mxu0 0.0
        %7797 = vmatpush1.msra.mxu0 0.0
        %7798 = vmatprep.subr.mxu0 0.0
        %7799 = vmatpush1.msra.mxu0 0.0
        %7800 = vmatprep.subr.mxu0 0.0
        %7801 = vmatpush1.msra.mxu0 0.0
        %7802 = vmatprep.subr.mxu0 0.0
        %7803 = vmatpush1.msra.mxu0 0.0
        %7804 = vmatprep.subr.mxu0 0.0
        %7805 = vmatpush1.msra.mxu0 0.0
        %7806 = vmatprep.subr.mxu0 0.0
        %7807 = vmatpush1.msra.mxu0 0.0
        %7808 = vmatprep.subr.mxu0 0.0
        %7809 = vmatpush1.msra.mxu0 0.0
        %7810 = vmatprep.subr.mxu0 0.0
        %7811 = vmatpush1.msra.mxu0 0.0
        %7812 = vmatprep.subr.mxu0 0.0
        %7813 = vmatpush1.msra.mxu0 0.0
        %7814 = vmatprep.subr.mxu0 0.0
        %7815 = vmatpush1.msra.mxu0 0.0
        %7816 = vmatprep.subr.mxu0 0.0
        %7817 = vmatpush1.msra.mxu0 0.0
        %7818 = vmatprep.subr.mxu0 0.0
        %7819 = vmatpush1.msra.mxu0 0.0
        %7820 = vmatprep.subr.mxu0 0.0
        %7821 = vmatpush1.msra.mxu0 0.0
        %7822 = vmatprep.subr.mxu0 0.0
        %7823 = vmatpush1.msra.mxu0 0.0
        %7824 = vmatprep.subr.mxu0 0.0
        %7825 = vmatpush1.msra.mxu0 0.0
        %7826 = vmatprep.mubr.f32.mxu0 0.0
        %7827 = vmatmul.mubr.f32.gmra.mrb[0].mxu0 %v7760
        %v7828 = vpop.f32.mrb[0].mxu0
        %v7829 = vadd.f32 0.0, %v7828
        %v7830 = vpop.f32.mrb[0].mxu0
        %7831 = vdwg.mxu0
        %v7832 = vadd.f32 %v2260, %v7829
        %v7833 = vld [vmem:[#allocation2 + $0x1] sm:$0x1]
        %v7835 = vsel %vm2327, %v7833, 0
        %7837 = vmatprep.subr.mxu0 0.0
        %7838 = vmatpush1.msra.mxu0 %v2232
        %7839 = vmatprep.subr.mxu0 0.0
        %7840 = vmatpush1.msra.mxu0 %v2233
        %7841 = vmatprep.subr.mxu0 0.0
        %7842 = vmatpush1.msra.mxu0 %v2234
        %7843 = vmatprep.subr.mxu0 0.0
        %7844 = vmatpush1.msra.mxu0 %v2235
        %7845 = vmatprep.subr.mxu0 0.0
        %7846 = vmatpush1.msra.mxu0 0.0
        %7847 = vmatprep.subr.mxu0 0.0
        %7848 = vmatpush1.msra.mxu0 0.0
        %7849 = vmatprep.subr.mxu0 0.0
        %7850 = vmatpush1.msra.mxu0 0.0
        %7851 = vmatprep.subr.mxu0 0.0
        %7852 = vmatpush1.msra.mxu0 0.0
        %7853 = vmatprep.subr.mxu0 0.0
        %7854 = vmatpush1.msra.mxu0 0.0
        %7855 = vmatprep.subr.mxu0 0.0
        %7856 = vmatpush1.msra.mxu0 0.0
        %7857 = vmatprep.subr.mxu0 0.0
        %7858 = vmatpush1.msra.mxu0 0.0
        %7859 = vmatprep.subr.mxu0 0.0
        %7860 = vmatpush1.msra.mxu0 0.0
        %7861 = vmatprep.subr.mxu0 0.0
        %7862 = vmatpush1.msra.mxu0 0.0
        %7863 = vmatprep.subr.mxu0 0.0
        %7864 = vmatpush1.msra.mxu0 0.0
        %7865 = vmatprep.subr.mxu0 0.0
        %7866 = vmatpush1.msra.mxu0 0.0
        %7867 = vmatprep.subr.mxu0 0.0
        %7868 = vmatpush1.msra.mxu0 0.0
        %7869 = vmatprep.subr.mxu0 0.0
        %7870 = vmatpush1.msra.mxu0 0.0
        %7871 = vmatprep.subr.mxu0 0.0
        %7872 = vmatpush1.msra.mxu0 0.0
        %7873 = vmatprep.subr.mxu0 0.0
        %7874 = vmatpush1.msra.mxu0 0.0
        %7875 = vmatprep.subr.mxu0 0.0
        %7876 = vmatpush1.msra.mxu0 0.0
        %7877 = vmatprep.subr.mxu0 0.0
        %7878 = vmatpush1.msra.mxu0 0.0
        %7879 = vmatprep.subr.mxu0 0.0
        %7880 = vmatpush1.msra.mxu0 0.0
        %7881 = vmatprep.subr.mxu0 0.0
        %7882 = vmatpush1.msra.mxu0 0.0
        %7883 = vmatprep.subr.mxu0 0.0
        %7884 = vmatpush1.msra.mxu0 0.0
        %7885 = vmatprep.subr.mxu0 0.0
        %7886 = vmatpush1.msra.mxu0 0.0
        %7887 = vmatprep.subr.mxu0 0.0
        %7888 = vmatpush1.msra.mxu0 0.0
        %7889 = vmatprep.subr.mxu0 0.0
        %7890 = vmatpush1.msra.mxu0 0.0
        %7891 = vmatprep.subr.mxu0 0.0
        %7892 = vmatpush1.msra.mxu0 0.0
        %7893 = vmatprep.subr.mxu0 0.0
        %7894 = vmatpush1.msra.mxu0 0.0
        %7895 = vmatprep.subr.mxu0 0.0
        %7896 = vmatpush1.msra.mxu0 0.0
        %7897 = vmatprep.subr.mxu0 0.0
        %7898 = vmatpush1.msra.mxu0 0.0
        %7899 = vmatprep.subr.mxu0 0.0
        %7900 = vmatpush1.msra.mxu0 0.0
        %7901 = vmatprep.mubr.f32.mxu0 0.0
        %7902 = vmatmul.mubr.f32.gmra.mrb[0].mxu0 %v7835
        %v7903 = vpop.f32.mrb[0].mxu0
        %v7904 = vadd.f32 0.0, %v7903
        %v7905 = vpop.f32.mrb[0].mxu0
        %7906 = vdwg.mxu0
        %v7907 = vadd.f32 %v7832, %v7904
        %v7908 = vld [vmem:[#allocation2 + $0x2] sm:$0x1]
        %v7910 = vsel %vm2327, %v7908, 0
        %7912 = vmatprep.subr.mxu0 0.0
        %7913 = vmatpush1.msra.mxu0 %v2236
        %7914 = vmatprep.subr.mxu0 0.0
        %7915 = vmatpush1.msra.mxu0 %v2237
        %7916 = vmatprep.subr.mxu0 0.0
        %7917 = vmatpush1.msra.mxu0 %v2238
        %7918 = vmatprep.subr.mxu0 0.0
        %7919 = vmatpush1.msra.mxu0 %v2239
        %7920 = vmatprep.subr.mxu0 0.0
        %7921 = vmatpush1.msra.mxu0 0.0
        %7922 = vmatprep.subr.mxu0 0.0
        %7923 = vmatpush1.msra.mxu0 0.0
        %7924 = vmatprep.subr.mxu0 0.0
        %7925 = vmatpush1.msra.mxu0 0.0
        %7926 = vmatprep.subr.mxu0 0.0
        %7927 = vmatpush1.msra.mxu0 0.0
        %7928 = vmatprep.subr.mxu0 0.0
        %7929 = vmatpush1.msra.mxu0 0.0
        %7930 = vmatprep.subr.mxu0 0.0
        %7931 = vmatpush1.msra.mxu0 0.0
        %7932 = vmatprep.subr.mxu0 0.0
        %7933 = vmatpush1.msra.mxu0 0.0
        %7934 = vmatprep.subr.mxu0 0.0
        %7935 = vmatpush1.msra.mxu0 0.0
        %7936 = vmatprep.subr.mxu0 0.0
        %7937 = vmatpush1.msra.mxu0 0.0
        %7938 = vmatprep.subr.mxu0 0.0
        %7939 = vmatpush1.msra.mxu0 0.0
        %7940 = vmatprep.subr.mxu0 0.0
        %7941 = vmatpush1.msra.mxu0 0.0
        %7942 = vmatprep.subr.mxu0 0.0
        %7943 = vmatpush1.msra.mxu0 0.0
        %7944 = vmatprep.subr.mxu0 0.0
        %7945 = vmatpush1.msra.mxu0 0.0
        %7946 = vmatprep.subr.mxu0 0.0
        %7947 = vmatpush1.msra.mxu0 0.0
        %7948 = vmatprep.subr.mxu0 0.0
        %7949 = vmatpush1.msra.mxu0 0.0
        %7950 = vmatprep.subr.mxu0 0.0
        %7951 = vmatpush1.msra.mxu0 0.0
        %7952 = vmatprep.subr.mxu0 0.0
        %7953 = vmatpush1.msra.mxu0 0.0
        %7954 = vmatprep.subr.mxu0 0.0
        %7955 = vmatpush1.msra.mxu0 0.0
        %7956 = vmatprep.subr.mxu0 0.0
        %7957 = vmatpush1.msra.mxu0 0.0
        %7958 = vmatprep.subr.mxu0 0.0
        %7959 = vmatpush1.msra.mxu0 0.0
        %7960 = vmatprep.subr.mxu0 0.0
        %7961 = vmatpush1.msra.mxu0 0.0
        %7962 = vmatprep.subr.mxu0 0.0
        %7963 = vmatpush1.msra.mxu0 0.0
        %7964 = vmatprep.subr.mxu0 0.0
        %7965 = vmatpush1.msra.mxu0 0.0
        %7966 = vmatprep.subr.mxu0 0.0
        %7967 = vmatpush1.msra.mxu0 0.0
        %7968 = vmatprep.subr.mxu0 0.0
        %7969 = vmatpush1.msra.mxu0 0.0
        %7970 = vmatprep.subr.mxu0 0.0
        %7971 = vmatpush1.msra.mxu0 0.0
        %7972 = vmatprep.subr.mxu0 0.0
        %7973 = vmatpush1.msra.mxu0 0.0
        %7974 = vmatprep.subr.mxu0 0.0
        %7975 = vmatpush1.msra.mxu0 0.0
        %7976 = vmatprep.mubr.f32.mxu0 0.0
        %7977 = vmatmul.mubr.f32.gmra.mrb[0].mxu0 %v7910
        %v7978 = vpop.f32.mrb[0].mxu0
        %v7979 = vadd.f32 0.0, %v7978
        %v7980 = vpop.f32.mrb[0].mxu0
        %7981 = vdwg.mxu0
        %v7982 = vadd.f32 %v7907, %v7979
        %v7983 = vld [vmem:[#allocation2 + $0x3] sm:$0x1]
        %v7985 = vsel %vm2327, %v7983, 0
        %7987 = vmatprep.subr.mxu0 0.0
        %7988 = vmatpush1.msra.mxu0 %v2240
        %7989 = vmatprep.subr.mxu0 0.0
        %7990 = vmatpush1.msra.mxu0 %v2241
        %7991 = vmatprep.subr.mxu0 0.0
        %7992 = vmatpush1.msra.mxu0 %v2242
        %7993 = vmatprep.subr.mxu0 0.0
        %7994 = vmatpush1.msra.mxu0 %v2243
        %7995 = vmatprep.subr.mxu0 0.0
        %7996 = vmatpush1.msra.mxu0 0.0
        %7997 = vmatprep.subr.mxu0 0.0
        %7998 = vmatpush1.msra.mxu0 0.0
        %7999 = vmatprep.subr.mxu0 0.0
        %8000 = vmatpush1.msra.mxu0 0.0
        %8001 = vmatprep.subr.mxu0 0.0
        %8002 = vmatpush1.msra.mxu0 0.0
        %8003 = vmatprep.subr.mxu0 0.0
        %8004 = vmatpush1.msra.mxu0 0.0
        %8005 = vmatprep.subr.mxu0 0.0
        %8006 = vmatpush1.msra.mxu0 0.0
        %8007 = vmatprep.subr.mxu0 0.0
        %8008 = vmatpush1.msra.mxu0 0.0
        %8009 = vmatprep.subr.mxu0 0.0
        %8010 = vmatpush1.msra.mxu0 0.0
        %8011 = vmatprep.subr.mxu0 0.0
        %8012 = vmatpush1.msra.mxu0 0.0
        %8013 = vmatprep.subr.mxu0 0.0
        %8014 = vmatpush1.msra.mxu0 0.0
        %8015 = vmatprep.subr.mxu0 0.0
        %8016 = vmatpush1.msra.mxu0 0.0
        %8017 = vmatprep.subr.mxu0 0.0
        %8018 = vmatpush1.msra.mxu0 0.0
        %8019 = vmatprep.subr.mxu0 0.0
        %8020 = vmatpush1.msra.mxu0 0.0
        %8021 = vmatprep.subr.mxu0 0.0
        %8022 = vmatpush1.msra.mxu0 0.0
        %8023 = vmatprep.subr.mxu0 0.0
        %8024 = vmatpush1.msra.mxu0 0.0
        %8025 = vmatprep.subr.mxu0 0.0
        %8026 = vmatpush1.msra.mxu0 0.0
        %8027 = vmatprep.subr.mxu0 0.0
        %8028 = vmatpush1.msra.mxu0 0.0
        %8029 = vmatprep.subr.mxu0 0.0
        %8030 = vmatpush1.msra.mxu0 0.0
        %8031 = vmatprep.subr.mxu0 0.0
        %8032 = vmatpush1.msra.mxu0 0.0
        %8033 = vmatprep.subr.mxu0 0.0
        %8034 = vmatpush1.msra.mxu0 0.0
        %8035 = vmatprep.subr.mxu0 0.0
        %8036 = vmatpush1.msra.mxu0 0.0
        %8037 = vmatprep.subr.mxu0 0.0
        %8038 = vmatpush1.msra.mxu0 0.0
        %8039 = vmatprep.subr.mxu0 0.0
        %8040 = vmatpush1.msra.mxu0 0.0
        %8041 = vmatprep.subr.mxu0 0.0
        %8042 = vmatpush1.msra.mxu0 0.0
        %8043 = vmatprep.subr.mxu0 0.0
        %8044 = vmatpush1.msra.mxu0 0.0
        %8045 = vmatprep.subr.mxu0 0.0
        %8046 = vmatpush1.msra.mxu0 0.0
        %8047 = vmatprep.subr.mxu0 0.0
        %8048 = vmatpush1.msra.mxu0 0.0
        %8049 = vmatprep.subr.mxu0 0.0
        %8050 = vmatpush1.msra.mxu0 0.0
        %8051 = vmatprep.mubr.f32.mxu0 0.0
        %8052 = vmatmul.mubr.f32.gmra.mrb[0].mxu0 %v7985
        %v8053 = vpop.f32.mrb[0].mxu0
        %v8054 = vadd.f32 0.0, %v8053
        %v8055 = vpop.f32.mrb[0].mxu0
        %8056 = vdwg.mxu0
        %v8057 = vadd.f32 %v7982, %v8054
        %v8058 = vld [vmem:[#allocation2 + $0x4] sm:$0x1]
        %v8060 = vsel %vm2327, %v8058, 0
        %8062 = vmatprep.subr.mxu0 0.0
        %8063 = vmatpush1.msra.mxu0 %v2244
        %8064 = vmatprep.subr.mxu0 0.0
        %8065 = vmatpush1.msra.mxu0 %v2245
        %8066 = vmatprep.subr.mxu0 0.0
        %8067 = vmatpush1.msra.mxu0 %v2246
        %8068 = vmatprep.subr.mxu0 0.0
        %8069 = vmatpush1.msra.mxu0 %v2247
        %8070 = vmatprep.subr.mxu0 0.0
        %8071 = vmatpush1.msra.mxu0 0.0
        %8072 = vmatprep.subr.mxu0 0.0
        %8073 = vmatpush1.msra.mxu0 0.0
        %8074 = vmatprep.subr.mxu0 0.0
        %8075 = vmatpush1.msra.mxu0 0.0
        %8076 = vmatprep.subr.mxu0 0.0
        %8077 = vmatpush1.msra.mxu0 0.0
        %8078 = vmatprep.subr.mxu0 0.0
        %8079 = vmatpush1.msra.mxu0 0.0
        %8080 = vmatprep.subr.mxu0 0.0
        %8081 = vmatpush1.msra.mxu0 0.0
        %8082 = vmatprep.subr.mxu0 0.0
        %8083 = vmatpush1.msra.mxu0 0.0
        %8084 = vmatprep.subr.mxu0 0.0
        %8085 = vmatpush1.msra.mxu0 0.0
        %8086 = vmatprep.subr.mxu0 0.0
        %8087 = vmatpush1.msra.mxu0 0.0
        %8088 = vmatprep.subr.mxu0 0.0
        %8089 = vmatpush1.msra.mxu0 0.0
        %8090 = vmatprep.subr.mxu0 0.0
        %8091 = vmatpush1.msra.mxu0 0.0
        %8092 = vmatprep.subr.mxu0 0.0
        %8093 = vmatpush1.msra.mxu0 0.0
        %8094 = vmatprep.subr.mxu0 0.0
        %8095 = vmatpush1.msra.mxu0 0.0
        %8096 = vmatprep.subr.mxu0 0.0
        %8097 = vmatpush1.msra.mxu0 0.0
        %8098 = vmatprep.subr.mxu0 0.0
        %8099 = vmatpush1.msra.mxu0 0.0
        %8100 = vmatprep.subr.mxu0 0.0
        %8101 = vmatpush1.msra.mxu0 0.0
        %8102 = vmatprep.subr.mxu0 0.0
        %8103 = vmatpush1.msra.mxu0 0.0
        %8104 = vmatprep.subr.mxu0 0.0
        %8105 = vmatpush1.msra.mxu0 0.0
        %8106 = vmatprep.subr.mxu0 0.0
        %8107 = vmatpush1.msra.mxu0 0.0
        %8108 = vmatprep.subr.mxu0 0.0
        %8109 = vmatpush1.msra.mxu0 0.0
        %8110 = vmatprep.subr.mxu0 0.0
        %8111 = vmatpush1.msra.mxu0 0.0
        %8112 = vmatprep.subr.mxu0 0.0
        %8113 = vmatpush1.msra.mxu0 0.0
        %8114 = vmatprep.subr.mxu0 0.0
        %8115 = vmatpush1.msra.mxu0 0.0
        %8116 = vmatprep.subr.mxu0 0.0
        %8117 = vmatpush1.msra.mxu0 0.0
        %8118 = vmatprep.subr.mxu0 0.0
        %8119 = vmatpush1.msra.mxu0 0.0
        %8120 = vmatprep.subr.mxu0 0.0
        %8121 = vmatpush1.msra.mxu0 0.0
        %8122 = vmatprep.subr.mxu0 0.0
        %8123 = vmatpush1.msra.mxu0 0.0
        %8124 = vmatprep.subr.mxu0 0.0
        %8125 = vmatpush1.msra.mxu0 0.0
        %8126 = vmatprep.mubr.f32.mxu0 0.0
        %8127 = vmatmul.mubr.f32.gmra.mrb[0].mxu0 %v8060
        %v8128 = vpop.f32.mrb[0].mxu0
        %v8129 = vadd.f32 0.0, %v8128
        %v8130 = vpop.f32.mrb[0].mxu0
        %8131 = vdwg.mxu0
        %v8132 = vadd.f32 %v8057, %v8129
        %v8133 = vld [vmem:[#allocation2 + $0x5] sm:$0x1]
        %v8135 = vsel %vm2327, %v8133, 0
        %8137 = vmatprep.subr.mxu0 0.0
        %8138 = vmatpush1.msra.mxu0 %v2248
        %8139 = vmatprep.subr.mxu0 0.0
        %8140 = vmatpush1.msra.mxu0 %v2249
        %8141 = vmatprep.subr.mxu0 0.0
        %8142 = vmatpush1.msra.mxu0 %v2250
        %8143 = vmatprep.subr.mxu0 0.0
        %8144 = vmatpush1.msra.mxu0 %v2251
        %8145 = vmatprep.subr.mxu0 0.0
        %8146 = vmatpush1.msra.mxu0 0.0
        %8147 = vmatprep.subr.mxu0 0.0
        %8148 = vmatpush1.msra.mxu0 0.0
        %8149 = vmatprep.subr.mxu0 0.0
        %8150 = vmatpush1.msra.mxu0 0.0
        %8151 = vmatprep.subr.mxu0 0.0
        %8152 = vmatpush1.msra.mxu0 0.0
        %8153 = vmatprep.subr.mxu0 0.0
        %8154 = vmatpush1.msra.mxu0 0.0
        %8155 = vmatprep.subr.mxu0 0.0
        %8156 = vmatpush1.msra.mxu0 0.0
        %8157 = vmatprep.subr.mxu0 0.0
        %8158 = vmatpush1.msra.mxu0 0.0
        %8159 = vmatprep.subr.mxu0 0.0
        %8160 = vmatpush1.msra.mxu0 0.0
        %8161 = vmatprep.subr.mxu0 0.0
        %8162 = vmatpush1.msra.mxu0 0.0
        %8163 = vmatprep.subr.mxu0 0.0
        %8164 = vmatpush1.msra.mxu0 0.0
        %8165 = vmatprep.subr.mxu0 0.0
        %8166 = vmatpush1.msra.mxu0 0.0
        %8167 = vmatprep.subr.mxu0 0.0
        %8168 = vmatpush1.msra.mxu0 0.0
        %8169 = vmatprep.subr.mxu0 0.0
        %8170 = vmatpush1.msra.mxu0 0.0
        %8171 = vmatprep.subr.mxu0 0.0
        %8172 = vmatpush1.msra.mxu0 0.0
        %8173 = vmatprep.subr.mxu0 0.0
        %8174 = vmatpush1.msra.mxu0 0.0
        %8175 = vmatprep.subr.mxu0 0.0
        %8176 = vmatpush1.msra.mxu0 0.0
        %8177 = vmatprep.subr.mxu0 0.0
        %8178 = vmatpush1.msra.mxu0 0.0
        %8179 = vmatprep.subr.mxu0 0.0
        %8180 = vmatpush1.msra.mxu0 0.0
        %8181 = vmatprep.subr.mxu0 0.0
        %8182 = vmatpush1.msra.mxu0 0.0
        %8183 = vmatprep.subr.mxu0 0.0
        %8184 = vmatpush1.msra.mxu0 0.0
        %8185 = vmatprep.subr.mxu0 0.0
        %8186 = vmatpush1.msra.mxu0 0.0
        %8187 = vmatprep.subr.mxu0 0.0
        %8188 = vmatpush1.msra.mxu0 0.0
        %8189 = vmatprep.subr.mxu0 0.0
        %8190 = vmatpush1.msra.mxu0 0.0
        %8191 = vmatprep.subr.mxu0 0.0
        %8192 = vmatpush1.msra.mxu0 0.0
        %8193 = vmatprep.subr.mxu0 0.0
        %8194 = vmatpush1.msra.mxu0 0.0
        %8195 = vmatprep.subr.mxu0 0.0
        %8196 = vmatpush1.msra.mxu0 0.0
        %8197 = vmatprep.subr.mxu0 0.0
        %8198 = vmatpush1.msra.mxu0 0.0
        %8199 = vmatprep.subr.mxu0 0.0
        %8200 = vmatpush1.msra.mxu0 0.0
        %8201 = vmatprep.mubr.f32.mxu0 0.0
        %8202 = vmatmul.mubr.f32.gmra.mrb[0].mxu0 %v8135
        %v8203 = vpop.f32.mrb[0].mxu0
        %v8204 = vadd.f32 0.0, %v8203
        %v8205 = vpop.f32.mrb[0].mxu0
        %8206 = vdwg.mxu0
        %v8207 = vadd.f32 %v8132, %v8204
        %v8208 = vld [vmem:[#allocation2 + $0x6] sm:$0x1]
        %v8210 = vsel %vm2327, %v8208, 0
        %8212 = vmatprep.subr.mxu0 0.0
        %8213 = vmatpush1.msra.mxu0 %v2252
        %8214 = vmatprep.subr.mxu0 0.0
        %8215 = vmatpush1.msra.mxu0 %v2253
        %8216 = vmatprep.subr.mxu0 0.0
        %8217 = vmatpush1.msra.mxu0 %v2254
        %8218 = vmatprep.subr.mxu0 0.0
        %8219 = vmatpush1.msra.mxu0 %v2255
        %8220 = vmatprep.subr.mxu0 0.0
        %8221 = vmatpush1.msra.mxu0 0.0
        %8222 = vmatprep.subr.mxu0 0.0
        %8223 = vmatpush1.msra.mxu0 0.0
        %8224 = vmatprep.subr.mxu0 0.0
        %8225 = vmatpush1.msra.mxu0 0.0
        %8226 = vmatprep.subr.mxu0 0.0
        %8227 = vmatpush1.msra.mxu0 0.0
        %8228 = vmatprep.subr.mxu0 0.0
        %8229 = vmatpush1.msra.mxu0 0.0
        %8230 = vmatprep.subr.mxu0 0.0
        %8231 = vmatpush1.msra.mxu0 0.0
        %8232 = vmatprep.subr.mxu0 0.0
        %8233 = vmatpush1.msra.mxu0 0.0
        %8234 = vmatprep.subr.mxu0 0.0
        %8235 = vmatpush1.msra.mxu0 0.0
        %8236 = vmatprep.subr.mxu0 0.0
        %8237 = vmatpush1.msra.mxu0 0.0
        %8238 = vmatprep.subr.mxu0 0.0
        %8239 = vmatpush1.msra.mxu0 0.0
        %8240 = vmatprep.subr.mxu0 0.0
        %8241 = vmatpush1.msra.mxu0 0.0
        %8242 = vmatprep.subr.mxu0 0.0
        %8243 = vmatpush1.msra.mxu0 0.0
        %8244 = vmatprep.subr.mxu0 0.0
        %8245 = vmatpush1.msra.mxu0 0.0
        %8246 = vmatprep.subr.mxu0 0.0
        %8247 = vmatpush1.msra.mxu0 0.0
        %8248 = vmatprep.subr.mxu0 0.0
        %8249 = vmatpush1.msra.mxu0 0.0
        %8250 = vmatprep.subr.mxu0 0.0
        %8251 = vmatpush1.msra.mxu0 0.0
        %8252 = vmatprep.subr.mxu0 0.0
        %8253 = vmatpush1.msra.mxu0 0.0
        %8254 = vmatprep.subr.mxu0 0.0
        %8255 = vmatpush1.msra.mxu0 0.0
        %8256 = vmatprep.subr.mxu0 0.0
        %8257 = vmatpush1.msra.mxu0 0.0
        %8258 = vmatprep.subr.mxu0 0.0
        %8259 = vmatpush1.msra.mxu0 0.0
        %8260 = vmatprep.subr.mxu0 0.0
        %8261 = vmatpush1.msra.mxu0 0.0
        %8262 = vmatprep.subr.mxu0 0.0
        %8263 = vmatpush1.msra.mxu0 0.0
        %8264 = vmatprep.subr.mxu0 0.0
        %8265 = vmatpush1.msra.mxu0 0.0
        %8266 = vmatprep.subr.mxu0 0.0
        %8267 = vmatpush1.msra.mxu0 0.0
        %8268 = vmatprep.subr.mxu0 0.0
        %8269 = vmatpush1.msra.mxu0 0.0
        %8270 = vmatprep.subr.mxu0 0.0
        %8271 = vmatpush1.msra.mxu0 0.0
        %8272 = vmatprep.subr.mxu0 0.0
        %8273 = vmatpush1.msra.mxu0 0.0
        %8274 = vmatprep.subr.mxu0 0.0
        %8275 = vmatpush1.msra.mxu0 0.0
        %8276 = vmatprep.mubr.f32.mxu0 0.0
        %8277 = vmatmul.mubr.f32.gmra.mrb[0].mxu0 %v8210
        %v8278 = vpop.f32.mrb[0].mxu0
        %v8279 = vadd.f32 0.0, %v8278
        %v8280 = vpop.f32.mrb[0].mxu0
        %8281 = vdwg.mxu0
        %v8282 = vadd.f32 %v8207, %v8279
        %v8283 = vld [vmem:[#allocation2 + $0x7] sm:$0x1]
        %v8285 = vsel %vm2327, %v8283, 0
        %8287 = vmatprep.subr.mxu0 0.0
        %8288 = vmatpush1.msra.mxu0 %v2256
        %8289 = vmatprep.subr.mxu0 0.0
        %8290 = vmatpush1.msra.mxu0 %v2257
        %8291 = vmatprep.subr.mxu0 0.0
        %8292 = vmatpush1.msra.mxu0 %v2258
        %8293 = vmatprep.subr.mxu0 0.0
        %8294 = vmatpush1.msra.mxu0 %v2259
        %8295 = vmatprep.subr.mxu0 0.0
        %8296 = vmatpush1.msra.mxu0 0.0
        %8297 = vmatprep.subr.mxu0 0.0
        %8298 = vmatpush1.msra.mxu0 0.0
        %8299 = vmatprep.subr.mxu0 0.0
        %8300 = vmatpush1.msra.mxu0 0.0
        %8301 = vmatprep.subr.mxu0 0.0
        %8302 = vmatpush1.msra.mxu0 0.0
        %8303 = vmatprep.subr.mxu0 0.0
        %8304 = vmatpush1.msra.mxu0 0.0
        %8305 = vmatprep.subr.mxu0 0.0
        %8306 = vmatpush1.msra.mxu0 0.0
        %8307 = vmatprep.subr.mxu0 0.0
        %8308 = vmatpush1.msra.mxu0 0.0
        %8309 = vmatprep.subr.mxu0 0.0
        %8310 = vmatpush1.msra.mxu0 0.0
        %8311 = vmatprep.subr.mxu0 0.0
        %8312 = vmatpush1.msra.mxu0 0.0
        %8313 = vmatprep.subr.mxu0 0.0
        %8314 = vmatpush1.msra.mxu0 0.0
        %8315 = vmatprep.subr.mxu0 0.0
        %8316 = vmatpush1.msra.mxu0 0.0
        %8317 = vmatprep.subr.mxu0 0.0
        %8318 = vmatpush1.msra.mxu0 0.0
        %8319 = vmatprep.subr.mxu0 0.0
        %8320 = vmatpush1.msra.mxu0 0.0
        %8321 = vmatprep.subr.mxu0 0.0
        %8322 = vmatpush1.msra.mxu0 0.0
        %8323 = vmatprep.subr.mxu0 0.0
        %8324 = vmatpush1.msra.mxu0 0.0
        %8325 = vmatprep.subr.mxu0 0.0
        %8326 = vmatpush1.msra.mxu0 0.0
        %8327 = vmatprep.subr.mxu0 0.0
        %8328 = vmatpush1.msra.mxu0 0.0
        %8329 = vmatprep.subr.mxu0 0.0
        %8330 = vmatpush1.msra.mxu0 0.0
        %8331 = vmatprep.subr.mxu0 0.0
        %8332 = vmatpush1.msra.mxu0 0.0
        %8333 = vmatprep.subr.mxu0 0.0
        %8334 = vmatpush1.msra.mxu0 0.0
        %8335 = vmatprep.subr.mxu0 0.0
        %8336 = vmatpush1.msra.mxu0 0.0
        %8337 = vmatprep.subr.mxu0 0.0
        %8338 = vmatpush1.msra.mxu0 0.0
        %8339 = vmatprep.subr.mxu0 0.0
        %8340 = vmatpush1.msra.mxu0 0.0
        %8341 = vmatprep.subr.mxu0 0.0
        %8342 = vmatpush1.msra.mxu0 0.0
        %8343 = vmatprep.subr.mxu0 0.0
        %8344 = vmatpush1.msra.mxu0 0.0
        %8345 = vmatprep.subr.mxu0 0.0
        %8346 = vmatpush1.msra.mxu0 0.0
        %8347 = vmatprep.subr.mxu0 0.0
        %8348 = vmatpush1.msra.mxu0 0.0
        %8349 = vmatprep.subr.mxu0 0.0
        %8350 = vmatpush1.msra.mxu0 0.0
        %8351 = vmatprep.mubr.f32.mxu0 0.0
        %8352 = vmatmul.mubr.f32.gmra.mrb[0].mxu0 %v8285
        %v8353 = vpop.f32.mrb[0].mxu0
        %v8354 = vadd.f32 0.0, %v8353
        %v8355 = vpop.f32.mrb[0].mxu0
        %8356 = vdwg.mxu0
        %v8357 = vadd.f32 %v8282, %v8354
        %vm8358 = vcmask 163840
        %8359 = vst.msk [vmem:[%s2121] sm:$0x1] %vm8358, %v8357
        %s8360 = sand.u32 %s1559, 1
        %s8361 = scalar_lea.sflag [#allocation5], %s8360
        %s8362 = sand.u32 %s1559, 1
        %s8363 = scalar_lea.vmem [#allocation26], %s8362
        // Predicated region
        $region341: #{sparse_sync_forward.1} parent=283 // pred_check
          %p8364 = pneg %p1569
        $region342: #{sparse_sync_forward.1} parent=283 // pred_check_branch
          %8366 = sbr.rel (%p8364) target = $region344
        $region343: #{sparse_sync_forward.1} parent=283 // pred_region
          %s8368 = ssub.s32 16, 16
          %8369 = vsyncadd %s8361, %s8368
          %s8370 = smul.addr %s155, 16
          %s8371 = scalar_lea.hbm %s133, %s8370
          %s8373 = sshll.u32 %s8363, 4
          %s8374 = int_to_ptr.vmem [resolvable:$true] %s8373
          %8376 = dma.vmem_to_hbm [thread:$0]  %s8374, 16, %s8371, %s8361
        $region344: #{sparse_sync_forward.1} parent=283 // pred_fallthru
          _
      $region284: #{sparse_sync_forward.1} parent=5 // pred_fallthru
        _
      %p8377 = scmp.le.s32.totalorder 2, %s150
      // Predicated region
      $region345: #{sparse_sync_forward.1} parent=5 // pred_check
        %p8378 = pneg %p8377
      $region346: #{sparse_sync_forward.1} parent=5 // pred_check_branch
        %8380 = sbr.rel (%p8378) target = $region348
      $region347: #{sparse_sync_forward.1} parent=5 // pred_region
        %s8381 = ssub.s32 %s150, 2
        // Predicated region
        $region349: #{sparse_sync_forward.1} parent=347 // pred_check
          %p8382 = pneg %p1575
        $region350: #{sparse_sync_forward.1} parent=347 // pred_check_branch
          %8384 = sbr.rel (%p8382) target = $region352
        $region351: #{sparse_sync_forward.1} parent=347 // pred_region
          %s8385 = sand.u32 %s1560, 1
          %s8386 = scalar_lea.sflag [#allocation5], %s8385
          %s8387 = sand.u32 %s1560, 1
          %s8388 = scalar_lea.vmem [#allocation26], %s8387
          %8389 = dma.done %s8386, 16
        $region352: #{sparse_sync_forward.1} parent=347 // pred_fallthru
          _
      $region348: #{sparse_sync_forward.1} parent=5 // pred_fallthru
        _
    $region6: #{sparse_sync_forward.1} parent=1 // loop_footer
      %s154 = sadd.s32 1, %s150
    $region7: #{sparse_sync_forward.1} parent=1 // loop_footer_branch
      %149 = sbr.rel target = $region3
    $region8: #{sparse_sync_forward.1} parent=1 // loop_exit
      _
    %8390 = vsyncpa [#allocation4], 1
    %s8391 = scalar_lea.sflag [#allocation4], 1
    %8392 = vsyncpa %s8391, 1
    %8393 = vsyncpa [#allocation7], 1
    %8394 = vsyncpa [#allocation10], 1
    %8395 = vsyncpa [#allocation13], 1
    %8396 = vsyncpa [#allocation16], 1
    %8397 = vsyncpa [#allocation19], 1
    %8398 = vsyncpa [#allocation22], 1
    %8399 = vsyncpa [#allocation25], 1
    %8400 = vsyncpa [#allocation5], 1
    %s8401 = scalar_lea.sflag [#allocation5], 1
    %8402 = vsyncpa %s8401, 1

</llo_original>
